<compile_context>
chip_gen: v7x
topology: tpu7x:2x2x1
jax: 0.10.0
libtpu: 0.0.40
codegen_flags: <defaults>
</compile_context>

<pallas_src>
import math
import functools

import jax
import jax.numpy as jnp
from jax import lax
from jax.experimental import pallas as pl
from jax.experimental.pallas import tpu as pltpu

# ----------------------------- config (tiny, lane-dense) ---------------------
VOCAB = 256
D_MODEL = 128
N_HEADS = 4
HEAD_DIM = D_MODEL // N_HEADS        # 32
HALF = HEAD_DIM // 2                 # 16
D_FF = 256
N_LAYERS = 2
EPS = 1e-6
ROPE_THETA = 10000.0
NEG_INF = -1e30


# ----------------------------- in-kernel helpers ------------------------------
def _rmsnorm(x, w):
    var = jnp.mean(x * x, axis=-1, keepdims=True)
    return x * lax.rsqrt(var + EPS) * w


# ----------------------------- fused per-layer kernel (gridded over layers) ---
def _layers_kernel(B, S, h0_ref, bias_ref, cos_ref, sins_ref,
                   an_ref, wqkv_ref, bqkv_ref, wo_ref,
                   mn_ref, wgu_ref, wd_ref, h_ref):
    l = pl.program_id(0)

    @pl.when(l == 0)
    def _():
        h_ref[...] = h0_ref[...]          # h stays resident in VMEM across layers

    x = h_ref[...]                        # (B*S, D) f32

    # ---------------- attention ----------------
    xn = _rmsnorm(x, an_ref[0]).astype(jnp.bfloat16)
    qkv = jnp.dot(xn, wqkv_ref[0], preferred_element_type=jnp.float32) + bqkv_ref[0]
    q = qkv[:, :D_MODEL]
    k = qkv[:, D_MODEL:2 * D_MODEL]
    v = qkv[:, 2 * D_MODEL:]

    # RoPE, lane dense: Wq/Wk columns pre-permuted so all heads' first halves sit
    # in lanes [0,64) and second halves in [64,128); rotate_half == roll by 64
    # with the sign folded into the pre-tiled sin table ("sins").
    cos = cos_ref[...]                    # (B*S, 128)
    sins = sins_ref[...]                  # (B*S, 128), first 64 lanes negated
    q = q * cos + pltpu.roll(q, shift=D_MODEL // 2, axis=1) * sins
    k = k * cos + pltpu.roll(k, shift=D_MODEL // 2, axis=1) * sins

    # scores via head-grouped 3-D einsum (single batch dim = B*2*H groups of 16)
    G = 2 * N_HEADS
    scale = 1.0 / math.sqrt(HEAD_DIM)

    def to_groups(t):                     # (B*S,128) -> (B*G, S, 16), n = b*G + g
        return t.reshape(B, S, G, HALF).transpose(0, 2, 1, 3).reshape(B * G, S, HALF)

    qg = to_groups(q)
    kg = to_groups(k)
    sg = jnp.einsum("nqd,nkd->nqk", qg, kg,
                    preferred_element_type=jnp.float32)          # (B*G, S, S)
    sg = sg.reshape(B, 2, N_HEADS, S, S)
    scores = (sg[:, 0] + sg[:, 1]) * scale                        # (B, H, S, S)
    scores = scores + bias_ref[...][:, None, :, :]                # causal+pad bias

    m = jnp.max(scores, axis=-1, keepdims=True)
    p = jnp.exp(scores - m)
    p = p * pl.reciprocal(jnp.sum(p, axis=-1, keepdims=True), approx=True)

    # p @ v with head as the single batch dim; v kept in the original head layout
    vg = (v.reshape(B, S, N_HEADS, HEAD_DIM).transpose(0, 2, 1, 3)
           .reshape(B * N_HEADS, S, HEAD_DIM))                    # (B*H, S, Dh)
    pf = p.reshape(B * N_HEADS, S, S)
    ctx = jnp.einsum("nqk,nkd->nqd", pf, vg,
                     preferred_element_type=jnp.float32)          # (B*H, S, Dh)
    ctx = (ctx.reshape(B, N_HEADS, S, HEAD_DIM).transpose(0, 2, 1, 3)
              .reshape(B * S, D_MODEL))

    x = x + jnp.dot(ctx.astype(jnp.bfloat16), wo_ref[0],
                    preferred_element_type=jnp.float32)           # fused residual

    # ---------------- MLP (SwiGLU) ----------------
    xn2 = _rmsnorm(x, mn_ref[0]).astype(jnp.bfloat16)
    gu = jnp.dot(xn2, wgu_ref[0], preferred_element_type=jnp.float32)  # (B*S, 2F)
    g = gu[:, :D_FF]
    u = gu[:, D_FF:]
    mid = (g * jax.nn.sigmoid(g)) * u                             # f32 (v5e-safe)
    x = x + jnp.dot(mid.astype(jnp.bfloat16), wd_ref[0],
                    preferred_element_type=jnp.float32)           # fused residual

    h_ref[...] = x


def run_layers(h0, bias3, cosr, sinr, lp, B, S):
    rows = B * S
    grid_spec = pltpu.PrefetchScalarGridSpec(
        num_scalar_prefetch=0,
        grid=(N_LAYERS,),
        in_specs=[
            pl.BlockSpec((rows, D_MODEL), lambda l: (0, 0)),             # h0
            pl.BlockSpec((B, S, S), lambda l: (0, 0, 0)),                # mask bias
            pl.BlockSpec((rows, D_MODEL), lambda l: (0, 0)),             # cos
            pl.BlockSpec((rows, D_MODEL), lambda l: (0, 0)),             # signed sin
            pl.BlockSpec((1, 1, D_MODEL), lambda l: (l, 0, 0)),          # attn_norm
            pl.BlockSpec((1, D_MODEL, 3 * D_MODEL), lambda l: (l, 0, 0)),  # wqkv
            pl.BlockSpec((1, 1, 3 * D_MODEL), lambda l: (l, 0, 0)),      # bqkv
            pl.BlockSpec((1, D_MODEL, D_MODEL), lambda l: (l, 0, 0)),    # wo
            pl.BlockSpec((1, 1, D_MODEL), lambda l: (l, 0, 0)),          # mlp_norm
            pl.BlockSpec((1, D_MODEL, 2 * D_FF), lambda l: (l, 0, 0)),   # w_gate_up
            pl.BlockSpec((1, D_FF, D_MODEL), lambda l: (l, 0, 0)),       # w_down
        ],
        out_specs=pl.BlockSpec((rows, D_MODEL), lambda l: (0, 0)),       # resident h
    )
    return pl.pallas_call(
        functools.partial(_layers_kernel, B, S),
        out_shape=jax.ShapeDtypeStruct((rows, D_MODEL), jnp.float32),
        grid_spec=grid_spec,
        compiler_params=pltpu.CompilerParams(dimension_semantics=("arbitrary",)),
    )(h0, bias3, cosr, sinr,
      lp["attn_norm"], lp["wqkv"], lp["bqkv"], lp["wo"],
      lp["mlp_norm"], lp["wgu"], lp["wd"])


# ----------------------------- final norm + LM head (+ fused CE) --------------
def _head_kernel(h_ref, wn_ref, wlm_ref, logits_ref):
    xn = _rmsnorm(h_ref[...], wn_ref[...]).astype(jnp.bfloat16)
    logits_ref[...] = jnp.dot(xn, wlm_ref[...], preferred_element_type=jnp.float32)


def _head_ce_kernel(h_ref, wn_ref, wlm_ref, onehot_ref, logits_ref, loss_ref):
    xn = _rmsnorm(h_ref[...], wn_ref[...]).astype(jnp.bfloat16)
    logits = jnp.dot(xn, wlm_ref[...], preferred_element_type=jnp.float32)  # (R, V)
    logits_ref[...] = logits

    # One lane-dense pass over the full (B*S, V) slab.  onehot already encodes
    # the label shift and ignore_index=-100 (all-zero rows for invalid positions).
    onehot = onehot_ref[...]
    valid = jnp.sum(onehot, axis=-1, keepdims=True)                  # 1.0 if valid
    m = jnp.max(logits, axis=-1, keepdims=True)
    lse = m + jnp.log(jnp.sum(jnp.exp(logits - m), axis=-1, keepdims=True))
    tgt = jnp.sum(onehot * logits, axis=-1, keepdims=True)
    loss_ref[0, 0] = jnp.sum(valid * lse - tgt)                      # scalar -> SMEM


def head_only(h2d, wn, wlm):
    vspec = pl.BlockSpec(memory_space=pltpu.MemorySpace.VMEM)
    return pl.pallas_call(
        _head_kernel,
        out_shape=jax.ShapeDtypeStruct((h2d.shape[0], VOCAB), jnp.float32),
        in_specs=[vspec] * 3,
        out_specs=vspec,
    )(h2d, wn, wlm)


def head_with_loss(h2d, wn, wlm, onehot):
    vspec = pl.BlockSpec(memory_space=pltpu.MemorySpace.VMEM)
    return pl.pallas_call(
        _head_ce_kernel,
        out_shape=(jax.ShapeDtypeStruct((h2d.shape[0], VOCAB), jnp.float32),
                   jax.ShapeDtypeStruct((1, 1), jnp.float32)),
        in_specs=[vspec] * 4,
        out_specs=(vspec, pl.BlockSpec(memory_space=pltpu.MemorySpace.SMEM)),
    )(h2d, wn, wlm, onehot)


# ----------------------------- JAX glue ---------------------------------------
def _qk_half_split_perm():
    # Column permutation: [all heads' first 16 dims | all heads' last 16 dims].
    first = [h * HEAD_DIM + d for h in range(N_HEADS) for d in range(HALF)]
    second = [h * HEAD_DIM + HALF + d for h in range(N_HEADS) for d in range(HALF)]
    return jnp.array(first + second, dtype=jnp.int32)


def rope_tables(B, S):
    inv_freq = 1.0 / (ROPE_THETA ** (jnp.arange(0, HEAD_DIM, 2, dtype=jnp.float32)
                                     / HEAD_DIM))
    pos = jnp.arange(S, dtype=jnp.float32)
    freqs = pos[:, None] * inv_freq[None, :]                       # (S, 16)
    cos_h, sin_h = jnp.cos(freqs), jnp.sin(freqs)
    cos128 = jnp.tile(cos_h, (1, 2 * N_HEADS))                     # (S, 128)
    sin128 = jnp.concatenate([-jnp.tile(sin_h, (1, N_HEADS)),      # sign folded in
                              jnp.tile(sin_h, (1, N_HEADS))], axis=-1)
    return jnp.tile(cos128, (B, 1)), jnp.tile(sin128, (B, 1))      # (B*S, 128)


def init_params(key):
    def nrm(k, shape, dtype=jnp.float32):
        return (jax.random.normal(k, shape, jnp.float32) * 0.02).astype(dtype)

    keys = jax.random.split(key, 3)
    lk = jax.random.split(keys[2], 10)
    perm = _qk_half_split_perm()

    # "Checkpoint" layout weights (as a HF Qwen load would give), then fuse/permute.
    wq = nrm(lk[0], (N_LAYERS, D_MODEL, D_MODEL), jnp.float32)[:, :, perm]
    wk = nrm(lk[1], (N_LAYERS, D_MODEL, D_MODEL), jnp.float32)[:, :, perm]
    wv = nrm(lk[2], (N_LAYERS, D_MODEL, D_MODEL), jnp.float32)
    bq = nrm(lk[4], (N_LAYERS, 1, D_MODEL), jnp.float32)[:, :, perm]
    bk = nrm(lk[5], (N_LAYERS, 1, D_MODEL), jnp.float32)[:, :, perm]
    bv = nrm(lk[6], (N_LAYERS, 1, D_MODEL), jnp.float32)
    wg = nrm(lk[7], (N_LAYERS, D_MODEL, D_FF), jnp.float32)
    wu = nrm(lk[8], (N_LAYERS, D_MODEL, D_FF), jnp.float32)

    layers = {
        "attn_norm": jnp.ones((N_LAYERS, 1, D_MODEL), jnp.float32),
        "mlp_norm": jnp.ones((N_LAYERS, 1, D_MODEL), jnp.float32),
        "wqkv": jnp.concatenate([wq, wk, wv], axis=-1).astype(jnp.bfloat16),
        "bqkv": jnp.concatenate([bq, bk, bv], axis=-1),            # f32 (Qwen QKV bias)
        "wo": nrm(lk[3], (N_LAYERS, D_MODEL, D_MODEL), jnp.bfloat16),
        "wgu": jnp.concatenate([wg, wu], axis=-1).astype(jnp.bfloat16),
        "wd": nrm(lk[9], (N_LAYERS, D_FF, D_MODEL), jnp.bfloat16),
    }
    return {
        "embed": nrm(keys[0], (VOCAB, D_MODEL)),
        "lm_head": nrm(keys[1], (D_MODEL, VOCAB), jnp.bfloat16),
        "final_norm": jnp.ones((1, D_MODEL), jnp.float32),
        "layers": layers,
    }


@functools.partial(jax.jit, static_argnames=("with_labels",))
def forward(params, input_ids, attention_mask, labels=None, with_labels=False):
    B, S = input_ids.shape
    # token embedding gather stays in XLA glue (no clean whole-array Pallas gather
    # at this scale)
    h0 = jnp.take(params["embed"], input_ids.reshape(-1), axis=0)    # (B*S, D)
    cosr, sinr = rope_tables(B, S)

    # additive causal + padding bias, built once
    causal = jnp.arange(S)[:, None] >= jnp.arange(S)[None, :]
    keep = causal[None, :, :] & (attention_mask > 0)[:, None, :]     # (B, S, S)
    bias3 = jnp.where(keep, 0.0, NEG_INF).astype(jnp.float32)

    h = run_layers(h0, bias3, cosr, sinr, params["layers"], B, S)

    if with_labels:
        # HF causal-LM loss: predict token t+1 from position t, ignore_index=-100.
        shifted = jnp.concatenate(
            [labels[:, 1:], jnp.full((B, 1), -100, labels.dtype)], axis=1
        ).reshape(-1).astype(jnp.int32)                               # (B*S,)
        valid = (shifted >= 0).astype(jnp.float32)
        onehot = jax.nn.one_hot(shifted, VOCAB, dtype=jnp.float32) * valid[:, None]
        count = jnp.sum(valid)
        logits2d, loss_sum = head_with_loss(h, params["final_norm"],
                                            params["lm_head"], onehot)
        # TODO(synk): HF returns NaN when every label is -100; we return 0.0.
        loss = loss_sum[0, 0] / jnp.maximum(count, 1.0)
        return loss, logits2d.reshape(B, S, VOCAB)

    logits2d = head_only(h, params["final_norm"], params["lm_head"])
    return logits2d.reshape(B, S, VOCAB)


# ----------------------------- main --------------------------------------------
if __name__ == "__main__":
    key = jax.random.PRNGKey(0)
    pkey, ikey = jax.random.split(key)
    params = init_params(pkey)

    B, S = 2, 16
    input_ids = jax.random.randint(ikey, (B, S), 0, VOCAB, dtype=jnp.int32)
    attention_mask = jnp.ones((B, S), jnp.int32).at[1, 12:].set(0)   # 2nd seq padded
    labels = jnp.where(attention_mask > 0, input_ids, -100).astype(jnp.int32)

    loss, logits = forward(params, input_ids, attention_mask, labels, with_labels=True)
    jax.block_until_ready((loss, logits))

    assert logits.shape == (B, S, VOCAB)
    assert loss.shape == ()
    assert bool(jnp.isfinite(loss)) and bool(jnp.all(jnp.isfinite(logits)))

    logits_only = forward(params, input_ids, attention_mask, with_labels=False)
    jax.block_until_ready(logits_only)
    assert logits_only.shape == (B, S, VOCAB)

    print("KERNEL_OK")
</pallas_src>

<mosaic_0001>
module attributes {stable_mosaic.version = 11 : i64} {
  func.func @_layers_kernel(%arg0: i32, %arg1: memref<32x128xf32, #tpu.memory_space<vmem>>, %arg2: memref<2x16x16xf32, #tpu.memory_space<vmem>>, %arg3: memref<32x128xf32, #tpu.memory_space<vmem>>, %arg4: memref<32x128xf32, #tpu.memory_space<vmem>>, %arg5: memref<1x1x128xf32, #tpu.memory_space<vmem>>, %arg6: memref<1x128x384xbf16, #tpu.memory_space<vmem>>, %arg7: memref<1x1x384xf32, #tpu.memory_space<vmem>>, %arg8: memref<1x128x128xbf16, #tpu.memory_space<vmem>>, %arg9: memref<1x1x128xf32, #tpu.memory_space<vmem>>, %arg10: memref<1x128x512xbf16, #tpu.memory_space<vmem>>, %arg11: memref<1x256x128xbf16, #tpu.memory_space<vmem>>, %arg12: memref<32x128xf32, #tpu.memory_space<vmem>>) attributes {dimension_semantics = [#tpu.dimension_semantics<arbitrary>], iteration_bounds = array<i64: 2>, scalar_prefetch = 0 : i64, scratch_operands = 0 : i64, tpu.core_type = #tpu.core_type<tc>, window_params = [{pipeline_mode = #tpu.pipeline_mode<synchronous>, transform_indices = @transform_0, window_bounds = array<i64: 32, 128>}, {pipeline_mode = #tpu.pipeline_mode<synchronous>, transform_indices = @transform_1, window_bounds = array<i64: 2, 16, 16>}, {pipeline_mode = #tpu.pipeline_mode<synchronous>, transform_indices = @transform_2, window_bounds = array<i64: 32, 128>}, {pipeline_mode = #tpu.pipeline_mode<synchronous>, transform_indices = @transform_3, window_bounds = array<i64: 32, 128>}, {transform_indices = @transform_4, window_bounds = array<i64: 1, 1, 128>}, {transform_indices = @transform_5, window_bounds = array<i64: 1, 128, 384>}, {transform_indices = @transform_6, window_bounds = array<i64: 1, 1, 384>}, {transform_indices = @transform_7, window_bounds = array<i64: 1, 128, 128>}, {transform_indices = @transform_8, window_bounds = array<i64: 1, 1, 128>}, {transform_indices = @transform_9, window_bounds = array<i64: 1, 128, 512>}, {transform_indices = @transform_10, window_bounds = array<i64: 1, 256, 128>}, {pipeline_mode = #tpu.pipeline_mode<synchronous>, transform_indices = @transform_11, window_bounds = array<i64: 32, 128>}]} {
    %c0_i32 = arith.constant 0 : i32
    %0 = arith.cmpi eq, %arg0, %c0_i32 : i32
    %1 = arith.extui %0 : i1 to i32
    %c0_i32_0 = arith.constant 0 : i32
    %2 = arith.cmpi ne, %1, %c0_i32_0 : i32
    scf.if %2 {
      %c0_48 = arith.constant 0 : index
      %c0_49 = arith.constant 0 : index
      %114 = vector.load %arg1[%c0_48, %c0_49] : memref<32x128xf32, #tpu.memory_space<vmem>>, vector<32x128xf32>
      %c0_50 = arith.constant 0 : index
      %c0_51 = arith.constant 0 : index
      %115 = vector.load %arg12[%c0_50, %c0_51] : memref<32x128xf32, #tpu.memory_space<vmem>>, vector<32x128xf32>
      tpu.vector_store %arg12[%c0_50, %c0_51], %114 {strides = array<i32>} : memref<32x128xf32, #tpu.memory_space<vmem>>, vector<32x128xf32>,
    } else {
    }
    %c0 = arith.constant 0 : index
    %c0_1 = arith.constant 0 : index
    %3 = vector.load %arg12[%c0, %c0_1] : memref<32x128xf32, #tpu.memory_space<vmem>>, vector<32x128xf32>
    %c0_2 = arith.constant 0 : index
    %c0_3 = arith.constant 0 : index
    %c0_4 = arith.constant 0 : index
    %4 = vector.load %arg5[%c0_2, %c0_3, %c0_4] : memref<1x1x128xf32, #tpu.memory_space<vmem>>, vector<1x1x128xf32>
    %5 = vector.shape_cast %4 : vector<1x1x128xf32> to vector<1x128xf32>
    %6 = arith.mulf %3, %3 : vector<32x128xf32>
    %cst = arith.constant dense<0.000000e+00> : vector<32xf32>
    %7 = vector.multi_reduction <add>, %6, %cst [1] : vector<32x128xf32> to vector<32xf32>
    %8 = vector.shape_cast %7 : vector<32xf32> to vector<32x1xf32>
    %cst_5 = arith.constant 1.280000e+02 : f32
    %9 = vector.broadcast %cst_5 : f32 to vector<32x1xf32>
    %10 = arith.divf %8, %9 : vector<32x1xf32>
    %cst_6 = arith.constant 9.99999997E-7 : f32
    %11 = vector.broadcast %cst_6 : f32 to vector<32x1xf32>
    %12 = arith.addf %10, %11 : vector<32x1xf32>
    %13 = math.rsqrt %12 : vector<32x1xf32>
    %14 = vector.broadcast %13 : vector<32x1xf32> to vector<32x128xf32>
    %15 = arith.mulf %3, %14 : vector<32x128xf32>
    %16 = vector.broadcast %5 : vector<1x128xf32> to vector<32x128xf32>
    %17 = arith.mulf %15, %16 : vector<32x128xf32>
    %18 = arith.truncf %17 : vector<32x128xf32> to vector<32x128xbf16>
    %c0_7 = arith.constant 0 : index
    %c0_8 = arith.constant 0 : index
    %c0_9 = arith.constant 0 : index
    %19 = vector.load %arg6[%c0_7, %c0_8, %c0_9] : memref<1x128x384xbf16, #tpu.memory_space<vmem>>, vector<1x128x384xbf16>
    %20 = vector.shape_cast %19 : vector<1x128x384xbf16> to vector<128x384xbf16>
    %cst_10 = arith.constant dense<0.000000e+00> : vector<32x384xf32>
    %21 = tpu.matmul %18, %20, %cst_10 {dimension_numbers = #tpu.dot_dimension_numbers<[1], [0], [0], [1], [0, 0, 1, 1], [], []>} : vector<32x128xbf16>, vector<128x384xbf16>, vector<32x384xf32> -> vector<32x384xf32>
    %c0_11 = arith.constant 0 : index
    %c0_12 = arith.constant 0 : index
    %c0_13 = arith.constant 0 : index
    %22 = vector.load %arg7[%c0_11, %c0_12, %c0_13] : memref<1x1x384xf32, #tpu.memory_space<vmem>>, vector<1x1x384xf32>
    %23 = vector.shape_cast %22 : vector<1x1x384xf32> to vector<1x384xf32>
    %24 = vector.broadcast %23 : vector<1x384xf32> to vector<32x384xf32>
    %25 = arith.addf %21, %24 : vector<32x384xf32>
    %26 = vector.extract_strided_slice %25 {offsets = [0, 0], sizes = [32, 128], strides = [1, 1]} : vector<32x384xf32> to vector<32x128xf32>
    %27 = vector.extract_strided_slice %25 {offsets = [0, 128], sizes = [32, 128], strides = [1, 1]} : vector<32x384xf32> to vector<32x128xf32>
    %28 = vector.extract_strided_slice %25 {offsets = [0, 256], sizes = [32, 128], strides = [1, 1]} : vector<32x384xf32> to vector<32x128xf32>
    %c0_14 = arith.constant 0 : index
    %c0_15 = arith.constant 0 : index
    %29 = vector.load %arg3[%c0_14, %c0_15] : memref<32x128xf32, #tpu.memory_space<vmem>>, vector<32x128xf32>
    %c0_16 = arith.constant 0 : index
    %c0_17 = arith.constant 0 : index
    %30 = vector.load %arg4[%c0_16, %c0_17] : memref<32x128xf32, #tpu.memory_space<vmem>>, vector<32x128xf32>
    %31 = arith.mulf %26, %29 : vector<32x128xf32>
    %c64_i32 = arith.constant 64 : i32
    %32 = tpu.dynamic_rotate %26 by %c64_i32 dim 1 : vector<32x128xf32>, i32 -> vector<32x128xf32>
    %33 = arith.mulf %32, %30 : vector<32x128xf32>
    %34 = arith.addf %31, %33 : vector<32x128xf32>
    %35 = arith.mulf %27, %29 : vector<32x128xf32>
    %c64_i32_18 = arith.constant 64 : i32
    %36 = tpu.dynamic_rotate %27 by %c64_i32_18 dim 1 : vector<32x128xf32>, i32 -> vector<32x128xf32>
    %37 = arith.mulf %36, %30 : vector<32x128xf32>
    %38 = arith.addf %35, %37 : vector<32x128xf32>
    %39 = vector.shape_cast %34 : vector<32x128xf32> to vector<2x16x8x16xf32>
    %40 = tpu.transpose %39, [0, 2, 1, 3] : vector<2x16x8x16xf32> -> vector<2x8x16x16xf32>
    %41 = vector.shape_cast %40 : vector<2x8x16x16xf32> to vector<16x16x16xf32>
    %42 = vector.shape_cast %38 : vector<32x128xf32> to vector<2x16x8x16xf32>
    %43 = tpu.transpose %42, [0, 2, 1, 3] : vector<2x16x8x16xf32> -> vector<2x8x16x16xf32>
    %44 = vector.shape_cast %43 : vector<2x8x16x16xf32> to vector<16x16x16xf32>
    "tpu.trace_start"() <{level = 10 : i32, message = "nqd,nkd->nqk"}> : () -> ()
    %cst_19 = arith.constant dense<0.000000e+00> : vector<16x16x16xf32>
    %45 = tpu.matmul %41, %44, %cst_19 {dimension_numbers = #tpu.dot_dimension_numbers<[2], [2], [1], [1], [0, 0, 0, 1, 1, 1], [0], [0]>} : vector<16x16x16xf32>, vector<16x16x16xf32>, vector<16x16x16xf32> -> vector<16x16x16xf32>
    "tpu.trace_stop"() : () -> ()
    %46 = vector.shape_cast %45 : vector<16x16x16xf32> to vector<2x2x4x16x16xf32>
    %47 = vector.extract_strided_slice %46 {offsets = [0, 0, 0, 0, 0], sizes = [2, 1, 4, 16, 16], strides = [1, 1, 1, 1, 1]} : vector<2x2x4x16x16xf32> to vector<2x1x4x16x16xf32>
    %48 = vector.shape_cast %47 : vector<2x1x4x16x16xf32> to vector<2x4x16x16xf32>
    %49 = vector.extract_strided_slice %46 {offsets = [0, 1, 0, 0, 0], sizes = [2, 1, 4, 16, 16], strides = [1, 1, 1, 1, 1]} : vector<2x2x4x16x16xf32> to vector<2x1x4x16x16xf32>
    %50 = vector.shape_cast %49 : vector<2x1x4x16x16xf32> to vector<2x4x16x16xf32>
    %51 = arith.addf %48, %50 : vector<2x4x16x16xf32>
    %cst_20 = arith.constant 0.176776692 : f32
    %52 = vector.broadcast %cst_20 : f32 to vector<2x4x16x16xf32>
    %53 = arith.mulf %51, %52 : vector<2x4x16x16xf32>
    %c0_21 = arith.constant 0 : index
    %c0_22 = arith.constant 0 : index
    %c0_23 = arith.constant 0 : index
    %54 = vector.load %arg2[%c0_21, %c0_22, %c0_23] : memref<2x16x16xf32, #tpu.memory_space<vmem>>, vector<2x16x16xf32>
    %55 = vector.shape_cast %54 : vector<2x16x16xf32> to vector<2x1x16x16xf32>
    %56 = vector.broadcast %55 : vector<2x1x16x16xf32> to vector<2x4x16x16xf32>
    %57 = arith.addf %53, %56 : vector<2x4x16x16xf32>
    %cst_24 = arith.constant dense<0xFF800000> : vector<2x4x16xf32>
    %58 = vector.multi_reduction <maximumf>, %57, %cst_24 [3] : vector<2x4x16x16xf32> to vector<2x4x16xf32>
    %59 = vector.shape_cast %58 : vector<2x4x16xf32> to vector<2x4x16x1xf32>
    %60 = vector.broadcast %59 : vector<2x4x16x1xf32> to vector<2x4x16x16xf32>
    %61 = arith.subf %57, %60 : vector<2x4x16x16xf32>
    %62 = math.exp %61 : vector<2x4x16x16xf32>
    %cst_25 = arith.constant dense<0.000000e+00> : vector<2x4x16xf32>
    %63 = vector.multi_reduction <add>, %62, %cst_25 [3] : vector<2x4x16x16xf32> to vector<2x4x16xf32>
    %64 = vector.shape_cast %63 : vector<2x4x16xf32> to vector<2x4x16x1xf32>
    %65 = tpu.reciprocal %64 {approx = true} : vector<2x4x16x1xf32> -> vector<2x4x16x1xf32>
    %66 = vector.broadcast %65 : vector<2x4x16x1xf32> to vector<2x4x16x16xf32>
    %67 = arith.mulf %62, %66 : vector<2x4x16x16xf32>
    %68 = vector.shape_cast %28 : vector<32x128xf32> to vector<2x16x4x32xf32>
    %69 = tpu.transpose %68, [0, 2, 1, 3] : vector<2x16x4x32xf32> -> vector<2x4x16x32xf32>
    %70 = vector.shape_cast %69 : vector<2x4x16x32xf32> to vector<8x16x32xf32>
    %71 = vector.shape_cast %67 : vector<2x4x16x16xf32> to vector<8x16x16xf32>
    "tpu.trace_start"() <{level = 10 : i32, message = "nqk,nkd->nqd"}> : () -> ()
    %cst_26 = arith.constant dense<0.000000e+00> : vector<8x16x32xf32>
    %72 = tpu.matmul %71, %70, %cst_26 {dimension_numbers = #tpu.dot_dimension_numbers<[2], [1], [1], [2], [0, 0, 0, 1, 1, 2], [0], [0]>} : vector<8x16x16xf32>, vector<8x16x32xf32>, vector<8x16x32xf32> -> vector<8x16x32xf32>
    "tpu.trace_stop"() : () -> ()
    %73 = vector.shape_cast %72 : vector<8x16x32xf32> to vector<2x4x16x32xf32>
    %74 = tpu.transpose %73, [0, 2, 1, 3] : vector<2x4x16x32xf32> -> vector<2x16x4x32xf32>
    %75 = vector.shape_cast %74 : vector<2x16x4x32xf32> to vector<32x128xf32>
    %76 = arith.truncf %75 : vector<32x128xf32> to vector<32x128xbf16>
    %c0_27 = arith.constant 0 : index
    %c0_28 = arith.constant 0 : index
    %c0_29 = arith.constant 0 : index
    %77 = vector.load %arg8[%c0_27, %c0_28, %c0_29] : memref<1x128x128xbf16, #tpu.memory_space<vmem>>, vector<1x128x128xbf16>
    %78 = vector.shape_cast %77 : vector<1x128x128xbf16> to vector<128x128xbf16>
    %cst_30 = arith.constant dense<0.000000e+00> : vector<32x128xf32>
    %79 = tpu.matmul %76, %78, %cst_30 {dimension_numbers = #tpu.dot_dimension_numbers<[1], [0], [0], [1], [0, 0, 1, 1], [], []>} : vector<32x128xbf16>, vector<128x128xbf16>, vector<32x128xf32> -> vector<32x128xf32>
    %80 = arith.addf %3, %79 : vector<32x128xf32>
    %c0_31 = arith.constant 0 : index
    %c0_32 = arith.constant 0 : index
    %c0_33 = arith.constant 0 : index
    %81 = vector.load %arg9[%c0_31, %c0_32, %c0_33] : memref<1x1x128xf32, #tpu.memory_space<vmem>>, vector<1x1x128xf32>
    %82 = vector.shape_cast %81 : vector<1x1x128xf32> to vector<1x128xf32>
    %83 = arith.mulf %80, %80 : vector<32x128xf32>
    %cst_34 = arith.constant dense<0.000000e+00> : vector<32xf32>
    %84 = vector.multi_reduction <add>, %83, %cst_34 [1] : vector<32x128xf32> to vector<32xf32>
    %85 = vector.shape_cast %84 : vector<32xf32> to vector<32x1xf32>
    %cst_35 = arith.constant 1.280000e+02 : f32
    %86 = vector.broadcast %cst_35 : f32 to vector<32x1xf32>
    %87 = arith.divf %85, %86 : vector<32x1xf32>
    %cst_36 = arith.constant 9.99999997E-7 : f32
    %88 = vector.broadcast %cst_36 : f32 to vector<32x1xf32>
    %89 = arith.addf %87, %88 : vector<32x1xf32>
    %90 = math.rsqrt %89 : vector<32x1xf32>
    %91 = vector.broadcast %90 : vector<32x1xf32> to vector<32x128xf32>
    %92 = arith.mulf %80, %91 : vector<32x128xf32>
    %93 = vector.broadcast %82 : vector<1x128xf32> to vector<32x128xf32>
    %94 = arith.mulf %92, %93 : vector<32x128xf32>
    %95 = arith.truncf %94 : vector<32x128xf32> to vector<32x128xbf16>
    %c0_37 = arith.constant 0 : index
    %c0_38 = arith.constant 0 : index
    %c0_39 = arith.constant 0 : index
    %96 = vector.load %arg10[%c0_37, %c0_38, %c0_39] : memref<1x128x512xbf16, #tpu.memory_space<vmem>>, vector<1x128x512xbf16>
    %97 = vector.shape_cast %96 : vector<1x128x512xbf16> to vector<128x512xbf16>
    %cst_40 = arith.constant dense<0.000000e+00> : vector<32x512xf32>
    %98 = tpu.matmul %95, %97, %cst_40 {dimension_numbers = #tpu.dot_dimension_numbers<[1], [0], [0], [1], [0, 0, 1, 1], [], []>} : vector<32x128xbf16>, vector<128x512xbf16>, vector<32x512xf32> -> vector<32x512xf32>
    %99 = vector.extract_strided_slice %98 {offsets = [0, 0], sizes = [32, 256], strides = [1, 1]} : vector<32x512xf32> to vector<32x256xf32>
    %100 = vector.extract_strided_slice %98 {offsets = [0, 256], sizes = [32, 256], strides = [1, 1]} : vector<32x512xf32> to vector<32x256xf32>
    %101 = arith.negf %99 : vector<32x256xf32>
    %102 = math.exp %101 : vector<32x256xf32>
    %cst_41 = arith.constant 1.000000e+00 : f32
    %103 = vector.broadcast %cst_41 : f32 to vector<32x256xf32>
    %104 = arith.addf %103, %102 : vector<32x256xf32>
    %105 = arith.divf %103, %104 : vector<32x256xf32>
    %106 = arith.mulf %99, %105 : vector<32x256xf32>
    %107 = arith.mulf %106, %100 : vector<32x256xf32>
    %108 = arith.truncf %107 : vector<32x256xf32> to vector<32x256xbf16>
    %c0_42 = arith.constant 0 : index
    %c0_43 = arith.constant 0 : index
    %c0_44 = arith.constant 0 : index
    %109 = vector.load %arg11[%c0_42, %c0_43, %c0_44] : memref<1x256x128xbf16, #tpu.memory_space<vmem>>, vector<1x256x128xbf16>
    %110 = vector.shape_cast %109 : vector<1x256x128xbf16> to vector<256x128xbf16>
    %cst_45 = arith.constant dense<0.000000e+00> : vector<32x128xf32>
    %111 = tpu.matmul %108, %110, %cst_45 {dimension_numbers = #tpu.dot_dimension_numbers<[1], [0], [0], [1], [0, 0, 1, 1], [], []>} : vector<32x256xbf16>, vector<256x128xbf16>, vector<32x128xf32> -> vector<32x128xf32>
    %112 = arith.addf %80, %111 : vector<32x128xf32>
    %c0_46 = arith.constant 0 : index
    %c0_47 = arith.constant 0 : index
    %113 = vector.load %arg12[%c0_46, %c0_47] : memref<32x128xf32, #tpu.memory_space<vmem>>, vector<32x128xf32>
    tpu.vector_store %arg12[%c0_46, %c0_47], %112 {strides = array<i32>} : memref<32x128xf32, #tpu.memory_space<vmem>>, vector<32x128xf32>,
    return
  }
  func.func @transform_0(%arg0: i32) -> (i32, i32) {
    %c0_i32 = arith.constant 0 : i32
    %c0_i32_0 = arith.constant 0 : i32
    %c0_i32_1 = arith.constant 0 : i32
    return %c0_i32, %c0_i32_0 : i32, i32
  }
  func.func @transform_1(%arg0: i32) -> (i32, i32, i32) {
    %c0_i32 = arith.constant 0 : i32
    %c0_i32_0 = arith.constant 0 : i32
    %c0_i32_1 = arith.constant 0 : i32
    %c0_i32_2 = arith.constant 0 : i32
    return %c0_i32, %c0_i32_0, %c0_i32_1 : i32, i32, i32
  }
  func.func @transform_2(%arg0: i32) -> (i32, i32) {
    %c0_i32 = arith.constant 0 : i32
    %c0_i32_0 = arith.constant 0 : i32
    %c0_i32_1 = arith.constant 0 : i32
    return %c0_i32, %c0_i32_0 : i32, i32
  }
  func.func @transform_3(%arg0: i32) -> (i32, i32) {
    %c0_i32 = arith.constant 0 : i32
    %c0_i32_0 = arith.constant 0 : i32
    %c0_i32_1 = arith.constant 0 : i32
    return %c0_i32, %c0_i32_0 : i32, i32
  }
  func.func @transform_4(%arg0: i32) -> (i32, i32, i32) {
    %c0_i32 = arith.constant 0 : i32
    %c0_i32_0 = arith.constant 0 : i32
    %c0_i32_1 = arith.constant 0 : i32
    return %arg0, %c0_i32, %c0_i32_0 : i32, i32, i32
  }
  func.func @transform_5(%arg0: i32) -> (i32, i32, i32) {
    %c0_i32 = arith.constant 0 : i32
    %c0_i32_0 = arith.constant 0 : i32
    %c0_i32_1 = arith.constant 0 : i32
    return %arg0, %c0_i32, %c0_i32_0 : i32, i32, i32
  }
  func.func @transform_6(%arg0: i32) -> (i32, i32, i32) {
    %c0_i32 = arith.constant 0 : i32
    %c0_i32_0 = arith.constant 0 : i32
    %c0_i32_1 = arith.constant 0 : i32
    return %arg0, %c0_i32, %c0_i32_0 : i32, i32, i32
  }
  func.func @transform_7(%arg0: i32) -> (i32, i32, i32) {
    %c0_i32 = arith.constant 0 : i32
    %c0_i32_0 = arith.constant 0 : i32
    %c0_i32_1 = arith.constant 0 : i32
    return %arg0, %c0_i32, %c0_i32_0 : i32, i32, i32
  }
  func.func @transform_8(%arg0: i32) -> (i32, i32, i32) {
    %c0_i32 = arith.constant 0 : i32
    %c0_i32_0 = arith.constant 0 : i32
    %c0_i32_1 = arith.constant 0 : i32
    return %arg0, %c0_i32, %c0_i32_0 : i32, i32, i32
  }
  func.func @transform_9(%arg0: i32) -> (i32, i32, i32) {
    %c0_i32 = arith.constant 0 : i32
    %c0_i32_0 = arith.constant 0 : i32
    %c0_i32_1 = arith.constant 0 : i32
    return %arg0, %c0_i32, %c0_i32_0 : i32, i32, i32
  }
  func.func @transform_10(%arg0: i32) -> (i32, i32, i32) {
    %c0_i32 = arith.constant 0 : i32
    %c0_i32_0 = arith.constant 0 : i32
    %c0_i32_1 = arith.constant 0 : i32
    return %arg0, %c0_i32, %c0_i32_0 : i32, i32, i32
  }
  func.func @transform_11(%arg0: i32) -> (i32, i32) {
    %c0_i32 = arith.constant 0 : i32
    %c0_i32_0 = arith.constant 0 : i32
    %c0_i32_1 = arith.constant 0 : i32
    return %c0_i32, %c0_i32_0 : i32, i32
  }
}

module attributes {stable_mosaic.version = 11 : i64} {
  func.func @_head_ce_kernel(%arg0: memref<32x128xf32, #tpu.memory_space<vmem>>, %arg1: memref<1x128xf32, #tpu.memory_space<vmem>>, %arg2: memref<128x256xbf16, #tpu.memory_space<vmem>>, %arg3: memref<32x256xf32, #tpu.memory_space<vmem>>, %arg4: memref<32x256xf32, #tpu.memory_space<vmem>>, %arg5: memref<1x1xf32, #tpu.memory_space<smem>>) attributes {dimension_semantics = [], scalar_prefetch = 0 : i64, scratch_operands = 0 : i64, tpu.core_type = #tpu.core_type<tc>} {
    %c0 = arith.constant 0 : index
    %c0_0 = arith.constant 0 : index
    %0 = vector.load %arg0[%c0, %c0_0] : memref<32x128xf32, #tpu.memory_space<vmem>>, vector<32x128xf32>
    %c0_1 = arith.constant 0 : index
    %c0_2 = arith.constant 0 : index
    %1 = vector.load %arg1[%c0_1, %c0_2] : memref<1x128xf32, #tpu.memory_space<vmem>>, vector<1x128xf32>
    %2 = arith.mulf %0, %0 : vector<32x128xf32>
    %cst = arith.constant dense<0.000000e+00> : vector<32xf32>
    %3 = vector.multi_reduction <add>, %2, %cst [1] : vector<32x128xf32> to vector<32xf32>
    %4 = vector.shape_cast %3 : vector<32xf32> to vector<32x1xf32>
    %cst_3 = arith.constant 1.280000e+02 : f32
    %5 = vector.broadcast %cst_3 : f32 to vector<32x1xf32>
    %6 = arith.divf %4, %5 : vector<32x1xf32>
    %cst_4 = arith.constant 9.99999997E-7 : f32
    %7 = vector.broadcast %cst_4 : f32 to vector<32x1xf32>
    %8 = arith.addf %6, %7 : vector<32x1xf32>
    %9 = math.rsqrt %8 : vector<32x1xf32>
    %10 = vector.broadcast %9 : vector<32x1xf32> to vector<32x128xf32>
    %11 = arith.mulf %0, %10 : vector<32x128xf32>
    %12 = vector.broadcast %1 : vector<1x128xf32> to vector<32x128xf32>
    %13 = arith.mulf %11, %12 : vector<32x128xf32>
    %14 = arith.truncf %13 : vector<32x128xf32> to vector<32x128xbf16>
    %c0_5 = arith.constant 0 : index
    %c0_6 = arith.constant 0 : index
    %15 = vector.load %arg2[%c0_5, %c0_6] : memref<128x256xbf16, #tpu.memory_space<vmem>>, vector<128x256xbf16>
    %cst_7 = arith.constant dense<0.000000e+00> : vector<32x256xf32>
    %16 = tpu.matmul %14, %15, %cst_7 {dimension_numbers = #tpu.dot_dimension_numbers<[1], [0], [0], [1], [0, 0, 1, 1], [], []>} : vector<32x128xbf16>, vector<128x256xbf16>, vector<32x256xf32> -> vector<32x256xf32>
    %c0_8 = arith.constant 0 : index
    %c0_9 = arith.constant 0 : index
    %17 = vector.load %arg4[%c0_8, %c0_9] : memref<32x256xf32, #tpu.memory_space<vmem>>, vector<32x256xf32>
    tpu.vector_store %arg4[%c0_8, %c0_9], %16 {strides = array<i32>} : memref<32x256xf32, #tpu.memory_space<vmem>>, vector<32x256xf32>,
    %c0_10 = arith.constant 0 : index
    %c0_11 = arith.constant 0 : index
    %18 = vector.load %arg3[%c0_10, %c0_11] : memref<32x256xf32, #tpu.memory_space<vmem>>, vector<32x256xf32>
    %cst_12 = arith.constant dense<0.000000e+00> : vector<32xf32>
    %19 = vector.multi_reduction <add>, %18, %cst_12 [1] : vector<32x256xf32> to vector<32xf32>
    %20 = vector.shape_cast %19 : vector<32xf32> to vector<32x1xf32>
    %cst_13 = arith.constant dense<0xFF800000> : vector<32xf32>
    %21 = vector.multi_reduction <maximumf>, %16, %cst_13 [1] : vector<32x256xf32> to vector<32xf32>
    %22 = vector.shape_cast %21 : vector<32xf32> to vector<32x1xf32>
    %23 = vector.broadcast %22 : vector<32x1xf32> to vector<32x256xf32>
    %24 = arith.subf %16, %23 : vector<32x256xf32>
    %25 = math.exp %24 : vector<32x256xf32>
    %cst_14 = arith.constant dense<0.000000e+00> : vector<32xf32>
    %26 = vector.multi_reduction <add>, %25, %cst_14 [1] : vector<32x256xf32> to vector<32xf32>
    %27 = vector.shape_cast %26 : vector<32xf32> to vector<32x1xf32>
    %28 = math.log %27 : vector<32x1xf32>
    %29 = arith.addf %22, %28 : vector<32x1xf32>
    %30 = arith.mulf %18, %16 : vector<32x256xf32>
    %cst_15 = arith.constant dense<0.000000e+00> : vector<32xf32>
    %31 = vector.multi_reduction <add>, %30, %cst_15 [1] : vector<32x256xf32> to vector<32xf32>
    %32 = vector.shape_cast %31 : vector<32xf32> to vector<32x1xf32>
    %33 = arith.mulf %20, %29 : vector<32x1xf32>
    %34 = arith.subf %33, %32 : vector<32x1xf32>
    %35 = vector.shape_cast %34 : vector<32x1xf32> to vector<1x32x1xf32>
    %cst_16 = arith.constant dense<0.000000e+00> : vector<1xf32>
    %36 = vector.multi_reduction <add>, %35, %cst_16 [1, 2] : vector<1x32x1xf32> to vector<1xf32>
    %37 = vector.shape_cast %36 : vector<1xf32> to vector<1x1x1xf32>
    %38 = vector.extract %37[0, 0, 0] : f32 from vector<1x1x1xf32>
    %c0_17 = arith.constant 0 : index
    %c0_18 = arith.constant 0 : index
    %39 = memref.load %arg5[%c0_17, %c0_18] : memref<1x1xf32, #tpu.memory_space<smem>>
    memref.store %38, %arg5[%c0_17, %c0_18] : memref<1x1xf32, #tpu.memory_space<smem>>
    return
  }
}

</mosaic_0001>

<llo_original>
// kernel: tile.32
$region0: #{tile.32}
  %s0 = inlined_call_operand.vmem [shape: f32[16,4,16], index: 0, kind: input, shape index: {}]
  %s1 = inlined_call_operand.vmem [shape: f32[16,64], index: 1, kind: output, shape index: {}]
  $region1: #{tile.32} parent=0
    #allocation0 [shape = 'u8[65536]{0}', space=vmem, size = 0x10000, scoped, tag = 'scoped mem for input reshape']
    %s3 = sshllo.u32 0, 4
    %s4 = smul.addr 4, 15
    %s5 = scalar_lea.vmem %s0, %s4
    %v6 = vld [vmem:[%s5] sm:%s3]
    %s7 = scalar_lea.vmem [#allocation0], 120
    %8 = vst [vmem:[%s7] sm:%s3] %v6
    %s9 = smul.addr 4, 14
    %s10 = scalar_lea.vmem %s0, %s9
    %v11 = vld [vmem:[%s10] sm:%s3]
    %s12 = scalar_lea.vmem [#allocation0], 112
    %13 = vst [vmem:[%s12] sm:%s3] %v11
    %s14 = smul.addr 4, 13
    %s15 = scalar_lea.vmem %s0, %s14
    %v16 = vld [vmem:[%s15] sm:%s3]
    %s17 = scalar_lea.vmem [#allocation0], 104
    %18 = vst [vmem:[%s17] sm:%s3] %v16
    %s19 = smul.addr 4, 12
    %s20 = scalar_lea.vmem %s0, %s19
    %v21 = vld [vmem:[%s20] sm:%s3]
    %s22 = scalar_lea.vmem [#allocation0], 96
    %23 = vst [vmem:[%s22] sm:%s3] %v21
    %s24 = smul.addr 4, 11
    %s25 = scalar_lea.vmem %s0, %s24
    %v26 = vld [vmem:[%s25] sm:%s3]
    %s27 = scalar_lea.vmem [#allocation0], 88
    %28 = vst [vmem:[%s27] sm:%s3] %v26
    %s29 = smul.addr 4, 10
    %s30 = scalar_lea.vmem %s0, %s29
    %v31 = vld [vmem:[%s30] sm:%s3]
    %s32 = scalar_lea.vmem [#allocation0], 80
    %33 = vst [vmem:[%s32] sm:%s3] %v31
    %s34 = smul.addr 4, 9
    %s35 = scalar_lea.vmem %s0, %s34
    %v36 = vld [vmem:[%s35] sm:%s3]
    %s37 = scalar_lea.vmem [#allocation0], 72
    %38 = vst [vmem:[%s37] sm:%s3] %v36
    %s39 = smul.addr 4, 8
    %s40 = scalar_lea.vmem %s0, %s39
    %v41 = vld [vmem:[%s40] sm:%s3]
    %s42 = scalar_lea.vmem [#allocation0], 64
    %43 = vst [vmem:[%s42] sm:%s3] %v41
    %s44 = smul.addr 4, 7
    %s45 = scalar_lea.vmem %s0, %s44
    %v46 = vld [vmem:[%s45] sm:%s3]
    %s47 = scalar_lea.vmem [#allocation0], 56
    %48 = vst [vmem:[%s47] sm:%s3] %v46
    %s49 = smul.addr 4, 6
    %s50 = scalar_lea.vmem %s0, %s49
    %v51 = vld [vmem:[%s50] sm:%s3]
    %s52 = scalar_lea.vmem [#allocation0], 48
    %53 = vst [vmem:[%s52] sm:%s3] %v51
    %s54 = smul.addr 4, 5
    %s55 = scalar_lea.vmem %s0, %s54
    %v56 = vld [vmem:[%s55] sm:%s3]
    %s57 = scalar_lea.vmem [#allocation0], 40
    %58 = vst [vmem:[%s57] sm:%s3] %v56
    %s59 = smul.addr 4, 4
    %s60 = scalar_lea.vmem %s0, %s59
    %v61 = vld [vmem:[%s60] sm:%s3]
    %s62 = scalar_lea.vmem [#allocation0], 32
    %63 = vst [vmem:[%s62] sm:%s3] %v61
    %s64 = smul.addr 4, 3
    %s65 = scalar_lea.vmem %s0, %s64
    %v66 = vld [vmem:[%s65] sm:%s3]
    %s67 = scalar_lea.vmem [#allocation0], 24
    %68 = vst [vmem:[%s67] sm:%s3] %v66
    %s69 = smul.addr 4, 2
    %s70 = scalar_lea.vmem %s0, %s69
    %v71 = vld [vmem:[%s70] sm:%s3]
    %s72 = scalar_lea.vmem [#allocation0], 16
    %73 = vst [vmem:[%s72] sm:%s3] %v71
    %s74 = scalar_lea.vmem %s0, 4
    %v75 = vld [vmem:[%s74] sm:%s3]
    %s76 = scalar_lea.vmem [#allocation0], 8
    %77 = vst [vmem:[%s76] sm:%s3] %v75
    %v78 = vld [vmem:[%s0] sm:%s3]
    %79 = vst [vmem:[#allocation0] sm:%s3] %v78
    %v80 = vld [vmem:[#allocation0] ss:$8 sm:$0xf]
    %v81 = vld [vmem:[#allocation0] ss:$8 sm:$0xf0]
    %vm82 = vcmask 1047556
    %v83 = vsel %vm82, %v81, %v80
    %vm84 = vcmask 130048
    %85 = vst.msk [vmem:[%s1] sm:$0xff] %vm84, %v83
    %s86 = scalar_lea.vmem [#allocation0], 64
    %v87 = vld [vmem:[%s86] ss:$8 sm:$0xf]
    %s88 = scalar_lea.vmem [#allocation0], 64
    %v89 = vld [vmem:[%s88] ss:$8 sm:$0xf0]
    %vm90 = vcmask 1047556
    %v91 = vsel %vm90, %v89, %v87
    %vm92 = vcmask 130048
    %s93 = scalar_lea.vmem %s1, 8
    %94 = vst.msk [vmem:[%s93] sm:$0xff] %vm92, %v91
    %s95 = scalar_lea.vmem [#allocation0], 3
    %v96 = vld [vmem:[%s95] ss:$8 sm:$0xf]
    %s97 = scalar_lea.vmem [#allocation0], 3
    %v98 = vld [vmem:[%s97] ss:$8 sm:$0xf0]
    %vm99 = vcmask 1047556
    %v100 = vsel %vm99, %v98, %v96
    %101 = vrot.lane.b32.xlu0 %v100, 48
    %v102 = vpop.permute.xlu0 %101
    %vm103 = vcmask 523648
    %104 = vst.msk [vmem:[%s1] sm:$0xff] %vm103, %v102
    %s105 = scalar_lea.vmem [#allocation0], 67
    %v106 = vld [vmem:[%s105] ss:$8 sm:$0xf]
    %s107 = scalar_lea.vmem [#allocation0], 67
    %v108 = vld [vmem:[%s107] ss:$8 sm:$0xf0]
    %vm109 = vcmask 1047556
    %v110 = vsel %vm109, %v108, %v106
    %111 = vrot.lane.b32.xlu0 %v110, 48
    %v112 = vpop.permute.xlu0 %111
    %vm113 = vcmask 523648
    %s114 = scalar_lea.vmem %s1, 8
    %115 = vst.msk [vmem:[%s114] sm:$0xff] %vm113, %v112
    %s116 = scalar_lea.vmem [#allocation0], 2
    %v117 = vld [vmem:[%s116] ss:$8 sm:$0xf]
    %s118 = scalar_lea.vmem [#allocation0], 2
    %v119 = vld [vmem:[%s118] ss:$8 sm:$0xf0]
    %vm120 = vcmask 1047556
    %v121 = vsel %vm120, %v119, %v117
    %122 = vrot.lane.b32.xlu0 %v121, 32
    %v123 = vpop.permute.xlu0 %122
    %vm124 = vcmask 392448
    %125 = vst.msk [vmem:[%s1] sm:$0xff] %vm124, %v123
    %s126 = scalar_lea.vmem [#allocation0], 66
    %v127 = vld [vmem:[%s126] ss:$8 sm:$0xf]
    %s128 = scalar_lea.vmem [#allocation0], 66
    %v129 = vld [vmem:[%s128] ss:$8 sm:$0xf0]
    %vm130 = vcmask 1047556
    %v131 = vsel %vm130, %v129, %v127
    %132 = vrot.lane.b32.xlu0 %v131, 32
    %v133 = vpop.permute.xlu0 %132
    %vm134 = vcmask 392448
    %s135 = scalar_lea.vmem %s1, 8
    %136 = vst.msk [vmem:[%s135] sm:$0xff] %vm134, %v133
    %s137 = scalar_lea.vmem [#allocation0], 1
    %v138 = vld [vmem:[%s137] ss:$8 sm:$0xf]
    %s139 = scalar_lea.vmem [#allocation0], 1
    %v140 = vld [vmem:[%s139] ss:$8 sm:$0xf0]
    %vm141 = vcmask 1047556
    %v142 = vsel %vm141, %v140, %v138
    %143 = vrot.lane.b32.xlu0 %v142, 16
    %v144 = vpop.permute.xlu0 %143
    %vm145 = vcmask 261248
    %146 = vst.msk [vmem:[%s1] sm:$0xff] %vm145, %v144
    %s147 = scalar_lea.vmem [#allocation0], 65
    %v148 = vld [vmem:[%s147] ss:$8 sm:$0xf]
    %s149 = scalar_lea.vmem [#allocation0], 65
    %v150 = vld [vmem:[%s149] ss:$8 sm:$0xf0]
    %vm151 = vcmask 1047556
    %v152 = vsel %vm151, %v150, %v148
    %153 = vrot.lane.b32.xlu0 %v152, 16
    %v154 = vpop.permute.xlu0 %153
    %vm155 = vcmask 261248
    %s156 = scalar_lea.vmem %s1, 8
    %157 = vst.msk [vmem:[%s156] sm:$0xff] %vm155, %v154

// kernel: neg.1
$region0: #{neg.1}
  #allocation0 [shape = 's32[1]{0}', space=sflag, size = 0x4, scoped, tag = 'scoped memory for neg.1']
  %s0 = inlined_call_operand.vmem [shape: f32[16,64], index: 0, kind: input, shape index: {}]
  %s1 = inlined_call_operand.vmem [shape: f32[16,64], index: 1, kind: output, shape index: {}]
  %v2 = vld [vmem:[%s0] sm:$0xff]
  %3 = xla_tuple %v2
  %4 = xla_tuple %3
  %v5 = vxor.u32 %v2, 2147483648
  %6 = xla_tuple %v5
  %7 = vst [vmem:[%s1] sm:$0xff] %v5
  %s8 = scalar_lea.vmem %s0, 8
  %v9 = vld [vmem:[%s8] sm:$0xff]
  %10 = xla_tuple %v9
  %11 = xla_tuple %10
  %v12 = vxor.u32 %v9, 2147483648
  %13 = xla_tuple %v12
  %s14 = scalar_lea.vmem %s1, 8
  %15 = vst [vmem:[%s14] sm:$0xff] %v12

// kernel: forward.3
$region0: #{forward.3}
  #allocation0 [shape = 'u32[]', space=smem, size = 0x4, offset = 0x4, fixed_abs, tag = 'smem constant byte address 0x4 - core index']
  #allocation1 [shape = 'u32[144,128]{1,0:T(1,128)}', space=vmem, size = 0x12000, scoped, tag = 'internal scratch']
  %s0 = inlined_call_operand.vmem [shape: f32[32,128], index: 0, kind: input, shape index: {}]
  %s1 = inlined_call_operand.vmem [shape: f32[1,128], index: 1, kind: input, shape index: {}]
  %s2 = inlined_call_operand.vmem [shape: bf16[128,256], index: 2, kind: input, shape index: {}]
  %s3 = inlined_call_operand.vmem [shape: f32[32,256], index: 3, kind: input, shape index: {}]
  %s4 = inlined_call_operand.hbm [shape: f32[32,256], index: 4, kind: output, shape index: {0}]
  %s5 = inlined_call_operand.hbm [shape: f32[1,1], index: 5, kind: output, shape index: {1}]
  %6 = xla_tuple %s4, %s5
  %s7 = sld [smem:[#allocation0]]
  $region34: #{forward.3} parent=0
    _
  %s9 = ssub.s32 1, %s7
  %s10 = scalar_select 0, %s9, %s7
  $region1: #{forward.3} parent=0
    #allocation2 [shape = 'u8[32768]{0}', space=vmem, size = 0x8000, scoped, tag = 'output window, operand 0, single buffered']
    #allocation3 [shape = 's32[1]{0}', space=sflag, size = 0x4, scoped, tag = 'scoped memory for forward.3']
    #allocation4 [shape = 's32[1]{0}', space=sflag, size = 0x4, scoped, tag = 'scoped memory for forward.3']
    #allocation5 [shape = 'u8[512]{0}', space=smem, size = 0x200, scoped, tag = 'output window, operand 1, single buffered']
    %11 = vsyncpa [#allocation3], 0
    %12 = vsyncpa [#allocation4], 0
    // Predicated region
    $region2: #{forward.3} parent=1 // pred_check
      _
    $region3: #{forward.3} parent=1 // pred_check_branch
      %14 = sbr.rel (0) target = $region5
    $region4: #{forward.3} parent=1 // pred_region
      _
    $region5: #{forward.3} parent=1 // pred_fallthru
      _
    // Predicated region
    $region6: #{forward.3} parent=1 // pred_check
      _
    $region7: #{forward.3} parent=1 // pred_check_branch
      %16 = sbr.rel (0) target = $region9
    $region8: #{forward.3} parent=1 // pred_region
      _
    $region9: #{forward.3} parent=1 // pred_fallthru
      _
    // Predicated region
    $region10: #{forward.3} parent=1 // pred_check
      _
    $region11: #{forward.3} parent=1 // pred_check_branch
      %18 = sbr.rel (0) target = $region13
    $region12: #{forward.3} parent=1 // pred_region
      _
    $region13: #{forward.3} parent=1 // pred_fallthru
      _
    // Predicated region
    $region14: #{forward.3} parent=1 // pred_check
      _
    $region15: #{forward.3} parent=1 // pred_check_branch
      %20 = sbr.rel (0) target = $region17
    $region16: #{forward.3} parent=1 // pred_region
      _
    $region17: #{forward.3} parent=1 // pred_fallthru
      _
    %v22 = vld [vmem:[%s0] sm:$0xff]
    %v23 = vld [vmem:[%s0 + $0x8] sm:$0xff]
    %v24 = vld [vmem:[%s0 + $0x10] sm:$0xff]
    %v25 = vld [vmem:[%s0 + $0x18] sm:$0xff]
    %v26 = vld [vmem:[%s1] sm:$0x1]
    %v27 = vmul.f32 %v22, %v22
    %v28 = vmul.f32 %v23, %v23
    %v29 = vmul.f32 %v24, %v24
    %v30 = vmul.f32 %v25, %v25
    %31 = vadd.xlane.f32.xlu0 %v27
    %v32 = vpop.xlane.xlu0 %31
    %33 = vadd.xlane.f32.xlu0 %v28
    %v34 = vpop.xlane.xlu0 %33
    %35 = vadd.xlane.f32.xlu0 %v29
    %v36 = vpop.xlane.xlu0 %35
    %37 = vadd.xlane.f32.xlu0 %v30
    %v38 = vpop.xlane.xlu0 %37
    %v39 = vrcp.pop 128.0
    %v40 = vmul.f32 %v32, %v39
    %v41 = vmul.f32 %v34, %v39
    %v42 = vmul.f32 %v36, %v39
    %v43 = vmul.f32 %v38, %v39
    %v44 = vadd.f32 %v40, 1e-06
    %v45 = vadd.f32 %v41, 1e-06
    %v46 = vadd.f32 %v42, 1e-06
    %v47 = vadd.f32 %v43, 1e-06
    %v48 = vrsqrt.pop %v44
    %v49 = vrsqrt.pop %v45
    %v50 = vrsqrt.pop %v46
    %v51 = vrsqrt.pop %v47
    %v52 = vmul.f32 %v22, %v48
    %v53 = vmul.f32 %v23, %v49
    %v54 = vmul.f32 %v24, %v50
    %v55 = vmul.f32 %v25, %v51
    %v57 = vlaneseq
    %v58 = vshrl.u32 %v57, 7
    %v59 = vsub.s32 0, %v58
    %v60 = vrot.slane %v26, %v59
    %v62 = vmul.f32 %v52, %v60
    %v63 = vmul.f32 %v53, %v60
    %v64 = vmul.f32 %v54, %v60
    %v65 = vmul.f32 %v55, %v60
    %v66 = vpack.c.bf16 %v63, %v62
    %v67 = vpack.c.bf16 %v65, %v64
    %v68 = vld [vmem:[%s2] sm:$0xff]
    %v69 = vld [vmem:[%s2 + $0x8] sm:$0xff]
    %v70 = vld [vmem:[%s2 + $0x10] sm:$0xff]
    %v71 = vld [vmem:[%s2 + $0x18] sm:$0xff]
    %v72 = vld [vmem:[%s2 + $0x20] sm:$0xff]
    %v73 = vld [vmem:[%s2 + $0x28] sm:$0xff]
    %v74 = vld [vmem:[%s2 + $0x30] sm:$0xff]
    %v75 = vld [vmem:[%s2 + $0x38] sm:$0xff]
    %v76 = vld [vmem:[%s2 + $0x40] sm:$0xff]
    %v77 = vld [vmem:[%s2 + $0x48] sm:$0xff]
    %v78 = vld [vmem:[%s2 + $0x50] sm:$0xff]
    %v79 = vld [vmem:[%s2 + $0x58] sm:$0xff]
    %v80 = vld [vmem:[%s2 + $0x60] sm:$0xff]
    %v81 = vld [vmem:[%s2 + $0x68] sm:$0xff]
    %v82 = vld [vmem:[%s2 + $0x70] sm:$0xff]
    %v83 = vld [vmem:[%s2 + $0x78] sm:$0xff]
    %v100 = vunpack.c.l.b16 %v68
    %v101 = vunpack.c.h.b16 %v68
    %v102 = vunpack.c.l.b16 %v69
    %v103 = vunpack.c.h.b16 %v69
    %v104 = vunpack.c.l.b16 %v70
    %v105 = vunpack.c.h.b16 %v70
    %v106 = vunpack.c.l.b16 %v71
    %v107 = vunpack.c.h.b16 %v71
    %v108 = vunpack.c.l.b16 %v72
    %v109 = vunpack.c.h.b16 %v72
    %v110 = vunpack.c.l.b16 %v73
    %v111 = vunpack.c.h.b16 %v73
    %v112 = vunpack.c.l.b16 %v74
    %v113 = vunpack.c.h.b16 %v74
    %v114 = vunpack.c.l.b16 %v75
    %v115 = vunpack.c.h.b16 %v75
    %v116 = vunpack.c.l.b16 %v76
    %v117 = vunpack.c.h.b16 %v76
    %v118 = vunpack.c.l.b16 %v77
    %v119 = vunpack.c.h.b16 %v77
    %v120 = vunpack.c.l.b16 %v78
    %v121 = vunpack.c.h.b16 %v78
    %v122 = vunpack.c.l.b16 %v79
    %v123 = vunpack.c.h.b16 %v79
    %v124 = vunpack.c.l.b16 %v80
    %v125 = vunpack.c.h.b16 %v80
    %v126 = vunpack.c.l.b16 %v81
    %v127 = vunpack.c.h.b16 %v81
    %v128 = vunpack.c.l.b16 %v82
    %v129 = vunpack.c.h.b16 %v82
    %v130 = vunpack.c.l.b16 %v83
    %v131 = vunpack.c.h.b16 %v83
    %v132 = vpack.c.b16 %v102, %v100
    %v133 = vpack.c.b16 %v103, %v101
    %v134 = vpack.c.b16 %v106, %v104
    %v135 = vpack.c.b16 %v107, %v105
    %v136 = vpack.c.b16 %v110, %v108
    %v137 = vpack.c.b16 %v111, %v109
    %v138 = vpack.c.b16 %v114, %v112
    %v139 = vpack.c.b16 %v115, %v113
    %v140 = vpack.c.b16 %v118, %v116
    %v141 = vpack.c.b16 %v119, %v117
    %v142 = vpack.c.b16 %v122, %v120
    %v143 = vpack.c.b16 %v123, %v121
    %v144 = vpack.c.b16 %v126, %v124
    %v145 = vpack.c.b16 %v127, %v125
    %v146 = vpack.c.b16 %v130, %v128
    %v147 = vpack.c.b16 %v131, %v129
    %164 = vmatprep.subr.bf16.mxu0 %v133
    %165 = vmatpush1.bf16.msra.mxu0 %v132
    %166 = vmatprep.subr.bf16.mxu0 %v135
    %167 = vmatpush1.bf16.msra.mxu0 %v134
    %168 = vmatprep.subr.bf16.mxu0 %v137
    %169 = vmatpush1.bf16.msra.mxu0 %v136
    %170 = vmatprep.subr.bf16.mxu0 %v139
    %171 = vmatpush1.bf16.msra.mxu0 %v138
    %172 = vmatprep.subr.bf16.mxu0 %v141
    %173 = vmatpush1.bf16.msra.mxu0 %v140
    %174 = vmatprep.subr.bf16.mxu0 %v143
    %175 = vmatpush1.bf16.msra.mxu0 %v142
    %176 = vmatprep.subr.bf16.mxu0 %v145
    %177 = vmatpush1.bf16.msra.mxu0 %v144
    %178 = vmatprep.subr.bf16.mxu0 %v147
    %179 = vmatpush1.bf16.msra.mxu0 %v146
    %180 = vmatprep.subr.bf16.mxu0 0
    %181 = vmatpush1.bf16.msra.mxu0 0
    %182 = vmatprep.subr.bf16.mxu0 0
    %183 = vmatpush1.bf16.msra.mxu0 0
    %184 = vmatprep.subr.bf16.mxu0 0
    %185 = vmatpush1.bf16.msra.mxu0 0
    %186 = vmatprep.subr.bf16.mxu0 0
    %187 = vmatpush1.bf16.msra.mxu0 0
    %188 = vmatprep.subr.bf16.mxu0 0
    %189 = vmatpush1.bf16.msra.mxu0 0
    %190 = vmatprep.subr.bf16.mxu0 0
    %191 = vmatpush1.bf16.msra.mxu0 0
    %192 = vmatprep.subr.bf16.mxu0 0
    %193 = vmatpush1.bf16.msra.mxu0 0
    %194 = vmatprep.subr.bf16.mxu0 0
    %195 = vmatpush1.bf16.msra.mxu0 0
    %196 = vmatprep.mubr.bf16.mxu0 0
    %197 = vmatmul.mubr.bf16.gmra.mrb[0].mxu0 %v66
    %v198 = vpop.f32.mrb[0].mxu0
    %v199 = vadd.f32 0.0, %v198
    %v200 = vpop.f32.mrb[0].mxu0
    %v201 = vadd.f32 0.0, %v200
    %v202 = vpop.f32.mrb[0].mxu0
    %v203 = vadd.f32 0.0, %v202
    %v204 = vpop.f32.mrb[0].mxu0
    %v205 = vadd.f32 0.0, %v204
    %206 = vmatprep.mubr.bf16.mxu0 0
    %207 = vmatmul.mubr.bf16.gmra.mrb[0].mxu0 %v67
    %v208 = vpop.f32.mrb[0].mxu0
    %v209 = vadd.f32 0.0, %v208
    %v210 = vpop.f32.mrb[0].mxu0
    %v211 = vadd.f32 0.0, %v210
    %v212 = vpop.f32.mrb[0].mxu0
    %v213 = vadd.f32 0.0, %v212
    %v214 = vpop.f32.mrb[0].mxu0
    %v215 = vadd.f32 0.0, %v214
    %216 = vdwg.mxu0
    %217 = vst [vmem:[#allocation2] sm:$0xff] %v199
    %218 = vst [vmem:[#allocation2 + $0x8] sm:$0xff] %v201
    %219 = vst [vmem:[#allocation2 + $0x10] sm:$0xff] %v203
    %220 = vst [vmem:[#allocation2 + $0x18] sm:$0xff] %v205
    %221 = vst [vmem:[#allocation2 + $0x20] sm:$0xff] %v209
    %222 = vst [vmem:[#allocation2 + $0x28] sm:$0xff] %v211
    %223 = vst [vmem:[#allocation2 + $0x30] sm:$0xff] %v213
    %224 = vst [vmem:[#allocation2 + $0x38] sm:$0xff] %v215
    %v225 = vld [vmem:[%s3] sm:$0xff]
    %v226 = vld [vmem:[%s3 + $0x8] sm:$0xff]
    %v227 = vld [vmem:[%s3 + $0x10] sm:$0xff]
    %v228 = vld [vmem:[%s3 + $0x18] sm:$0xff]
    %v229 = vld [vmem:[%s3 + $0x20] sm:$0xff]
    %v230 = vld [vmem:[%s3 + $0x28] sm:$0xff]
    %v231 = vld [vmem:[%s3 + $0x30] sm:$0xff]
    %v232 = vld [vmem:[%s3 + $0x38] sm:$0xff]
    %v233 = vadd.f32 %v225, %v226
    %234 = vadd.xlane.f32.xlu0 %v233
    %v235 = vpop.xlane.xlu0 %234
    %v236 = vadd.f32 %v227, %v228
    %237 = vadd.xlane.f32.xlu0 %v236
    %v238 = vpop.xlane.xlu0 %237
    %v239 = vadd.f32 %v229, %v230
    %240 = vadd.xlane.f32.xlu0 %v239
    %v241 = vpop.xlane.xlu0 %240
    %v242 = vadd.f32 %v231, %v232
    %243 = vadd.xlane.f32.xlu0 %v242
    %v244 = vpop.xlane.xlu0 %243
    %v245 = vmax.f32 %v199, %v201
    %246 = vmax.xlane.f32.xlu0 %v245
    %v247 = vpop.xlane.xlu0 %246
    %v248 = vmax.f32 %v203, %v205
    %249 = vmax.xlane.f32.xlu0 %v248
    %v250 = vpop.xlane.xlu0 %249
    %v251 = vmax.f32 %v209, %v211
    %252 = vmax.xlane.f32.xlu0 %v251
    %v253 = vpop.xlane.xlu0 %252
    %v254 = vmax.f32 %v213, %v215
    %255 = vmax.xlane.f32.xlu0 %v254
    %v256 = vpop.xlane.xlu0 %255
    %v257 = vsub.f32 %v199, %v247
    %v258 = vsub.f32 %v201, %v247
    %v259 = vsub.f32 %v203, %v250
    %v260 = vsub.f32 %v205, %v250
    %v261 = vsub.f32 %v209, %v253
    %v262 = vsub.f32 %v211, %v253
    %v263 = vsub.f32 %v213, %v256
    %v264 = vsub.f32 %v215, %v256
    %v265 = vmul.f32 %v257, 1.442695
    %v266 = vpow.pop %v265
    %v267 = vmul.f32 %v258, 1.442695
    %v268 = vpow.pop %v267
    %v269 = vmul.f32 %v259, 1.442695
    %v270 = vpow.pop %v269
    %v271 = vmul.f32 %v260, 1.442695
    %v272 = vpow.pop %v271
    %v273 = vmul.f32 %v261, 1.442695
    %v274 = vpow.pop %v273
    %v275 = vmul.f32 %v262, 1.442695
    %v276 = vpow.pop %v275
    %v277 = vmul.f32 %v263, 1.442695
    %v278 = vpow.pop %v277
    %v279 = vmul.f32 %v264, 1.442695
    %v280 = vpow.pop %v279
    %v281 = vadd.f32 %v266, %v268
    %282 = vadd.xlane.f32.xlu0 %v281
    %v283 = vpop.xlane.xlu0 %282
    %v284 = vadd.f32 %v270, %v272
    %285 = vadd.xlane.f32.xlu0 %v284
    %v286 = vpop.xlane.xlu0 %285
    %v287 = vadd.f32 %v274, %v276
    %288 = vadd.xlane.f32.xlu0 %v287
    %v289 = vpop.xlane.xlu0 %288
    %v290 = vadd.f32 %v278, %v280
    %291 = vadd.xlane.f32.xlu0 %v290
    %v292 = vpop.xlane.xlu0 %291
    %v293 = vlog2.pop %v283
    %v294 = vmul.f32 %v293, 0.6931472
    %v295 = vlog2.pop %v286
    %v296 = vmul.f32 %v295, 0.6931472
    %v297 = vlog2.pop %v289
    %v298 = vmul.f32 %v297, 0.6931472
    %v299 = vlog2.pop %v292
    %v300 = vmul.f32 %v299, 0.6931472
    %v301 = vadd.f32 %v247, %v294
    %v302 = vadd.f32 %v250, %v296
    %v303 = vadd.f32 %v253, %v298
    %v304 = vadd.f32 %v256, %v300
    %v305 = vmul.f32 %v225, %v199
    %v306 = vmul.f32 %v226, %v201
    %v307 = vmul.f32 %v227, %v203
    %v308 = vmul.f32 %v228, %v205
    %v309 = vmul.f32 %v229, %v209
    %v310 = vmul.f32 %v230, %v211
    %v311 = vmul.f32 %v231, %v213
    %v312 = vmul.f32 %v232, %v215
    %v313 = vadd.f32 %v305, %v306
    %314 = vadd.xlane.f32.xlu0 %v313
    %v315 = vpop.xlane.xlu0 %314
    %v316 = vadd.f32 %v307, %v308
    %317 = vadd.xlane.f32.xlu0 %v316
    %v318 = vpop.xlane.xlu0 %317
    %v319 = vadd.f32 %v309, %v310
    %320 = vadd.xlane.f32.xlu0 %v319
    %v321 = vpop.xlane.xlu0 %320
    %v322 = vadd.f32 %v311, %v312
    %323 = vadd.xlane.f32.xlu0 %v322
    %v324 = vpop.xlane.xlu0 %323
    %v325 = vmul.f32 %v235, %v301
    %v326 = vmul.f32 %v238, %v302
    %v327 = vmul.f32 %v241, %v303
    %v328 = vmul.f32 %v244, %v304
    %v329 = vsub.f32 %v325, %v315
    %v330 = vsub.f32 %v326, %v318
    %v331 = vsub.f32 %v327, %v321
    %v332 = vsub.f32 %v328, %v324
    %vm333 = vcmask 7168
    %v334 = vsel %vm333, %v329, 0.0
    %v335 = vsel %vm333, %v330, 0.0
    %v336 = vadd.f32 %v334, %v335
    %v337 = vsel %vm333, %v331, 0.0
    %v338 = vadd.f32 %v336, %v337
    %v339 = vsel %vm333, %v332, 0.0
    %v340 = vadd.f32 %v338, %v339
    %341 = vadd.xlane.f32.xlu0 %v340
    %v342 = vpop.xlane.xlu0 %341
    %v343 = vrot.slane %v342, 4
    %v344 = vadd.f32 %v342, %v343
    %v345 = vrot.slane %v344, 2
    %v346 = vadd.f32 %v344, %v345
    %v347 = vrot.slane %v346, 1
    %v348 = vadd.f32 %v346, %v347
    %s349 = vtos %v348
    %s350 = scalar_lea.smem [#allocation5], 0
    %351 = sst [smem:[%s350]] %s349
    // Predicated region
    $region18: #{forward.3} parent=1 // pred_check
      _
    $region19: #{forward.3} parent=1 // pred_check_branch
      %353 = sbr.rel (0) target = $region21
    $region20: #{forward.3} parent=1 // pred_region
      %s355 = ssub.s32 1024, 1024
      %356 = vsyncadd [#allocation3], %s355
      %s357 = sshll.u32 [#allocation2], 4
      %s358 = int_to_ptr.vmem [resolvable:$true] %s357
      %363 = dma.vmem_to_hbm [thread:$0]  %s358, 1024, %s4, [#allocation3], 256, 256, 16
    $region21: #{forward.3} parent=1 // pred_fallthru
      _
    // Predicated region
    $region22: #{forward.3} parent=1 // pred_check
      _
    $region23: #{forward.3} parent=1 // pred_check_branch
      %365 = sbr.rel (0) target = $region25
    $region24: #{forward.3} parent=1 // pred_region
      %s367 = ssub.s32 16, 16
      %368 = vsyncadd [#allocation4], %s367
      %371 = dma.smem_to_hbm [#allocation5], 16, %s5, [#allocation4]
    $region25: #{forward.3} parent=1 // pred_fallthru
      _
    // Predicated region
    $region26: #{forward.3} parent=1 // pred_check
      _
    $region27: #{forward.3} parent=1 // pred_check_branch
      %373 = sbr.rel (0) target = $region29
    $region28: #{forward.3} parent=1 // pred_region
      %374 = dma.done [#allocation3], 1024
    $region29: #{forward.3} parent=1 // pred_fallthru
      _
    // Predicated region
    $region30: #{forward.3} parent=1 // pred_check
      _
    $region31: #{forward.3} parent=1 // pred_check_branch
      %376 = sbr.rel (0) target = $region33
    $region32: #{forward.3} parent=1 // pred_region
      %377 = dma.done [#allocation4], 16
    $region33: #{forward.3} parent=1 // pred_fallthru
      _
    %378 = sfence
    %379 = vsyncpa [#allocation3], 1
    %380 = vsyncpa [#allocation4], 1

// kernel: forward.2
$region0: #{forward.2}
  #allocation0 [shape = 'u32[]', space=smem, size = 0x4, offset = 0x4, fixed_abs, tag = 'smem constant byte address 0x4 - core index']
  #allocation1 [shape = 'u32[144,128]{1,0:T(1,128)}', space=vmem, size = 0x12000, scoped, tag = 'internal scratch']
  %s0 = inlined_call_operand.vmem [shape: f32[32,128], index: 0, kind: input, shape index: {}]
  %s1 = inlined_call_operand.vmem [shape: f32[2,16,16], index: 1, kind: input, shape index: {}]
  %s2 = inlined_call_operand.vmem [shape: f32[32,128], index: 2, kind: input, shape index: {}]
  %s3 = inlined_call_operand.vmem [shape: f32[32,128], index: 3, kind: input, shape index: {}]
  %s4 = inlined_call_operand.vmem [shape: f32[2,1,128], index: 4, kind: input, shape index: {}]
  %s5 = inlined_call_operand.vmem [shape: bf16[2,128,384], index: 5, kind: input, shape index: {}]
  %s6 = inlined_call_operand.vmem [shape: f32[2,1,384], index: 6, kind: input, shape index: {}]
  %s7 = inlined_call_operand.vmem [shape: bf16[2,128,128], index: 7, kind: input, shape index: {}]
  %s8 = inlined_call_operand.vmem [shape: f32[2,1,128], index: 8, kind: input, shape index: {}]
  %s9 = inlined_call_operand.vmem [shape: bf16[2,128,512], index: 9, kind: input, shape index: {}]
  %s10 = inlined_call_operand.hbm [shape: bf16[2,256,128], index: 10, kind: input, shape index: {}]
  %s11 = inlined_call_operand.vmem [shape: f32[32,128], index: 11, kind: output, shape index: {}]
  %s12 = sld [smem:[#allocation0]]
  $region85: #{forward.2} parent=0
    _
  %s14 = ssub.s32 1, %s12
  %s15 = scalar_select 0, %s14, %s12
  $region1: #{forward.2} parent=0
    #allocation2 [shape = 'u8[131072]{0}', space=vmem, size = 0x20000, scoped, tag = 'input window, operand 10']
    #allocation3 [shape = 's32[2]{0}', space=sflag, size = 0x8, scoped, tag = 'scoped memory for forward.2']
    %16 = vsyncpa [#allocation3], 0
    %s17 = scalar_lea.sflag [#allocation3], 1
    %18 = vsyncpa %s17, 0
    loop: start=0, step=1, limit=4
    $region2: #{forward.2} parent=1 // loop_pre_header
      _
    $region3: #{forward.2} parent=1 // loop_header
      %s20 = sphi 0, %s24
      %p21 = scmp.ge.s32.totalorder %s20, 4
      %s28 = sphi 0, %s28
      %s30 = sphi 0, %s28
      %s31 = sphi 0, %s30
      %s45 = sphi 0, %s31
      %s49 = sphi 0, %s49
      %s51 = sphi 0, %s49
      %s52 = sphi 0, %s51
      %s66 = sphi 0, %s52
      %s70 = sphi 0, %s70
      %s72 = sphi 0, %s70
      %s73 = sphi 0, %s72
      %s87 = sphi 0, %s73
      %s91 = sphi 0, %s91
      %s93 = sphi 0, %s91
      %s94 = sphi 0, %s93
      %s108 = sphi 0, %s94
      %s114 = sphi 0, %s116
      %s117 = sphi 0, %s114
      %s118 = sphi 0, %s117
      %s134 = sphi 0, %s118
      %s140 = sphi 0, %s142
      %s143 = sphi 0, %s140
      %s144 = sphi 0, %s143
      %s160 = sphi 0, %s144
      %s166 = sphi 0, %s168
      %s169 = sphi 0, %s166
      %s170 = sphi 0, %s169
      %s186 = sphi 0, %s170
      %s192 = sphi 0, %s194
      %s195 = sphi 0, %s192
      %s196 = sphi 0, %s195
      %s212 = sphi 0, %s196
      %s218 = sphi 0, %s220
      %s221 = sphi 0, %s218
      %s222 = sphi 0, %s221
      %s238 = sphi 0, %s222
      %s244 = sphi 0, %s246
      %s247 = sphi 0, %s244
      %s248 = sphi 0, %s247
      %s264 = sphi 0, %s248
      %s270 = sphi 0, %s272
      %s273 = sphi 0, %s270
      %s274 = sphi 0, %s273
      %s290 = sphi 0, %s274
      %s294 = sphi 0, %s294
      %s296 = sphi 0, %s294
      %s297 = sphi 0, %s296
      %s311 = sphi 0, %s297
    $region4: #{forward.2} parent=1 // loop_header_branch
      %23 = sbr.rel (%p21) target = $region8
    $region5: #{forward.2} parent=1 // loop_body
      %s25 = ssub.s32 %s20, 1
      %s26 = ssub.s32 %s20, 2
      %s27 = sadd.s32 %s20, 1
      %s29 = sadd.s32 %s28, 1
      %p32 = scmp.eq.s32.totalorder %s20, 1
      %p33 = scmp.ne.s32.totalorder %s28, %s30
      %p34 = scmp.eq.s32.totalorder %s20, 0
      %p35 = por %p33, %p34
      %p36 = scmp.ne.s32.totalorder %s28, %s30
      %p37 = scmp.eq.s32.totalorder %s25, 1
      %p38 = por %p36, %p37
      %p39 = scmp.ne.s32.totalorder %s30, %s31
      %p40 = scmp.eq.s32.totalorder %s25, 0
      %p41 = por %p39, %p40
      %p42 = scmp.ne.s32.totalorder %s30, %s31
      %p43 = scmp.eq.s32.totalorder %s26, 1
      %p44 = por %p42, %p43
      %p46 = scmp.ne.s32.totalorder %s31, %s45
      %p47 = scmp.eq.s32.totalorder %s26, 0
      %p48 = por %p46, %p47
      %s50 = sadd.s32 %s49, 1
      %p53 = scmp.eq.s32.totalorder %s20, 1
      %p54 = scmp.ne.s32.totalorder %s49, %s51
      %p55 = scmp.eq.s32.totalorder %s20, 0
      %p56 = por %p54, %p55
      %p57 = scmp.ne.s32.totalorder %s49, %s51
      %p58 = scmp.eq.s32.totalorder %s25, 1
      %p59 = por %p57, %p58
      %p60 = scmp.ne.s32.totalorder %s51, %s52
      %p61 = scmp.eq.s32.totalorder %s25, 0
      %p62 = por %p60, %p61
      %p63 = scmp.ne.s32.totalorder %s51, %s52
      %p64 = scmp.eq.s32.totalorder %s26, 1
      %p65 = por %p63, %p64
      %p67 = scmp.ne.s32.totalorder %s52, %s66
      %p68 = scmp.eq.s32.totalorder %s26, 0
      %p69 = por %p67, %p68
      %s71 = sadd.s32 %s70, 1
      %p74 = scmp.eq.s32.totalorder %s20, 1
      %p75 = scmp.ne.s32.totalorder %s70, %s72
      %p76 = scmp.eq.s32.totalorder %s20, 0
      %p77 = por %p75, %p76
      %p78 = scmp.ne.s32.totalorder %s70, %s72
      %p79 = scmp.eq.s32.totalorder %s25, 1
      %p80 = por %p78, %p79
      %p81 = scmp.ne.s32.totalorder %s72, %s73
      %p82 = scmp.eq.s32.totalorder %s25, 0
      %p83 = por %p81, %p82
      %p84 = scmp.ne.s32.totalorder %s72, %s73
      %p85 = scmp.eq.s32.totalorder %s26, 1
      %p86 = por %p84, %p85
      %p88 = scmp.ne.s32.totalorder %s73, %s87
      %p89 = scmp.eq.s32.totalorder %s26, 0
      %p90 = por %p88, %p89
      %s92 = sadd.s32 %s91, 1
      %p95 = scmp.eq.s32.totalorder %s20, 1
      %p96 = scmp.ne.s32.totalorder %s91, %s93
      %p97 = scmp.eq.s32.totalorder %s20, 0
      %p98 = por %p96, %p97
      %p99 = scmp.ne.s32.totalorder %s91, %s93
      %p100 = scmp.eq.s32.totalorder %s25, 1
      %p101 = por %p99, %p100
      %p102 = scmp.ne.s32.totalorder %s93, %s94
      %p103 = scmp.eq.s32.totalorder %s25, 0
      %p104 = por %p102, %p103
      %p105 = scmp.ne.s32.totalorder %s93, %s94
      %p106 = scmp.eq.s32.totalorder %s26, 1
      %p107 = por %p105, %p106
      %p109 = scmp.ne.s32.totalorder %s94, %s108
      %p110 = scmp.eq.s32.totalorder %s26, 0
      %p111 = por %p109, %p110
      %s112 = ssub.s32 %s20, %s27
      %p113 = scmp.eq.s32.totalorder %s112, 0
      %s115 = sadd.s32 %s114, 1
      %s116 = scalar_select %p113, %s114, %s115
      %p119 = pneg %p113
      %p120 = scmp.eq.s32.totalorder %s20, 1
      %p121 = por %p119, %p120
      %p122 = scmp.ne.s32.totalorder %s114, %s117
      %p123 = scmp.eq.s32.totalorder %s20, 0
      %p124 = por %p122, %p123
      %p125 = scmp.ne.s32.totalorder %s114, %s117
      %p126 = scmp.eq.s32.totalorder %s25, 1
      %p127 = por %p125, %p126
      %p128 = scmp.ne.s32.totalorder %s117, %s118
      %p129 = scmp.eq.s32.totalorder %s25, 0
      %p130 = por %p128, %p129
      %p131 = scmp.ne.s32.totalorder %s117, %s118
      %p132 = scmp.eq.s32.totalorder %s26, 1
      %p133 = por %p131, %p132
      %p135 = scmp.ne.s32.totalorder %s118, %s134
      %p136 = scmp.eq.s32.totalorder %s26, 0
      %p137 = por %p135, %p136
      %s138 = ssub.s32 %s20, %s27
      %p139 = scmp.eq.s32.totalorder %s138, 0
      %s141 = sadd.s32 %s140, 1
      %s142 = scalar_select %p139, %s140, %s141
      %p145 = pneg %p139
      %p146 = scmp.eq.s32.totalorder %s20, 1
      %p147 = por %p145, %p146
      %p148 = scmp.ne.s32.totalorder %s140, %s143
      %p149 = scmp.eq.s32.totalorder %s20, 0
      %p150 = por %p148, %p149
      %p151 = scmp.ne.s32.totalorder %s140, %s143
      %p152 = scmp.eq.s32.totalorder %s25, 1
      %p153 = por %p151, %p152
      %p154 = scmp.ne.s32.totalorder %s143, %s144
      %p155 = scmp.eq.s32.totalorder %s25, 0
      %p156 = por %p154, %p155
      %p157 = scmp.ne.s32.totalorder %s143, %s144
      %p158 = scmp.eq.s32.totalorder %s26, 1
      %p159 = por %p157, %p158
      %p161 = scmp.ne.s32.totalorder %s144, %s160
      %p162 = scmp.eq.s32.totalorder %s26, 0
      %p163 = por %p161, %p162
      %s164 = ssub.s32 %s20, %s27
      %p165 = scmp.eq.s32.totalorder %s164, 0
      %s167 = sadd.s32 %s166, 1
      %s168 = scalar_select %p165, %s166, %s167
      %p171 = pneg %p165
      %p172 = scmp.eq.s32.totalorder %s20, 1
      %p173 = por %p171, %p172
      %p174 = scmp.ne.s32.totalorder %s166, %s169
      %p175 = scmp.eq.s32.totalorder %s20, 0
      %p176 = por %p174, %p175
      %p177 = scmp.ne.s32.totalorder %s166, %s169
      %p178 = scmp.eq.s32.totalorder %s25, 1
      %p179 = por %p177, %p178
      %p180 = scmp.ne.s32.totalorder %s169, %s170
      %p181 = scmp.eq.s32.totalorder %s25, 0
      %p182 = por %p180, %p181
      %p183 = scmp.ne.s32.totalorder %s169, %s170
      %p184 = scmp.eq.s32.totalorder %s26, 1
      %p185 = por %p183, %p184
      %p187 = scmp.ne.s32.totalorder %s170, %s186
      %p188 = scmp.eq.s32.totalorder %s26, 0
      %p189 = por %p187, %p188
      %s190 = ssub.s32 %s20, %s27
      %p191 = scmp.eq.s32.totalorder %s190, 0
      %s193 = sadd.s32 %s192, 1
      %s194 = scalar_select %p191, %s192, %s193
      %p197 = pneg %p191
      %p198 = scmp.eq.s32.totalorder %s20, 1
      %p199 = por %p197, %p198
      %p200 = scmp.ne.s32.totalorder %s192, %s195
      %p201 = scmp.eq.s32.totalorder %s20, 0
      %p202 = por %p200, %p201
      %p203 = scmp.ne.s32.totalorder %s192, %s195
      %p204 = scmp.eq.s32.totalorder %s25, 1
      %p205 = por %p203, %p204
      %p206 = scmp.ne.s32.totalorder %s195, %s196
      %p207 = scmp.eq.s32.totalorder %s25, 0
      %p208 = por %p206, %p207
      %p209 = scmp.ne.s32.totalorder %s195, %s196
      %p210 = scmp.eq.s32.totalorder %s26, 1
      %p211 = por %p209, %p210
      %p213 = scmp.ne.s32.totalorder %s196, %s212
      %p214 = scmp.eq.s32.totalorder %s26, 0
      %p215 = por %p213, %p214
      %s216 = ssub.s32 %s20, %s27
      %p217 = scmp.eq.s32.totalorder %s216, 0
      %s219 = sadd.s32 %s218, 1
      %s220 = scalar_select %p217, %s218, %s219
      %p223 = pneg %p217
      %p224 = scmp.eq.s32.totalorder %s20, 1
      %p225 = por %p223, %p224
      %p226 = scmp.ne.s32.totalorder %s218, %s221
      %p227 = scmp.eq.s32.totalorder %s20, 0
      %p228 = por %p226, %p227
      %p229 = scmp.ne.s32.totalorder %s218, %s221
      %p230 = scmp.eq.s32.totalorder %s25, 1
      %p231 = por %p229, %p230
      %p232 = scmp.ne.s32.totalorder %s221, %s222
      %p233 = scmp.eq.s32.totalorder %s25, 0
      %p234 = por %p232, %p233
      %p235 = scmp.ne.s32.totalorder %s221, %s222
      %p236 = scmp.eq.s32.totalorder %s26, 1
      %p237 = por %p235, %p236
      %p239 = scmp.ne.s32.totalorder %s222, %s238
      %p240 = scmp.eq.s32.totalorder %s26, 0
      %p241 = por %p239, %p240
      %s242 = ssub.s32 %s20, %s27
      %p243 = scmp.eq.s32.totalorder %s242, 0
      %s245 = sadd.s32 %s244, 1
      %s246 = scalar_select %p243, %s244, %s245
      %p249 = pneg %p243
      %p250 = scmp.eq.s32.totalorder %s20, 1
      %p251 = por %p249, %p250
      %p252 = scmp.ne.s32.totalorder %s244, %s247
      %p253 = scmp.eq.s32.totalorder %s20, 0
      %p254 = por %p252, %p253
      %p255 = scmp.ne.s32.totalorder %s244, %s247
      %p256 = scmp.eq.s32.totalorder %s25, 1
      %p257 = por %p255, %p256
      %p258 = scmp.ne.s32.totalorder %s247, %s248
      %p259 = scmp.eq.s32.totalorder %s25, 0
      %p260 = por %p258, %p259
      %p261 = scmp.ne.s32.totalorder %s247, %s248
      %p262 = scmp.eq.s32.totalorder %s26, 1
      %p263 = por %p261, %p262
      %p265 = scmp.ne.s32.totalorder %s248, %s264
      %p266 = scmp.eq.s32.totalorder %s26, 0
      %p267 = por %p265, %p266
      %s268 = ssub.s32 %s20, %s27
      %p269 = scmp.eq.s32.totalorder %s268, 0
      %s271 = sadd.s32 %s270, 1
      %s272 = scalar_select %p269, %s270, %s271
      %p275 = pneg %p269
      %p276 = scmp.eq.s32.totalorder %s20, 1
      %p277 = por %p275, %p276
      %p278 = scmp.ne.s32.totalorder %s270, %s273
      %p279 = scmp.eq.s32.totalorder %s20, 0
      %p280 = por %p278, %p279
      %p281 = scmp.ne.s32.totalorder %s270, %s273
      %p282 = scmp.eq.s32.totalorder %s25, 1
      %p283 = por %p281, %p282
      %p284 = scmp.ne.s32.totalorder %s273, %s274
      %p285 = scmp.eq.s32.totalorder %s25, 0
      %p286 = por %p284, %p285
      %p287 = scmp.ne.s32.totalorder %s273, %s274
      %p288 = scmp.eq.s32.totalorder %s26, 1
      %p289 = por %p287, %p288
      %p291 = scmp.ne.s32.totalorder %s274, %s290
      %p292 = scmp.eq.s32.totalorder %s26, 0
      %p293 = por %p291, %p292
      %s295 = sadd.s32 %s294, 1
      %p298 = scmp.eq.s32.totalorder %s20, 1
      %p299 = scmp.ne.s32.totalorder %s294, %s296
      %p300 = scmp.eq.s32.totalorder %s20, 0
      %p301 = por %p299, %p300
      %p302 = scmp.ne.s32.totalorder %s294, %s296
      %p303 = scmp.eq.s32.totalorder %s25, 1
      %p304 = por %p302, %p303
      %p305 = scmp.ne.s32.totalorder %s296, %s297
      %p306 = scmp.eq.s32.totalorder %s25, 0
      %p307 = por %p305, %p306
      %p308 = scmp.ne.s32.totalorder %s296, %s297
      %p309 = scmp.eq.s32.totalorder %s26, 1
      %p310 = por %p308, %p309
      %p312 = scmp.ne.s32.totalorder %s297, %s311
      %p313 = scmp.eq.s32.totalorder %s26, 0
      %p314 = por %p312, %p313
      %p315 = scmp.le.s32.totalorder 1, %s20
      %p316 = scmp.lt.s32.totalorder %s20, 3
      %p317 = pnand %p315, %p316
      %p318 = pneg %p317
      // Predicated region
      $region9: #{forward.2} parent=5 // pred_check
        _
      $region10: #{forward.2} parent=5 // pred_check_branch
        %320 = sbr.rel (%p317) target = $region12
      $region11: #{forward.2} parent=5 // pred_region
        %s321 = ssub.s32 %s20, 1
        // Predicated region
        $region13: #{forward.2} parent=11 // pred_check
          %p322 = pneg %p41
        $region14: #{forward.2} parent=11 // pred_check_branch
          %324 = sbr.rel (%p322) target = $region16
        $region15: #{forward.2} parent=11 // pred_region
          _
        $region16: #{forward.2} parent=11 // pred_fallthru
          _
        // Predicated region
        $region17: #{forward.2} parent=11 // pred_check
          %p325 = pneg %p62
        $region18: #{forward.2} parent=11 // pred_check_branch
          %327 = sbr.rel (%p325) target = $region20
        $region19: #{forward.2} parent=11 // pred_region
          _
        $region20: #{forward.2} parent=11 // pred_fallthru
          _
        // Predicated region
        $region21: #{forward.2} parent=11 // pred_check
          %p328 = pneg %p83
        $region22: #{forward.2} parent=11 // pred_check_branch
          %330 = sbr.rel (%p328) target = $region24
        $region23: #{forward.2} parent=11 // pred_region
          _
        $region24: #{forward.2} parent=11 // pred_fallthru
          _
        // Predicated region
        $region25: #{forward.2} parent=11 // pred_check
          %p331 = pneg %p104
        $region26: #{forward.2} parent=11 // pred_check_branch
          %333 = sbr.rel (%p331) target = $region28
        $region27: #{forward.2} parent=11 // pred_region
          _
        $region28: #{forward.2} parent=11 // pred_fallthru
          _
      $region12: #{forward.2} parent=5 // pred_fallthru
        _
      %p334 = scmp.lt.s32.totalorder %s20, 2
      // Predicated region
      $region29: #{forward.2} parent=5 // pred_check
        %p335 = pneg %p334
      $region30: #{forward.2} parent=5 // pred_check_branch
        %337 = sbr.rel (%p335) target = $region32
      $region31: #{forward.2} parent=5 // pred_region
        // Predicated region
        $region33: #{forward.2} parent=31 // pred_check
          %p338 = pneg %p124
        $region34: #{forward.2} parent=31 // pred_check_branch
          %340 = sbr.rel (%p338) target = $region36
        $region35: #{forward.2} parent=31 // pred_region
          %p341 = scmp.lt.s32.totalorder %s20, 1
          %s342 = scalar_select %p341, %s20, 1
          %s343 = scalar_lea.vmem %s4, %s342
        $region36: #{forward.2} parent=31 // pred_fallthru
          _
        // Predicated region
        $region37: #{forward.2} parent=31 // pred_check
          %p344 = pneg %p150
        $region38: #{forward.2} parent=31 // pred_check_branch
          %346 = sbr.rel (%p344) target = $region40
        $region39: #{forward.2} parent=31 // pred_region
          %p347 = scmp.lt.s32.totalorder %s20, 1
          %s348 = scalar_select %p347, %s20, 1
          %s349 = smul.addr %s348, 48
          %s350 = smul.addr %s349, 4
          %s351 = scalar_lea.vmem %s5, %s350
        $region40: #{forward.2} parent=31 // pred_fallthru
          _
        // Predicated region
        $region41: #{forward.2} parent=31 // pred_check
          %p352 = pneg %p176
        $region42: #{forward.2} parent=31 // pred_check_branch
          %354 = sbr.rel (%p352) target = $region44
        $region43: #{forward.2} parent=31 // pred_region
          %p355 = scmp.lt.s32.totalorder %s20, 1
          %s356 = scalar_select %p355, %s20, 1
          %s357 = smul.addr %s356, 3
          %s358 = scalar_lea.vmem %s6, %s357
        $region44: #{forward.2} parent=31 // pred_fallthru
          _
        // Predicated region
        $region45: #{forward.2} parent=31 // pred_check
          %p359 = pneg %p202
        $region46: #{forward.2} parent=31 // pred_check_branch
          %361 = sbr.rel (%p359) target = $region48
        $region47: #{forward.2} parent=31 // pred_region
          %p362 = scmp.lt.s32.totalorder %s20, 1
          %s363 = scalar_select %p362, %s20, 1
          %s364 = smul.addr %s363, 16
          %s365 = smul.addr %s364, 4
          %s366 = scalar_lea.vmem %s7, %s365
        $region48: #{forward.2} parent=31 // pred_fallthru
          _
        // Predicated region
        $region49: #{forward.2} parent=31 // pred_check
          %p367 = pneg %p228
        $region50: #{forward.2} parent=31 // pred_check_branch
          %369 = sbr.rel (%p367) target = $region52
        $region51: #{forward.2} parent=31 // pred_region
          %p370 = scmp.lt.s32.totalorder %s20, 1
          %s371 = scalar_select %p370, %s20, 1
          %s372 = scalar_lea.vmem %s8, %s371
        $region52: #{forward.2} parent=31 // pred_fallthru
          _
        // Predicated region
        $region53: #{forward.2} parent=31 // pred_check
          %p373 = pneg %p254
        $region54: #{forward.2} parent=31 // pred_check_branch
          %375 = sbr.rel (%p373) target = $region56
        $region55: #{forward.2} parent=31 // pred_region
          %p376 = scmp.lt.s32.totalorder %s20, 1
          %s377 = scalar_select %p376, %s20, 1
          %s378 = smul.addr %s377, 64
          %s379 = smul.addr %s378, 4
          %s380 = scalar_lea.vmem %s9, %s379
        $region56: #{forward.2} parent=31 // pred_fallthru
          _
        // Predicated region
        $region57: #{forward.2} parent=31 // pred_check
          %p381 = pneg %p280
        $region58: #{forward.2} parent=31 // pred_check_branch
          %383 = sbr.rel (%p381) target = $region60
        $region59: #{forward.2} parent=31 // pred_region
          %s384 = sand.u32 %s270, 1
          %s385 = scalar_lea.sflag [#allocation3], %s384
          %s386 = sand.u32 %s270, 1
          %s387 = smul.addr %s386, 128
          %s388 = scalar_lea.vmem [#allocation2], %s387
          %s390 = ssub.s32 2048, 2048
          %391 = vsyncadd %s385, %s390
          %s392 = smul.addr %s20, 32
          %s393 = smul.addr %s392, 64
          %s394 = scalar_lea.hbm %s10, %s393
          %s395 = sshll.u32 %s388, 4
          %s396 = int_to_ptr.vmem [resolvable:$true] %s395
          %401 = dma.hbm_to_vmem [thread:$0]  %s394, 2048, %s396, %s385, 64, 64, 4
        $region60: #{forward.2} parent=31 // pred_fallthru
          _
      $region32: #{forward.2} parent=5 // pred_fallthru
        _
      %p402 = scmp.le.s32.totalorder 1, %s20
      %p403 = scmp.lt.s32.totalorder %s20, 3
      %p404 = pnand %p402, %p403
      %p405 = pneg %p404
      // Predicated region
      $region61: #{forward.2} parent=5 // pred_check
        _
      $region62: #{forward.2} parent=5 // pred_check_branch
        %407 = sbr.rel (%p404) target = $region64
      $region63: #{forward.2} parent=5 // pred_region
        %s408 = ssub.s32 %s20, 1
        %s409 = sand.u32 %s273, 1
        %s410 = scalar_lea.sflag [#allocation3], %s409
        %s411 = sand.u32 %s273, 1
        %s412 = smul.addr %s411, 128
        %s413 = scalar_lea.vmem [#allocation2], %s412
        // Predicated region
        $region65: #{forward.2} parent=63 // pred_check
          %p414 = pneg %p286
        $region66: #{forward.2} parent=63 // pred_check_branch
          %416 = sbr.rel (%p414) target = $region68
        $region67: #{forward.2} parent=63 // pred_region
          %417 = dma.done %s410, 2048
        $region68: #{forward.2} parent=63 // pred_fallthru
          _
        %p418 = pneg %p41
        %p419 = pneg %p38
        %p420 = pneg %p62
        %p421 = pneg %p59
        %p422 = pneg %p83
        %p423 = pneg %p80
        %p424 = pneg %p104
        %p425 = pneg %p101
        %p426 = scmp.lt.s32.totalorder %s25, 1
        %s427 = scalar_select %p426, %s25, 1
        %s428 = scalar_lea.vmem %s4, %s427
        %p429 = pneg %p130
        %p430 = pneg %p127
        %p431 = scmp.lt.s32.totalorder %s25, 1
        %s432 = scalar_select %p431, %s25, 1
        %s433 = smul.addr %s432, 48
        %s434 = smul.addr %s433, 4
        %s435 = scalar_lea.vmem %s5, %s434
        %p436 = pneg %p156
        %p437 = pneg %p153
        %p438 = scmp.lt.s32.totalorder %s25, 1
        %s439 = scalar_select %p438, %s25, 1
        %s440 = smul.addr %s439, 3
        %s441 = scalar_lea.vmem %s6, %s440
        %p442 = pneg %p182
        %p443 = pneg %p179
        %p444 = scmp.lt.s32.totalorder %s25, 1
        %s445 = scalar_select %p444, %s25, 1
        %s446 = smul.addr %s445, 16
        %s447 = smul.addr %s446, 4
        %s448 = scalar_lea.vmem %s7, %s447
        %p449 = pneg %p208
        %p450 = pneg %p205
        %p451 = scmp.lt.s32.totalorder %s25, 1
        %s452 = scalar_select %p451, %s25, 1
        %s453 = scalar_lea.vmem %s8, %s452
        %p454 = pneg %p234
        %p455 = pneg %p231
        %p456 = scmp.lt.s32.totalorder %s25, 1
        %s457 = scalar_select %p456, %s25, 1
        %s458 = smul.addr %s457, 64
        %s459 = smul.addr %s458, 4
        %s460 = scalar_lea.vmem %s9, %s459
        %p461 = pneg %p260
        %p462 = pneg %p257
        %s463 = sand.u32 %s273, 1
        %s464 = scalar_lea.sflag [#allocation3], %s463
        %s465 = sand.u32 %s273, 1
        %s466 = smul.addr %s465, 128
        %s467 = scalar_lea.vmem [#allocation2], %s466
        %p468 = pneg %p286
        %p469 = pneg %p283
        %p470 = pneg %p307
        %p471 = pneg %p304
        %p472 = scmp.lt.s32.totalorder %s25, 1
        %s473 = scalar_select %p472, %s25, 1
        %s474 = scalar_lea.vmem %s4, %s473
        %p475 = scmp.lt.s32.totalorder %s25, 1
        %s476 = scalar_select %p475, %s25, 1
        %s477 = smul.addr %s476, 48
        %s478 = smul.addr %s477, 4
        %s479 = scalar_lea.vmem %s5, %s478
        %p480 = scmp.lt.s32.totalorder %s25, 1
        %s481 = scalar_select %p480, %s25, 1
        %s482 = smul.addr %s481, 3
        %s483 = scalar_lea.vmem %s6, %s482
        %p484 = scmp.lt.s32.totalorder %s25, 1
        %s485 = scalar_select %p484, %s25, 1
        %s486 = smul.addr %s485, 16
        %s487 = smul.addr %s486, 4
        %s488 = scalar_lea.vmem %s7, %s487
        %p489 = scmp.lt.s32.totalorder %s25, 1
        %s490 = scalar_select %p489, %s25, 1
        %s491 = scalar_lea.vmem %s8, %s490
        %p492 = scmp.lt.s32.totalorder %s25, 1
        %s493 = scalar_select %p492, %s25, 1
        %s494 = smul.addr %s493, 64
        %s495 = smul.addr %s494, 4
        %s496 = scalar_lea.vmem %s9, %s495
        %p498 = scmp.eq.s32.totalorder %s25, 0
        // Predicated region
        $region69: #{forward.2} parent=63 // pred_check
          %p499 = pneg %p498
        $region70: #{forward.2} parent=63 // pred_check_branch
          %501 = sbr.rel (%p499) target = $region72
        $region71: #{forward.2} parent=63 // pred_region
          %v502 = vld [vmem:[%s0] sm:$0xff]
          %v503 = vld [vmem:[%s0 + $0x8] sm:$0xff]
          %v504 = vld [vmem:[%s0 + $0x10] sm:$0xff]
          %v505 = vld [vmem:[%s0 + $0x18] sm:$0xff]
          %506 = vst [vmem:[%s11] sm:$0xff] %v502
          %507 = vst [vmem:[%s11 + $0x8] sm:$0xff] %v503
          %508 = vst [vmem:[%s11 + $0x10] sm:$0xff] %v504
          %509 = vst [vmem:[%s11 + $0x18] sm:$0xff] %v505
        $region72: #{forward.2} parent=63 // pred_fallthru
          _
        %v510 = vld [vmem:[%s11] sm:$0xff]
        %v511 = vld [vmem:[%s11 + $0x8] sm:$0xff]
        %v512 = vld [vmem:[%s11 + $0x10] sm:$0xff]
        %v513 = vld [vmem:[%s11 + $0x18] sm:$0xff]
        %v514 = vld [vmem:[%s474] sm:$0x1]
        %v515 = vmul.f32 %v510, %v510
        %v516 = vmul.f32 %v511, %v511
        %v517 = vmul.f32 %v512, %v512
        %v518 = vmul.f32 %v513, %v513
        %519 = vadd.xlane.f32.xlu0 %v515
        %v520 = vpop.xlane.xlu0 %519
        %521 = vadd.xlane.f32.xlu0 %v516
        %v522 = vpop.xlane.xlu0 %521
        %523 = vadd.xlane.f32.xlu0 %v517
        %v524 = vpop.xlane.xlu0 %523
        %525 = vadd.xlane.f32.xlu0 %v518
        %v526 = vpop.xlane.xlu0 %525
        %v527 = vrcp.pop 128.0
        %v528 = vmul.f32 %v520, %v527
        %v529 = vmul.f32 %v522, %v527
        %v530 = vmul.f32 %v524, %v527
        %v531 = vmul.f32 %v526, %v527
        %v532 = vadd.f32 %v528, 1e-06
        %v533 = vadd.f32 %v529, 1e-06
        %v534 = vadd.f32 %v530, 1e-06
        %v535 = vadd.f32 %v531, 1e-06
        %v536 = vrsqrt.pop %v532
        %v537 = vrsqrt.pop %v533
        %v538 = vrsqrt.pop %v534
        %v539 = vrsqrt.pop %v535
        %v540 = vmul.f32 %v510, %v536
        %v541 = vmul.f32 %v511, %v537
        %v542 = vmul.f32 %v512, %v538
        %v543 = vmul.f32 %v513, %v539
        %v545 = vlaneseq
        %v546 = vshrl.u32 %v545, 7
        %v547 = vsub.s32 0, %v546
        %v548 = vrot.slane %v514, %v547
        %v550 = vmul.f32 %v540, %v548
        %v551 = vmul.f32 %v541, %v548
        %v552 = vmul.f32 %v542, %v548
        %v553 = vmul.f32 %v543, %v548
        %v554 = vpack.c.bf16 %v551, %v550
        %v555 = vpack.c.bf16 %v553, %v552
        %v556 = vld [vmem:[%s479] sm:$0xff]
        %v557 = vld [vmem:[%s479 + $0x8] sm:$0xf]
        %v558 = vld [vmem:[%s479 + $0xc] sm:$0xff]
        %v559 = vld [vmem:[%s479 + $0x14] sm:$0xf]
        %v560 = vld [vmem:[%s479 + $0x18] sm:$0xff]
        %v561 = vld [vmem:[%s479 + $0x20] sm:$0xf]
        %v562 = vld [vmem:[%s479 + $0x24] sm:$0xff]
        %v563 = vld [vmem:[%s479 + $0x2c] sm:$0xf]
        %v564 = vld [vmem:[%s479 + $0x30] sm:$0xff]
        %v565 = vld [vmem:[%s479 + $0x38] sm:$0xf]
        %v566 = vld [vmem:[%s479 + $0x3c] sm:$0xff]
        %v567 = vld [vmem:[%s479 + $0x44] sm:$0xf]
        %v568 = vld [vmem:[%s479 + $0x48] sm:$0xff]
        %v569 = vld [vmem:[%s479 + $0x50] sm:$0xf]
        %v570 = vld [vmem:[%s479 + $0x54] sm:$0xff]
        %v571 = vld [vmem:[%s479 + $0x5c] sm:$0xf]
        %v572 = vld [vmem:[%s479 + $0x60] sm:$0xff]
        %v573 = vld [vmem:[%s479 + $0x68] sm:$0xf]
        %v574 = vld [vmem:[%s479 + $0x6c] sm:$0xff]
        %v575 = vld [vmem:[%s479 + $0x74] sm:$0xf]
        %v576 = vld [vmem:[%s479 + $0x78] sm:$0xff]
        %v577 = vld [vmem:[%s479 + $0x80] sm:$0xf]
        %v578 = vld [vmem:[%s479 + $0x84] sm:$0xff]
        %v579 = vld [vmem:[%s479 + $0x8c] sm:$0xf]
        %v580 = vld [vmem:[%s479 + $0x90] sm:$0xff]
        %v581 = vld [vmem:[%s479 + $0x98] sm:$0xf]
        %v582 = vld [vmem:[%s479 + $0x9c] sm:$0xff]
        %v583 = vld [vmem:[%s479 + $0xa4] sm:$0xf]
        %v584 = vld [vmem:[%s479 + $0xa8] sm:$0xff]
        %v585 = vld [vmem:[%s479 + $0xb0] sm:$0xf]
        %v586 = vld [vmem:[%s479 + $0xb4] sm:$0xff]
        %v587 = vld [vmem:[%s479 + $0xbc] sm:$0xf]
        %v588 = vld [vmem:[%s483] sm:$0x7]
        %v590 = vlaneseq
        %v591 = vshrl.u32 %v590, 7
        %v592 = vsub.s32 0, %v591
        %v593 = vrot.slane %v588, %v592
        %v594 = vlaneseq
        %v595 = vshrl.u32 %v594, 7
        %v596 = vsub.s32 1, %v595
        %v597 = vrot.slane %v588, %v596
        %v598 = vlaneseq
        %v599 = vshrl.u32 %v598, 7
        %v600 = vsub.s32 2, %v599
        %v601 = vrot.slane %v588, %v600
        %v637 = vunpack.c.l.b16 %v556
        %v638 = vunpack.c.h.b16 %v556
        %v639 = vunpack.c.l.b16 %v557
        %v640 = vunpack.c.l.b16 %v558
        %v641 = vunpack.c.h.b16 %v558
        %v642 = vunpack.c.l.b16 %v559
        %v643 = vunpack.c.l.b16 %v560
        %v644 = vunpack.c.h.b16 %v560
        %v645 = vunpack.c.l.b16 %v561
        %v646 = vunpack.c.l.b16 %v562
        %v647 = vunpack.c.h.b16 %v562
        %v648 = vunpack.c.l.b16 %v563
        %v649 = vunpack.c.l.b16 %v564
        %v650 = vunpack.c.h.b16 %v564
        %v651 = vunpack.c.l.b16 %v565
        %v652 = vunpack.c.l.b16 %v566
        %v653 = vunpack.c.h.b16 %v566
        %v654 = vunpack.c.l.b16 %v567
        %v655 = vunpack.c.l.b16 %v568
        %v656 = vunpack.c.h.b16 %v568
        %v657 = vunpack.c.l.b16 %v569
        %v658 = vunpack.c.l.b16 %v570
        %v659 = vunpack.c.h.b16 %v570
        %v660 = vunpack.c.l.b16 %v571
        %v661 = vunpack.c.l.b16 %v572
        %v662 = vunpack.c.h.b16 %v572
        %v663 = vunpack.c.l.b16 %v573
        %v664 = vunpack.c.l.b16 %v574
        %v665 = vunpack.c.h.b16 %v574
        %v666 = vunpack.c.l.b16 %v575
        %v667 = vunpack.c.l.b16 %v576
        %v668 = vunpack.c.h.b16 %v576
        %v669 = vunpack.c.l.b16 %v577
        %v670 = vunpack.c.l.b16 %v578
        %v671 = vunpack.c.h.b16 %v578
        %v672 = vunpack.c.l.b16 %v579
        %v673 = vunpack.c.l.b16 %v580
        %v674 = vunpack.c.h.b16 %v580
        %v675 = vunpack.c.l.b16 %v581
        %v676 = vunpack.c.l.b16 %v582
        %v677 = vunpack.c.h.b16 %v582
        %v678 = vunpack.c.l.b16 %v583
        %v679 = vunpack.c.l.b16 %v584
        %v680 = vunpack.c.h.b16 %v584
        %v681 = vunpack.c.l.b16 %v585
        %v682 = vunpack.c.l.b16 %v586
        %v683 = vunpack.c.h.b16 %v586
        %v684 = vunpack.c.l.b16 %v587
        %v685 = vpack.c.b16 %v640, %v637
        %v686 = vpack.c.b16 %v641, %v638
        %v687 = vpack.c.b16 %v642, %v639
        %v688 = vpack.c.b16 %v646, %v643
        %v689 = vpack.c.b16 %v647, %v644
        %v690 = vpack.c.b16 %v648, %v645
        %v691 = vpack.c.b16 %v652, %v649
        %v692 = vpack.c.b16 %v653, %v650
        %v693 = vpack.c.b16 %v654, %v651
        %v694 = vpack.c.b16 %v658, %v655
        %v695 = vpack.c.b16 %v659, %v656
        %v696 = vpack.c.b16 %v660, %v657
        %v697 = vpack.c.b16 %v664, %v661
        %v698 = vpack.c.b16 %v665, %v662
        %v699 = vpack.c.b16 %v666, %v663
        %v700 = vpack.c.b16 %v670, %v667
        %v701 = vpack.c.b16 %v671, %v668
        %v702 = vpack.c.b16 %v672, %v669
        %v703 = vpack.c.b16 %v676, %v673
        %v704 = vpack.c.b16 %v677, %v674
        %v705 = vpack.c.b16 %v678, %v675
        %v706 = vpack.c.b16 %v682, %v679
        %v707 = vpack.c.b16 %v683, %v680
        %v708 = vpack.c.b16 %v684, %v681
        %733 = vmatprep.subr.bf16.mxu0 %v686
        %734 = vmatpush1.bf16.msra.mxu0 %v685
        %735 = vmatprep.subr.bf16.mxu0 %v689
        %736 = vmatpush1.bf16.msra.mxu0 %v688
        %737 = vmatprep.subr.bf16.mxu0 %v692
        %738 = vmatpush1.bf16.msra.mxu0 %v691
        %739 = vmatprep.subr.bf16.mxu0 %v695
        %740 = vmatpush1.bf16.msra.mxu0 %v694
        %741 = vmatprep.subr.bf16.mxu0 %v698
        %742 = vmatpush1.bf16.msra.mxu0 %v697
        %743 = vmatprep.subr.bf16.mxu0 %v701
        %744 = vmatpush1.bf16.msra.mxu0 %v700
        %745 = vmatprep.subr.bf16.mxu0 %v704
        %746 = vmatpush1.bf16.msra.mxu0 %v703
        %747 = vmatprep.subr.bf16.mxu0 %v707
        %748 = vmatpush1.bf16.msra.mxu0 %v706
        %749 = vmatprep.subr.bf16.mxu0 0
        %750 = vmatpush1.bf16.msra.mxu0 0
        %751 = vmatprep.subr.bf16.mxu0 0
        %752 = vmatpush1.bf16.msra.mxu0 0
        %753 = vmatprep.subr.bf16.mxu0 0
        %754 = vmatpush1.bf16.msra.mxu0 0
        %755 = vmatprep.subr.bf16.mxu0 0
        %756 = vmatpush1.bf16.msra.mxu0 0
        %757 = vmatprep.subr.bf16.mxu0 0
        %758 = vmatpush1.bf16.msra.mxu0 0
        %759 = vmatprep.subr.bf16.mxu0 0
        %760 = vmatpush1.bf16.msra.mxu0 0
        %761 = vmatprep.subr.bf16.mxu0 0
        %762 = vmatpush1.bf16.msra.mxu0 0
        %763 = vmatprep.subr.bf16.mxu0 0
        %764 = vmatpush1.bf16.msra.mxu0 0
        %765 = vmatprep.mubr.bf16.mxu0 0
        %766 = vmatmul.mubr.bf16.gmra.mrb[0].mxu0 %v554
        %v767 = vpop.f32.mrb[0].mxu0
        %v768 = vadd.f32 %v593, %v767
        %v769 = vpop.f32.mrb[0].mxu0
        %v770 = vadd.f32 %v597, %v769
        %v771 = vpop.f32.mrb[0].mxu0
        %v772 = vadd.f32 %v593, %v771
        %v773 = vpop.f32.mrb[0].mxu0
        %v774 = vadd.f32 %v597, %v773
        %775 = vmatprep.mubr.bf16.mxu0 0
        %776 = vmatmul.mubr.bf16.gmra.mrb[0].mxu0 %v555
        %v777 = vpop.f32.mrb[0].mxu0
        %v778 = vadd.f32 %v593, %v777
        %v779 = vpop.f32.mrb[0].mxu0
        %v780 = vadd.f32 %v597, %v779
        %v781 = vpop.f32.mrb[0].mxu0
        %v782 = vadd.f32 %v593, %v781
        %v783 = vpop.f32.mrb[0].mxu0
        %v784 = vadd.f32 %v597, %v783
        %785 = vdwg.mxu0
        %786 = vmatprep.subr.bf16.mxu0 0
        %787 = vmatpush1.bf16.msra.mxu0 %v687
        %788 = vmatprep.subr.bf16.mxu0 0
        %789 = vmatpush1.bf16.msra.mxu0 %v690
        %790 = vmatprep.subr.bf16.mxu0 0
        %791 = vmatpush1.bf16.msra.mxu0 %v693
        %792 = vmatprep.subr.bf16.mxu0 0
        %793 = vmatpush1.bf16.msra.mxu0 %v696
        %794 = vmatprep.subr.bf16.mxu0 0
        %795 = vmatpush1.bf16.msra.mxu0 %v699
        %796 = vmatprep.subr.bf16.mxu0 0
        %797 = vmatpush1.bf16.msra.mxu0 %v702
        %798 = vmatprep.subr.bf16.mxu0 0
        %799 = vmatpush1.bf16.msra.mxu0 %v705
        %800 = vmatprep.subr.bf16.mxu0 0
        %801 = vmatpush1.bf16.msra.mxu0 %v708
        %802 = vmatprep.subr.bf16.mxu0 0
        %803 = vmatpush1.bf16.msra.mxu0 0
        %804 = vmatprep.subr.bf16.mxu0 0
        %805 = vmatpush1.bf16.msra.mxu0 0
        %806 = vmatprep.subr.bf16.mxu0 0
        %807 = vmatpush1.bf16.msra.mxu0 0
        %808 = vmatprep.subr.bf16.mxu0 0
        %809 = vmatpush1.bf16.msra.mxu0 0
        %810 = vmatprep.subr.bf16.mxu0 0
        %811 = vmatpush1.bf16.msra.mxu0 0
        %812 = vmatprep.subr.bf16.mxu0 0
        %813 = vmatpush1.bf16.msra.mxu0 0
        %814 = vmatprep.subr.bf16.mxu0 0
        %815 = vmatpush1.bf16.msra.mxu0 0
        %816 = vmatprep.subr.bf16.mxu0 0
        %817 = vmatpush1.bf16.msra.mxu0 0
        %818 = vmatprep.mubr.bf16.mxu0 0
        %819 = vmatmul.mubr.bf16.gmra.mrb[0].mxu0 %v554
        %v820 = vpop.f32.mrb[0].mxu0
        %v821 = vadd.f32 %v601, %v820
        %v822 = vpop.f32.mrb[0].mxu0
        %v823 = vpop.f32.mrb[0].mxu0
        %v824 = vadd.f32 %v601, %v823
        %v825 = vpop.f32.mrb[0].mxu0
        %826 = vmatprep.mubr.bf16.mxu0 0
        %827 = vmatmul.mubr.bf16.gmra.mrb[0].mxu0 %v555
        %v828 = vpop.f32.mrb[0].mxu0
        %v829 = vadd.f32 %v601, %v828
        %v830 = vpop.f32.mrb[0].mxu0
        %v831 = vpop.f32.mrb[0].mxu0
        %v832 = vadd.f32 %v601, %v831
        %v833 = vpop.f32.mrb[0].mxu0
        %834 = vdwg.mxu0
        %v835 = vld [vmem:[%s2] sm:$0xff]
        %v836 = vld [vmem:[%s2 + $0x8] sm:$0xff]
        %v837 = vld [vmem:[%s2 + $0x10] sm:$0xff]
        %v838 = vld [vmem:[%s2 + $0x18] sm:$0xff]
        %v839 = vld [vmem:[%s3] sm:$0xff]
        %v840 = vld [vmem:[%s3 + $0x8] sm:$0xff]
        %v841 = vld [vmem:[%s3 + $0x10] sm:$0xff]
        %v842 = vld [vmem:[%s3 + $0x18] sm:$0xff]
        %v843 = vmul.f32 %v768, %v835
        %v844 = vmul.f32 %v772, %v836
        %v845 = vmul.f32 %v778, %v837
        %v846 = vmul.f32 %v782, %v838
        %847 = vrot.lane.b32.xlu0 %v768, 64
        %v848 = vpop.permute.xlu0 %847
        %849 = vrot.lane.b32.xlu0 %v772, 64
        %v850 = vpop.permute.xlu0 %849
        %851 = vrot.lane.b32.xlu0 %v778, 64
        %v852 = vpop.permute.xlu0 %851
        %853 = vrot.lane.b32.xlu0 %v782, 64
        %v854 = vpop.permute.xlu0 %853
        %v855 = vmul.f32 %v848, %v839
        %v856 = vmul.f32 %v850, %v840
        %v857 = vmul.f32 %v852, %v841
        %v858 = vmul.f32 %v854, %v842
        %v859 = vadd.f32 %v843, %v855
        %v860 = vadd.f32 %v844, %v856
        %v861 = vadd.f32 %v845, %v857
        %v862 = vadd.f32 %v846, %v858
        %v863 = vmul.f32 %v770, %v835
        %v864 = vmul.f32 %v774, %v836
        %v865 = vmul.f32 %v780, %v837
        %v866 = vmul.f32 %v784, %v838
        %867 = vrot.lane.b32.xlu0 %v770, 64
        %v868 = vpop.permute.xlu0 %867
        %869 = vrot.lane.b32.xlu0 %v774, 64
        %v870 = vpop.permute.xlu0 %869
        %871 = vrot.lane.b32.xlu0 %v780, 64
        %v872 = vpop.permute.xlu0 %871
        %873 = vrot.lane.b32.xlu0 %v784, 64
        %v874 = vpop.permute.xlu0 %873
        %v875 = vmul.f32 %v868, %v839
        %v876 = vmul.f32 %v870, %v840
        %v877 = vmul.f32 %v872, %v841
        %v878 = vmul.f32 %v874, %v842
        %v879 = vadd.f32 %v863, %v875
        %v880 = vadd.f32 %v864, %v876
        %v881 = vadd.f32 %v865, %v877
        %v882 = vadd.f32 %v866, %v878
        %887 = vrot.lane.b32.xlu0 %v859, 112
        %v888 = vpop.permute.xlu0 %887
        %889 = vrot.lane.b32.xlu0 %v860, 112
        %v890 = vpop.permute.xlu0 %889
        %891 = vrot.lane.b32.xlu0 %v861, 112
        %v892 = vpop.permute.xlu0 %891
        %893 = vrot.lane.b32.xlu0 %v862, 112
        %v894 = vpop.permute.xlu0 %893
        %899 = vrot.lane.b32.xlu0 %v859, 96
        %v900 = vpop.permute.xlu0 %899
        %901 = vrot.lane.b32.xlu0 %v860, 96
        %v902 = vpop.permute.xlu0 %901
        %903 = vrot.lane.b32.xlu0 %v861, 96
        %v904 = vpop.permute.xlu0 %903
        %905 = vrot.lane.b32.xlu0 %v862, 96
        %v906 = vpop.permute.xlu0 %905
        %911 = vrot.lane.b32.xlu0 %v859, 80
        %v912 = vpop.permute.xlu0 %911
        %913 = vrot.lane.b32.xlu0 %v860, 80
        %v914 = vpop.permute.xlu0 %913
        %915 = vrot.lane.b32.xlu0 %v861, 80
        %v916 = vpop.permute.xlu0 %915
        %917 = vrot.lane.b32.xlu0 %v862, 80
        %v918 = vpop.permute.xlu0 %917
        %923 = vrot.lane.b32.xlu0 %v859, 64
        %v924 = vpop.permute.xlu0 %923
        %925 = vrot.lane.b32.xlu0 %v860, 64
        %v926 = vpop.permute.xlu0 %925
        %927 = vrot.lane.b32.xlu0 %v861, 64
        %v928 = vpop.permute.xlu0 %927
        %929 = vrot.lane.b32.xlu0 %v862, 64
        %v930 = vpop.permute.xlu0 %929
        %935 = vrot.lane.b32.xlu0 %v859, 48
        %v936 = vpop.permute.xlu0 %935
        %937 = vrot.lane.b32.xlu0 %v860, 48
        %v938 = vpop.permute.xlu0 %937
        %939 = vrot.lane.b32.xlu0 %v861, 48
        %v940 = vpop.permute.xlu0 %939
        %941 = vrot.lane.b32.xlu0 %v862, 48
        %v942 = vpop.permute.xlu0 %941
        %947 = vrot.lane.b32.xlu0 %v859, 32
        %v948 = vpop.permute.xlu0 %947
        %949 = vrot.lane.b32.xlu0 %v860, 32
        %v950 = vpop.permute.xlu0 %949
        %951 = vrot.lane.b32.xlu0 %v861, 32
        %v952 = vpop.permute.xlu0 %951
        %953 = vrot.lane.b32.xlu0 %v862, 32
        %v954 = vpop.permute.xlu0 %953
        %959 = vrot.lane.b32.xlu0 %v859, 16
        %v960 = vpop.permute.xlu0 %959
        %961 = vrot.lane.b32.xlu0 %v860, 16
        %v962 = vpop.permute.xlu0 %961
        %963 = vrot.lane.b32.xlu0 %v861, 16
        %v964 = vpop.permute.xlu0 %963
        %965 = vrot.lane.b32.xlu0 %v862, 16
        %v966 = vpop.permute.xlu0 %965
        %v971 = vcombine.low %v859, %v900
        %v972 = vcombine.high %v859, %v900
        %v974 = vunpack.c.l.s4 1983009808
        %v975 = vunpack.c.0.s8 %v974
        %v976 = vlaneseq
        %v977 = vshrl.u32 %v976, 7
        %v978 = vsub.s32 %v975, %v977
        %v979 = vrot.slane %v971, %v978
        %v981 = vunpack.c.l.s4 1983009808
        %v982 = vunpack.c.0.s8 %v981
        %v983 = vlaneseq
        %v984 = vshrl.u32 %v983, 7
        %v985 = vsub.s32 %v982, %v984
        %v986 = vrot.slane %v972, %v985
        %v987 = vcombine.low %v888, %v912
        %v988 = vcombine.high %v888, %v912
        %v990 = vunpack.c.l.s4 1983009808
        %v991 = vunpack.c.0.s8 %v990
        %v992 = vlaneseq
        %v993 = vshrl.u32 %v992, 7
        %v994 = vsub.s32 %v991, %v993
        %v995 = vrot.slane %v987, %v994
        %v997 = vunpack.c.l.s4 1983009808
        %v998 = vunpack.c.0.s8 %v997
        %v999 = vlaneseq
        %v1000 = vshrl.u32 %v999, 7
        %v1001 = vsub.s32 %v998, %v1000
        %v1002 = vrot.slane %v988, %v1001
        %v1003 = vcombine.low %v924, %v948
        %v1004 = vcombine.high %v924, %v948
        %v1006 = vunpack.c.l.s4 1983009808
        %v1007 = vunpack.c.0.s8 %v1006
        %v1008 = vlaneseq
        %v1009 = vshrl.u32 %v1008, 7
        %v1010 = vsub.s32 %v1007, %v1009
        %v1011 = vrot.slane %v1003, %v1010
        %v1013 = vunpack.c.l.s4 1983009808
        %v1014 = vunpack.c.0.s8 %v1013
        %v1015 = vlaneseq
        %v1016 = vshrl.u32 %v1015, 7
        %v1017 = vsub.s32 %v1014, %v1016
        %v1018 = vrot.slane %v1004, %v1017
        %v1019 = vcombine.low %v936, %v960
        %v1020 = vcombine.high %v936, %v960
        %v1022 = vunpack.c.l.s4 1983009808
        %v1023 = vunpack.c.0.s8 %v1022
        %v1024 = vlaneseq
        %v1025 = vshrl.u32 %v1024, 7
        %v1026 = vsub.s32 %v1023, %v1025
        %v1027 = vrot.slane %v1019, %v1026
        %v1029 = vunpack.c.l.s4 1983009808
        %v1030 = vunpack.c.0.s8 %v1029
        %v1031 = vlaneseq
        %v1032 = vshrl.u32 %v1031, 7
        %v1033 = vsub.s32 %v1030, %v1032
        %v1034 = vrot.slane %v1020, %v1033
        %v1035 = vcombine.low %v979, %v995
        %v1036 = vcombine.high %v979, %v995
        %v1038 = vunpack.c.l.s4 1934713408
        %v1039 = vunpack.c.0.s8 %v1038
        %v1040 = vlaneseq
        %v1041 = vshrl.u32 %v1040, 7
        %v1042 = vsub.s32 %v1039, %v1041
        %v1043 = vrot.slane %v1035, %v1042
        %v1045 = vunpack.c.l.s4 1934713408
        %v1046 = vunpack.c.0.s8 %v1045
        %v1047 = vlaneseq
        %v1048 = vshrl.u32 %v1047, 7
        %v1049 = vsub.s32 %v1046, %v1048
        %v1050 = vrot.slane %v1036, %v1049
        %v1051 = vcombine.low %v986, %v1002
        %v1052 = vcombine.high %v986, %v1002
        %v1054 = vunpack.c.l.s4 1934713408
        %v1055 = vunpack.c.0.s8 %v1054
        %v1056 = vlaneseq
        %v1057 = vshrl.u32 %v1056, 7
        %v1058 = vsub.s32 %v1055, %v1057
        %v1059 = vrot.slane %v1051, %v1058
        %v1061 = vunpack.c.l.s4 1934713408
        %v1062 = vunpack.c.0.s8 %v1061
        %v1063 = vlaneseq
        %v1064 = vshrl.u32 %v1063, 7
        %v1065 = vsub.s32 %v1062, %v1064
        %v1066 = vrot.slane %v1052, %v1065
        %v1067 = vcombine.low %v1011, %v1027
        %v1068 = vcombine.high %v1011, %v1027
        %v1070 = vunpack.c.l.s4 1934713408
        %v1071 = vunpack.c.0.s8 %v1070
        %v1072 = vlaneseq
        %v1073 = vshrl.u32 %v1072, 7
        %v1074 = vsub.s32 %v1071, %v1073
        %v1075 = vrot.slane %v1067, %v1074
        %v1077 = vunpack.c.l.s4 1934713408
        %v1078 = vunpack.c.0.s8 %v1077
        %v1079 = vlaneseq
        %v1080 = vshrl.u32 %v1079, 7
        %v1081 = vsub.s32 %v1078, %v1080
        %v1082 = vrot.slane %v1068, %v1081
        %v1083 = vcombine.low %v1018, %v1034
        %v1084 = vcombine.high %v1018, %v1034
        %v1086 = vunpack.c.l.s4 1934713408
        %v1087 = vunpack.c.0.s8 %v1086
        %v1088 = vlaneseq
        %v1089 = vshrl.u32 %v1088, 7
        %v1090 = vsub.s32 %v1087, %v1089
        %v1091 = vrot.slane %v1083, %v1090
        %v1093 = vunpack.c.l.s4 1934713408
        %v1094 = vunpack.c.0.s8 %v1093
        %v1095 = vlaneseq
        %v1096 = vshrl.u32 %v1095, 7
        %v1097 = vsub.s32 %v1094, %v1096
        %v1098 = vrot.slane %v1084, %v1097
        %v1099 = vcombine.low %v1043, %v1075
        %v1100 = vcombine.high %v1043, %v1075
        %v1101 = vcombine.low %v1050, %v1082
        %v1102 = vcombine.high %v1050, %v1082
        %v1103 = vcombine.low %v1059, %v1091
        %v1104 = vcombine.high %v1059, %v1091
        %v1105 = vcombine.low %v1066, %v1098
        %v1106 = vcombine.high %v1066, %v1098
        %v1107 = vcombine.low %v860, %v902
        %v1108 = vcombine.high %v860, %v902
        %v1110 = vunpack.c.l.s4 1983009808
        %v1111 = vunpack.c.0.s8 %v1110
        %v1112 = vlaneseq
        %v1113 = vshrl.u32 %v1112, 7
        %v1114 = vsub.s32 %v1111, %v1113
        %v1115 = vrot.slane %v1107, %v1114
        %v1117 = vunpack.c.l.s4 1983009808
        %v1118 = vunpack.c.0.s8 %v1117
        %v1119 = vlaneseq
        %v1120 = vshrl.u32 %v1119, 7
        %v1121 = vsub.s32 %v1118, %v1120
        %v1122 = vrot.slane %v1108, %v1121
        %v1123 = vcombine.low %v890, %v914
        %v1124 = vcombine.high %v890, %v914
        %v1126 = vunpack.c.l.s4 1983009808
        %v1127 = vunpack.c.0.s8 %v1126
        %v1128 = vlaneseq
        %v1129 = vshrl.u32 %v1128, 7
        %v1130 = vsub.s32 %v1127, %v1129
        %v1131 = vrot.slane %v1123, %v1130
        %v1133 = vunpack.c.l.s4 1983009808
        %v1134 = vunpack.c.0.s8 %v1133
        %v1135 = vlaneseq
        %v1136 = vshrl.u32 %v1135, 7
        %v1137 = vsub.s32 %v1134, %v1136
        %v1138 = vrot.slane %v1124, %v1137
        %v1139 = vcombine.low %v926, %v950
        %v1140 = vcombine.high %v926, %v950
        %v1142 = vunpack.c.l.s4 1983009808
        %v1143 = vunpack.c.0.s8 %v1142
        %v1144 = vlaneseq
        %v1145 = vshrl.u32 %v1144, 7
        %v1146 = vsub.s32 %v1143, %v1145
        %v1147 = vrot.slane %v1139, %v1146
        %v1149 = vunpack.c.l.s4 1983009808
        %v1150 = vunpack.c.0.s8 %v1149
        %v1151 = vlaneseq
        %v1152 = vshrl.u32 %v1151, 7
        %v1153 = vsub.s32 %v1150, %v1152
        %v1154 = vrot.slane %v1140, %v1153
        %v1155 = vcombine.low %v938, %v962
        %v1156 = vcombine.high %v938, %v962
        %v1158 = vunpack.c.l.s4 1983009808
        %v1159 = vunpack.c.0.s8 %v1158
        %v1160 = vlaneseq
        %v1161 = vshrl.u32 %v1160, 7
        %v1162 = vsub.s32 %v1159, %v1161
        %v1163 = vrot.slane %v1155, %v1162
        %v1165 = vunpack.c.l.s4 1983009808
        %v1166 = vunpack.c.0.s8 %v1165
        %v1167 = vlaneseq
        %v1168 = vshrl.u32 %v1167, 7
        %v1169 = vsub.s32 %v1166, %v1168
        %v1170 = vrot.slane %v1156, %v1169
        %v1171 = vcombine.low %v1115, %v1131
        %v1172 = vcombine.high %v1115, %v1131
        %v1174 = vunpack.c.l.s4 1934713408
        %v1175 = vunpack.c.0.s8 %v1174
        %v1176 = vlaneseq
        %v1177 = vshrl.u32 %v1176, 7
        %v1178 = vsub.s32 %v1175, %v1177
        %v1179 = vrot.slane %v1171, %v1178
        %v1181 = vunpack.c.l.s4 1934713408
        %v1182 = vunpack.c.0.s8 %v1181
        %v1183 = vlaneseq
        %v1184 = vshrl.u32 %v1183, 7
        %v1185 = vsub.s32 %v1182, %v1184
        %v1186 = vrot.slane %v1172, %v1185
        %v1187 = vcombine.low %v1122, %v1138
        %v1188 = vcombine.high %v1122, %v1138
        %v1190 = vunpack.c.l.s4 1934713408
        %v1191 = vunpack.c.0.s8 %v1190
        %v1192 = vlaneseq
        %v1193 = vshrl.u32 %v1192, 7
        %v1194 = vsub.s32 %v1191, %v1193
        %v1195 = vrot.slane %v1187, %v1194
        %v1197 = vunpack.c.l.s4 1934713408
        %v1198 = vunpack.c.0.s8 %v1197
        %v1199 = vlaneseq
        %v1200 = vshrl.u32 %v1199, 7
        %v1201 = vsub.s32 %v1198, %v1200
        %v1202 = vrot.slane %v1188, %v1201
        %v1203 = vcombine.low %v1147, %v1163
        %v1204 = vcombine.high %v1147, %v1163
        %v1206 = vunpack.c.l.s4 1934713408
        %v1207 = vunpack.c.0.s8 %v1206
        %v1208 = vlaneseq
        %v1209 = vshrl.u32 %v1208, 7
        %v1210 = vsub.s32 %v1207, %v1209
        %v1211 = vrot.slane %v1203, %v1210
        %v1213 = vunpack.c.l.s4 1934713408
        %v1214 = vunpack.c.0.s8 %v1213
        %v1215 = vlaneseq
        %v1216 = vshrl.u32 %v1215, 7
        %v1217 = vsub.s32 %v1214, %v1216
        %v1218 = vrot.slane %v1204, %v1217
        %v1219 = vcombine.low %v1154, %v1170
        %v1220 = vcombine.high %v1154, %v1170
        %v1222 = vunpack.c.l.s4 1934713408
        %v1223 = vunpack.c.0.s8 %v1222
        %v1224 = vlaneseq
        %v1225 = vshrl.u32 %v1224, 7
        %v1226 = vsub.s32 %v1223, %v1225
        %v1227 = vrot.slane %v1219, %v1226
        %v1229 = vunpack.c.l.s4 1934713408
        %v1230 = vunpack.c.0.s8 %v1229
        %v1231 = vlaneseq
        %v1232 = vshrl.u32 %v1231, 7
        %v1233 = vsub.s32 %v1230, %v1232
        %v1234 = vrot.slane %v1220, %v1233
        %v1235 = vcombine.low %v1179, %v1211
        %v1236 = vcombine.high %v1179, %v1211
        %v1237 = vcombine.low %v1186, %v1218
        %v1238 = vcombine.high %v1186, %v1218
        %v1239 = vcombine.low %v1195, %v1227
        %v1240 = vcombine.high %v1195, %v1227
        %v1241 = vcombine.low %v1202, %v1234
        %v1242 = vcombine.high %v1202, %v1234
        %v1243 = vcombine.low %v861, %v904
        %v1244 = vcombine.high %v861, %v904
        %v1246 = vunpack.c.l.s4 1983009808
        %v1247 = vunpack.c.0.s8 %v1246
        %v1248 = vlaneseq
        %v1249 = vshrl.u32 %v1248, 7
        %v1250 = vsub.s32 %v1247, %v1249
        %v1251 = vrot.slane %v1243, %v1250
        %v1253 = vunpack.c.l.s4 1983009808
        %v1254 = vunpack.c.0.s8 %v1253
        %v1255 = vlaneseq
        %v1256 = vshrl.u32 %v1255, 7
        %v1257 = vsub.s32 %v1254, %v1256
        %v1258 = vrot.slane %v1244, %v1257
        %v1259 = vcombine.low %v892, %v916
        %v1260 = vcombine.high %v892, %v916
        %v1262 = vunpack.c.l.s4 1983009808
        %v1263 = vunpack.c.0.s8 %v1262
        %v1264 = vlaneseq
        %v1265 = vshrl.u32 %v1264, 7
        %v1266 = vsub.s32 %v1263, %v1265
        %v1267 = vrot.slane %v1259, %v1266
        %v1269 = vunpack.c.l.s4 1983009808
        %v1270 = vunpack.c.0.s8 %v1269
        %v1271 = vlaneseq
        %v1272 = vshrl.u32 %v1271, 7
        %v1273 = vsub.s32 %v1270, %v1272
        %v1274 = vrot.slane %v1260, %v1273
        %v1275 = vcombine.low %v928, %v952
        %v1276 = vcombine.high %v928, %v952
        %v1278 = vunpack.c.l.s4 1983009808
        %v1279 = vunpack.c.0.s8 %v1278
        %v1280 = vlaneseq
        %v1281 = vshrl.u32 %v1280, 7
        %v1282 = vsub.s32 %v1279, %v1281
        %v1283 = vrot.slane %v1275, %v1282
        %v1285 = vunpack.c.l.s4 1983009808
        %v1286 = vunpack.c.0.s8 %v1285
        %v1287 = vlaneseq
        %v1288 = vshrl.u32 %v1287, 7
        %v1289 = vsub.s32 %v1286, %v1288
        %v1290 = vrot.slane %v1276, %v1289
        %v1291 = vcombine.low %v940, %v964
        %v1292 = vcombine.high %v940, %v964
        %v1294 = vunpack.c.l.s4 1983009808
        %v1295 = vunpack.c.0.s8 %v1294
        %v1296 = vlaneseq
        %v1297 = vshrl.u32 %v1296, 7
        %v1298 = vsub.s32 %v1295, %v1297
        %v1299 = vrot.slane %v1291, %v1298
        %v1301 = vunpack.c.l.s4 1983009808
        %v1302 = vunpack.c.0.s8 %v1301
        %v1303 = vlaneseq
        %v1304 = vshrl.u32 %v1303, 7
        %v1305 = vsub.s32 %v1302, %v1304
        %v1306 = vrot.slane %v1292, %v1305
        %v1307 = vcombine.low %v1251, %v1267
        %v1308 = vcombine.high %v1251, %v1267
        %v1310 = vunpack.c.l.s4 1934713408
        %v1311 = vunpack.c.0.s8 %v1310
        %v1312 = vlaneseq
        %v1313 = vshrl.u32 %v1312, 7
        %v1314 = vsub.s32 %v1311, %v1313
        %v1315 = vrot.slane %v1307, %v1314
        %v1317 = vunpack.c.l.s4 1934713408
        %v1318 = vunpack.c.0.s8 %v1317
        %v1319 = vlaneseq
        %v1320 = vshrl.u32 %v1319, 7
        %v1321 = vsub.s32 %v1318, %v1320
        %v1322 = vrot.slane %v1308, %v1321
        %v1323 = vcombine.low %v1258, %v1274
        %v1324 = vcombine.high %v1258, %v1274
        %v1326 = vunpack.c.l.s4 1934713408
        %v1327 = vunpack.c.0.s8 %v1326
        %v1328 = vlaneseq
        %v1329 = vshrl.u32 %v1328, 7
        %v1330 = vsub.s32 %v1327, %v1329
        %v1331 = vrot.slane %v1323, %v1330
        %v1333 = vunpack.c.l.s4 1934713408
        %v1334 = vunpack.c.0.s8 %v1333
        %v1335 = vlaneseq
        %v1336 = vshrl.u32 %v1335, 7
        %v1337 = vsub.s32 %v1334, %v1336
        %v1338 = vrot.slane %v1324, %v1337
        %v1339 = vcombine.low %v1283, %v1299
        %v1340 = vcombine.high %v1283, %v1299
        %v1342 = vunpack.c.l.s4 1934713408
        %v1343 = vunpack.c.0.s8 %v1342
        %v1344 = vlaneseq
        %v1345 = vshrl.u32 %v1344, 7
        %v1346 = vsub.s32 %v1343, %v1345
        %v1347 = vrot.slane %v1339, %v1346
        %v1349 = vunpack.c.l.s4 1934713408
        %v1350 = vunpack.c.0.s8 %v1349
        %v1351 = vlaneseq
        %v1352 = vshrl.u32 %v1351, 7
        %v1353 = vsub.s32 %v1350, %v1352
        %v1354 = vrot.slane %v1340, %v1353
        %v1355 = vcombine.low %v1290, %v1306
        %v1356 = vcombine.high %v1290, %v1306
        %v1358 = vunpack.c.l.s4 1934713408
        %v1359 = vunpack.c.0.s8 %v1358
        %v1360 = vlaneseq
        %v1361 = vshrl.u32 %v1360, 7
        %v1362 = vsub.s32 %v1359, %v1361
        %v1363 = vrot.slane %v1355, %v1362
        %v1365 = vunpack.c.l.s4 1934713408
        %v1366 = vunpack.c.0.s8 %v1365
        %v1367 = vlaneseq
        %v1368 = vshrl.u32 %v1367, 7
        %v1369 = vsub.s32 %v1366, %v1368
        %v1370 = vrot.slane %v1356, %v1369
        %v1371 = vcombine.low %v1315, %v1347
        %v1372 = vcombine.high %v1315, %v1347
        %v1373 = vcombine.low %v1322, %v1354
        %v1374 = vcombine.high %v1322, %v1354
        %v1375 = vcombine.low %v1331, %v1363
        %v1376 = vcombine.high %v1331, %v1363
        %v1377 = vcombine.low %v1338, %v1370
        %v1378 = vcombine.high %v1338, %v1370
        %v1379 = vcombine.low %v862, %v906
        %v1380 = vcombine.high %v862, %v906
        %v1382 = vunpack.c.l.s4 1983009808
        %v1383 = vunpack.c.0.s8 %v1382
        %v1384 = vlaneseq
        %v1385 = vshrl.u32 %v1384, 7
        %v1386 = vsub.s32 %v1383, %v1385
        %v1387 = vrot.slane %v1379, %v1386
        %v1389 = vunpack.c.l.s4 1983009808
        %v1390 = vunpack.c.0.s8 %v1389
        %v1391 = vlaneseq
        %v1392 = vshrl.u32 %v1391, 7
        %v1393 = vsub.s32 %v1390, %v1392
        %v1394 = vrot.slane %v1380, %v1393
        %v1395 = vcombine.low %v894, %v918
        %v1396 = vcombine.high %v894, %v918
        %v1398 = vunpack.c.l.s4 1983009808
        %v1399 = vunpack.c.0.s8 %v1398
        %v1400 = vlaneseq
        %v1401 = vshrl.u32 %v1400, 7
        %v1402 = vsub.s32 %v1399, %v1401
        %v1403 = vrot.slane %v1395, %v1402
        %v1405 = vunpack.c.l.s4 1983009808
        %v1406 = vunpack.c.0.s8 %v1405
        %v1407 = vlaneseq
        %v1408 = vshrl.u32 %v1407, 7
        %v1409 = vsub.s32 %v1406, %v1408
        %v1410 = vrot.slane %v1396, %v1409
        %v1411 = vcombine.low %v930, %v954
        %v1412 = vcombine.high %v930, %v954
        %v1414 = vunpack.c.l.s4 1983009808
        %v1415 = vunpack.c.0.s8 %v1414
        %v1416 = vlaneseq
        %v1417 = vshrl.u32 %v1416, 7
        %v1418 = vsub.s32 %v1415, %v1417
        %v1419 = vrot.slane %v1411, %v1418
        %v1421 = vunpack.c.l.s4 1983009808
        %v1422 = vunpack.c.0.s8 %v1421
        %v1423 = vlaneseq
        %v1424 = vshrl.u32 %v1423, 7
        %v1425 = vsub.s32 %v1422, %v1424
        %v1426 = vrot.slane %v1412, %v1425
        %v1427 = vcombine.low %v942, %v966
        %v1428 = vcombine.high %v942, %v966
        %v1430 = vunpack.c.l.s4 1983009808
        %v1431 = vunpack.c.0.s8 %v1430
        %v1432 = vlaneseq
        %v1433 = vshrl.u32 %v1432, 7
        %v1434 = vsub.s32 %v1431, %v1433
        %v1435 = vrot.slane %v1427, %v1434
        %v1437 = vunpack.c.l.s4 1983009808
        %v1438 = vunpack.c.0.s8 %v1437
        %v1439 = vlaneseq
        %v1440 = vshrl.u32 %v1439, 7
        %v1441 = vsub.s32 %v1438, %v1440
        %v1442 = vrot.slane %v1428, %v1441
        %v1443 = vcombine.low %v1387, %v1403
        %v1444 = vcombine.high %v1387, %v1403
        %v1446 = vunpack.c.l.s4 1934713408
        %v1447 = vunpack.c.0.s8 %v1446
        %v1448 = vlaneseq
        %v1449 = vshrl.u32 %v1448, 7
        %v1450 = vsub.s32 %v1447, %v1449
        %v1451 = vrot.slane %v1443, %v1450
        %v1453 = vunpack.c.l.s4 1934713408
        %v1454 = vunpack.c.0.s8 %v1453
        %v1455 = vlaneseq
        %v1456 = vshrl.u32 %v1455, 7
        %v1457 = vsub.s32 %v1454, %v1456
        %v1458 = vrot.slane %v1444, %v1457
        %v1459 = vcombine.low %v1394, %v1410
        %v1460 = vcombine.high %v1394, %v1410
        %v1462 = vunpack.c.l.s4 1934713408
        %v1463 = vunpack.c.0.s8 %v1462
        %v1464 = vlaneseq
        %v1465 = vshrl.u32 %v1464, 7
        %v1466 = vsub.s32 %v1463, %v1465
        %v1467 = vrot.slane %v1459, %v1466
        %v1469 = vunpack.c.l.s4 1934713408
        %v1470 = vunpack.c.0.s8 %v1469
        %v1471 = vlaneseq
        %v1472 = vshrl.u32 %v1471, 7
        %v1473 = vsub.s32 %v1470, %v1472
        %v1474 = vrot.slane %v1460, %v1473
        %v1475 = vcombine.low %v1419, %v1435
        %v1476 = vcombine.high %v1419, %v1435
        %v1478 = vunpack.c.l.s4 1934713408
        %v1479 = vunpack.c.0.s8 %v1478
        %v1480 = vlaneseq
        %v1481 = vshrl.u32 %v1480, 7
        %v1482 = vsub.s32 %v1479, %v1481
        %v1483 = vrot.slane %v1475, %v1482
        %v1485 = vunpack.c.l.s4 1934713408
        %v1486 = vunpack.c.0.s8 %v1485
        %v1487 = vlaneseq
        %v1488 = vshrl.u32 %v1487, 7
        %v1489 = vsub.s32 %v1486, %v1488
        %v1490 = vrot.slane %v1476, %v1489
        %v1491 = vcombine.low %v1426, %v1442
        %v1492 = vcombine.high %v1426, %v1442
        %v1494 = vunpack.c.l.s4 1934713408
        %v1495 = vunpack.c.0.s8 %v1494
        %v1496 = vlaneseq
        %v1497 = vshrl.u32 %v1496, 7
        %v1498 = vsub.s32 %v1495, %v1497
        %v1499 = vrot.slane %v1491, %v1498
        %v1501 = vunpack.c.l.s4 1934713408
        %v1502 = vunpack.c.0.s8 %v1501
        %v1503 = vlaneseq
        %v1504 = vshrl.u32 %v1503, 7
        %v1505 = vsub.s32 %v1502, %v1504
        %v1506 = vrot.slane %v1492, %v1505
        %v1507 = vcombine.low %v1451, %v1483
        %v1508 = vcombine.high %v1451, %v1483
        %v1509 = vcombine.low %v1458, %v1490
        %v1510 = vcombine.high %v1458, %v1490
        %v1511 = vcombine.low %v1467, %v1499
        %v1512 = vcombine.high %v1467, %v1499
        %v1513 = vcombine.low %v1474, %v1506
        %v1514 = vcombine.high %v1474, %v1506
        %v1515 = vcombine.low %v1099, %v1101
        %v1516 = vcombine.high %v1099, %v1101
        %v1518 = vunpack.c.l.s4 1983009808
        %v1519 = vunpack.c.0.s8 %v1518
        %v1520 = vlaneseq
        %v1521 = vshrl.u32 %v1520, 7
        %v1522 = vsub.s32 %v1519, %v1521
        %v1523 = vrot.slane %v1515, %v1522
        %v1525 = vunpack.c.l.s4 1983009808
        %v1526 = vunpack.c.0.s8 %v1525
        %v1527 = vlaneseq
        %v1528 = vshrl.u32 %v1527, 7
        %v1529 = vsub.s32 %v1526, %v1528
        %v1530 = vrot.slane %v1516, %v1529
        %v1531 = vcombine.low %v1100, %v1102
        %v1532 = vcombine.high %v1100, %v1102
        %v1534 = vunpack.c.l.s4 1983009808
        %v1535 = vunpack.c.0.s8 %v1534
        %v1536 = vlaneseq
        %v1537 = vshrl.u32 %v1536, 7
        %v1538 = vsub.s32 %v1535, %v1537
        %v1539 = vrot.slane %v1531, %v1538
        %v1541 = vunpack.c.l.s4 1983009808
        %v1542 = vunpack.c.0.s8 %v1541
        %v1543 = vlaneseq
        %v1544 = vshrl.u32 %v1543, 7
        %v1545 = vsub.s32 %v1542, %v1544
        %v1546 = vrot.slane %v1532, %v1545
        %v1547 = vcombine.low %v1103, %v1105
        %v1548 = vcombine.high %v1103, %v1105
        %v1550 = vunpack.c.l.s4 1983009808
        %v1551 = vunpack.c.0.s8 %v1550
        %v1552 = vlaneseq
        %v1553 = vshrl.u32 %v1552, 7
        %v1554 = vsub.s32 %v1551, %v1553
        %v1555 = vrot.slane %v1547, %v1554
        %v1557 = vunpack.c.l.s4 1983009808
        %v1558 = vunpack.c.0.s8 %v1557
        %v1559 = vlaneseq
        %v1560 = vshrl.u32 %v1559, 7
        %v1561 = vsub.s32 %v1558, %v1560
        %v1562 = vrot.slane %v1548, %v1561
        %v1563 = vcombine.low %v1104, %v1106
        %v1564 = vcombine.high %v1104, %v1106
        %v1566 = vunpack.c.l.s4 1983009808
        %v1567 = vunpack.c.0.s8 %v1566
        %v1568 = vlaneseq
        %v1569 = vshrl.u32 %v1568, 7
        %v1570 = vsub.s32 %v1567, %v1569
        %v1571 = vrot.slane %v1563, %v1570
        %v1573 = vunpack.c.l.s4 1983009808
        %v1574 = vunpack.c.0.s8 %v1573
        %v1575 = vlaneseq
        %v1576 = vshrl.u32 %v1575, 7
        %v1577 = vsub.s32 %v1574, %v1576
        %v1578 = vrot.slane %v1564, %v1577
        %v1579 = vcombine.low %v1523, %v1539
        %v1580 = vcombine.high %v1523, %v1539
        %v1582 = vunpack.c.l.s4 1934713408
        %v1583 = vunpack.c.0.s8 %v1582
        %v1584 = vlaneseq
        %v1585 = vshrl.u32 %v1584, 7
        %v1586 = vsub.s32 %v1583, %v1585
        %v1587 = vrot.slane %v1579, %v1586
        %v1589 = vunpack.c.l.s4 1934713408
        %v1590 = vunpack.c.0.s8 %v1589
        %v1591 = vlaneseq
        %v1592 = vshrl.u32 %v1591, 7
        %v1593 = vsub.s32 %v1590, %v1592
        %v1594 = vrot.slane %v1580, %v1593
        %v1595 = vcombine.low %v1530, %v1546
        %v1596 = vcombine.high %v1530, %v1546
        %v1598 = vunpack.c.l.s4 1934713408
        %v1599 = vunpack.c.0.s8 %v1598
        %v1600 = vlaneseq
        %v1601 = vshrl.u32 %v1600, 7
        %v1602 = vsub.s32 %v1599, %v1601
        %v1603 = vrot.slane %v1595, %v1602
        %v1605 = vunpack.c.l.s4 1934713408
        %v1606 = vunpack.c.0.s8 %v1605
        %v1607 = vlaneseq
        %v1608 = vshrl.u32 %v1607, 7
        %v1609 = vsub.s32 %v1606, %v1608
        %v1610 = vrot.slane %v1596, %v1609
        %v1611 = vcombine.low %v1555, %v1571
        %v1612 = vcombine.high %v1555, %v1571
        %v1614 = vunpack.c.l.s4 1934713408
        %v1615 = vunpack.c.0.s8 %v1614
        %v1616 = vlaneseq
        %v1617 = vshrl.u32 %v1616, 7
        %v1618 = vsub.s32 %v1615, %v1617
        %v1619 = vrot.slane %v1611, %v1618
        %v1621 = vunpack.c.l.s4 1934713408
        %v1622 = vunpack.c.0.s8 %v1621
        %v1623 = vlaneseq
        %v1624 = vshrl.u32 %v1623, 7
        %v1625 = vsub.s32 %v1622, %v1624
        %v1626 = vrot.slane %v1612, %v1625
        %v1627 = vcombine.low %v1562, %v1578
        %v1628 = vcombine.high %v1562, %v1578
        %v1630 = vunpack.c.l.s4 1934713408
        %v1631 = vunpack.c.0.s8 %v1630
        %v1632 = vlaneseq
        %v1633 = vshrl.u32 %v1632, 7
        %v1634 = vsub.s32 %v1631, %v1633
        %v1635 = vrot.slane %v1627, %v1634
        %v1637 = vunpack.c.l.s4 1934713408
        %v1638 = vunpack.c.0.s8 %v1637
        %v1639 = vlaneseq
        %v1640 = vshrl.u32 %v1639, 7
        %v1641 = vsub.s32 %v1638, %v1640
        %v1642 = vrot.slane %v1628, %v1641
        %v1643 = vcombine.low %v1587, %v1619
        %v1644 = vcombine.high %v1587, %v1619
        %v1645 = vcombine.low %v1594, %v1626
        %v1646 = vcombine.high %v1594, %v1626
        %v1647 = vcombine.low %v1603, %v1635
        %v1648 = vcombine.high %v1603, %v1635
        %v1649 = vcombine.low %v1610, %v1642
        %v1650 = vcombine.high %v1610, %v1642
        %v1651 = vcombine.low %v1235, %v1237
        %v1652 = vcombine.high %v1235, %v1237
        %v1654 = vunpack.c.l.s4 1983009808
        %v1655 = vunpack.c.0.s8 %v1654
        %v1656 = vlaneseq
        %v1657 = vshrl.u32 %v1656, 7
        %v1658 = vsub.s32 %v1655, %v1657
        %v1659 = vrot.slane %v1651, %v1658
        %v1661 = vunpack.c.l.s4 1983009808
        %v1662 = vunpack.c.0.s8 %v1661
        %v1663 = vlaneseq
        %v1664 = vshrl.u32 %v1663, 7
        %v1665 = vsub.s32 %v1662, %v1664
        %v1666 = vrot.slane %v1652, %v1665
        %v1667 = vcombine.low %v1236, %v1238
        %v1668 = vcombine.high %v1236, %v1238
        %v1670 = vunpack.c.l.s4 1983009808
        %v1671 = vunpack.c.0.s8 %v1670
        %v1672 = vlaneseq
        %v1673 = vshrl.u32 %v1672, 7
        %v1674 = vsub.s32 %v1671, %v1673
        %v1675 = vrot.slane %v1667, %v1674
        %v1677 = vunpack.c.l.s4 1983009808
        %v1678 = vunpack.c.0.s8 %v1677
        %v1679 = vlaneseq
        %v1680 = vshrl.u32 %v1679, 7
        %v1681 = vsub.s32 %v1678, %v1680
        %v1682 = vrot.slane %v1668, %v1681
        %v1683 = vcombine.low %v1239, %v1241
        %v1684 = vcombine.high %v1239, %v1241
        %v1686 = vunpack.c.l.s4 1983009808
        %v1687 = vunpack.c.0.s8 %v1686
        %v1688 = vlaneseq
        %v1689 = vshrl.u32 %v1688, 7
        %v1690 = vsub.s32 %v1687, %v1689
        %v1691 = vrot.slane %v1683, %v1690
        %v1693 = vunpack.c.l.s4 1983009808
        %v1694 = vunpack.c.0.s8 %v1693
        %v1695 = vlaneseq
        %v1696 = vshrl.u32 %v1695, 7
        %v1697 = vsub.s32 %v1694, %v1696
        %v1698 = vrot.slane %v1684, %v1697
        %v1699 = vcombine.low %v1240, %v1242
        %v1700 = vcombine.high %v1240, %v1242
        %v1702 = vunpack.c.l.s4 1983009808
        %v1703 = vunpack.c.0.s8 %v1702
        %v1704 = vlaneseq
        %v1705 = vshrl.u32 %v1704, 7
        %v1706 = vsub.s32 %v1703, %v1705
        %v1707 = vrot.slane %v1699, %v1706
        %v1709 = vunpack.c.l.s4 1983009808
        %v1710 = vunpack.c.0.s8 %v1709
        %v1711 = vlaneseq
        %v1712 = vshrl.u32 %v1711, 7
        %v1713 = vsub.s32 %v1710, %v1712
        %v1714 = vrot.slane %v1700, %v1713
        %v1715 = vcombine.low %v1659, %v1675
        %v1716 = vcombine.high %v1659, %v1675
        %v1718 = vunpack.c.l.s4 1934713408
        %v1719 = vunpack.c.0.s8 %v1718
        %v1720 = vlaneseq
        %v1721 = vshrl.u32 %v1720, 7
        %v1722 = vsub.s32 %v1719, %v1721
        %v1723 = vrot.slane %v1715, %v1722
        %v1725 = vunpack.c.l.s4 1934713408
        %v1726 = vunpack.c.0.s8 %v1725
        %v1727 = vlaneseq
        %v1728 = vshrl.u32 %v1727, 7
        %v1729 = vsub.s32 %v1726, %v1728
        %v1730 = vrot.slane %v1716, %v1729
        %v1731 = vcombine.low %v1666, %v1682
        %v1732 = vcombine.high %v1666, %v1682
        %v1734 = vunpack.c.l.s4 1934713408
        %v1735 = vunpack.c.0.s8 %v1734
        %v1736 = vlaneseq
        %v1737 = vshrl.u32 %v1736, 7
        %v1738 = vsub.s32 %v1735, %v1737
        %v1739 = vrot.slane %v1731, %v1738
        %v1741 = vunpack.c.l.s4 1934713408
        %v1742 = vunpack.c.0.s8 %v1741
        %v1743 = vlaneseq
        %v1744 = vshrl.u32 %v1743, 7
        %v1745 = vsub.s32 %v1742, %v1744
        %v1746 = vrot.slane %v1732, %v1745
        %v1747 = vcombine.low %v1691, %v1707
        %v1748 = vcombine.high %v1691, %v1707
        %v1750 = vunpack.c.l.s4 1934713408
        %v1751 = vunpack.c.0.s8 %v1750
        %v1752 = vlaneseq
        %v1753 = vshrl.u32 %v1752, 7
        %v1754 = vsub.s32 %v1751, %v1753
        %v1755 = vrot.slane %v1747, %v1754
        %v1757 = vunpack.c.l.s4 1934713408
        %v1758 = vunpack.c.0.s8 %v1757
        %v1759 = vlaneseq
        %v1760 = vshrl.u32 %v1759, 7
        %v1761 = vsub.s32 %v1758, %v1760
        %v1762 = vrot.slane %v1748, %v1761
        %v1763 = vcombine.low %v1698, %v1714
        %v1764 = vcombine.high %v1698, %v1714
        %v1766 = vunpack.c.l.s4 1934713408
        %v1767 = vunpack.c.0.s8 %v1766
        %v1768 = vlaneseq
        %v1769 = vshrl.u32 %v1768, 7
        %v1770 = vsub.s32 %v1767, %v1769
        %v1771 = vrot.slane %v1763, %v1770
        %v1773 = vunpack.c.l.s4 1934713408
        %v1774 = vunpack.c.0.s8 %v1773
        %v1775 = vlaneseq
        %v1776 = vshrl.u32 %v1775, 7
        %v1777 = vsub.s32 %v1774, %v1776
        %v1778 = vrot.slane %v1764, %v1777
        %v1779 = vcombine.low %v1723, %v1755
        %v1780 = vcombine.high %v1723, %v1755
        %v1781 = vcombine.low %v1730, %v1762
        %v1782 = vcombine.high %v1730, %v1762
        %v1783 = vcombine.low %v1739, %v1771
        %v1784 = vcombine.high %v1739, %v1771
        %v1785 = vcombine.low %v1746, %v1778
        %v1786 = vcombine.high %v1746, %v1778
        %v1787 = vcombine.low %v1371, %v1373
        %v1788 = vcombine.high %v1371, %v1373
        %v1790 = vunpack.c.l.s4 1983009808
        %v1791 = vunpack.c.0.s8 %v1790
        %v1792 = vlaneseq
        %v1793 = vshrl.u32 %v1792, 7
        %v1794 = vsub.s32 %v1791, %v1793
        %v1795 = vrot.slane %v1787, %v1794
        %v1797 = vunpack.c.l.s4 1983009808
        %v1798 = vunpack.c.0.s8 %v1797
        %v1799 = vlaneseq
        %v1800 = vshrl.u32 %v1799, 7
        %v1801 = vsub.s32 %v1798, %v1800
        %v1802 = vrot.slane %v1788, %v1801
        %v1803 = vcombine.low %v1372, %v1374
        %v1804 = vcombine.high %v1372, %v1374
        %v1806 = vunpack.c.l.s4 1983009808
        %v1807 = vunpack.c.0.s8 %v1806
        %v1808 = vlaneseq
        %v1809 = vshrl.u32 %v1808, 7
        %v1810 = vsub.s32 %v1807, %v1809
        %v1811 = vrot.slane %v1803, %v1810
        %v1813 = vunpack.c.l.s4 1983009808
        %v1814 = vunpack.c.0.s8 %v1813
        %v1815 = vlaneseq
        %v1816 = vshrl.u32 %v1815, 7
        %v1817 = vsub.s32 %v1814, %v1816
        %v1818 = vrot.slane %v1804, %v1817
        %v1819 = vcombine.low %v1375, %v1377
        %v1820 = vcombine.high %v1375, %v1377
        %v1822 = vunpack.c.l.s4 1983009808
        %v1823 = vunpack.c.0.s8 %v1822
        %v1824 = vlaneseq
        %v1825 = vshrl.u32 %v1824, 7
        %v1826 = vsub.s32 %v1823, %v1825
        %v1827 = vrot.slane %v1819, %v1826
        %v1829 = vunpack.c.l.s4 1983009808
        %v1830 = vunpack.c.0.s8 %v1829
        %v1831 = vlaneseq
        %v1832 = vshrl.u32 %v1831, 7
        %v1833 = vsub.s32 %v1830, %v1832
        %v1834 = vrot.slane %v1820, %v1833
        %v1835 = vcombine.low %v1376, %v1378
        %v1836 = vcombine.high %v1376, %v1378
        %v1838 = vunpack.c.l.s4 1983009808
        %v1839 = vunpack.c.0.s8 %v1838
        %v1840 = vlaneseq
        %v1841 = vshrl.u32 %v1840, 7
        %v1842 = vsub.s32 %v1839, %v1841
        %v1843 = vrot.slane %v1835, %v1842
        %v1845 = vunpack.c.l.s4 1983009808
        %v1846 = vunpack.c.0.s8 %v1845
        %v1847 = vlaneseq
        %v1848 = vshrl.u32 %v1847, 7
        %v1849 = vsub.s32 %v1846, %v1848
        %v1850 = vrot.slane %v1836, %v1849
        %v1851 = vcombine.low %v1795, %v1811
        %v1852 = vcombine.high %v1795, %v1811
        %v1854 = vunpack.c.l.s4 1934713408
        %v1855 = vunpack.c.0.s8 %v1854
        %v1856 = vlaneseq
        %v1857 = vshrl.u32 %v1856, 7
        %v1858 = vsub.s32 %v1855, %v1857
        %v1859 = vrot.slane %v1851, %v1858
        %v1861 = vunpack.c.l.s4 1934713408
        %v1862 = vunpack.c.0.s8 %v1861
        %v1863 = vlaneseq
        %v1864 = vshrl.u32 %v1863, 7
        %v1865 = vsub.s32 %v1862, %v1864
        %v1866 = vrot.slane %v1852, %v1865
        %v1867 = vcombine.low %v1802, %v1818
        %v1868 = vcombine.high %v1802, %v1818
        %v1870 = vunpack.c.l.s4 1934713408
        %v1871 = vunpack.c.0.s8 %v1870
        %v1872 = vlaneseq
        %v1873 = vshrl.u32 %v1872, 7
        %v1874 = vsub.s32 %v1871, %v1873
        %v1875 = vrot.slane %v1867, %v1874
        %v1877 = vunpack.c.l.s4 1934713408
        %v1878 = vunpack.c.0.s8 %v1877
        %v1879 = vlaneseq
        %v1880 = vshrl.u32 %v1879, 7
        %v1881 = vsub.s32 %v1878, %v1880
        %v1882 = vrot.slane %v1868, %v1881
        %v1883 = vcombine.low %v1827, %v1843
        %v1884 = vcombine.high %v1827, %v1843
        %v1886 = vunpack.c.l.s4 1934713408
        %v1887 = vunpack.c.0.s8 %v1886
        %v1888 = vlaneseq
        %v1889 = vshrl.u32 %v1888, 7
        %v1890 = vsub.s32 %v1887, %v1889
        %v1891 = vrot.slane %v1883, %v1890
        %v1893 = vunpack.c.l.s4 1934713408
        %v1894 = vunpack.c.0.s8 %v1893
        %v1895 = vlaneseq
        %v1896 = vshrl.u32 %v1895, 7
        %v1897 = vsub.s32 %v1894, %v1896
        %v1898 = vrot.slane %v1884, %v1897
        %v1899 = vcombine.low %v1834, %v1850
        %v1900 = vcombine.high %v1834, %v1850
        %v1902 = vunpack.c.l.s4 1934713408
        %v1903 = vunpack.c.0.s8 %v1902
        %v1904 = vlaneseq
        %v1905 = vshrl.u32 %v1904, 7
        %v1906 = vsub.s32 %v1903, %v1905
        %v1907 = vrot.slane %v1899, %v1906
        %v1909 = vunpack.c.l.s4 1934713408
        %v1910 = vunpack.c.0.s8 %v1909
        %v1911 = vlaneseq
        %v1912 = vshrl.u32 %v1911, 7
        %v1913 = vsub.s32 %v1910, %v1912
        %v1914 = vrot.slane %v1900, %v1913
        %v1915 = vcombine.low %v1859, %v1891
        %v1916 = vcombine.high %v1859, %v1891
        %v1917 = vcombine.low %v1866, %v1898
        %v1918 = vcombine.high %v1866, %v1898
        %v1919 = vcombine.low %v1875, %v1907
        %v1920 = vcombine.high %v1875, %v1907
        %v1921 = vcombine.low %v1882, %v1914
        %v1922 = vcombine.high %v1882, %v1914
        %v1923 = vcombine.low %v1507, %v1509
        %v1924 = vcombine.high %v1507, %v1509
        %v1926 = vunpack.c.l.s4 1983009808
        %v1927 = vunpack.c.0.s8 %v1926
        %v1928 = vlaneseq
        %v1929 = vshrl.u32 %v1928, 7
        %v1930 = vsub.s32 %v1927, %v1929
        %v1931 = vrot.slane %v1923, %v1930
        %v1933 = vunpack.c.l.s4 1983009808
        %v1934 = vunpack.c.0.s8 %v1933
        %v1935 = vlaneseq
        %v1936 = vshrl.u32 %v1935, 7
        %v1937 = vsub.s32 %v1934, %v1936
        %v1938 = vrot.slane %v1924, %v1937
        %v1939 = vcombine.low %v1508, %v1510
        %v1940 = vcombine.high %v1508, %v1510
        %v1942 = vunpack.c.l.s4 1983009808
        %v1943 = vunpack.c.0.s8 %v1942
        %v1944 = vlaneseq
        %v1945 = vshrl.u32 %v1944, 7
        %v1946 = vsub.s32 %v1943, %v1945
        %v1947 = vrot.slane %v1939, %v1946
        %v1949 = vunpack.c.l.s4 1983009808
        %v1950 = vunpack.c.0.s8 %v1949
        %v1951 = vlaneseq
        %v1952 = vshrl.u32 %v1951, 7
        %v1953 = vsub.s32 %v1950, %v1952
        %v1954 = vrot.slane %v1940, %v1953
        %v1955 = vcombine.low %v1511, %v1513
        %v1956 = vcombine.high %v1511, %v1513
        %v1958 = vunpack.c.l.s4 1983009808
        %v1959 = vunpack.c.0.s8 %v1958
        %v1960 = vlaneseq
        %v1961 = vshrl.u32 %v1960, 7
        %v1962 = vsub.s32 %v1959, %v1961
        %v1963 = vrot.slane %v1955, %v1962
        %v1965 = vunpack.c.l.s4 1983009808
        %v1966 = vunpack.c.0.s8 %v1965
        %v1967 = vlaneseq
        %v1968 = vshrl.u32 %v1967, 7
        %v1969 = vsub.s32 %v1966, %v1968
        %v1970 = vrot.slane %v1956, %v1969
        %v1971 = vcombine.low %v1512, %v1514
        %v1972 = vcombine.high %v1512, %v1514
        %v1974 = vunpack.c.l.s4 1983009808
        %v1975 = vunpack.c.0.s8 %v1974
        %v1976 = vlaneseq
        %v1977 = vshrl.u32 %v1976, 7
        %v1978 = vsub.s32 %v1975, %v1977
        %v1979 = vrot.slane %v1971, %v1978
        %v1981 = vunpack.c.l.s4 1983009808
        %v1982 = vunpack.c.0.s8 %v1981
        %v1983 = vlaneseq
        %v1984 = vshrl.u32 %v1983, 7
        %v1985 = vsub.s32 %v1982, %v1984
        %v1986 = vrot.slane %v1972, %v1985
        %v1987 = vcombine.low %v1931, %v1947
        %v1988 = vcombine.high %v1931, %v1947
        %v1990 = vunpack.c.l.s4 1934713408
        %v1991 = vunpack.c.0.s8 %v1990
        %v1992 = vlaneseq
        %v1993 = vshrl.u32 %v1992, 7
        %v1994 = vsub.s32 %v1991, %v1993
        %v1995 = vrot.slane %v1987, %v1994
        %v1997 = vunpack.c.l.s4 1934713408
        %v1998 = vunpack.c.0.s8 %v1997
        %v1999 = vlaneseq
        %v2000 = vshrl.u32 %v1999, 7
        %v2001 = vsub.s32 %v1998, %v2000
        %v2002 = vrot.slane %v1988, %v2001
        %v2003 = vcombine.low %v1938, %v1954
        %v2004 = vcombine.high %v1938, %v1954
        %v2006 = vunpack.c.l.s4 1934713408
        %v2007 = vunpack.c.0.s8 %v2006
        %v2008 = vlaneseq
        %v2009 = vshrl.u32 %v2008, 7
        %v2010 = vsub.s32 %v2007, %v2009
        %v2011 = vrot.slane %v2003, %v2010
        %v2013 = vunpack.c.l.s4 1934713408
        %v2014 = vunpack.c.0.s8 %v2013
        %v2015 = vlaneseq
        %v2016 = vshrl.u32 %v2015, 7
        %v2017 = vsub.s32 %v2014, %v2016
        %v2018 = vrot.slane %v2004, %v2017
        %v2019 = vcombine.low %v1963, %v1979
        %v2020 = vcombine.high %v1963, %v1979
        %v2022 = vunpack.c.l.s4 1934713408
        %v2023 = vunpack.c.0.s8 %v2022
        %v2024 = vlaneseq
        %v2025 = vshrl.u32 %v2024, 7
        %v2026 = vsub.s32 %v2023, %v2025
        %v2027 = vrot.slane %v2019, %v2026
        %v2029 = vunpack.c.l.s4 1934713408
        %v2030 = vunpack.c.0.s8 %v2029
        %v2031 = vlaneseq
        %v2032 = vshrl.u32 %v2031, 7
        %v2033 = vsub.s32 %v2030, %v2032
        %v2034 = vrot.slane %v2020, %v2033
        %v2035 = vcombine.low %v1970, %v1986
        %v2036 = vcombine.high %v1970, %v1986
        %v2038 = vunpack.c.l.s4 1934713408
        %v2039 = vunpack.c.0.s8 %v2038
        %v2040 = vlaneseq
        %v2041 = vshrl.u32 %v2040, 7
        %v2042 = vsub.s32 %v2039, %v2041
        %v2043 = vrot.slane %v2035, %v2042
        %v2045 = vunpack.c.l.s4 1934713408
        %v2046 = vunpack.c.0.s8 %v2045
        %v2047 = vlaneseq
        %v2048 = vshrl.u32 %v2047, 7
        %v2049 = vsub.s32 %v2046, %v2048
        %v2050 = vrot.slane %v2036, %v2049
        %v2051 = vcombine.low %v1995, %v2027
        %v2052 = vcombine.high %v1995, %v2027
        %v2053 = vcombine.low %v2002, %v2034
        %v2054 = vcombine.high %v2002, %v2034
        %v2055 = vcombine.low %v2011, %v2043
        %v2056 = vcombine.high %v2011, %v2043
        %v2057 = vcombine.low %v2018, %v2050
        %v2058 = vcombine.high %v2018, %v2050
        %2063 = vrot.lane.b32.xlu0 %v879, 112
        %v2064 = vpop.permute.xlu0 %2063
        %2065 = vrot.lane.b32.xlu0 %v880, 112
        %v2066 = vpop.permute.xlu0 %2065
        %2067 = vrot.lane.b32.xlu0 %v881, 112
        %v2068 = vpop.permute.xlu0 %2067
        %2069 = vrot.lane.b32.xlu0 %v882, 112
        %v2070 = vpop.permute.xlu0 %2069
        %2075 = vrot.lane.b32.xlu0 %v879, 96
        %v2076 = vpop.permute.xlu0 %2075
        %2077 = vrot.lane.b32.xlu0 %v880, 96
        %v2078 = vpop.permute.xlu0 %2077
        %2079 = vrot.lane.b32.xlu0 %v881, 96
        %v2080 = vpop.permute.xlu0 %2079
        %2081 = vrot.lane.b32.xlu0 %v882, 96
        %v2082 = vpop.permute.xlu0 %2081
        %2087 = vrot.lane.b32.xlu0 %v879, 80
        %v2088 = vpop.permute.xlu0 %2087
        %2089 = vrot.lane.b32.xlu0 %v880, 80
        %v2090 = vpop.permute.xlu0 %2089
        %2091 = vrot.lane.b32.xlu0 %v881, 80
        %v2092 = vpop.permute.xlu0 %2091
        %2093 = vrot.lane.b32.xlu0 %v882, 80
        %v2094 = vpop.permute.xlu0 %2093
        %2099 = vrot.lane.b32.xlu0 %v879, 64
        %v2100 = vpop.permute.xlu0 %2099
        %2101 = vrot.lane.b32.xlu0 %v880, 64
        %v2102 = vpop.permute.xlu0 %2101
        %2103 = vrot.lane.b32.xlu0 %v881, 64
        %v2104 = vpop.permute.xlu0 %2103
        %2105 = vrot.lane.b32.xlu0 %v882, 64
        %v2106 = vpop.permute.xlu0 %2105
        %2111 = vrot.lane.b32.xlu0 %v879, 48
        %v2112 = vpop.permute.xlu0 %2111
        %2113 = vrot.lane.b32.xlu0 %v880, 48
        %v2114 = vpop.permute.xlu0 %2113
        %2115 = vrot.lane.b32.xlu0 %v881, 48
        %v2116 = vpop.permute.xlu0 %2115
        %2117 = vrot.lane.b32.xlu0 %v882, 48
        %v2118 = vpop.permute.xlu0 %2117
        %2123 = vrot.lane.b32.xlu0 %v879, 32
        %v2124 = vpop.permute.xlu0 %2123
        %2125 = vrot.lane.b32.xlu0 %v880, 32
        %v2126 = vpop.permute.xlu0 %2125
        %2127 = vrot.lane.b32.xlu0 %v881, 32
        %v2128 = vpop.permute.xlu0 %2127
        %2129 = vrot.lane.b32.xlu0 %v882, 32
        %v2130 = vpop.permute.xlu0 %2129
        %2135 = vrot.lane.b32.xlu0 %v879, 16
        %v2136 = vpop.permute.xlu0 %2135
        %2137 = vrot.lane.b32.xlu0 %v880, 16
        %v2138 = vpop.permute.xlu0 %2137
        %2139 = vrot.lane.b32.xlu0 %v881, 16
        %v2140 = vpop.permute.xlu0 %2139
        %2141 = vrot.lane.b32.xlu0 %v882, 16
        %v2142 = vpop.permute.xlu0 %2141
        %v2147 = vcombine.low %v879, %v2076
        %v2148 = vcombine.high %v879, %v2076
        %v2150 = vunpack.c.l.s4 1983009808
        %v2151 = vunpack.c.0.s8 %v2150
        %v2152 = vlaneseq
        %v2153 = vshrl.u32 %v2152, 7
        %v2154 = vsub.s32 %v2151, %v2153
        %v2155 = vrot.slane %v2147, %v2154
        %v2157 = vunpack.c.l.s4 1983009808
        %v2158 = vunpack.c.0.s8 %v2157
        %v2159 = vlaneseq
        %v2160 = vshrl.u32 %v2159, 7
        %v2161 = vsub.s32 %v2158, %v2160
        %v2162 = vrot.slane %v2148, %v2161
        %v2163 = vcombine.low %v2064, %v2088
        %v2164 = vcombine.high %v2064, %v2088
        %v2166 = vunpack.c.l.s4 1983009808
        %v2167 = vunpack.c.0.s8 %v2166
        %v2168 = vlaneseq
        %v2169 = vshrl.u32 %v2168, 7
        %v2170 = vsub.s32 %v2167, %v2169
        %v2171 = vrot.slane %v2163, %v2170
        %v2173 = vunpack.c.l.s4 1983009808
        %v2174 = vunpack.c.0.s8 %v2173
        %v2175 = vlaneseq
        %v2176 = vshrl.u32 %v2175, 7
        %v2177 = vsub.s32 %v2174, %v2176
        %v2178 = vrot.slane %v2164, %v2177
        %v2179 = vcombine.low %v2100, %v2124
        %v2180 = vcombine.high %v2100, %v2124
        %v2182 = vunpack.c.l.s4 1983009808
        %v2183 = vunpack.c.0.s8 %v2182
        %v2184 = vlaneseq
        %v2185 = vshrl.u32 %v2184, 7
        %v2186 = vsub.s32 %v2183, %v2185
        %v2187 = vrot.slane %v2179, %v2186
        %v2189 = vunpack.c.l.s4 1983009808
        %v2190 = vunpack.c.0.s8 %v2189
        %v2191 = vlaneseq
        %v2192 = vshrl.u32 %v2191, 7
        %v2193 = vsub.s32 %v2190, %v2192
        %v2194 = vrot.slane %v2180, %v2193
        %v2195 = vcombine.low %v2112, %v2136
        %v2196 = vcombine.high %v2112, %v2136
        %v2198 = vunpack.c.l.s4 1983009808
        %v2199 = vunpack.c.0.s8 %v2198
        %v2200 = vlaneseq
        %v2201 = vshrl.u32 %v2200, 7
        %v2202 = vsub.s32 %v2199, %v2201
        %v2203 = vrot.slane %v2195, %v2202
        %v2205 = vunpack.c.l.s4 1983009808
        %v2206 = vunpack.c.0.s8 %v2205
        %v2207 = vlaneseq
        %v2208 = vshrl.u32 %v2207, 7
        %v2209 = vsub.s32 %v2206, %v2208
        %v2210 = vrot.slane %v2196, %v2209
        %v2211 = vcombine.low %v2155, %v2171
        %v2212 = vcombine.high %v2155, %v2171
        %v2214 = vunpack.c.l.s4 1934713408
        %v2215 = vunpack.c.0.s8 %v2214
        %v2216 = vlaneseq
        %v2217 = vshrl.u32 %v2216, 7
        %v2218 = vsub.s32 %v2215, %v2217
        %v2219 = vrot.slane %v2211, %v2218
        %v2221 = vunpack.c.l.s4 1934713408
        %v2222 = vunpack.c.0.s8 %v2221
        %v2223 = vlaneseq
        %v2224 = vshrl.u32 %v2223, 7
        %v2225 = vsub.s32 %v2222, %v2224
        %v2226 = vrot.slane %v2212, %v2225
        %v2227 = vcombine.low %v2162, %v2178
        %v2228 = vcombine.high %v2162, %v2178
        %v2230 = vunpack.c.l.s4 1934713408
        %v2231 = vunpack.c.0.s8 %v2230
        %v2232 = vlaneseq
        %v2233 = vshrl.u32 %v2232, 7
        %v2234 = vsub.s32 %v2231, %v2233
        %v2235 = vrot.slane %v2227, %v2234
        %v2237 = vunpack.c.l.s4 1934713408
        %v2238 = vunpack.c.0.s8 %v2237
        %v2239 = vlaneseq
        %v2240 = vshrl.u32 %v2239, 7
        %v2241 = vsub.s32 %v2238, %v2240
        %v2242 = vrot.slane %v2228, %v2241
        %v2243 = vcombine.low %v2187, %v2203
        %v2244 = vcombine.high %v2187, %v2203
        %v2246 = vunpack.c.l.s4 1934713408
        %v2247 = vunpack.c.0.s8 %v2246
        %v2248 = vlaneseq
        %v2249 = vshrl.u32 %v2248, 7
        %v2250 = vsub.s32 %v2247, %v2249
        %v2251 = vrot.slane %v2243, %v2250
        %v2253 = vunpack.c.l.s4 1934713408
        %v2254 = vunpack.c.0.s8 %v2253
        %v2255 = vlaneseq
        %v2256 = vshrl.u32 %v2255, 7
        %v2257 = vsub.s32 %v2254, %v2256
        %v2258 = vrot.slane %v2244, %v2257
        %v2259 = vcombine.low %v2194, %v2210
        %v2260 = vcombine.high %v2194, %v2210
        %v2262 = vunpack.c.l.s4 1934713408
        %v2263 = vunpack.c.0.s8 %v2262
        %v2264 = vlaneseq
        %v2265 = vshrl.u32 %v2264, 7
        %v2266 = vsub.s32 %v2263, %v2265
        %v2267 = vrot.slane %v2259, %v2266
        %v2269 = vunpack.c.l.s4 1934713408
        %v2270 = vunpack.c.0.s8 %v2269
        %v2271 = vlaneseq
        %v2272 = vshrl.u32 %v2271, 7
        %v2273 = vsub.s32 %v2270, %v2272
        %v2274 = vrot.slane %v2260, %v2273
        %v2275 = vcombine.low %v2219, %v2251
        %v2276 = vcombine.high %v2219, %v2251
        %v2277 = vcombine.low %v2226, %v2258
        %v2278 = vcombine.high %v2226, %v2258
        %v2279 = vcombine.low %v2235, %v2267
        %v2280 = vcombine.high %v2235, %v2267
        %v2281 = vcombine.low %v2242, %v2274
        %v2282 = vcombine.high %v2242, %v2274
        %v2283 = vcombine.low %v880, %v2078
        %v2284 = vcombine.high %v880, %v2078
        %v2286 = vunpack.c.l.s4 1983009808
        %v2287 = vunpack.c.0.s8 %v2286
        %v2288 = vlaneseq
        %v2289 = vshrl.u32 %v2288, 7
        %v2290 = vsub.s32 %v2287, %v2289
        %v2291 = vrot.slane %v2283, %v2290
        %v2293 = vunpack.c.l.s4 1983009808
        %v2294 = vunpack.c.0.s8 %v2293
        %v2295 = vlaneseq
        %v2296 = vshrl.u32 %v2295, 7
        %v2297 = vsub.s32 %v2294, %v2296
        %v2298 = vrot.slane %v2284, %v2297
        %v2299 = vcombine.low %v2066, %v2090
        %v2300 = vcombine.high %v2066, %v2090
        %v2302 = vunpack.c.l.s4 1983009808
        %v2303 = vunpack.c.0.s8 %v2302
        %v2304 = vlaneseq
        %v2305 = vshrl.u32 %v2304, 7
        %v2306 = vsub.s32 %v2303, %v2305
        %v2307 = vrot.slane %v2299, %v2306
        %v2309 = vunpack.c.l.s4 1983009808
        %v2310 = vunpack.c.0.s8 %v2309
        %v2311 = vlaneseq
        %v2312 = vshrl.u32 %v2311, 7
        %v2313 = vsub.s32 %v2310, %v2312
        %v2314 = vrot.slane %v2300, %v2313
        %v2315 = vcombine.low %v2102, %v2126
        %v2316 = vcombine.high %v2102, %v2126
        %v2318 = vunpack.c.l.s4 1983009808
        %v2319 = vunpack.c.0.s8 %v2318
        %v2320 = vlaneseq
        %v2321 = vshrl.u32 %v2320, 7
        %v2322 = vsub.s32 %v2319, %v2321
        %v2323 = vrot.slane %v2315, %v2322
        %v2325 = vunpack.c.l.s4 1983009808
        %v2326 = vunpack.c.0.s8 %v2325
        %v2327 = vlaneseq
        %v2328 = vshrl.u32 %v2327, 7
        %v2329 = vsub.s32 %v2326, %v2328
        %v2330 = vrot.slane %v2316, %v2329
        %v2331 = vcombine.low %v2114, %v2138
        %v2332 = vcombine.high %v2114, %v2138
        %v2334 = vunpack.c.l.s4 1983009808
        %v2335 = vunpack.c.0.s8 %v2334
        %v2336 = vlaneseq
        %v2337 = vshrl.u32 %v2336, 7
        %v2338 = vsub.s32 %v2335, %v2337
        %v2339 = vrot.slane %v2331, %v2338
        %v2341 = vunpack.c.l.s4 1983009808
        %v2342 = vunpack.c.0.s8 %v2341
        %v2343 = vlaneseq
        %v2344 = vshrl.u32 %v2343, 7
        %v2345 = vsub.s32 %v2342, %v2344
        %v2346 = vrot.slane %v2332, %v2345
        %v2347 = vcombine.low %v2291, %v2307
        %v2348 = vcombine.high %v2291, %v2307
        %v2350 = vunpack.c.l.s4 1934713408
        %v2351 = vunpack.c.0.s8 %v2350
        %v2352 = vlaneseq
        %v2353 = vshrl.u32 %v2352, 7
        %v2354 = vsub.s32 %v2351, %v2353
        %v2355 = vrot.slane %v2347, %v2354
        %v2357 = vunpack.c.l.s4 1934713408
        %v2358 = vunpack.c.0.s8 %v2357
        %v2359 = vlaneseq
        %v2360 = vshrl.u32 %v2359, 7
        %v2361 = vsub.s32 %v2358, %v2360
        %v2362 = vrot.slane %v2348, %v2361
        %v2363 = vcombine.low %v2298, %v2314
        %v2364 = vcombine.high %v2298, %v2314
        %v2366 = vunpack.c.l.s4 1934713408
        %v2367 = vunpack.c.0.s8 %v2366
        %v2368 = vlaneseq
        %v2369 = vshrl.u32 %v2368, 7
        %v2370 = vsub.s32 %v2367, %v2369
        %v2371 = vrot.slane %v2363, %v2370
        %v2373 = vunpack.c.l.s4 1934713408
        %v2374 = vunpack.c.0.s8 %v2373
        %v2375 = vlaneseq
        %v2376 = vshrl.u32 %v2375, 7
        %v2377 = vsub.s32 %v2374, %v2376
        %v2378 = vrot.slane %v2364, %v2377
        %v2379 = vcombine.low %v2323, %v2339
        %v2380 = vcombine.high %v2323, %v2339
        %v2382 = vunpack.c.l.s4 1934713408
        %v2383 = vunpack.c.0.s8 %v2382
        %v2384 = vlaneseq
        %v2385 = vshrl.u32 %v2384, 7
        %v2386 = vsub.s32 %v2383, %v2385
        %v2387 = vrot.slane %v2379, %v2386
        %v2389 = vunpack.c.l.s4 1934713408
        %v2390 = vunpack.c.0.s8 %v2389
        %v2391 = vlaneseq
        %v2392 = vshrl.u32 %v2391, 7
        %v2393 = vsub.s32 %v2390, %v2392
        %v2394 = vrot.slane %v2380, %v2393
        %v2395 = vcombine.low %v2330, %v2346
        %v2396 = vcombine.high %v2330, %v2346
        %v2398 = vunpack.c.l.s4 1934713408
        %v2399 = vunpack.c.0.s8 %v2398
        %v2400 = vlaneseq
        %v2401 = vshrl.u32 %v2400, 7
        %v2402 = vsub.s32 %v2399, %v2401
        %v2403 = vrot.slane %v2395, %v2402
        %v2405 = vunpack.c.l.s4 1934713408
        %v2406 = vunpack.c.0.s8 %v2405
        %v2407 = vlaneseq
        %v2408 = vshrl.u32 %v2407, 7
        %v2409 = vsub.s32 %v2406, %v2408
        %v2410 = vrot.slane %v2396, %v2409
        %v2411 = vcombine.low %v2355, %v2387
        %v2412 = vcombine.high %v2355, %v2387
        %v2413 = vcombine.low %v2362, %v2394
        %v2414 = vcombine.high %v2362, %v2394
        %v2415 = vcombine.low %v2371, %v2403
        %v2416 = vcombine.high %v2371, %v2403
        %v2417 = vcombine.low %v2378, %v2410
        %v2418 = vcombine.high %v2378, %v2410
        %v2419 = vcombine.low %v881, %v2080
        %v2420 = vcombine.high %v881, %v2080
        %v2422 = vunpack.c.l.s4 1983009808
        %v2423 = vunpack.c.0.s8 %v2422
        %v2424 = vlaneseq
        %v2425 = vshrl.u32 %v2424, 7
        %v2426 = vsub.s32 %v2423, %v2425
        %v2427 = vrot.slane %v2419, %v2426
        %v2429 = vunpack.c.l.s4 1983009808
        %v2430 = vunpack.c.0.s8 %v2429
        %v2431 = vlaneseq
        %v2432 = vshrl.u32 %v2431, 7
        %v2433 = vsub.s32 %v2430, %v2432
        %v2434 = vrot.slane %v2420, %v2433
        %v2435 = vcombine.low %v2068, %v2092
        %v2436 = vcombine.high %v2068, %v2092
        %v2438 = vunpack.c.l.s4 1983009808
        %v2439 = vunpack.c.0.s8 %v2438
        %v2440 = vlaneseq
        %v2441 = vshrl.u32 %v2440, 7
        %v2442 = vsub.s32 %v2439, %v2441
        %v2443 = vrot.slane %v2435, %v2442
        %v2445 = vunpack.c.l.s4 1983009808
        %v2446 = vunpack.c.0.s8 %v2445
        %v2447 = vlaneseq
        %v2448 = vshrl.u32 %v2447, 7
        %v2449 = vsub.s32 %v2446, %v2448
        %v2450 = vrot.slane %v2436, %v2449
        %v2451 = vcombine.low %v2104, %v2128
        %v2452 = vcombine.high %v2104, %v2128
        %v2454 = vunpack.c.l.s4 1983009808
        %v2455 = vunpack.c.0.s8 %v2454
        %v2456 = vlaneseq
        %v2457 = vshrl.u32 %v2456, 7
        %v2458 = vsub.s32 %v2455, %v2457
        %v2459 = vrot.slane %v2451, %v2458
        %v2461 = vunpack.c.l.s4 1983009808
        %v2462 = vunpack.c.0.s8 %v2461
        %v2463 = vlaneseq
        %v2464 = vshrl.u32 %v2463, 7
        %v2465 = vsub.s32 %v2462, %v2464
        %v2466 = vrot.slane %v2452, %v2465
        %v2467 = vcombine.low %v2116, %v2140
        %v2468 = vcombine.high %v2116, %v2140
        %v2470 = vunpack.c.l.s4 1983009808
        %v2471 = vunpack.c.0.s8 %v2470
        %v2472 = vlaneseq
        %v2473 = vshrl.u32 %v2472, 7
        %v2474 = vsub.s32 %v2471, %v2473
        %v2475 = vrot.slane %v2467, %v2474
        %v2477 = vunpack.c.l.s4 1983009808
        %v2478 = vunpack.c.0.s8 %v2477
        %v2479 = vlaneseq
        %v2480 = vshrl.u32 %v2479, 7
        %v2481 = vsub.s32 %v2478, %v2480
        %v2482 = vrot.slane %v2468, %v2481
        %v2483 = vcombine.low %v2427, %v2443
        %v2484 = vcombine.high %v2427, %v2443
        %v2486 = vunpack.c.l.s4 1934713408
        %v2487 = vunpack.c.0.s8 %v2486
        %v2488 = vlaneseq
        %v2489 = vshrl.u32 %v2488, 7
        %v2490 = vsub.s32 %v2487, %v2489
        %v2491 = vrot.slane %v2483, %v2490
        %v2493 = vunpack.c.l.s4 1934713408
        %v2494 = vunpack.c.0.s8 %v2493
        %v2495 = vlaneseq
        %v2496 = vshrl.u32 %v2495, 7
        %v2497 = vsub.s32 %v2494, %v2496
        %v2498 = vrot.slane %v2484, %v2497
        %v2499 = vcombine.low %v2434, %v2450
        %v2500 = vcombine.high %v2434, %v2450
        %v2502 = vunpack.c.l.s4 1934713408
        %v2503 = vunpack.c.0.s8 %v2502
        %v2504 = vlaneseq
        %v2505 = vshrl.u32 %v2504, 7
        %v2506 = vsub.s32 %v2503, %v2505
        %v2507 = vrot.slane %v2499, %v2506
        %v2509 = vunpack.c.l.s4 1934713408
        %v2510 = vunpack.c.0.s8 %v2509
        %v2511 = vlaneseq
        %v2512 = vshrl.u32 %v2511, 7
        %v2513 = vsub.s32 %v2510, %v2512
        %v2514 = vrot.slane %v2500, %v2513
        %v2515 = vcombine.low %v2459, %v2475
        %v2516 = vcombine.high %v2459, %v2475
        %v2518 = vunpack.c.l.s4 1934713408
        %v2519 = vunpack.c.0.s8 %v2518
        %v2520 = vlaneseq
        %v2521 = vshrl.u32 %v2520, 7
        %v2522 = vsub.s32 %v2519, %v2521
        %v2523 = vrot.slane %v2515, %v2522
        %v2525 = vunpack.c.l.s4 1934713408
        %v2526 = vunpack.c.0.s8 %v2525
        %v2527 = vlaneseq
        %v2528 = vshrl.u32 %v2527, 7
        %v2529 = vsub.s32 %v2526, %v2528
        %v2530 = vrot.slane %v2516, %v2529
        %v2531 = vcombine.low %v2466, %v2482
        %v2532 = vcombine.high %v2466, %v2482
        %v2534 = vunpack.c.l.s4 1934713408
        %v2535 = vunpack.c.0.s8 %v2534
        %v2536 = vlaneseq
        %v2537 = vshrl.u32 %v2536, 7
        %v2538 = vsub.s32 %v2535, %v2537
        %v2539 = vrot.slane %v2531, %v2538
        %v2541 = vunpack.c.l.s4 1934713408
        %v2542 = vunpack.c.0.s8 %v2541
        %v2543 = vlaneseq
        %v2544 = vshrl.u32 %v2543, 7
        %v2545 = vsub.s32 %v2542, %v2544
        %v2546 = vrot.slane %v2532, %v2545
        %v2547 = vcombine.low %v2491, %v2523
        %v2548 = vcombine.high %v2491, %v2523
        %v2549 = vcombine.low %v2498, %v2530
        %v2550 = vcombine.high %v2498, %v2530
        %v2551 = vcombine.low %v2507, %v2539
        %v2552 = vcombine.high %v2507, %v2539
        %v2553 = vcombine.low %v2514, %v2546
        %v2554 = vcombine.high %v2514, %v2546
        %v2555 = vcombine.low %v882, %v2082
        %v2556 = vcombine.high %v882, %v2082
        %v2558 = vunpack.c.l.s4 1983009808
        %v2559 = vunpack.c.0.s8 %v2558
        %v2560 = vlaneseq
        %v2561 = vshrl.u32 %v2560, 7
        %v2562 = vsub.s32 %v2559, %v2561
        %v2563 = vrot.slane %v2555, %v2562
        %v2565 = vunpack.c.l.s4 1983009808
        %v2566 = vunpack.c.0.s8 %v2565
        %v2567 = vlaneseq
        %v2568 = vshrl.u32 %v2567, 7
        %v2569 = vsub.s32 %v2566, %v2568
        %v2570 = vrot.slane %v2556, %v2569
        %v2571 = vcombine.low %v2070, %v2094
        %v2572 = vcombine.high %v2070, %v2094
        %v2574 = vunpack.c.l.s4 1983009808
        %v2575 = vunpack.c.0.s8 %v2574
        %v2576 = vlaneseq
        %v2577 = vshrl.u32 %v2576, 7
        %v2578 = vsub.s32 %v2575, %v2577
        %v2579 = vrot.slane %v2571, %v2578
        %v2581 = vunpack.c.l.s4 1983009808
        %v2582 = vunpack.c.0.s8 %v2581
        %v2583 = vlaneseq
        %v2584 = vshrl.u32 %v2583, 7
        %v2585 = vsub.s32 %v2582, %v2584
        %v2586 = vrot.slane %v2572, %v2585
        %v2587 = vcombine.low %v2106, %v2130
        %v2588 = vcombine.high %v2106, %v2130
        %v2590 = vunpack.c.l.s4 1983009808
        %v2591 = vunpack.c.0.s8 %v2590
        %v2592 = vlaneseq
        %v2593 = vshrl.u32 %v2592, 7
        %v2594 = vsub.s32 %v2591, %v2593
        %v2595 = vrot.slane %v2587, %v2594
        %v2597 = vunpack.c.l.s4 1983009808
        %v2598 = vunpack.c.0.s8 %v2597
        %v2599 = vlaneseq
        %v2600 = vshrl.u32 %v2599, 7
        %v2601 = vsub.s32 %v2598, %v2600
        %v2602 = vrot.slane %v2588, %v2601
        %v2603 = vcombine.low %v2118, %v2142
        %v2604 = vcombine.high %v2118, %v2142
        %v2606 = vunpack.c.l.s4 1983009808
        %v2607 = vunpack.c.0.s8 %v2606
        %v2608 = vlaneseq
        %v2609 = vshrl.u32 %v2608, 7
        %v2610 = vsub.s32 %v2607, %v2609
        %v2611 = vrot.slane %v2603, %v2610
        %v2613 = vunpack.c.l.s4 1983009808
        %v2614 = vunpack.c.0.s8 %v2613
        %v2615 = vlaneseq
        %v2616 = vshrl.u32 %v2615, 7
        %v2617 = vsub.s32 %v2614, %v2616
        %v2618 = vrot.slane %v2604, %v2617
        %v2619 = vcombine.low %v2563, %v2579
        %v2620 = vcombine.high %v2563, %v2579
        %v2622 = vunpack.c.l.s4 1934713408
        %v2623 = vunpack.c.0.s8 %v2622
        %v2624 = vlaneseq
        %v2625 = vshrl.u32 %v2624, 7
        %v2626 = vsub.s32 %v2623, %v2625
        %v2627 = vrot.slane %v2619, %v2626
        %v2629 = vunpack.c.l.s4 1934713408
        %v2630 = vunpack.c.0.s8 %v2629
        %v2631 = vlaneseq
        %v2632 = vshrl.u32 %v2631, 7
        %v2633 = vsub.s32 %v2630, %v2632
        %v2634 = vrot.slane %v2620, %v2633
        %v2635 = vcombine.low %v2570, %v2586
        %v2636 = vcombine.high %v2570, %v2586
        %v2638 = vunpack.c.l.s4 1934713408
        %v2639 = vunpack.c.0.s8 %v2638
        %v2640 = vlaneseq
        %v2641 = vshrl.u32 %v2640, 7
        %v2642 = vsub.s32 %v2639, %v2641
        %v2643 = vrot.slane %v2635, %v2642
        %v2645 = vunpack.c.l.s4 1934713408
        %v2646 = vunpack.c.0.s8 %v2645
        %v2647 = vlaneseq
        %v2648 = vshrl.u32 %v2647, 7
        %v2649 = vsub.s32 %v2646, %v2648
        %v2650 = vrot.slane %v2636, %v2649
        %v2651 = vcombine.low %v2595, %v2611
        %v2652 = vcombine.high %v2595, %v2611
        %v2654 = vunpack.c.l.s4 1934713408
        %v2655 = vunpack.c.0.s8 %v2654
        %v2656 = vlaneseq
        %v2657 = vshrl.u32 %v2656, 7
        %v2658 = vsub.s32 %v2655, %v2657
        %v2659 = vrot.slane %v2651, %v2658
        %v2661 = vunpack.c.l.s4 1934713408
        %v2662 = vunpack.c.0.s8 %v2661
        %v2663 = vlaneseq
        %v2664 = vshrl.u32 %v2663, 7
        %v2665 = vsub.s32 %v2662, %v2664
        %v2666 = vrot.slane %v2652, %v2665
        %v2667 = vcombine.low %v2602, %v2618
        %v2668 = vcombine.high %v2602, %v2618
        %v2670 = vunpack.c.l.s4 1934713408
        %v2671 = vunpack.c.0.s8 %v2670
        %v2672 = vlaneseq
        %v2673 = vshrl.u32 %v2672, 7
        %v2674 = vsub.s32 %v2671, %v2673
        %v2675 = vrot.slane %v2667, %v2674
        %v2677 = vunpack.c.l.s4 1934713408
        %v2678 = vunpack.c.0.s8 %v2677
        %v2679 = vlaneseq
        %v2680 = vshrl.u32 %v2679, 7
        %v2681 = vsub.s32 %v2678, %v2680
        %v2682 = vrot.slane %v2668, %v2681
        %v2683 = vcombine.low %v2627, %v2659
        %v2684 = vcombine.high %v2627, %v2659
        %v2685 = vcombine.low %v2634, %v2666
        %v2686 = vcombine.high %v2634, %v2666
        %v2687 = vcombine.low %v2643, %v2675
        %v2688 = vcombine.high %v2643, %v2675
        %v2689 = vcombine.low %v2650, %v2682
        %v2690 = vcombine.high %v2650, %v2682
        %v2691 = vcombine.low %v2275, %v2277
        %v2692 = vcombine.high %v2275, %v2277
        %v2694 = vunpack.c.l.s4 1983009808
        %v2695 = vunpack.c.0.s8 %v2694
        %v2696 = vlaneseq
        %v2697 = vshrl.u32 %v2696, 7
        %v2698 = vsub.s32 %v2695, %v2697
        %v2699 = vrot.slane %v2691, %v2698
        %v2701 = vunpack.c.l.s4 1983009808
        %v2702 = vunpack.c.0.s8 %v2701
        %v2703 = vlaneseq
        %v2704 = vshrl.u32 %v2703, 7
        %v2705 = vsub.s32 %v2702, %v2704
        %v2706 = vrot.slane %v2692, %v2705
        %v2707 = vcombine.low %v2276, %v2278
        %v2708 = vcombine.high %v2276, %v2278
        %v2710 = vunpack.c.l.s4 1983009808
        %v2711 = vunpack.c.0.s8 %v2710
        %v2712 = vlaneseq
        %v2713 = vshrl.u32 %v2712, 7
        %v2714 = vsub.s32 %v2711, %v2713
        %v2715 = vrot.slane %v2707, %v2714
        %v2717 = vunpack.c.l.s4 1983009808
        %v2718 = vunpack.c.0.s8 %v2717
        %v2719 = vlaneseq
        %v2720 = vshrl.u32 %v2719, 7
        %v2721 = vsub.s32 %v2718, %v2720
        %v2722 = vrot.slane %v2708, %v2721
        %v2723 = vcombine.low %v2279, %v2281
        %v2724 = vcombine.high %v2279, %v2281
        %v2726 = vunpack.c.l.s4 1983009808
        %v2727 = vunpack.c.0.s8 %v2726
        %v2728 = vlaneseq
        %v2729 = vshrl.u32 %v2728, 7
        %v2730 = vsub.s32 %v2727, %v2729
        %v2731 = vrot.slane %v2723, %v2730
        %v2733 = vunpack.c.l.s4 1983009808
        %v2734 = vunpack.c.0.s8 %v2733
        %v2735 = vlaneseq
        %v2736 = vshrl.u32 %v2735, 7
        %v2737 = vsub.s32 %v2734, %v2736
        %v2738 = vrot.slane %v2724, %v2737
        %v2739 = vcombine.low %v2280, %v2282
        %v2740 = vcombine.high %v2280, %v2282
        %v2742 = vunpack.c.l.s4 1983009808
        %v2743 = vunpack.c.0.s8 %v2742
        %v2744 = vlaneseq
        %v2745 = vshrl.u32 %v2744, 7
        %v2746 = vsub.s32 %v2743, %v2745
        %v2747 = vrot.slane %v2739, %v2746
        %v2749 = vunpack.c.l.s4 1983009808
        %v2750 = vunpack.c.0.s8 %v2749
        %v2751 = vlaneseq
        %v2752 = vshrl.u32 %v2751, 7
        %v2753 = vsub.s32 %v2750, %v2752
        %v2754 = vrot.slane %v2740, %v2753
        %v2755 = vcombine.low %v2699, %v2715
        %v2756 = vcombine.high %v2699, %v2715
        %v2758 = vunpack.c.l.s4 1934713408
        %v2759 = vunpack.c.0.s8 %v2758
        %v2760 = vlaneseq
        %v2761 = vshrl.u32 %v2760, 7
        %v2762 = vsub.s32 %v2759, %v2761
        %v2763 = vrot.slane %v2755, %v2762
        %v2765 = vunpack.c.l.s4 1934713408
        %v2766 = vunpack.c.0.s8 %v2765
        %v2767 = vlaneseq
        %v2768 = vshrl.u32 %v2767, 7
        %v2769 = vsub.s32 %v2766, %v2768
        %v2770 = vrot.slane %v2756, %v2769
        %v2771 = vcombine.low %v2706, %v2722
        %v2772 = vcombine.high %v2706, %v2722
        %v2774 = vunpack.c.l.s4 1934713408
        %v2775 = vunpack.c.0.s8 %v2774
        %v2776 = vlaneseq
        %v2777 = vshrl.u32 %v2776, 7
        %v2778 = vsub.s32 %v2775, %v2777
        %v2779 = vrot.slane %v2771, %v2778
        %v2781 = vunpack.c.l.s4 1934713408
        %v2782 = vunpack.c.0.s8 %v2781
        %v2783 = vlaneseq
        %v2784 = vshrl.u32 %v2783, 7
        %v2785 = vsub.s32 %v2782, %v2784
        %v2786 = vrot.slane %v2772, %v2785
        %v2787 = vcombine.low %v2731, %v2747
        %v2788 = vcombine.high %v2731, %v2747
        %v2790 = vunpack.c.l.s4 1934713408
        %v2791 = vunpack.c.0.s8 %v2790
        %v2792 = vlaneseq
        %v2793 = vshrl.u32 %v2792, 7
        %v2794 = vsub.s32 %v2791, %v2793
        %v2795 = vrot.slane %v2787, %v2794
        %v2797 = vunpack.c.l.s4 1934713408
        %v2798 = vunpack.c.0.s8 %v2797
        %v2799 = vlaneseq
        %v2800 = vshrl.u32 %v2799, 7
        %v2801 = vsub.s32 %v2798, %v2800
        %v2802 = vrot.slane %v2788, %v2801
        %v2803 = vcombine.low %v2738, %v2754
        %v2804 = vcombine.high %v2738, %v2754
        %v2806 = vunpack.c.l.s4 1934713408
        %v2807 = vunpack.c.0.s8 %v2806
        %v2808 = vlaneseq
        %v2809 = vshrl.u32 %v2808, 7
        %v2810 = vsub.s32 %v2807, %v2809
        %v2811 = vrot.slane %v2803, %v2810
        %v2813 = vunpack.c.l.s4 1934713408
        %v2814 = vunpack.c.0.s8 %v2813
        %v2815 = vlaneseq
        %v2816 = vshrl.u32 %v2815, 7
        %v2817 = vsub.s32 %v2814, %v2816
        %v2818 = vrot.slane %v2804, %v2817
        %v2819 = vcombine.low %v2763, %v2795
        %v2820 = vcombine.high %v2763, %v2795
        %v2821 = vcombine.low %v2770, %v2802
        %v2822 = vcombine.high %v2770, %v2802
        %v2823 = vcombine.low %v2779, %v2811
        %v2824 = vcombine.high %v2779, %v2811
        %v2825 = vcombine.low %v2786, %v2818
        %v2826 = vcombine.high %v2786, %v2818
        %v2827 = vcombine.low %v2411, %v2413
        %v2828 = vcombine.high %v2411, %v2413
        %v2830 = vunpack.c.l.s4 1983009808
        %v2831 = vunpack.c.0.s8 %v2830
        %v2832 = vlaneseq
        %v2833 = vshrl.u32 %v2832, 7
        %v2834 = vsub.s32 %v2831, %v2833
        %v2835 = vrot.slane %v2827, %v2834
        %v2837 = vunpack.c.l.s4 1983009808
        %v2838 = vunpack.c.0.s8 %v2837
        %v2839 = vlaneseq
        %v2840 = vshrl.u32 %v2839, 7
        %v2841 = vsub.s32 %v2838, %v2840
        %v2842 = vrot.slane %v2828, %v2841
        %v2843 = vcombine.low %v2412, %v2414
        %v2844 = vcombine.high %v2412, %v2414
        %v2846 = vunpack.c.l.s4 1983009808
        %v2847 = vunpack.c.0.s8 %v2846
        %v2848 = vlaneseq
        %v2849 = vshrl.u32 %v2848, 7
        %v2850 = vsub.s32 %v2847, %v2849
        %v2851 = vrot.slane %v2843, %v2850
        %v2853 = vunpack.c.l.s4 1983009808
        %v2854 = vunpack.c.0.s8 %v2853
        %v2855 = vlaneseq
        %v2856 = vshrl.u32 %v2855, 7
        %v2857 = vsub.s32 %v2854, %v2856
        %v2858 = vrot.slane %v2844, %v2857
        %v2859 = vcombine.low %v2415, %v2417
        %v2860 = vcombine.high %v2415, %v2417
        %v2862 = vunpack.c.l.s4 1983009808
        %v2863 = vunpack.c.0.s8 %v2862
        %v2864 = vlaneseq
        %v2865 = vshrl.u32 %v2864, 7
        %v2866 = vsub.s32 %v2863, %v2865
        %v2867 = vrot.slane %v2859, %v2866
        %v2869 = vunpack.c.l.s4 1983009808
        %v2870 = vunpack.c.0.s8 %v2869
        %v2871 = vlaneseq
        %v2872 = vshrl.u32 %v2871, 7
        %v2873 = vsub.s32 %v2870, %v2872
        %v2874 = vrot.slane %v2860, %v2873
        %v2875 = vcombine.low %v2416, %v2418
        %v2876 = vcombine.high %v2416, %v2418
        %v2878 = vunpack.c.l.s4 1983009808
        %v2879 = vunpack.c.0.s8 %v2878
        %v2880 = vlaneseq
        %v2881 = vshrl.u32 %v2880, 7
        %v2882 = vsub.s32 %v2879, %v2881
        %v2883 = vrot.slane %v2875, %v2882
        %v2885 = vunpack.c.l.s4 1983009808
        %v2886 = vunpack.c.0.s8 %v2885
        %v2887 = vlaneseq
        %v2888 = vshrl.u32 %v2887, 7
        %v2889 = vsub.s32 %v2886, %v2888
        %v2890 = vrot.slane %v2876, %v2889
        %v2891 = vcombine.low %v2835, %v2851
        %v2892 = vcombine.high %v2835, %v2851
        %v2894 = vunpack.c.l.s4 1934713408
        %v2895 = vunpack.c.0.s8 %v2894
        %v2896 = vlaneseq
        %v2897 = vshrl.u32 %v2896, 7
        %v2898 = vsub.s32 %v2895, %v2897
        %v2899 = vrot.slane %v2891, %v2898
        %v2901 = vunpack.c.l.s4 1934713408
        %v2902 = vunpack.c.0.s8 %v2901
        %v2903 = vlaneseq
        %v2904 = vshrl.u32 %v2903, 7
        %v2905 = vsub.s32 %v2902, %v2904
        %v2906 = vrot.slane %v2892, %v2905
        %v2907 = vcombine.low %v2842, %v2858
        %v2908 = vcombine.high %v2842, %v2858
        %v2910 = vunpack.c.l.s4 1934713408
        %v2911 = vunpack.c.0.s8 %v2910
        %v2912 = vlaneseq
        %v2913 = vshrl.u32 %v2912, 7
        %v2914 = vsub.s32 %v2911, %v2913
        %v2915 = vrot.slane %v2907, %v2914
        %v2917 = vunpack.c.l.s4 1934713408
        %v2918 = vunpack.c.0.s8 %v2917
        %v2919 = vlaneseq
        %v2920 = vshrl.u32 %v2919, 7
        %v2921 = vsub.s32 %v2918, %v2920
        %v2922 = vrot.slane %v2908, %v2921
        %v2923 = vcombine.low %v2867, %v2883
        %v2924 = vcombine.high %v2867, %v2883
        %v2926 = vunpack.c.l.s4 1934713408
        %v2927 = vunpack.c.0.s8 %v2926
        %v2928 = vlaneseq
        %v2929 = vshrl.u32 %v2928, 7
        %v2930 = vsub.s32 %v2927, %v2929
        %v2931 = vrot.slane %v2923, %v2930
        %v2933 = vunpack.c.l.s4 1934713408
        %v2934 = vunpack.c.0.s8 %v2933
        %v2935 = vlaneseq
        %v2936 = vshrl.u32 %v2935, 7
        %v2937 = vsub.s32 %v2934, %v2936
        %v2938 = vrot.slane %v2924, %v2937
        %v2939 = vcombine.low %v2874, %v2890
        %v2940 = vcombine.high %v2874, %v2890
        %v2942 = vunpack.c.l.s4 1934713408
        %v2943 = vunpack.c.0.s8 %v2942
        %v2944 = vlaneseq
        %v2945 = vshrl.u32 %v2944, 7
        %v2946 = vsub.s32 %v2943, %v2945
        %v2947 = vrot.slane %v2939, %v2946
        %v2949 = vunpack.c.l.s4 1934713408
        %v2950 = vunpack.c.0.s8 %v2949
        %v2951 = vlaneseq
        %v2952 = vshrl.u32 %v2951, 7
        %v2953 = vsub.s32 %v2950, %v2952
        %v2954 = vrot.slane %v2940, %v2953
        %v2955 = vcombine.low %v2899, %v2931
        %v2956 = vcombine.high %v2899, %v2931
        %v2957 = vcombine.low %v2906, %v2938
        %v2958 = vcombine.high %v2906, %v2938
        %v2959 = vcombine.low %v2915, %v2947
        %v2960 = vcombine.high %v2915, %v2947
        %v2961 = vcombine.low %v2922, %v2954
        %v2962 = vcombine.high %v2922, %v2954
        %v2963 = vcombine.low %v2547, %v2549
        %v2964 = vcombine.high %v2547, %v2549
        %v2966 = vunpack.c.l.s4 1983009808
        %v2967 = vunpack.c.0.s8 %v2966
        %v2968 = vlaneseq
        %v2969 = vshrl.u32 %v2968, 7
        %v2970 = vsub.s32 %v2967, %v2969
        %v2971 = vrot.slane %v2963, %v2970
        %v2973 = vunpack.c.l.s4 1983009808
        %v2974 = vunpack.c.0.s8 %v2973
        %v2975 = vlaneseq
        %v2976 = vshrl.u32 %v2975, 7
        %v2977 = vsub.s32 %v2974, %v2976
        %v2978 = vrot.slane %v2964, %v2977
        %v2979 = vcombine.low %v2548, %v2550
        %v2980 = vcombine.high %v2548, %v2550
        %v2982 = vunpack.c.l.s4 1983009808
        %v2983 = vunpack.c.0.s8 %v2982
        %v2984 = vlaneseq
        %v2985 = vshrl.u32 %v2984, 7
        %v2986 = vsub.s32 %v2983, %v2985
        %v2987 = vrot.slane %v2979, %v2986
        %v2989 = vunpack.c.l.s4 1983009808
        %v2990 = vunpack.c.0.s8 %v2989
        %v2991 = vlaneseq
        %v2992 = vshrl.u32 %v2991, 7
        %v2993 = vsub.s32 %v2990, %v2992
        %v2994 = vrot.slane %v2980, %v2993
        %v2995 = vcombine.low %v2551, %v2553
        %v2996 = vcombine.high %v2551, %v2553
        %v2998 = vunpack.c.l.s4 1983009808
        %v2999 = vunpack.c.0.s8 %v2998
        %v3000 = vlaneseq
        %v3001 = vshrl.u32 %v3000, 7
        %v3002 = vsub.s32 %v2999, %v3001
        %v3003 = vrot.slane %v2995, %v3002
        %v3005 = vunpack.c.l.s4 1983009808
        %v3006 = vunpack.c.0.s8 %v3005
        %v3007 = vlaneseq
        %v3008 = vshrl.u32 %v3007, 7
        %v3009 = vsub.s32 %v3006, %v3008
        %v3010 = vrot.slane %v2996, %v3009
        %v3011 = vcombine.low %v2552, %v2554
        %v3012 = vcombine.high %v2552, %v2554
        %v3014 = vunpack.c.l.s4 1983009808
        %v3015 = vunpack.c.0.s8 %v3014
        %v3016 = vlaneseq
        %v3017 = vshrl.u32 %v3016, 7
        %v3018 = vsub.s32 %v3015, %v3017
        %v3019 = vrot.slane %v3011, %v3018
        %v3021 = vunpack.c.l.s4 1983009808
        %v3022 = vunpack.c.0.s8 %v3021
        %v3023 = vlaneseq
        %v3024 = vshrl.u32 %v3023, 7
        %v3025 = vsub.s32 %v3022, %v3024
        %v3026 = vrot.slane %v3012, %v3025
        %v3027 = vcombine.low %v2971, %v2987
        %v3028 = vcombine.high %v2971, %v2987
        %v3030 = vunpack.c.l.s4 1934713408
        %v3031 = vunpack.c.0.s8 %v3030
        %v3032 = vlaneseq
        %v3033 = vshrl.u32 %v3032, 7
        %v3034 = vsub.s32 %v3031, %v3033
        %v3035 = vrot.slane %v3027, %v3034
        %v3037 = vunpack.c.l.s4 1934713408
        %v3038 = vunpack.c.0.s8 %v3037
        %v3039 = vlaneseq
        %v3040 = vshrl.u32 %v3039, 7
        %v3041 = vsub.s32 %v3038, %v3040
        %v3042 = vrot.slane %v3028, %v3041
        %v3043 = vcombine.low %v2978, %v2994
        %v3044 = vcombine.high %v2978, %v2994
        %v3046 = vunpack.c.l.s4 1934713408
        %v3047 = vunpack.c.0.s8 %v3046
        %v3048 = vlaneseq
        %v3049 = vshrl.u32 %v3048, 7
        %v3050 = vsub.s32 %v3047, %v3049
        %v3051 = vrot.slane %v3043, %v3050
        %v3053 = vunpack.c.l.s4 1934713408
        %v3054 = vunpack.c.0.s8 %v3053
        %v3055 = vlaneseq
        %v3056 = vshrl.u32 %v3055, 7
        %v3057 = vsub.s32 %v3054, %v3056
        %v3058 = vrot.slane %v3044, %v3057
        %v3059 = vcombine.low %v3003, %v3019
        %v3060 = vcombine.high %v3003, %v3019
        %v3062 = vunpack.c.l.s4 1934713408
        %v3063 = vunpack.c.0.s8 %v3062
        %v3064 = vlaneseq
        %v3065 = vshrl.u32 %v3064, 7
        %v3066 = vsub.s32 %v3063, %v3065
        %v3067 = vrot.slane %v3059, %v3066
        %v3069 = vunpack.c.l.s4 1934713408
        %v3070 = vunpack.c.0.s8 %v3069
        %v3071 = vlaneseq
        %v3072 = vshrl.u32 %v3071, 7
        %v3073 = vsub.s32 %v3070, %v3072
        %v3074 = vrot.slane %v3060, %v3073
        %v3075 = vcombine.low %v3010, %v3026
        %v3076 = vcombine.high %v3010, %v3026
        %v3078 = vunpack.c.l.s4 1934713408
        %v3079 = vunpack.c.0.s8 %v3078
        %v3080 = vlaneseq
        %v3081 = vshrl.u32 %v3080, 7
        %v3082 = vsub.s32 %v3079, %v3081
        %v3083 = vrot.slane %v3075, %v3082
        %v3085 = vunpack.c.l.s4 1934713408
        %v3086 = vunpack.c.0.s8 %v3085
        %v3087 = vlaneseq
        %v3088 = vshrl.u32 %v3087, 7
        %v3089 = vsub.s32 %v3086, %v3088
        %v3090 = vrot.slane %v3076, %v3089
        %v3091 = vcombine.low %v3035, %v3067
        %v3092 = vcombine.high %v3035, %v3067
        %v3093 = vcombine.low %v3042, %v3074
        %v3094 = vcombine.high %v3042, %v3074
        %v3095 = vcombine.low %v3051, %v3083
        %v3096 = vcombine.high %v3051, %v3083
        %v3097 = vcombine.low %v3058, %v3090
        %v3098 = vcombine.high %v3058, %v3090
        %v3099 = vcombine.low %v2683, %v2685
        %v3100 = vcombine.high %v2683, %v2685
        %v3102 = vunpack.c.l.s4 1983009808
        %v3103 = vunpack.c.0.s8 %v3102
        %v3104 = vlaneseq
        %v3105 = vshrl.u32 %v3104, 7
        %v3106 = vsub.s32 %v3103, %v3105
        %v3107 = vrot.slane %v3099, %v3106
        %v3109 = vunpack.c.l.s4 1983009808
        %v3110 = vunpack.c.0.s8 %v3109
        %v3111 = vlaneseq
        %v3112 = vshrl.u32 %v3111, 7
        %v3113 = vsub.s32 %v3110, %v3112
        %v3114 = vrot.slane %v3100, %v3113
        %v3115 = vcombine.low %v2684, %v2686
        %v3116 = vcombine.high %v2684, %v2686
        %v3118 = vunpack.c.l.s4 1983009808
        %v3119 = vunpack.c.0.s8 %v3118
        %v3120 = vlaneseq
        %v3121 = vshrl.u32 %v3120, 7
        %v3122 = vsub.s32 %v3119, %v3121
        %v3123 = vrot.slane %v3115, %v3122
        %v3125 = vunpack.c.l.s4 1983009808
        %v3126 = vunpack.c.0.s8 %v3125
        %v3127 = vlaneseq
        %v3128 = vshrl.u32 %v3127, 7
        %v3129 = vsub.s32 %v3126, %v3128
        %v3130 = vrot.slane %v3116, %v3129
        %v3131 = vcombine.low %v2687, %v2689
        %v3132 = vcombine.high %v2687, %v2689
        %v3134 = vunpack.c.l.s4 1983009808
        %v3135 = vunpack.c.0.s8 %v3134
        %v3136 = vlaneseq
        %v3137 = vshrl.u32 %v3136, 7
        %v3138 = vsub.s32 %v3135, %v3137
        %v3139 = vrot.slane %v3131, %v3138
        %v3141 = vunpack.c.l.s4 1983009808
        %v3142 = vunpack.c.0.s8 %v3141
        %v3143 = vlaneseq
        %v3144 = vshrl.u32 %v3143, 7
        %v3145 = vsub.s32 %v3142, %v3144
        %v3146 = vrot.slane %v3132, %v3145
        %v3147 = vcombine.low %v2688, %v2690
        %v3148 = vcombine.high %v2688, %v2690
        %v3150 = vunpack.c.l.s4 1983009808
        %v3151 = vunpack.c.0.s8 %v3150
        %v3152 = vlaneseq
        %v3153 = vshrl.u32 %v3152, 7
        %v3154 = vsub.s32 %v3151, %v3153
        %v3155 = vrot.slane %v3147, %v3154
        %v3157 = vunpack.c.l.s4 1983009808
        %v3158 = vunpack.c.0.s8 %v3157
        %v3159 = vlaneseq
        %v3160 = vshrl.u32 %v3159, 7
        %v3161 = vsub.s32 %v3158, %v3160
        %v3162 = vrot.slane %v3148, %v3161
        %v3163 = vcombine.low %v3107, %v3123
        %v3164 = vcombine.high %v3107, %v3123
        %v3166 = vunpack.c.l.s4 1934713408
        %v3167 = vunpack.c.0.s8 %v3166
        %v3168 = vlaneseq
        %v3169 = vshrl.u32 %v3168, 7
        %v3170 = vsub.s32 %v3167, %v3169
        %v3171 = vrot.slane %v3163, %v3170
        %v3173 = vunpack.c.l.s4 1934713408
        %v3174 = vunpack.c.0.s8 %v3173
        %v3175 = vlaneseq
        %v3176 = vshrl.u32 %v3175, 7
        %v3177 = vsub.s32 %v3174, %v3176
        %v3178 = vrot.slane %v3164, %v3177
        %v3179 = vcombine.low %v3114, %v3130
        %v3180 = vcombine.high %v3114, %v3130
        %v3182 = vunpack.c.l.s4 1934713408
        %v3183 = vunpack.c.0.s8 %v3182
        %v3184 = vlaneseq
        %v3185 = vshrl.u32 %v3184, 7
        %v3186 = vsub.s32 %v3183, %v3185
        %v3187 = vrot.slane %v3179, %v3186
        %v3189 = vunpack.c.l.s4 1934713408
        %v3190 = vunpack.c.0.s8 %v3189
        %v3191 = vlaneseq
        %v3192 = vshrl.u32 %v3191, 7
        %v3193 = vsub.s32 %v3190, %v3192
        %v3194 = vrot.slane %v3180, %v3193
        %v3195 = vcombine.low %v3139, %v3155
        %v3196 = vcombine.high %v3139, %v3155
        %v3198 = vunpack.c.l.s4 1934713408
        %v3199 = vunpack.c.0.s8 %v3198
        %v3200 = vlaneseq
        %v3201 = vshrl.u32 %v3200, 7
        %v3202 = vsub.s32 %v3199, %v3201
        %v3203 = vrot.slane %v3195, %v3202
        %v3205 = vunpack.c.l.s4 1934713408
        %v3206 = vunpack.c.0.s8 %v3205
        %v3207 = vlaneseq
        %v3208 = vshrl.u32 %v3207, 7
        %v3209 = vsub.s32 %v3206, %v3208
        %v3210 = vrot.slane %v3196, %v3209
        %v3211 = vcombine.low %v3146, %v3162
        %v3212 = vcombine.high %v3146, %v3162
        %v3214 = vunpack.c.l.s4 1934713408
        %v3215 = vunpack.c.0.s8 %v3214
        %v3216 = vlaneseq
        %v3217 = vshrl.u32 %v3216, 7
        %v3218 = vsub.s32 %v3215, %v3217
        %v3219 = vrot.slane %v3211, %v3218
        %v3221 = vunpack.c.l.s4 1934713408
        %v3222 = vunpack.c.0.s8 %v3221
        %v3223 = vlaneseq
        %v3224 = vshrl.u32 %v3223, 7
        %v3225 = vsub.s32 %v3222, %v3224
        %v3226 = vrot.slane %v3212, %v3225
        %v3227 = vcombine.low %v3171, %v3203
        %v3228 = vcombine.high %v3171, %v3203
        %v3229 = vcombine.low %v3178, %v3210
        %v3230 = vcombine.high %v3178, %v3210
        %v3231 = vcombine.low %v3187, %v3219
        %v3232 = vcombine.high %v3187, %v3219
        %v3233 = vcombine.low %v3194, %v3226
        %v3234 = vcombine.high %v3194, %v3226
        %vm3235 = vcmask 130048
        %v3237 = vsel %vm3235, %v1643, 0
        %v3240 = vsel %vm3235, %v1779, 0
        %v3243 = vsel %vm3235, %v2819, 0
        %v3246 = vsel %vm3235, %v2955, 0
        %3248 = vmatprep.subr.mxu0 0.0
        %3249 = vmatpush1.xpose.msra.mxu0 %v3243
        %3250 = vmatprep.subr.mxu0 0.0
        %3251 = vmatpush1.xpose.msra.mxu0 %v3246
        %3252 = vmatprep.subr.mxu0 0.0
        %3253 = vmatpush1.xpose.msra.mxu0 0.0
        %3254 = vmatprep.subr.mxu0 0.0
        %3255 = vmatpush1.xpose.msra.mxu0 0.0
        %3256 = vmatprep.subr.mxu0 0.0
        %3257 = vmatpush1.xpose.msra.mxu0 0.0
        %3258 = vmatprep.subr.mxu0 0.0
        %3259 = vmatpush1.xpose.msra.mxu0 0.0
        %3260 = vmatprep.subr.mxu0 0.0
        %3261 = vmatpush1.xpose.msra.mxu0 0.0
        %3262 = vmatprep.subr.mxu0 0.0
        %3263 = vmatpush1.xpose.msra.mxu0 0.0
        %3264 = vmatprep.subr.mxu0 0.0
        %3265 = vmatpush1.xpose.msra.mxu0 0.0
        %3266 = vmatprep.subr.mxu0 0.0
        %3267 = vmatpush1.xpose.msra.mxu0 0.0
        %3268 = vmatprep.subr.mxu0 0.0
        %3269 = vmatpush1.xpose.msra.mxu0 0.0
        %3270 = vmatprep.subr.mxu0 0.0
        %3271 = vmatpush1.xpose.msra.mxu0 0.0
        %3272 = vmatprep.subr.mxu0 0.0
        %3273 = vmatpush1.xpose.msra.mxu0 0.0
        %3274 = vmatprep.subr.mxu0 0.0
        %3275 = vmatpush1.xpose.msra.mxu0 0.0
        %3276 = vmatprep.subr.mxu0 0.0
        %3277 = vmatpush1.xpose.msra.mxu0 0.0
        %3278 = vmatprep.subr.mxu0 0.0
        %3279 = vmatpush1.xpose.msra.mxu0 0.0
        %3280 = vmatprep.subr.mxu0 0.0
        %3281 = vmatpush1.xpose.msra.mxu0 0.0
        %3282 = vmatprep.subr.mxu0 0.0
        %3283 = vmatpush1.xpose.msra.mxu0 0.0
        %3284 = vmatprep.subr.mxu0 0.0
        %3285 = vmatpush1.xpose.msra.mxu0 0.0
        %3286 = vmatprep.subr.mxu0 0.0
        %3287 = vmatpush1.xpose.msra.mxu0 0.0
        %3288 = vmatprep.subr.mxu0 0.0
        %3289 = vmatpush1.xpose.msra.mxu0 0.0
        %3290 = vmatprep.subr.mxu0 0.0
        %3291 = vmatpush1.xpose.msra.mxu0 0.0
        %3292 = vmatprep.subr.mxu0 0.0
        %3293 = vmatpush1.xpose.msra.mxu0 0.0
        %3294 = vmatprep.subr.mxu0 0.0
        %3295 = vmatpush1.xpose.msra.mxu0 0.0
        %3296 = vmatprep.subr.mxu0 0.0
        %3297 = vmatpush1.xpose.msra.mxu0 0.0
        %3298 = vmatprep.subr.mxu0 0.0
        %3299 = vmatpush1.xpose.msra.mxu0 0.0
        %3300 = vmatprep.subr.mxu0 0.0
        %3301 = vmatpush1.xpose.msra.mxu0 0.0
        %3302 = vmatprep.subr.mxu0 0.0
        %3303 = vmatpush1.xpose.msra.mxu0 0.0
        %3304 = vmatprep.subr.mxu0 0.0
        %3305 = vmatpush1.xpose.msra.mxu0 0.0
        %3306 = vmatprep.subr.mxu0 0.0
        %3307 = vmatpush1.xpose.msra.mxu0 0.0
        %3308 = vmatprep.subr.mxu0 0.0
        %3309 = vmatpush1.xpose.msra.mxu0 0.0
        %3310 = vmatprep.subr.mxu0 0.0
        %3311 = vmatpush1.xpose.msra.mxu0 0.0
        %3312 = vmatprep.mubr.f32.mxu0 0.0
        %3313 = vmatmul.mubr.f32.gmra.mrb[0].mxu0 %v3237
        %v3314 = vpop.f32.mrb[0].mxu0
        %v3315 = vadd.f32 0.0, %v3314
        %v3316 = vpop.f32.mrb[0].mxu0
        %3317 = vmatprep.mubr.f32.mxu0 0.0
        %3318 = vmatmul.mubr.f32.gmra.mrb[0].mxu0 %v3240
        %v3319 = vpop.f32.mrb[0].mxu0
        %v3320 = vadd.f32 0.0, %v3319
        %v3321 = vpop.f32.mrb[0].mxu0
        %3322 = vdwg.mxu0
        %v3324 = vsel %vm3235, %v1644, 0
        %v3327 = vsel %vm3235, %v1780, 0
        %v3330 = vsel %vm3235, %v2820, 0
        %v3333 = vsel %vm3235, %v2956, 0
        %3335 = vmatprep.subr.mxu0 0.0
        %3336 = vmatpush1.xpose.msra.mxu0 %v3330
        %3337 = vmatprep.subr.mxu0 0.0
        %3338 = vmatpush1.xpose.msra.mxu0 %v3333
        %3339 = vmatprep.subr.mxu0 0.0
        %3340 = vmatpush1.xpose.msra.mxu0 0.0
        %3341 = vmatprep.subr.mxu0 0.0
        %3342 = vmatpush1.xpose.msra.mxu0 0.0
        %3343 = vmatprep.subr.mxu0 0.0
        %3344 = vmatpush1.xpose.msra.mxu0 0.0
        %3345 = vmatprep.subr.mxu0 0.0
        %3346 = vmatpush1.xpose.msra.mxu0 0.0
        %3347 = vmatprep.subr.mxu0 0.0
        %3348 = vmatpush1.xpose.msra.mxu0 0.0
        %3349 = vmatprep.subr.mxu0 0.0
        %3350 = vmatpush1.xpose.msra.mxu0 0.0
        %3351 = vmatprep.subr.mxu0 0.0
        %3352 = vmatpush1.xpose.msra.mxu0 0.0
        %3353 = vmatprep.subr.mxu0 0.0
        %3354 = vmatpush1.xpose.msra.mxu0 0.0
        %3355 = vmatprep.subr.mxu0 0.0
        %3356 = vmatpush1.xpose.msra.mxu0 0.0
        %3357 = vmatprep.subr.mxu0 0.0
        %3358 = vmatpush1.xpose.msra.mxu0 0.0
        %3359 = vmatprep.subr.mxu0 0.0
        %3360 = vmatpush1.xpose.msra.mxu0 0.0
        %3361 = vmatprep.subr.mxu0 0.0
        %3362 = vmatpush1.xpose.msra.mxu0 0.0
        %3363 = vmatprep.subr.mxu0 0.0
        %3364 = vmatpush1.xpose.msra.mxu0 0.0
        %3365 = vmatprep.subr.mxu0 0.0
        %3366 = vmatpush1.xpose.msra.mxu0 0.0
        %3367 = vmatprep.subr.mxu0 0.0
        %3368 = vmatpush1.xpose.msra.mxu0 0.0
        %3369 = vmatprep.subr.mxu0 0.0
        %3370 = vmatpush1.xpose.msra.mxu0 0.0
        %3371 = vmatprep.subr.mxu0 0.0
        %3372 = vmatpush1.xpose.msra.mxu0 0.0
        %3373 = vmatprep.subr.mxu0 0.0
        %3374 = vmatpush1.xpose.msra.mxu0 0.0
        %3375 = vmatprep.subr.mxu0 0.0
        %3376 = vmatpush1.xpose.msra.mxu0 0.0
        %3377 = vmatprep.subr.mxu0 0.0
        %3378 = vmatpush1.xpose.msra.mxu0 0.0
        %3379 = vmatprep.subr.mxu0 0.0
        %3380 = vmatpush1.xpose.msra.mxu0 0.0
        %3381 = vmatprep.subr.mxu0 0.0
        %3382 = vmatpush1.xpose.msra.mxu0 0.0
        %3383 = vmatprep.subr.mxu0 0.0
        %3384 = vmatpush1.xpose.msra.mxu0 0.0
        %3385 = vmatprep.subr.mxu0 0.0
        %3386 = vmatpush1.xpose.msra.mxu0 0.0
        %3387 = vmatprep.subr.mxu0 0.0
        %3388 = vmatpush1.xpose.msra.mxu0 0.0
        %3389 = vmatprep.subr.mxu0 0.0
        %3390 = vmatpush1.xpose.msra.mxu0 0.0
        %3391 = vmatprep.subr.mxu0 0.0
        %3392 = vmatpush1.xpose.msra.mxu0 0.0
        %3393 = vmatprep.subr.mxu0 0.0
        %3394 = vmatpush1.xpose.msra.mxu0 0.0
        %3395 = vmatprep.subr.mxu0 0.0
        %3396 = vmatpush1.xpose.msra.mxu0 0.0
        %3397 = vmatprep.subr.mxu0 0.0
        %3398 = vmatpush1.xpose.msra.mxu0 0.0
        %3399 = vmatprep.mubr.f32.mxu0 0.0
        %3400 = vmatmul.mubr.f32.gmra.mrb[0].mxu0 %v3324
        %v3401 = vpop.f32.mrb[0].mxu0
        %v3402 = vadd.f32 0.0, %v3401
        %v3403 = vpop.f32.mrb[0].mxu0
        %3404 = vmatprep.mubr.f32.mxu0 0.0
        %3405 = vmatmul.mubr.f32.gmra.mrb[0].mxu0 %v3327
        %v3406 = vpop.f32.mrb[0].mxu0
        %v3407 = vadd.f32 0.0, %v3406
        %v3408 = vpop.f32.mrb[0].mxu0
        %3409 = vdwg.mxu0
        %v3411 = vsel %vm3235, %v1645, 0
        %v3414 = vsel %vm3235, %v1781, 0
        %v3417 = vsel %vm3235, %v2821, 0
        %v3420 = vsel %vm3235, %v2957, 0
        %3422 = vmatprep.subr.mxu0 0.0
        %3423 = vmatpush1.xpose.msra.mxu0 %v3417
        %3424 = vmatprep.subr.mxu0 0.0
        %3425 = vmatpush1.xpose.msra.mxu0 %v3420
        %3426 = vmatprep.subr.mxu0 0.0
        %3427 = vmatpush1.xpose.msra.mxu0 0.0
        %3428 = vmatprep.subr.mxu0 0.0
        %3429 = vmatpush1.xpose.msra.mxu0 0.0
        %3430 = vmatprep.subr.mxu0 0.0
        %3431 = vmatpush1.xpose.msra.mxu0 0.0
        %3432 = vmatprep.subr.mxu0 0.0
        %3433 = vmatpush1.xpose.msra.mxu0 0.0
        %3434 = vmatprep.subr.mxu0 0.0
        %3435 = vmatpush1.xpose.msra.mxu0 0.0
        %3436 = vmatprep.subr.mxu0 0.0
        %3437 = vmatpush1.xpose.msra.mxu0 0.0
        %3438 = vmatprep.subr.mxu0 0.0
        %3439 = vmatpush1.xpose.msra.mxu0 0.0
        %3440 = vmatprep.subr.mxu0 0.0
        %3441 = vmatpush1.xpose.msra.mxu0 0.0
        %3442 = vmatprep.subr.mxu0 0.0
        %3443 = vmatpush1.xpose.msra.mxu0 0.0
        %3444 = vmatprep.subr.mxu0 0.0
        %3445 = vmatpush1.xpose.msra.mxu0 0.0
        %3446 = vmatprep.subr.mxu0 0.0
        %3447 = vmatpush1.xpose.msra.mxu0 0.0
        %3448 = vmatprep.subr.mxu0 0.0
        %3449 = vmatpush1.xpose.msra.mxu0 0.0
        %3450 = vmatprep.subr.mxu0 0.0
        %3451 = vmatpush1.xpose.msra.mxu0 0.0
        %3452 = vmatprep.subr.mxu0 0.0
        %3453 = vmatpush1.xpose.msra.mxu0 0.0
        %3454 = vmatprep.subr.mxu0 0.0
        %3455 = vmatpush1.xpose.msra.mxu0 0.0
        %3456 = vmatprep.subr.mxu0 0.0
        %3457 = vmatpush1.xpose.msra.mxu0 0.0
        %3458 = vmatprep.subr.mxu0 0.0
        %3459 = vmatpush1.xpose.msra.mxu0 0.0
        %3460 = vmatprep.subr.mxu0 0.0
        %3461 = vmatpush1.xpose.msra.mxu0 0.0
        %3462 = vmatprep.subr.mxu0 0.0
        %3463 = vmatpush1.xpose.msra.mxu0 0.0
        %3464 = vmatprep.subr.mxu0 0.0
        %3465 = vmatpush1.xpose.msra.mxu0 0.0
        %3466 = vmatprep.subr.mxu0 0.0
        %3467 = vmatpush1.xpose.msra.mxu0 0.0
        %3468 = vmatprep.subr.mxu0 0.0
        %3469 = vmatpush1.xpose.msra.mxu0 0.0
        %3470 = vmatprep.subr.mxu0 0.0
        %3471 = vmatpush1.xpose.msra.mxu0 0.0
        %3472 = vmatprep.subr.mxu0 0.0
        %3473 = vmatpush1.xpose.msra.mxu0 0.0
        %3474 = vmatprep.subr.mxu0 0.0
        %3475 = vmatpush1.xpose.msra.mxu0 0.0
        %3476 = vmatprep.subr.mxu0 0.0
        %3477 = vmatpush1.xpose.msra.mxu0 0.0
        %3478 = vmatprep.subr.mxu0 0.0
        %3479 = vmatpush1.xpose.msra.mxu0 0.0
        %3480 = vmatprep.subr.mxu0 0.0
        %3481 = vmatpush1.xpose.msra.mxu0 0.0
        %3482 = vmatprep.subr.mxu0 0.0
        %3483 = vmatpush1.xpose.msra.mxu0 0.0
        %3484 = vmatprep.subr.mxu0 0.0
        %3485 = vmatpush1.xpose.msra.mxu0 0.0
        %3486 = vmatprep.mubr.f32.mxu0 0.0
        %3487 = vmatmul.mubr.f32.gmra.mrb[0].mxu0 %v3411
        %v3488 = vpop.f32.mrb[0].mxu0
        %v3489 = vadd.f32 0.0, %v3488
        %v3490 = vpop.f32.mrb[0].mxu0
        %3491 = vmatprep.mubr.f32.mxu0 0.0
        %3492 = vmatmul.mubr.f32.gmra.mrb[0].mxu0 %v3414
        %v3493 = vpop.f32.mrb[0].mxu0
        %v3494 = vadd.f32 0.0, %v3493
        %v3495 = vpop.f32.mrb[0].mxu0
        %3496 = vdwg.mxu0
        %v3498 = vsel %vm3235, %v1646, 0
        %v3501 = vsel %vm3235, %v1782, 0
        %v3504 = vsel %vm3235, %v2822, 0
        %v3507 = vsel %vm3235, %v2958, 0
        %3509 = vmatprep.subr.mxu0 0.0
        %3510 = vmatpush1.xpose.msra.mxu0 %v3504
        %3511 = vmatprep.subr.mxu0 0.0
        %3512 = vmatpush1.xpose.msra.mxu0 %v3507
        %3513 = vmatprep.subr.mxu0 0.0
        %3514 = vmatpush1.xpose.msra.mxu0 0.0
        %3515 = vmatprep.subr.mxu0 0.0
        %3516 = vmatpush1.xpose.msra.mxu0 0.0
        %3517 = vmatprep.subr.mxu0 0.0
        %3518 = vmatpush1.xpose.msra.mxu0 0.0
        %3519 = vmatprep.subr.mxu0 0.0
        %3520 = vmatpush1.xpose.msra.mxu0 0.0
        %3521 = vmatprep.subr.mxu0 0.0
        %3522 = vmatpush1.xpose.msra.mxu0 0.0
        %3523 = vmatprep.subr.mxu0 0.0
        %3524 = vmatpush1.xpose.msra.mxu0 0.0
        %3525 = vmatprep.subr.mxu0 0.0
        %3526 = vmatpush1.xpose.msra.mxu0 0.0
        %3527 = vmatprep.subr.mxu0 0.0
        %3528 = vmatpush1.xpose.msra.mxu0 0.0
        %3529 = vmatprep.subr.mxu0 0.0
        %3530 = vmatpush1.xpose.msra.mxu0 0.0
        %3531 = vmatprep.subr.mxu0 0.0
        %3532 = vmatpush1.xpose.msra.mxu0 0.0
        %3533 = vmatprep.subr.mxu0 0.0
        %3534 = vmatpush1.xpose.msra.mxu0 0.0
        %3535 = vmatprep.subr.mxu0 0.0
        %3536 = vmatpush1.xpose.msra.mxu0 0.0
        %3537 = vmatprep.subr.mxu0 0.0
        %3538 = vmatpush1.xpose.msra.mxu0 0.0
        %3539 = vmatprep.subr.mxu0 0.0
        %3540 = vmatpush1.xpose.msra.mxu0 0.0
        %3541 = vmatprep.subr.mxu0 0.0
        %3542 = vmatpush1.xpose.msra.mxu0 0.0
        %3543 = vmatprep.subr.mxu0 0.0
        %3544 = vmatpush1.xpose.msra.mxu0 0.0
        %3545 = vmatprep.subr.mxu0 0.0
        %3546 = vmatpush1.xpose.msra.mxu0 0.0
        %3547 = vmatprep.subr.mxu0 0.0
        %3548 = vmatpush1.xpose.msra.mxu0 0.0
        %3549 = vmatprep.subr.mxu0 0.0
        %3550 = vmatpush1.xpose.msra.mxu0 0.0
        %3551 = vmatprep.subr.mxu0 0.0
        %3552 = vmatpush1.xpose.msra.mxu0 0.0
        %3553 = vmatprep.subr.mxu0 0.0
        %3554 = vmatpush1.xpose.msra.mxu0 0.0
        %3555 = vmatprep.subr.mxu0 0.0
        %3556 = vmatpush1.xpose.msra.mxu0 0.0
        %3557 = vmatprep.subr.mxu0 0.0
        %3558 = vmatpush1.xpose.msra.mxu0 0.0
        %3559 = vmatprep.subr.mxu0 0.0
        %3560 = vmatpush1.xpose.msra.mxu0 0.0
        %3561 = vmatprep.subr.mxu0 0.0
        %3562 = vmatpush1.xpose.msra.mxu0 0.0
        %3563 = vmatprep.subr.mxu0 0.0
        %3564 = vmatpush1.xpose.msra.mxu0 0.0
        %3565 = vmatprep.subr.mxu0 0.0
        %3566 = vmatpush1.xpose.msra.mxu0 0.0
        %3567 = vmatprep.subr.mxu0 0.0
        %3568 = vmatpush1.xpose.msra.mxu0 0.0
        %3569 = vmatprep.subr.mxu0 0.0
        %3570 = vmatpush1.xpose.msra.mxu0 0.0
        %3571 = vmatprep.subr.mxu0 0.0
        %3572 = vmatpush1.xpose.msra.mxu0 0.0
        %3573 = vmatprep.mubr.f32.mxu0 0.0
        %3574 = vmatmul.mubr.f32.gmra.mrb[0].mxu0 %v3498
        %v3575 = vpop.f32.mrb[0].mxu0
        %v3576 = vadd.f32 0.0, %v3575
        %v3577 = vpop.f32.mrb[0].mxu0
        %3578 = vmatprep.mubr.f32.mxu0 0.0
        %3579 = vmatmul.mubr.f32.gmra.mrb[0].mxu0 %v3501
        %v3580 = vpop.f32.mrb[0].mxu0
        %v3581 = vadd.f32 0.0, %v3580
        %v3582 = vpop.f32.mrb[0].mxu0
        %3583 = vdwg.mxu0
        %v3585 = vsel %vm3235, %v1647, 0
        %v3588 = vsel %vm3235, %v1783, 0
        %v3591 = vsel %vm3235, %v2823, 0
        %v3594 = vsel %vm3235, %v2959, 0
        %3596 = vmatprep.subr.mxu0 0.0
        %3597 = vmatpush1.xpose.msra.mxu0 %v3591
        %3598 = vmatprep.subr.mxu0 0.0
        %3599 = vmatpush1.xpose.msra.mxu0 %v3594
        %3600 = vmatprep.subr.mxu0 0.0
        %3601 = vmatpush1.xpose.msra.mxu0 0.0
        %3602 = vmatprep.subr.mxu0 0.0
        %3603 = vmatpush1.xpose.msra.mxu0 0.0
        %3604 = vmatprep.subr.mxu0 0.0
        %3605 = vmatpush1.xpose.msra.mxu0 0.0
        %3606 = vmatprep.subr.mxu0 0.0
        %3607 = vmatpush1.xpose.msra.mxu0 0.0
        %3608 = vmatprep.subr.mxu0 0.0
        %3609 = vmatpush1.xpose.msra.mxu0 0.0
        %3610 = vmatprep.subr.mxu0 0.0
        %3611 = vmatpush1.xpose.msra.mxu0 0.0
        %3612 = vmatprep.subr.mxu0 0.0
        %3613 = vmatpush1.xpose.msra.mxu0 0.0
        %3614 = vmatprep.subr.mxu0 0.0
        %3615 = vmatpush1.xpose.msra.mxu0 0.0
        %3616 = vmatprep.subr.mxu0 0.0
        %3617 = vmatpush1.xpose.msra.mxu0 0.0
        %3618 = vmatprep.subr.mxu0 0.0
        %3619 = vmatpush1.xpose.msra.mxu0 0.0
        %3620 = vmatprep.subr.mxu0 0.0
        %3621 = vmatpush1.xpose.msra.mxu0 0.0
        %3622 = vmatprep.subr.mxu0 0.0
        %3623 = vmatpush1.xpose.msra.mxu0 0.0
        %3624 = vmatprep.subr.mxu0 0.0
        %3625 = vmatpush1.xpose.msra.mxu0 0.0
        %3626 = vmatprep.subr.mxu0 0.0
        %3627 = vmatpush1.xpose.msra.mxu0 0.0
        %3628 = vmatprep.subr.mxu0 0.0
        %3629 = vmatpush1.xpose.msra.mxu0 0.0
        %3630 = vmatprep.subr.mxu0 0.0
        %3631 = vmatpush1.xpose.msra.mxu0 0.0
        %3632 = vmatprep.subr.mxu0 0.0
        %3633 = vmatpush1.xpose.msra.mxu0 0.0
        %3634 = vmatprep.subr.mxu0 0.0
        %3635 = vmatpush1.xpose.msra.mxu0 0.0
        %3636 = vmatprep.subr.mxu0 0.0
        %3637 = vmatpush1.xpose.msra.mxu0 0.0
        %3638 = vmatprep.subr.mxu0 0.0
        %3639 = vmatpush1.xpose.msra.mxu0 0.0
        %3640 = vmatprep.subr.mxu0 0.0
        %3641 = vmatpush1.xpose.msra.mxu0 0.0
        %3642 = vmatprep.subr.mxu0 0.0
        %3643 = vmatpush1.xpose.msra.mxu0 0.0
        %3644 = vmatprep.subr.mxu0 0.0
        %3645 = vmatpush1.xpose.msra.mxu0 0.0
        %3646 = vmatprep.subr.mxu0 0.0
        %3647 = vmatpush1.xpose.msra.mxu0 0.0
        %3648 = vmatprep.subr.mxu0 0.0
        %3649 = vmatpush1.xpose.msra.mxu0 0.0
        %3650 = vmatprep.subr.mxu0 0.0
        %3651 = vmatpush1.xpose.msra.mxu0 0.0
        %3652 = vmatprep.subr.mxu0 0.0
        %3653 = vmatpush1.xpose.msra.mxu0 0.0
        %3654 = vmatprep.subr.mxu0 0.0
        %3655 = vmatpush1.xpose.msra.mxu0 0.0
        %3656 = vmatprep.subr.mxu0 0.0
        %3657 = vmatpush1.xpose.msra.mxu0 0.0
        %3658 = vmatprep.subr.mxu0 0.0
        %3659 = vmatpush1.xpose.msra.mxu0 0.0
        %3660 = vmatprep.mubr.f32.mxu0 0.0
        %3661 = vmatmul.mubr.f32.gmra.mrb[0].mxu0 %v3585
        %v3662 = vpop.f32.mrb[0].mxu0
        %v3663 = vadd.f32 0.0, %v3662
        %v3664 = vpop.f32.mrb[0].mxu0
        %3665 = vmatprep.mubr.f32.mxu0 0.0
        %3666 = vmatmul.mubr.f32.gmra.mrb[0].mxu0 %v3588
        %v3667 = vpop.f32.mrb[0].mxu0
        %v3668 = vadd.f32 0.0, %v3667
        %v3669 = vpop.f32.mrb[0].mxu0
        %3670 = vdwg.mxu0
        %v3672 = vsel %vm3235, %v1648, 0
        %v3675 = vsel %vm3235, %v1784, 0
        %v3678 = vsel %vm3235, %v2824, 0
        %v3681 = vsel %vm3235, %v2960, 0
        %3683 = vmatprep.subr.mxu0 0.0
        %3684 = vmatpush1.xpose.msra.mxu0 %v3678
        %3685 = vmatprep.subr.mxu0 0.0
        %3686 = vmatpush1.xpose.msra.mxu0 %v3681
        %3687 = vmatprep.subr.mxu0 0.0
        %3688 = vmatpush1.xpose.msra.mxu0 0.0
        %3689 = vmatprep.subr.mxu0 0.0
        %3690 = vmatpush1.xpose.msra.mxu0 0.0
        %3691 = vmatprep.subr.mxu0 0.0
        %3692 = vmatpush1.xpose.msra.mxu0 0.0
        %3693 = vmatprep.subr.mxu0 0.0
        %3694 = vmatpush1.xpose.msra.mxu0 0.0
        %3695 = vmatprep.subr.mxu0 0.0
        %3696 = vmatpush1.xpose.msra.mxu0 0.0
        %3697 = vmatprep.subr.mxu0 0.0
        %3698 = vmatpush1.xpose.msra.mxu0 0.0
        %3699 = vmatprep.subr.mxu0 0.0
        %3700 = vmatpush1.xpose.msra.mxu0 0.0
        %3701 = vmatprep.subr.mxu0 0.0
        %3702 = vmatpush1.xpose.msra.mxu0 0.0
        %3703 = vmatprep.subr.mxu0 0.0
        %3704 = vmatpush1.xpose.msra.mxu0 0.0
        %3705 = vmatprep.subr.mxu0 0.0
        %3706 = vmatpush1.xpose.msra.mxu0 0.0
        %3707 = vmatprep.subr.mxu0 0.0
        %3708 = vmatpush1.xpose.msra.mxu0 0.0
        %3709 = vmatprep.subr.mxu0 0.0
        %3710 = vmatpush1.xpose.msra.mxu0 0.0
        %3711 = vmatprep.subr.mxu0 0.0
        %3712 = vmatpush1.xpose.msra.mxu0 0.0
        %3713 = vmatprep.subr.mxu0 0.0
        %3714 = vmatpush1.xpose.msra.mxu0 0.0
        %3715 = vmatprep.subr.mxu0 0.0
        %3716 = vmatpush1.xpose.msra.mxu0 0.0
        %3717 = vmatprep.subr.mxu0 0.0
        %3718 = vmatpush1.xpose.msra.mxu0 0.0
        %3719 = vmatprep.subr.mxu0 0.0
        %3720 = vmatpush1.xpose.msra.mxu0 0.0
        %3721 = vmatprep.subr.mxu0 0.0
        %3722 = vmatpush1.xpose.msra.mxu0 0.0
        %3723 = vmatprep.subr.mxu0 0.0
        %3724 = vmatpush1.xpose.msra.mxu0 0.0
        %3725 = vmatprep.subr.mxu0 0.0
        %3726 = vmatpush1.xpose.msra.mxu0 0.0
        %3727 = vmatprep.subr.mxu0 0.0
        %3728 = vmatpush1.xpose.msra.mxu0 0.0
        %3729 = vmatprep.subr.mxu0 0.0
        %3730 = vmatpush1.xpose.msra.mxu0 0.0
        %3731 = vmatprep.subr.mxu0 0.0
        %3732 = vmatpush1.xpose.msra.mxu0 0.0
        %3733 = vmatprep.subr.mxu0 0.0
        %3734 = vmatpush1.xpose.msra.mxu0 0.0
        %3735 = vmatprep.subr.mxu0 0.0
        %3736 = vmatpush1.xpose.msra.mxu0 0.0
        %3737 = vmatprep.subr.mxu0 0.0
        %3738 = vmatpush1.xpose.msra.mxu0 0.0
        %3739 = vmatprep.subr.mxu0 0.0
        %3740 = vmatpush1.xpose.msra.mxu0 0.0
        %3741 = vmatprep.subr.mxu0 0.0
        %3742 = vmatpush1.xpose.msra.mxu0 0.0
        %3743 = vmatprep.subr.mxu0 0.0
        %3744 = vmatpush1.xpose.msra.mxu0 0.0
        %3745 = vmatprep.subr.mxu0 0.0
        %3746 = vmatpush1.xpose.msra.mxu0 0.0
        %3747 = vmatprep.mubr.f32.mxu0 0.0
        %3748 = vmatmul.mubr.f32.gmra.mrb[0].mxu0 %v3672
        %v3749 = vpop.f32.mrb[0].mxu0
        %v3750 = vadd.f32 0.0, %v3749
        %v3751 = vpop.f32.mrb[0].mxu0
        %3752 = vmatprep.mubr.f32.mxu0 0.0
        %3753 = vmatmul.mubr.f32.gmra.mrb[0].mxu0 %v3675
        %v3754 = vpop.f32.mrb[0].mxu0
        %v3755 = vadd.f32 0.0, %v3754
        %v3756 = vpop.f32.mrb[0].mxu0
        %3757 = vdwg.mxu0
        %v3759 = vsel %vm3235, %v1649, 0
        %v3762 = vsel %vm3235, %v1785, 0
        %v3765 = vsel %vm3235, %v2825, 0
        %v3768 = vsel %vm3235, %v2961, 0
        %3770 = vmatprep.subr.mxu0 0.0
        %3771 = vmatpush1.xpose.msra.mxu0 %v3765
        %3772 = vmatprep.subr.mxu0 0.0
        %3773 = vmatpush1.xpose.msra.mxu0 %v3768
        %3774 = vmatprep.subr.mxu0 0.0
        %3775 = vmatpush1.xpose.msra.mxu0 0.0
        %3776 = vmatprep.subr.mxu0 0.0
        %3777 = vmatpush1.xpose.msra.mxu0 0.0
        %3778 = vmatprep.subr.mxu0 0.0
        %3779 = vmatpush1.xpose.msra.mxu0 0.0
        %3780 = vmatprep.subr.mxu0 0.0
        %3781 = vmatpush1.xpose.msra.mxu0 0.0
        %3782 = vmatprep.subr.mxu0 0.0
        %3783 = vmatpush1.xpose.msra.mxu0 0.0
        %3784 = vmatprep.subr.mxu0 0.0
        %3785 = vmatpush1.xpose.msra.mxu0 0.0
        %3786 = vmatprep.subr.mxu0 0.0
        %3787 = vmatpush1.xpose.msra.mxu0 0.0
        %3788 = vmatprep.subr.mxu0 0.0
        %3789 = vmatpush1.xpose.msra.mxu0 0.0
        %3790 = vmatprep.subr.mxu0 0.0
        %3791 = vmatpush1.xpose.msra.mxu0 0.0
        %3792 = vmatprep.subr.mxu0 0.0
        %3793 = vmatpush1.xpose.msra.mxu0 0.0
        %3794 = vmatprep.subr.mxu0 0.0
        %3795 = vmatpush1.xpose.msra.mxu0 0.0
        %3796 = vmatprep.subr.mxu0 0.0
        %3797 = vmatpush1.xpose.msra.mxu0 0.0
        %3798 = vmatprep.subr.mxu0 0.0
        %3799 = vmatpush1.xpose.msra.mxu0 0.0
        %3800 = vmatprep.subr.mxu0 0.0
        %3801 = vmatpush1.xpose.msra.mxu0 0.0
        %3802 = vmatprep.subr.mxu0 0.0
        %3803 = vmatpush1.xpose.msra.mxu0 0.0
        %3804 = vmatprep.subr.mxu0 0.0
        %3805 = vmatpush1.xpose.msra.mxu0 0.0
        %3806 = vmatprep.subr.mxu0 0.0
        %3807 = vmatpush1.xpose.msra.mxu0 0.0
        %3808 = vmatprep.subr.mxu0 0.0
        %3809 = vmatpush1.xpose.msra.mxu0 0.0
        %3810 = vmatprep.subr.mxu0 0.0
        %3811 = vmatpush1.xpose.msra.mxu0 0.0
        %3812 = vmatprep.subr.mxu0 0.0
        %3813 = vmatpush1.xpose.msra.mxu0 0.0
        %3814 = vmatprep.subr.mxu0 0.0
        %3815 = vmatpush1.xpose.msra.mxu0 0.0
        %3816 = vmatprep.subr.mxu0 0.0
        %3817 = vmatpush1.xpose.msra.mxu0 0.0
        %3818 = vmatprep.subr.mxu0 0.0
        %3819 = vmatpush1.xpose.msra.mxu0 0.0
        %3820 = vmatprep.subr.mxu0 0.0
        %3821 = vmatpush1.xpose.msra.mxu0 0.0
        %3822 = vmatprep.subr.mxu0 0.0
        %3823 = vmatpush1.xpose.msra.mxu0 0.0
        %3824 = vmatprep.subr.mxu0 0.0
        %3825 = vmatpush1.xpose.msra.mxu0 0.0
        %3826 = vmatprep.subr.mxu0 0.0
        %3827 = vmatpush1.xpose.msra.mxu0 0.0
        %3828 = vmatprep.subr.mxu0 0.0
        %3829 = vmatpush1.xpose.msra.mxu0 0.0
        %3830 = vmatprep.subr.mxu0 0.0
        %3831 = vmatpush1.xpose.msra.mxu0 0.0
        %3832 = vmatprep.subr.mxu0 0.0
        %3833 = vmatpush1.xpose.msra.mxu0 0.0
        %3834 = vmatprep.mubr.f32.mxu0 0.0
        %3835 = vmatmul.mubr.f32.gmra.mrb[0].mxu0 %v3759
        %v3836 = vpop.f32.mrb[0].mxu0
        %v3837 = vadd.f32 0.0, %v3836
        %v3838 = vpop.f32.mrb[0].mxu0
        %3839 = vmatprep.mubr.f32.mxu0 0.0
        %3840 = vmatmul.mubr.f32.gmra.mrb[0].mxu0 %v3762
        %v3841 = vpop.f32.mrb[0].mxu0
        %v3842 = vadd.f32 0.0, %v3841
        %v3843 = vpop.f32.mrb[0].mxu0
        %3844 = vdwg.mxu0
        %v3846 = vsel %vm3235, %v1650, 0
        %v3849 = vsel %vm3235, %v1786, 0
        %v3852 = vsel %vm3235, %v2826, 0
        %v3855 = vsel %vm3235, %v2962, 0
        %3857 = vmatprep.subr.mxu0 0.0
        %3858 = vmatpush1.xpose.msra.mxu0 %v3852
        %3859 = vmatprep.subr.mxu0 0.0
        %3860 = vmatpush1.xpose.msra.mxu0 %v3855
        %3861 = vmatprep.subr.mxu0 0.0
        %3862 = vmatpush1.xpose.msra.mxu0 0.0
        %3863 = vmatprep.subr.mxu0 0.0
        %3864 = vmatpush1.xpose.msra.mxu0 0.0
        %3865 = vmatprep.subr.mxu0 0.0
        %3866 = vmatpush1.xpose.msra.mxu0 0.0
        %3867 = vmatprep.subr.mxu0 0.0
        %3868 = vmatpush1.xpose.msra.mxu0 0.0
        %3869 = vmatprep.subr.mxu0 0.0
        %3870 = vmatpush1.xpose.msra.mxu0 0.0
        %3871 = vmatprep.subr.mxu0 0.0
        %3872 = vmatpush1.xpose.msra.mxu0 0.0
        %3873 = vmatprep.subr.mxu0 0.0
        %3874 = vmatpush1.xpose.msra.mxu0 0.0
        %3875 = vmatprep.subr.mxu0 0.0
        %3876 = vmatpush1.xpose.msra.mxu0 0.0
        %3877 = vmatprep.subr.mxu0 0.0
        %3878 = vmatpush1.xpose.msra.mxu0 0.0
        %3879 = vmatprep.subr.mxu0 0.0
        %3880 = vmatpush1.xpose.msra.mxu0 0.0
        %3881 = vmatprep.subr.mxu0 0.0
        %3882 = vmatpush1.xpose.msra.mxu0 0.0
        %3883 = vmatprep.subr.mxu0 0.0
        %3884 = vmatpush1.xpose.msra.mxu0 0.0
        %3885 = vmatprep.subr.mxu0 0.0
        %3886 = vmatpush1.xpose.msra.mxu0 0.0
        %3887 = vmatprep.subr.mxu0 0.0
        %3888 = vmatpush1.xpose.msra.mxu0 0.0
        %3889 = vmatprep.subr.mxu0 0.0
        %3890 = vmatpush1.xpose.msra.mxu0 0.0
        %3891 = vmatprep.subr.mxu0 0.0
        %3892 = vmatpush1.xpose.msra.mxu0 0.0
        %3893 = vmatprep.subr.mxu0 0.0
        %3894 = vmatpush1.xpose.msra.mxu0 0.0
        %3895 = vmatprep.subr.mxu0 0.0
        %3896 = vmatpush1.xpose.msra.mxu0 0.0
        %3897 = vmatprep.subr.mxu0 0.0
        %3898 = vmatpush1.xpose.msra.mxu0 0.0
        %3899 = vmatprep.subr.mxu0 0.0
        %3900 = vmatpush1.xpose.msra.mxu0 0.0
        %3901 = vmatprep.subr.mxu0 0.0
        %3902 = vmatpush1.xpose.msra.mxu0 0.0
        %3903 = vmatprep.subr.mxu0 0.0
        %3904 = vmatpush1.xpose.msra.mxu0 0.0
        %3905 = vmatprep.subr.mxu0 0.0
        %3906 = vmatpush1.xpose.msra.mxu0 0.0
        %3907 = vmatprep.subr.mxu0 0.0
        %3908 = vmatpush1.xpose.msra.mxu0 0.0
        %3909 = vmatprep.subr.mxu0 0.0
        %3910 = vmatpush1.xpose.msra.mxu0 0.0
        %3911 = vmatprep.subr.mxu0 0.0
        %3912 = vmatpush1.xpose.msra.mxu0 0.0
        %3913 = vmatprep.subr.mxu0 0.0
        %3914 = vmatpush1.xpose.msra.mxu0 0.0
        %3915 = vmatprep.subr.mxu0 0.0
        %3916 = vmatpush1.xpose.msra.mxu0 0.0
        %3917 = vmatprep.subr.mxu0 0.0
        %3918 = vmatpush1.xpose.msra.mxu0 0.0
        %3919 = vmatprep.subr.mxu0 0.0
        %3920 = vmatpush1.xpose.msra.mxu0 0.0
        %3921 = vmatprep.mubr.f32.mxu0 0.0
        %3922 = vmatmul.mubr.f32.gmra.mrb[0].mxu0 %v3846
        %v3923 = vpop.f32.mrb[0].mxu0
        %v3924 = vadd.f32 0.0, %v3923
        %v3925 = vpop.f32.mrb[0].mxu0
        %3926 = vmatprep.mubr.f32.mxu0 0.0
        %3927 = vmatmul.mubr.f32.gmra.mrb[0].mxu0 %v3849
        %v3928 = vpop.f32.mrb[0].mxu0
        %v3929 = vadd.f32 0.0, %v3928
        %v3930 = vpop.f32.mrb[0].mxu0
        %3931 = vdwg.mxu0
        %v3933 = vsel %vm3235, %v1915, 0
        %v3936 = vsel %vm3235, %v2051, 0
        %v3939 = vsel %vm3235, %v3091, 0
        %v3942 = vsel %vm3235, %v3227, 0
        %3944 = vmatprep.subr.mxu0 0.0
        %3945 = vmatpush1.xpose.msra.mxu0 %v3939
        %3946 = vmatprep.subr.mxu0 0.0
        %3947 = vmatpush1.xpose.msra.mxu0 %v3942
        %3948 = vmatprep.subr.mxu0 0.0
        %3949 = vmatpush1.xpose.msra.mxu0 0.0
        %3950 = vmatprep.subr.mxu0 0.0
        %3951 = vmatpush1.xpose.msra.mxu0 0.0
        %3952 = vmatprep.subr.mxu0 0.0
        %3953 = vmatpush1.xpose.msra.mxu0 0.0
        %3954 = vmatprep.subr.mxu0 0.0
        %3955 = vmatpush1.xpose.msra.mxu0 0.0
        %3956 = vmatprep.subr.mxu0 0.0
        %3957 = vmatpush1.xpose.msra.mxu0 0.0
        %3958 = vmatprep.subr.mxu0 0.0
        %3959 = vmatpush1.xpose.msra.mxu0 0.0
        %3960 = vmatprep.subr.mxu0 0.0
        %3961 = vmatpush1.xpose.msra.mxu0 0.0
        %3962 = vmatprep.subr.mxu0 0.0
        %3963 = vmatpush1.xpose.msra.mxu0 0.0
        %3964 = vmatprep.subr.mxu0 0.0
        %3965 = vmatpush1.xpose.msra.mxu0 0.0
        %3966 = vmatprep.subr.mxu0 0.0
        %3967 = vmatpush1.xpose.msra.mxu0 0.0
        %3968 = vmatprep.subr.mxu0 0.0
        %3969 = vmatpush1.xpose.msra.mxu0 0.0
        %3970 = vmatprep.subr.mxu0 0.0
        %3971 = vmatpush1.xpose.msra.mxu0 0.0
        %3972 = vmatprep.subr.mxu0 0.0
        %3973 = vmatpush1.xpose.msra.mxu0 0.0
        %3974 = vmatprep.subr.mxu0 0.0
        %3975 = vmatpush1.xpose.msra.mxu0 0.0
        %3976 = vmatprep.subr.mxu0 0.0
        %3977 = vmatpush1.xpose.msra.mxu0 0.0
        %3978 = vmatprep.subr.mxu0 0.0
        %3979 = vmatpush1.xpose.msra.mxu0 0.0
        %3980 = vmatprep.subr.mxu0 0.0
        %3981 = vmatpush1.xpose.msra.mxu0 0.0
        %3982 = vmatprep.subr.mxu0 0.0
        %3983 = vmatpush1.xpose.msra.mxu0 0.0
        %3984 = vmatprep.subr.mxu0 0.0
        %3985 = vmatpush1.xpose.msra.mxu0 0.0
        %3986 = vmatprep.subr.mxu0 0.0
        %3987 = vmatpush1.xpose.msra.mxu0 0.0
        %3988 = vmatprep.subr.mxu0 0.0
        %3989 = vmatpush1.xpose.msra.mxu0 0.0
        %3990 = vmatprep.subr.mxu0 0.0
        %3991 = vmatpush1.xpose.msra.mxu0 0.0
        %3992 = vmatprep.subr.mxu0 0.0
        %3993 = vmatpush1.xpose.msra.mxu0 0.0
        %3994 = vmatprep.subr.mxu0 0.0
        %3995 = vmatpush1.xpose.msra.mxu0 0.0
        %3996 = vmatprep.subr.mxu0 0.0
        %3997 = vmatpush1.xpose.msra.mxu0 0.0
        %3998 = vmatprep.subr.mxu0 0.0
        %3999 = vmatpush1.xpose.msra.mxu0 0.0
        %4000 = vmatprep.subr.mxu0 0.0
        %4001 = vmatpush1.xpose.msra.mxu0 0.0
        %4002 = vmatprep.subr.mxu0 0.0
        %4003 = vmatpush1.xpose.msra.mxu0 0.0
        %4004 = vmatprep.subr.mxu0 0.0
        %4005 = vmatpush1.xpose.msra.mxu0 0.0
        %4006 = vmatprep.subr.mxu0 0.0
        %4007 = vmatpush1.xpose.msra.mxu0 0.0
        %4008 = vmatprep.mubr.f32.mxu0 0.0
        %4009 = vmatmul.mubr.f32.gmra.mrb[0].mxu0 %v3933
        %v4010 = vpop.f32.mrb[0].mxu0
        %v4011 = vadd.f32 0.0, %v4010
        %v4012 = vpop.f32.mrb[0].mxu0
        %4013 = vmatprep.mubr.f32.mxu0 0.0
        %4014 = vmatmul.mubr.f32.gmra.mrb[0].mxu0 %v3936
        %v4015 = vpop.f32.mrb[0].mxu0
        %v4016 = vadd.f32 0.0, %v4015
        %v4017 = vpop.f32.mrb[0].mxu0
        %4018 = vdwg.mxu0
        %v4020 = vsel %vm3235, %v1916, 0
        %v4023 = vsel %vm3235, %v2052, 0
        %v4026 = vsel %vm3235, %v3092, 0
        %v4029 = vsel %vm3235, %v3228, 0
        %4031 = vmatprep.subr.mxu0 0.0
        %4032 = vmatpush1.xpose.msra.mxu0 %v4026
        %4033 = vmatprep.subr.mxu0 0.0
        %4034 = vmatpush1.xpose.msra.mxu0 %v4029
        %4035 = vmatprep.subr.mxu0 0.0
        %4036 = vmatpush1.xpose.msra.mxu0 0.0
        %4037 = vmatprep.subr.mxu0 0.0
        %4038 = vmatpush1.xpose.msra.mxu0 0.0
        %4039 = vmatprep.subr.mxu0 0.0
        %4040 = vmatpush1.xpose.msra.mxu0 0.0
        %4041 = vmatprep.subr.mxu0 0.0
        %4042 = vmatpush1.xpose.msra.mxu0 0.0
        %4043 = vmatprep.subr.mxu0 0.0
        %4044 = vmatpush1.xpose.msra.mxu0 0.0
        %4045 = vmatprep.subr.mxu0 0.0
        %4046 = vmatpush1.xpose.msra.mxu0 0.0
        %4047 = vmatprep.subr.mxu0 0.0
        %4048 = vmatpush1.xpose.msra.mxu0 0.0
        %4049 = vmatprep.subr.mxu0 0.0
        %4050 = vmatpush1.xpose.msra.mxu0 0.0
        %4051 = vmatprep.subr.mxu0 0.0
        %4052 = vmatpush1.xpose.msra.mxu0 0.0
        %4053 = vmatprep.subr.mxu0 0.0
        %4054 = vmatpush1.xpose.msra.mxu0 0.0
        %4055 = vmatprep.subr.mxu0 0.0
        %4056 = vmatpush1.xpose.msra.mxu0 0.0
        %4057 = vmatprep.subr.mxu0 0.0
        %4058 = vmatpush1.xpose.msra.mxu0 0.0
        %4059 = vmatprep.subr.mxu0 0.0
        %4060 = vmatpush1.xpose.msra.mxu0 0.0
        %4061 = vmatprep.subr.mxu0 0.0
        %4062 = vmatpush1.xpose.msra.mxu0 0.0
        %4063 = vmatprep.subr.mxu0 0.0
        %4064 = vmatpush1.xpose.msra.mxu0 0.0
        %4065 = vmatprep.subr.mxu0 0.0
        %4066 = vmatpush1.xpose.msra.mxu0 0.0
        %4067 = vmatprep.subr.mxu0 0.0
        %4068 = vmatpush1.xpose.msra.mxu0 0.0
        %4069 = vmatprep.subr.mxu0 0.0
        %4070 = vmatpush1.xpose.msra.mxu0 0.0
        %4071 = vmatprep.subr.mxu0 0.0
        %4072 = vmatpush1.xpose.msra.mxu0 0.0
        %4073 = vmatprep.subr.mxu0 0.0
        %4074 = vmatpush1.xpose.msra.mxu0 0.0
        %4075 = vmatprep.subr.mxu0 0.0
        %4076 = vmatpush1.xpose.msra.mxu0 0.0
        %4077 = vmatprep.subr.mxu0 0.0
        %4078 = vmatpush1.xpose.msra.mxu0 0.0
        %4079 = vmatprep.subr.mxu0 0.0
        %4080 = vmatpush1.xpose.msra.mxu0 0.0
        %4081 = vmatprep.subr.mxu0 0.0
        %4082 = vmatpush1.xpose.msra.mxu0 0.0
        %4083 = vmatprep.subr.mxu0 0.0
        %4084 = vmatpush1.xpose.msra.mxu0 0.0
        %4085 = vmatprep.subr.mxu0 0.0
        %4086 = vmatpush1.xpose.msra.mxu0 0.0
        %4087 = vmatprep.subr.mxu0 0.0
        %4088 = vmatpush1.xpose.msra.mxu0 0.0
        %4089 = vmatprep.subr.mxu0 0.0
        %4090 = vmatpush1.xpose.msra.mxu0 0.0
        %4091 = vmatprep.subr.mxu0 0.0
        %4092 = vmatpush1.xpose.msra.mxu0 0.0
        %4093 = vmatprep.subr.mxu0 0.0
        %4094 = vmatpush1.xpose.msra.mxu0 0.0
        %4095 = vmatprep.mubr.f32.mxu0 0.0
        %4096 = vmatmul.mubr.f32.gmra.mrb[0].mxu0 %v4020
        %v4097 = vpop.f32.mrb[0].mxu0
        %v4098 = vadd.f32 0.0, %v4097
        %v4099 = vpop.f32.mrb[0].mxu0
        %4100 = vmatprep.mubr.f32.mxu0 0.0
        %4101 = vmatmul.mubr.f32.gmra.mrb[0].mxu0 %v4023
        %v4102 = vpop.f32.mrb[0].mxu0
        %v4103 = vadd.f32 0.0, %v4102
        %v4104 = vpop.f32.mrb[0].mxu0
        %4105 = vdwg.mxu0
        %v4107 = vsel %vm3235, %v1917, 0
        %v4110 = vsel %vm3235, %v2053, 0
        %v4113 = vsel %vm3235, %v3093, 0
        %v4116 = vsel %vm3235, %v3229, 0
        %4118 = vmatprep.subr.mxu0 0.0
        %4119 = vmatpush1.xpose.msra.mxu0 %v4113
        %4120 = vmatprep.subr.mxu0 0.0
        %4121 = vmatpush1.xpose.msra.mxu0 %v4116
        %4122 = vmatprep.subr.mxu0 0.0
        %4123 = vmatpush1.xpose.msra.mxu0 0.0
        %4124 = vmatprep.subr.mxu0 0.0
        %4125 = vmatpush1.xpose.msra.mxu0 0.0
        %4126 = vmatprep.subr.mxu0 0.0
        %4127 = vmatpush1.xpose.msra.mxu0 0.0
        %4128 = vmatprep.subr.mxu0 0.0
        %4129 = vmatpush1.xpose.msra.mxu0 0.0
        %4130 = vmatprep.subr.mxu0 0.0
        %4131 = vmatpush1.xpose.msra.mxu0 0.0
        %4132 = vmatprep.subr.mxu0 0.0
        %4133 = vmatpush1.xpose.msra.mxu0 0.0
        %4134 = vmatprep.subr.mxu0 0.0
        %4135 = vmatpush1.xpose.msra.mxu0 0.0
        %4136 = vmatprep.subr.mxu0 0.0
        %4137 = vmatpush1.xpose.msra.mxu0 0.0
        %4138 = vmatprep.subr.mxu0 0.0
        %4139 = vmatpush1.xpose.msra.mxu0 0.0
        %4140 = vmatprep.subr.mxu0 0.0
        %4141 = vmatpush1.xpose.msra.mxu0 0.0
        %4142 = vmatprep.subr.mxu0 0.0
        %4143 = vmatpush1.xpose.msra.mxu0 0.0
        %4144 = vmatprep.subr.mxu0 0.0
        %4145 = vmatpush1.xpose.msra.mxu0 0.0
        %4146 = vmatprep.subr.mxu0 0.0
        %4147 = vmatpush1.xpose.msra.mxu0 0.0
        %4148 = vmatprep.subr.mxu0 0.0
        %4149 = vmatpush1.xpose.msra.mxu0 0.0
        %4150 = vmatprep.subr.mxu0 0.0
        %4151 = vmatpush1.xpose.msra.mxu0 0.0
        %4152 = vmatprep.subr.mxu0 0.0
        %4153 = vmatpush1.xpose.msra.mxu0 0.0
        %4154 = vmatprep.subr.mxu0 0.0
        %4155 = vmatpush1.xpose.msra.mxu0 0.0
        %4156 = vmatprep.subr.mxu0 0.0
        %4157 = vmatpush1.xpose.msra.mxu0 0.0
        %4158 = vmatprep.subr.mxu0 0.0
        %4159 = vmatpush1.xpose.msra.mxu0 0.0
        %4160 = vmatprep.subr.mxu0 0.0
        %4161 = vmatpush1.xpose.msra.mxu0 0.0
        %4162 = vmatprep.subr.mxu0 0.0
        %4163 = vmatpush1.xpose.msra.mxu0 0.0
        %4164 = vmatprep.subr.mxu0 0.0
        %4165 = vmatpush1.xpose.msra.mxu0 0.0
        %4166 = vmatprep.subr.mxu0 0.0
        %4167 = vmatpush1.xpose.msra.mxu0 0.0
        %4168 = vmatprep.subr.mxu0 0.0
        %4169 = vmatpush1.xpose.msra.mxu0 0.0
        %4170 = vmatprep.subr.mxu0 0.0
        %4171 = vmatpush1.xpose.msra.mxu0 0.0
        %4172 = vmatprep.subr.mxu0 0.0
        %4173 = vmatpush1.xpose.msra.mxu0 0.0
        %4174 = vmatprep.subr.mxu0 0.0
        %4175 = vmatpush1.xpose.msra.mxu0 0.0
        %4176 = vmatprep.subr.mxu0 0.0
        %4177 = vmatpush1.xpose.msra.mxu0 0.0
        %4178 = vmatprep.subr.mxu0 0.0
        %4179 = vmatpush1.xpose.msra.mxu0 0.0
        %4180 = vmatprep.subr.mxu0 0.0
        %4181 = vmatpush1.xpose.msra.mxu0 0.0
        %4182 = vmatprep.mubr.f32.mxu0 0.0
        %4183 = vmatmul.mubr.f32.gmra.mrb[0].mxu0 %v4107
        %v4184 = vpop.f32.mrb[0].mxu0
        %v4185 = vadd.f32 0.0, %v4184
        %v4186 = vpop.f32.mrb[0].mxu0
        %4187 = vmatprep.mubr.f32.mxu0 0.0
        %4188 = vmatmul.mubr.f32.gmra.mrb[0].mxu0 %v4110
        %v4189 = vpop.f32.mrb[0].mxu0
        %v4190 = vadd.f32 0.0, %v4189
        %v4191 = vpop.f32.mrb[0].mxu0
        %4192 = vdwg.mxu0
        %v4194 = vsel %vm3235, %v1918, 0
        %v4197 = vsel %vm3235, %v2054, 0
        %v4200 = vsel %vm3235, %v3094, 0
        %v4203 = vsel %vm3235, %v3230, 0
        %4205 = vmatprep.subr.mxu0 0.0
        %4206 = vmatpush1.xpose.msra.mxu0 %v4200
        %4207 = vmatprep.subr.mxu0 0.0
        %4208 = vmatpush1.xpose.msra.mxu0 %v4203
        %4209 = vmatprep.subr.mxu0 0.0
        %4210 = vmatpush1.xpose.msra.mxu0 0.0
        %4211 = vmatprep.subr.mxu0 0.0
        %4212 = vmatpush1.xpose.msra.mxu0 0.0
        %4213 = vmatprep.subr.mxu0 0.0
        %4214 = vmatpush1.xpose.msra.mxu0 0.0
        %4215 = vmatprep.subr.mxu0 0.0
        %4216 = vmatpush1.xpose.msra.mxu0 0.0
        %4217 = vmatprep.subr.mxu0 0.0
        %4218 = vmatpush1.xpose.msra.mxu0 0.0
        %4219 = vmatprep.subr.mxu0 0.0
        %4220 = vmatpush1.xpose.msra.mxu0 0.0
        %4221 = vmatprep.subr.mxu0 0.0
        %4222 = vmatpush1.xpose.msra.mxu0 0.0
        %4223 = vmatprep.subr.mxu0 0.0
        %4224 = vmatpush1.xpose.msra.mxu0 0.0
        %4225 = vmatprep.subr.mxu0 0.0
        %4226 = vmatpush1.xpose.msra.mxu0 0.0
        %4227 = vmatprep.subr.mxu0 0.0
        %4228 = vmatpush1.xpose.msra.mxu0 0.0
        %4229 = vmatprep.subr.mxu0 0.0
        %4230 = vmatpush1.xpose.msra.mxu0 0.0
        %4231 = vmatprep.subr.mxu0 0.0
        %4232 = vmatpush1.xpose.msra.mxu0 0.0
        %4233 = vmatprep.subr.mxu0 0.0
        %4234 = vmatpush1.xpose.msra.mxu0 0.0
        %4235 = vmatprep.subr.mxu0 0.0
        %4236 = vmatpush1.xpose.msra.mxu0 0.0
        %4237 = vmatprep.subr.mxu0 0.0
        %4238 = vmatpush1.xpose.msra.mxu0 0.0
        %4239 = vmatprep.subr.mxu0 0.0
        %4240 = vmatpush1.xpose.msra.mxu0 0.0
        %4241 = vmatprep.subr.mxu0 0.0
        %4242 = vmatpush1.xpose.msra.mxu0 0.0
        %4243 = vmatprep.subr.mxu0 0.0
        %4244 = vmatpush1.xpose.msra.mxu0 0.0
        %4245 = vmatprep.subr.mxu0 0.0
        %4246 = vmatpush1.xpose.msra.mxu0 0.0
        %4247 = vmatprep.subr.mxu0 0.0
        %4248 = vmatpush1.xpose.msra.mxu0 0.0
        %4249 = vmatprep.subr.mxu0 0.0
        %4250 = vmatpush1.xpose.msra.mxu0 0.0
        %4251 = vmatprep.subr.mxu0 0.0
        %4252 = vmatpush1.xpose.msra.mxu0 0.0
        %4253 = vmatprep.subr.mxu0 0.0
        %4254 = vmatpush1.xpose.msra.mxu0 0.0
        %4255 = vmatprep.subr.mxu0 0.0
        %4256 = vmatpush1.xpose.msra.mxu0 0.0
        %4257 = vmatprep.subr.mxu0 0.0
        %4258 = vmatpush1.xpose.msra.mxu0 0.0
        %4259 = vmatprep.subr.mxu0 0.0
        %4260 = vmatpush1.xpose.msra.mxu0 0.0
        %4261 = vmatprep.subr.mxu0 0.0
        %4262 = vmatpush1.xpose.msra.mxu0 0.0
        %4263 = vmatprep.subr.mxu0 0.0
        %4264 = vmatpush1.xpose.msra.mxu0 0.0
        %4265 = vmatprep.subr.mxu0 0.0
        %4266 = vmatpush1.xpose.msra.mxu0 0.0
        %4267 = vmatprep.subr.mxu0 0.0
        %4268 = vmatpush1.xpose.msra.mxu0 0.0
        %4269 = vmatprep.mubr.f32.mxu0 0.0
        %4270 = vmatmul.mubr.f32.gmra.mrb[0].mxu0 %v4194
        %v4271 = vpop.f32.mrb[0].mxu0
        %v4272 = vadd.f32 0.0, %v4271
        %v4273 = vpop.f32.mrb[0].mxu0
        %4274 = vmatprep.mubr.f32.mxu0 0.0
        %4275 = vmatmul.mubr.f32.gmra.mrb[0].mxu0 %v4197
        %v4276 = vpop.f32.mrb[0].mxu0
        %v4277 = vadd.f32 0.0, %v4276
        %v4278 = vpop.f32.mrb[0].mxu0
        %4279 = vdwg.mxu0
        %v4281 = vsel %vm3235, %v1919, 0
        %v4284 = vsel %vm3235, %v2055, 0
        %v4287 = vsel %vm3235, %v3095, 0
        %v4290 = vsel %vm3235, %v3231, 0
        %4292 = vmatprep.subr.mxu0 0.0
        %4293 = vmatpush1.xpose.msra.mxu0 %v4287
        %4294 = vmatprep.subr.mxu0 0.0
        %4295 = vmatpush1.xpose.msra.mxu0 %v4290
        %4296 = vmatprep.subr.mxu0 0.0
        %4297 = vmatpush1.xpose.msra.mxu0 0.0
        %4298 = vmatprep.subr.mxu0 0.0
        %4299 = vmatpush1.xpose.msra.mxu0 0.0
        %4300 = vmatprep.subr.mxu0 0.0
        %4301 = vmatpush1.xpose.msra.mxu0 0.0
        %4302 = vmatprep.subr.mxu0 0.0
        %4303 = vmatpush1.xpose.msra.mxu0 0.0
        %4304 = vmatprep.subr.mxu0 0.0
        %4305 = vmatpush1.xpose.msra.mxu0 0.0
        %4306 = vmatprep.subr.mxu0 0.0
        %4307 = vmatpush1.xpose.msra.mxu0 0.0
        %4308 = vmatprep.subr.mxu0 0.0
        %4309 = vmatpush1.xpose.msra.mxu0 0.0
        %4310 = vmatprep.subr.mxu0 0.0
        %4311 = vmatpush1.xpose.msra.mxu0 0.0
        %4312 = vmatprep.subr.mxu0 0.0
        %4313 = vmatpush1.xpose.msra.mxu0 0.0
        %4314 = vmatprep.subr.mxu0 0.0
        %4315 = vmatpush1.xpose.msra.mxu0 0.0
        %4316 = vmatprep.subr.mxu0 0.0
        %4317 = vmatpush1.xpose.msra.mxu0 0.0
        %4318 = vmatprep.subr.mxu0 0.0
        %4319 = vmatpush1.xpose.msra.mxu0 0.0
        %4320 = vmatprep.subr.mxu0 0.0
        %4321 = vmatpush1.xpose.msra.mxu0 0.0
        %4322 = vmatprep.subr.mxu0 0.0
        %4323 = vmatpush1.xpose.msra.mxu0 0.0
        %4324 = vmatprep.subr.mxu0 0.0
        %4325 = vmatpush1.xpose.msra.mxu0 0.0
        %4326 = vmatprep.subr.mxu0 0.0
        %4327 = vmatpush1.xpose.msra.mxu0 0.0
        %4328 = vmatprep.subr.mxu0 0.0
        %4329 = vmatpush1.xpose.msra.mxu0 0.0
        %4330 = vmatprep.subr.mxu0 0.0
        %4331 = vmatpush1.xpose.msra.mxu0 0.0
        %4332 = vmatprep.subr.mxu0 0.0
        %4333 = vmatpush1.xpose.msra.mxu0 0.0
        %4334 = vmatprep.subr.mxu0 0.0
        %4335 = vmatpush1.xpose.msra.mxu0 0.0
        %4336 = vmatprep.subr.mxu0 0.0
        %4337 = vmatpush1.xpose.msra.mxu0 0.0
        %4338 = vmatprep.subr.mxu0 0.0
        %4339 = vmatpush1.xpose.msra.mxu0 0.0
        %4340 = vmatprep.subr.mxu0 0.0
        %4341 = vmatpush1.xpose.msra.mxu0 0.0
        %4342 = vmatprep.subr.mxu0 0.0
        %4343 = vmatpush1.xpose.msra.mxu0 0.0
        %4344 = vmatprep.subr.mxu0 0.0
        %4345 = vmatpush1.xpose.msra.mxu0 0.0
        %4346 = vmatprep.subr.mxu0 0.0
        %4347 = vmatpush1.xpose.msra.mxu0 0.0
        %4348 = vmatprep.subr.mxu0 0.0
        %4349 = vmatpush1.xpose.msra.mxu0 0.0
        %4350 = vmatprep.subr.mxu0 0.0
        %4351 = vmatpush1.xpose.msra.mxu0 0.0
        %4352 = vmatprep.subr.mxu0 0.0
        %4353 = vmatpush1.xpose.msra.mxu0 0.0
        %4354 = vmatprep.subr.mxu0 0.0
        %4355 = vmatpush1.xpose.msra.mxu0 0.0
        %4356 = vmatprep.mubr.f32.mxu0 0.0
        %4357 = vmatmul.mubr.f32.gmra.mrb[0].mxu0 %v4281
        %v4358 = vpop.f32.mrb[0].mxu0
        %v4359 = vadd.f32 0.0, %v4358
        %v4360 = vpop.f32.mrb[0].mxu0
        %4361 = vmatprep.mubr.f32.mxu0 0.0
        %4362 = vmatmul.mubr.f32.gmra.mrb[0].mxu0 %v4284
        %v4363 = vpop.f32.mrb[0].mxu0
        %v4364 = vadd.f32 0.0, %v4363
        %v4365 = vpop.f32.mrb[0].mxu0
        %4366 = vdwg.mxu0
        %v4368 = vsel %vm3235, %v1920, 0
        %v4371 = vsel %vm3235, %v2056, 0
        %v4374 = vsel %vm3235, %v3096, 0
        %v4377 = vsel %vm3235, %v3232, 0
        %4379 = vmatprep.subr.mxu0 0.0
        %4380 = vmatpush1.xpose.msra.mxu0 %v4374
        %4381 = vmatprep.subr.mxu0 0.0
        %4382 = vmatpush1.xpose.msra.mxu0 %v4377
        %4383 = vmatprep.subr.mxu0 0.0
        %4384 = vmatpush1.xpose.msra.mxu0 0.0
        %4385 = vmatprep.subr.mxu0 0.0
        %4386 = vmatpush1.xpose.msra.mxu0 0.0
        %4387 = vmatprep.subr.mxu0 0.0
        %4388 = vmatpush1.xpose.msra.mxu0 0.0
        %4389 = vmatprep.subr.mxu0 0.0
        %4390 = vmatpush1.xpose.msra.mxu0 0.0
        %4391 = vmatprep.subr.mxu0 0.0
        %4392 = vmatpush1.xpose.msra.mxu0 0.0
        %4393 = vmatprep.subr.mxu0 0.0
        %4394 = vmatpush1.xpose.msra.mxu0 0.0
        %4395 = vmatprep.subr.mxu0 0.0
        %4396 = vmatpush1.xpose.msra.mxu0 0.0
        %4397 = vmatprep.subr.mxu0 0.0
        %4398 = vmatpush1.xpose.msra.mxu0 0.0
        %4399 = vmatprep.subr.mxu0 0.0
        %4400 = vmatpush1.xpose.msra.mxu0 0.0
        %4401 = vmatprep.subr.mxu0 0.0
        %4402 = vmatpush1.xpose.msra.mxu0 0.0
        %4403 = vmatprep.subr.mxu0 0.0
        %4404 = vmatpush1.xpose.msra.mxu0 0.0
        %4405 = vmatprep.subr.mxu0 0.0
        %4406 = vmatpush1.xpose.msra.mxu0 0.0
        %4407 = vmatprep.subr.mxu0 0.0
        %4408 = vmatpush1.xpose.msra.mxu0 0.0
        %4409 = vmatprep.subr.mxu0 0.0
        %4410 = vmatpush1.xpose.msra.mxu0 0.0
        %4411 = vmatprep.subr.mxu0 0.0
        %4412 = vmatpush1.xpose.msra.mxu0 0.0
        %4413 = vmatprep.subr.mxu0 0.0
        %4414 = vmatpush1.xpose.msra.mxu0 0.0
        %4415 = vmatprep.subr.mxu0 0.0
        %4416 = vmatpush1.xpose.msra.mxu0 0.0
        %4417 = vmatprep.subr.mxu0 0.0
        %4418 = vmatpush1.xpose.msra.mxu0 0.0
        %4419 = vmatprep.subr.mxu0 0.0
        %4420 = vmatpush1.xpose.msra.mxu0 0.0
        %4421 = vmatprep.subr.mxu0 0.0
        %4422 = vmatpush1.xpose.msra.mxu0 0.0
        %4423 = vmatprep.subr.mxu0 0.0
        %4424 = vmatpush1.xpose.msra.mxu0 0.0
        %4425 = vmatprep.subr.mxu0 0.0
        %4426 = vmatpush1.xpose.msra.mxu0 0.0
        %4427 = vmatprep.subr.mxu0 0.0
        %4428 = vmatpush1.xpose.msra.mxu0 0.0
        %4429 = vmatprep.subr.mxu0 0.0
        %4430 = vmatpush1.xpose.msra.mxu0 0.0
        %4431 = vmatprep.subr.mxu0 0.0
        %4432 = vmatpush1.xpose.msra.mxu0 0.0
        %4433 = vmatprep.subr.mxu0 0.0
        %4434 = vmatpush1.xpose.msra.mxu0 0.0
        %4435 = vmatprep.subr.mxu0 0.0
        %4436 = vmatpush1.xpose.msra.mxu0 0.0
        %4437 = vmatprep.subr.mxu0 0.0
        %4438 = vmatpush1.xpose.msra.mxu0 0.0
        %4439 = vmatprep.subr.mxu0 0.0
        %4440 = vmatpush1.xpose.msra.mxu0 0.0
        %4441 = vmatprep.subr.mxu0 0.0
        %4442 = vmatpush1.xpose.msra.mxu0 0.0
        %4443 = vmatprep.mubr.f32.mxu0 0.0
        %4444 = vmatmul.mubr.f32.gmra.mrb[0].mxu0 %v4368
        %v4445 = vpop.f32.mrb[0].mxu0
        %v4446 = vadd.f32 0.0, %v4445
        %v4447 = vpop.f32.mrb[0].mxu0
        %4448 = vmatprep.mubr.f32.mxu0 0.0
        %4449 = vmatmul.mubr.f32.gmra.mrb[0].mxu0 %v4371
        %v4450 = vpop.f32.mrb[0].mxu0
        %v4451 = vadd.f32 0.0, %v4450
        %v4452 = vpop.f32.mrb[0].mxu0
        %4453 = vdwg.mxu0
        %v4455 = vsel %vm3235, %v1921, 0
        %v4458 = vsel %vm3235, %v2057, 0
        %v4461 = vsel %vm3235, %v3097, 0
        %v4464 = vsel %vm3235, %v3233, 0
        %4466 = vmatprep.subr.mxu0 0.0
        %4467 = vmatpush1.xpose.msra.mxu0 %v4461
        %4468 = vmatprep.subr.mxu0 0.0
        %4469 = vmatpush1.xpose.msra.mxu0 %v4464
        %4470 = vmatprep.subr.mxu0 0.0
        %4471 = vmatpush1.xpose.msra.mxu0 0.0
        %4472 = vmatprep.subr.mxu0 0.0
        %4473 = vmatpush1.xpose.msra.mxu0 0.0
        %4474 = vmatprep.subr.mxu0 0.0
        %4475 = vmatpush1.xpose.msra.mxu0 0.0
        %4476 = vmatprep.subr.mxu0 0.0
        %4477 = vmatpush1.xpose.msra.mxu0 0.0
        %4478 = vmatprep.subr.mxu0 0.0
        %4479 = vmatpush1.xpose.msra.mxu0 0.0
        %4480 = vmatprep.subr.mxu0 0.0
        %4481 = vmatpush1.xpose.msra.mxu0 0.0
        %4482 = vmatprep.subr.mxu0 0.0
        %4483 = vmatpush1.xpose.msra.mxu0 0.0
        %4484 = vmatprep.subr.mxu0 0.0
        %4485 = vmatpush1.xpose.msra.mxu0 0.0
        %4486 = vmatprep.subr.mxu0 0.0
        %4487 = vmatpush1.xpose.msra.mxu0 0.0
        %4488 = vmatprep.subr.mxu0 0.0
        %4489 = vmatpush1.xpose.msra.mxu0 0.0
        %4490 = vmatprep.subr.mxu0 0.0
        %4491 = vmatpush1.xpose.msra.mxu0 0.0
        %4492 = vmatprep.subr.mxu0 0.0
        %4493 = vmatpush1.xpose.msra.mxu0 0.0
        %4494 = vmatprep.subr.mxu0 0.0
        %4495 = vmatpush1.xpose.msra.mxu0 0.0
        %4496 = vmatprep.subr.mxu0 0.0
        %4497 = vmatpush1.xpose.msra.mxu0 0.0
        %4498 = vmatprep.subr.mxu0 0.0
        %4499 = vmatpush1.xpose.msra.mxu0 0.0
        %4500 = vmatprep.subr.mxu0 0.0
        %4501 = vmatpush1.xpose.msra.mxu0 0.0
        %4502 = vmatprep.subr.mxu0 0.0
        %4503 = vmatpush1.xpose.msra.mxu0 0.0
        %4504 = vmatprep.subr.mxu0 0.0
        %4505 = vmatpush1.xpose.msra.mxu0 0.0
        %4506 = vmatprep.subr.mxu0 0.0
        %4507 = vmatpush1.xpose.msra.mxu0 0.0
        %4508 = vmatprep.subr.mxu0 0.0
        %4509 = vmatpush1.xpose.msra.mxu0 0.0
        %4510 = vmatprep.subr.mxu0 0.0
        %4511 = vmatpush1.xpose.msra.mxu0 0.0
        %4512 = vmatprep.subr.mxu0 0.0
        %4513 = vmatpush1.xpose.msra.mxu0 0.0
        %4514 = vmatprep.subr.mxu0 0.0
        %4515 = vmatpush1.xpose.msra.mxu0 0.0
        %4516 = vmatprep.subr.mxu0 0.0
        %4517 = vmatpush1.xpose.msra.mxu0 0.0
        %4518 = vmatprep.subr.mxu0 0.0
        %4519 = vmatpush1.xpose.msra.mxu0 0.0
        %4520 = vmatprep.subr.mxu0 0.0
        %4521 = vmatpush1.xpose.msra.mxu0 0.0
        %4522 = vmatprep.subr.mxu0 0.0
        %4523 = vmatpush1.xpose.msra.mxu0 0.0
        %4524 = vmatprep.subr.mxu0 0.0
        %4525 = vmatpush1.xpose.msra.mxu0 0.0
        %4526 = vmatprep.subr.mxu0 0.0
        %4527 = vmatpush1.xpose.msra.mxu0 0.0
        %4528 = vmatprep.subr.mxu0 0.0
        %4529 = vmatpush1.xpose.msra.mxu0 0.0
        %4530 = vmatprep.mubr.f32.mxu0 0.0
        %4531 = vmatmul.mubr.f32.gmra.mrb[0].mxu0 %v4455
        %v4532 = vpop.f32.mrb[0].mxu0
        %v4533 = vadd.f32 0.0, %v4532
        %v4534 = vpop.f32.mrb[0].mxu0
        %4535 = vmatprep.mubr.f32.mxu0 0.0
        %4536 = vmatmul.mubr.f32.gmra.mrb[0].mxu0 %v4458
        %v4537 = vpop.f32.mrb[0].mxu0
        %v4538 = vadd.f32 0.0, %v4537
        %v4539 = vpop.f32.mrb[0].mxu0
        %4540 = vdwg.mxu0
        %v4542 = vsel %vm3235, %v1922, 0
        %v4545 = vsel %vm3235, %v2058, 0
        %v4548 = vsel %vm3235, %v3098, 0
        %v4551 = vsel %vm3235, %v3234, 0
        %4553 = vmatprep.subr.mxu0 0.0
        %4554 = vmatpush1.xpose.msra.mxu0 %v4548
        %4555 = vmatprep.subr.mxu0 0.0
        %4556 = vmatpush1.xpose.msra.mxu0 %v4551
        %4557 = vmatprep.subr.mxu0 0.0
        %4558 = vmatpush1.xpose.msra.mxu0 0.0
        %4559 = vmatprep.subr.mxu0 0.0
        %4560 = vmatpush1.xpose.msra.mxu0 0.0
        %4561 = vmatprep.subr.mxu0 0.0
        %4562 = vmatpush1.xpose.msra.mxu0 0.0
        %4563 = vmatprep.subr.mxu0 0.0
        %4564 = vmatpush1.xpose.msra.mxu0 0.0
        %4565 = vmatprep.subr.mxu0 0.0
        %4566 = vmatpush1.xpose.msra.mxu0 0.0
        %4567 = vmatprep.subr.mxu0 0.0
        %4568 = vmatpush1.xpose.msra.mxu0 0.0
        %4569 = vmatprep.subr.mxu0 0.0
        %4570 = vmatpush1.xpose.msra.mxu0 0.0
        %4571 = vmatprep.subr.mxu0 0.0
        %4572 = vmatpush1.xpose.msra.mxu0 0.0
        %4573 = vmatprep.subr.mxu0 0.0
        %4574 = vmatpush1.xpose.msra.mxu0 0.0
        %4575 = vmatprep.subr.mxu0 0.0
        %4576 = vmatpush1.xpose.msra.mxu0 0.0
        %4577 = vmatprep.subr.mxu0 0.0
        %4578 = vmatpush1.xpose.msra.mxu0 0.0
        %4579 = vmatprep.subr.mxu0 0.0
        %4580 = vmatpush1.xpose.msra.mxu0 0.0
        %4581 = vmatprep.subr.mxu0 0.0
        %4582 = vmatpush1.xpose.msra.mxu0 0.0
        %4583 = vmatprep.subr.mxu0 0.0
        %4584 = vmatpush1.xpose.msra.mxu0 0.0
        %4585 = vmatprep.subr.mxu0 0.0
        %4586 = vmatpush1.xpose.msra.mxu0 0.0
        %4587 = vmatprep.subr.mxu0 0.0
        %4588 = vmatpush1.xpose.msra.mxu0 0.0
        %4589 = vmatprep.subr.mxu0 0.0
        %4590 = vmatpush1.xpose.msra.mxu0 0.0
        %4591 = vmatprep.subr.mxu0 0.0
        %4592 = vmatpush1.xpose.msra.mxu0 0.0
        %4593 = vmatprep.subr.mxu0 0.0
        %4594 = vmatpush1.xpose.msra.mxu0 0.0
        %4595 = vmatprep.subr.mxu0 0.0
        %4596 = vmatpush1.xpose.msra.mxu0 0.0
        %4597 = vmatprep.subr.mxu0 0.0
        %4598 = vmatpush1.xpose.msra.mxu0 0.0
        %4599 = vmatprep.subr.mxu0 0.0
        %4600 = vmatpush1.xpose.msra.mxu0 0.0
        %4601 = vmatprep.subr.mxu0 0.0
        %4602 = vmatpush1.xpose.msra.mxu0 0.0
        %4603 = vmatprep.subr.mxu0 0.0
        %4604 = vmatpush1.xpose.msra.mxu0 0.0
        %4605 = vmatprep.subr.mxu0 0.0
        %4606 = vmatpush1.xpose.msra.mxu0 0.0
        %4607 = vmatprep.subr.mxu0 0.0
        %4608 = vmatpush1.xpose.msra.mxu0 0.0
        %4609 = vmatprep.subr.mxu0 0.0
        %4610 = vmatpush1.xpose.msra.mxu0 0.0
        %4611 = vmatprep.subr.mxu0 0.0
        %4612 = vmatpush1.xpose.msra.mxu0 0.0
        %4613 = vmatprep.subr.mxu0 0.0
        %4614 = vmatpush1.xpose.msra.mxu0 0.0
        %4615 = vmatprep.subr.mxu0 0.0
        %4616 = vmatpush1.xpose.msra.mxu0 0.0
        %4617 = vmatprep.mubr.f32.mxu0 0.0
        %4618 = vmatmul.mubr.f32.gmra.mrb[0].mxu0 %v4542
        %v4619 = vpop.f32.mrb[0].mxu0
        %v4620 = vadd.f32 0.0, %v4619
        %v4621 = vpop.f32.mrb[0].mxu0
        %4622 = vmatprep.mubr.f32.mxu0 0.0
        %4623 = vmatmul.mubr.f32.gmra.mrb[0].mxu0 %v4545
        %v4624 = vpop.f32.mrb[0].mxu0
        %v4625 = vadd.f32 0.0, %v4624
        %v4626 = vpop.f32.mrb[0].mxu0
        %4627 = vdwg.mxu0
        %v4628 = vadd.f32 %v3315, %v3663
        %v4629 = vadd.f32 %v3320, %v3668
        %v4630 = vadd.f32 %v3402, %v3750
        %v4631 = vadd.f32 %v3407, %v3755
        %v4632 = vadd.f32 %v3489, %v3837
        %v4633 = vadd.f32 %v3494, %v3842
        %v4634 = vadd.f32 %v3576, %v3924
        %v4635 = vadd.f32 %v3581, %v3929
        %v4636 = vadd.f32 %v4011, %v4359
        %v4637 = vadd.f32 %v4016, %v4364
        %v4638 = vadd.f32 %v4098, %v4446
        %v4639 = vadd.f32 %v4103, %v4451
        %v4640 = vadd.f32 %v4185, %v4533
        %v4641 = vadd.f32 %v4190, %v4538
        %v4642 = vadd.f32 %v4272, %v4620
        %v4643 = vadd.f32 %v4277, %v4625
        %v4644 = vmul.f32 %v4628, 0.17677669
        %v4645 = vmul.f32 %v4629, 0.17677669
        %v4646 = vmul.f32 %v4630, 0.17677669
        %v4647 = vmul.f32 %v4631, 0.17677669
        %v4648 = vmul.f32 %v4632, 0.17677669
        %v4649 = vmul.f32 %v4633, 0.17677669
        %v4650 = vmul.f32 %v4634, 0.17677669
        %v4651 = vmul.f32 %v4635, 0.17677669
        %v4652 = vmul.f32 %v4636, 0.17677669
        %v4653 = vmul.f32 %v4637, 0.17677669
        %v4654 = vmul.f32 %v4638, 0.17677669
        %v4655 = vmul.f32 %v4639, 0.17677669
        %v4656 = vmul.f32 %v4640, 0.17677669
        %v4657 = vmul.f32 %v4641, 0.17677669
        %v4658 = vmul.f32 %v4642, 0.17677669
        %v4659 = vmul.f32 %v4643, 0.17677669
        %v4660 = vld [vmem:[%s1] sm:$0xff]
        %v4661 = vld [vmem:[%s1 + $0x8] sm:$0xff]
        %v4662 = vld [vmem:[%s1 + $0x10] sm:$0xff]
        %v4663 = vld [vmem:[%s1 + $0x18] sm:$0xff]
        %v4664 = vadd.f32 %v4644, %v4660
        %v4665 = vadd.f32 %v4645, %v4661
        %v4666 = vadd.f32 %v4646, %v4660
        %v4667 = vadd.f32 %v4647, %v4661
        %v4668 = vadd.f32 %v4648, %v4660
        %v4669 = vadd.f32 %v4649, %v4661
        %v4670 = vadd.f32 %v4650, %v4660
        %v4671 = vadd.f32 %v4651, %v4661
        %v4672 = vadd.f32 %v4652, %v4662
        %v4673 = vadd.f32 %v4653, %v4663
        %v4674 = vadd.f32 %v4654, %v4662
        %v4675 = vadd.f32 %v4655, %v4663
        %v4676 = vadd.f32 %v4656, %v4662
        %v4677 = vadd.f32 %v4657, %v4663
        %v4678 = vadd.f32 %v4658, %v4662
        %v4679 = vadd.f32 %v4659, %v4663
        %v4680 = vsel %vm3235, %v4664, -inf
        %4681 = vmax.xlane.f32.xlu0 %v4680
        %v4682 = vpop.xlane.xlu0 %4681
        %v4683 = vsel %vm3235, %v4665, -inf
        %4684 = vmax.xlane.f32.xlu0 %v4683
        %v4685 = vpop.xlane.xlu0 %4684
        %v4686 = vsel %vm3235, %v4666, -inf
        %4687 = vmax.xlane.f32.xlu0 %v4686
        %v4688 = vpop.xlane.xlu0 %4687
        %v4689 = vsel %vm3235, %v4667, -inf
        %4690 = vmax.xlane.f32.xlu0 %v4689
        %v4691 = vpop.xlane.xlu0 %4690
        %v4692 = vsel %vm3235, %v4668, -inf
        %4693 = vmax.xlane.f32.xlu0 %v4692
        %v4694 = vpop.xlane.xlu0 %4693
        %v4695 = vsel %vm3235, %v4669, -inf
        %4696 = vmax.xlane.f32.xlu0 %v4695
        %v4697 = vpop.xlane.xlu0 %4696
        %v4698 = vsel %vm3235, %v4670, -inf
        %4699 = vmax.xlane.f32.xlu0 %v4698
        %v4700 = vpop.xlane.xlu0 %4699
        %v4701 = vsel %vm3235, %v4671, -inf
        %4702 = vmax.xlane.f32.xlu0 %v4701
        %v4703 = vpop.xlane.xlu0 %4702
        %v4704 = vsel %vm3235, %v4672, -inf
        %4705 = vmax.xlane.f32.xlu0 %v4704
        %v4706 = vpop.xlane.xlu0 %4705
        %v4707 = vsel %vm3235, %v4673, -inf
        %4708 = vmax.xlane.f32.xlu0 %v4707
        %v4709 = vpop.xlane.xlu0 %4708
        %v4710 = vsel %vm3235, %v4674, -inf
        %4711 = vmax.xlane.f32.xlu0 %v4710
        %v4712 = vpop.xlane.xlu0 %4711
        %v4713 = vsel %vm3235, %v4675, -inf
        %4714 = vmax.xlane.f32.xlu0 %v4713
        %v4715 = vpop.xlane.xlu0 %4714
        %v4716 = vsel %vm3235, %v4676, -inf
        %4717 = vmax.xlane.f32.xlu0 %v4716
        %v4718 = vpop.xlane.xlu0 %4717
        %v4719 = vsel %vm3235, %v4677, -inf
        %4720 = vmax.xlane.f32.xlu0 %v4719
        %v4721 = vpop.xlane.xlu0 %4720
        %v4722 = vsel %vm3235, %v4678, -inf
        %4723 = vmax.xlane.f32.xlu0 %v4722
        %v4724 = vpop.xlane.xlu0 %4723
        %v4725 = vsel %vm3235, %v4679, -inf
        %4726 = vmax.xlane.f32.xlu0 %v4725
        %v4727 = vpop.xlane.xlu0 %4726
        %v4728 = vsub.f32 %v4664, %v4682
        %v4729 = vsub.f32 %v4665, %v4685
        %v4730 = vsub.f32 %v4666, %v4688
        %v4731 = vsub.f32 %v4667, %v4691
        %v4732 = vsub.f32 %v4668, %v4694
        %v4733 = vsub.f32 %v4669, %v4697
        %v4734 = vsub.f32 %v4670, %v4700
        %v4735 = vsub.f32 %v4671, %v4703
        %v4736 = vsub.f32 %v4672, %v4706
        %v4737 = vsub.f32 %v4673, %v4709
        %v4738 = vsub.f32 %v4674, %v4712
        %v4739 = vsub.f32 %v4675, %v4715
        %v4740 = vsub.f32 %v4676, %v4718
        %v4741 = vsub.f32 %v4677, %v4721
        %v4742 = vsub.f32 %v4678, %v4724
        %v4743 = vsub.f32 %v4679, %v4727
        %v4744 = vmul.f32 %v4728, 1.442695
        %v4745 = vpow.pop %v4744
        %v4746 = vmul.f32 %v4729, 1.442695
        %v4747 = vpow.pop %v4746
        %v4748 = vmul.f32 %v4730, 1.442695
        %v4749 = vpow.pop %v4748
        %v4750 = vmul.f32 %v4731, 1.442695
        %v4751 = vpow.pop %v4750
        %v4752 = vmul.f32 %v4732, 1.442695
        %v4753 = vpow.pop %v4752
        %v4754 = vmul.f32 %v4733, 1.442695
        %v4755 = vpow.pop %v4754
        %v4756 = vmul.f32 %v4734, 1.442695
        %v4757 = vpow.pop %v4756
        %v4758 = vmul.f32 %v4735, 1.442695
        %v4759 = vpow.pop %v4758
        %v4760 = vmul.f32 %v4736, 1.442695
        %v4761 = vpow.pop %v4760
        %v4762 = vmul.f32 %v4737, 1.442695
        %v4763 = vpow.pop %v4762
        %v4764 = vmul.f32 %v4738, 1.442695
        %v4765 = vpow.pop %v4764
        %v4766 = vmul.f32 %v4739, 1.442695
        %v4767 = vpow.pop %v4766
        %v4768 = vmul.f32 %v4740, 1.442695
        %v4769 = vpow.pop %v4768
        %v4770 = vmul.f32 %v4741, 1.442695
        %v4771 = vpow.pop %v4770
        %v4772 = vmul.f32 %v4742, 1.442695
        %v4773 = vpow.pop %v4772
        %v4774 = vmul.f32 %v4743, 1.442695
        %v4775 = vpow.pop %v4774
        %v4776 = vsel %vm3235, %v4745, 0.0
        %4777 = vadd.xlane.f32.xlu0 %v4776
        %v4778 = vpop.xlane.xlu0 %4777
        %v4779 = vsel %vm3235, %v4747, 0.0
        %4780 = vadd.xlane.f32.xlu0 %v4779
        %v4781 = vpop.xlane.xlu0 %4780
        %v4782 = vsel %vm3235, %v4749, 0.0
        %4783 = vadd.xlane.f32.xlu0 %v4782
        %v4784 = vpop.xlane.xlu0 %4783
        %v4785 = vsel %vm3235, %v4751, 0.0
        %4786 = vadd.xlane.f32.xlu0 %v4785
        %v4787 = vpop.xlane.xlu0 %4786
        %v4788 = vsel %vm3235, %v4753, 0.0
        %4789 = vadd.xlane.f32.xlu0 %v4788
        %v4790 = vpop.xlane.xlu0 %4789
        %v4791 = vsel %vm3235, %v4755, 0.0
        %4792 = vadd.xlane.f32.xlu0 %v4791
        %v4793 = vpop.xlane.xlu0 %4792
        %v4794 = vsel %vm3235, %v4757, 0.0
        %4795 = vadd.xlane.f32.xlu0 %v4794
        %v4796 = vpop.xlane.xlu0 %4795
        %v4797 = vsel %vm3235, %v4759, 0.0
        %4798 = vadd.xlane.f32.xlu0 %v4797
        %v4799 = vpop.xlane.xlu0 %4798
        %v4800 = vsel %vm3235, %v4761, 0.0
        %4801 = vadd.xlane.f32.xlu0 %v4800
        %v4802 = vpop.xlane.xlu0 %4801
        %v4803 = vsel %vm3235, %v4763, 0.0
        %4804 = vadd.xlane.f32.xlu0 %v4803
        %v4805 = vpop.xlane.xlu0 %4804
        %v4806 = vsel %vm3235, %v4765, 0.0
        %4807 = vadd.xlane.f32.xlu0 %v4806
        %v4808 = vpop.xlane.xlu0 %4807
        %v4809 = vsel %vm3235, %v4767, 0.0
        %4810 = vadd.xlane.f32.xlu0 %v4809
        %v4811 = vpop.xlane.xlu0 %4810
        %v4812 = vsel %vm3235, %v4769, 0.0
        %4813 = vadd.xlane.f32.xlu0 %v4812
        %v4814 = vpop.xlane.xlu0 %4813
        %v4815 = vsel %vm3235, %v4771, 0.0
        %4816 = vadd.xlane.f32.xlu0 %v4815
        %v4817 = vpop.xlane.xlu0 %4816
        %v4818 = vsel %vm3235, %v4773, 0.0
        %4819 = vadd.xlane.f32.xlu0 %v4818
        %v4820 = vpop.xlane.xlu0 %4819
        %v4821 = vsel %vm3235, %v4775, 0.0
        %4822 = vadd.xlane.f32.xlu0 %v4821
        %v4823 = vpop.xlane.xlu0 %4822
        %v4824 = vrcp.pop %v4778
        %v4825 = vrcp.pop %v4781
        %v4826 = vrcp.pop %v4784
        %v4827 = vrcp.pop %v4787
        %v4828 = vrcp.pop %v4790
        %v4829 = vrcp.pop %v4793
        %v4830 = vrcp.pop %v4796
        %v4831 = vrcp.pop %v4799
        %v4832 = vrcp.pop %v4802
        %v4833 = vrcp.pop %v4805
        %v4834 = vrcp.pop %v4808
        %v4835 = vrcp.pop %v4811
        %v4836 = vrcp.pop %v4814
        %v4837 = vrcp.pop %v4817
        %v4838 = vrcp.pop %v4820
        %v4839 = vrcp.pop %v4823
        %v4840 = vmul.f32 %v4745, %v4824
        %v4841 = vmul.f32 %v4747, %v4825
        %v4842 = vmul.f32 %v4749, %v4826
        %v4843 = vmul.f32 %v4751, %v4827
        %v4844 = vmul.f32 %v4753, %v4828
        %v4845 = vmul.f32 %v4755, %v4829
        %v4846 = vmul.f32 %v4757, %v4830
        %v4847 = vmul.f32 %v4759, %v4831
        %v4848 = vmul.f32 %v4761, %v4832
        %v4849 = vmul.f32 %v4763, %v4833
        %v4850 = vmul.f32 %v4765, %v4834
        %v4851 = vmul.f32 %v4767, %v4835
        %v4852 = vmul.f32 %v4769, %v4836
        %v4853 = vmul.f32 %v4771, %v4837
        %v4854 = vmul.f32 %v4773, %v4838
        %v4855 = vmul.f32 %v4775, %v4839
        %4860 = vrot.lane.b32.xlu0 %v821, 96
        %v4861 = vpop.permute.xlu0 %4860
        %4862 = vrot.lane.b32.xlu0 %v824, 96
        %v4863 = vpop.permute.xlu0 %4862
        %4864 = vrot.lane.b32.xlu0 %v829, 96
        %v4865 = vpop.permute.xlu0 %4864
        %4866 = vrot.lane.b32.xlu0 %v832, 96
        %v4867 = vpop.permute.xlu0 %4866
        %4872 = vrot.lane.b32.xlu0 %v821, 64
        %v4873 = vpop.permute.xlu0 %4872
        %4874 = vrot.lane.b32.xlu0 %v824, 64
        %v4875 = vpop.permute.xlu0 %4874
        %4876 = vrot.lane.b32.xlu0 %v829, 64
        %v4877 = vpop.permute.xlu0 %4876
        %4878 = vrot.lane.b32.xlu0 %v832, 64
        %v4879 = vpop.permute.xlu0 %4878
        %4884 = vrot.lane.b32.xlu0 %v821, 32
        %v4885 = vpop.permute.xlu0 %4884
        %4886 = vrot.lane.b32.xlu0 %v824, 32
        %v4887 = vpop.permute.xlu0 %4886
        %4888 = vrot.lane.b32.xlu0 %v829, 32
        %v4889 = vpop.permute.xlu0 %4888
        %4890 = vrot.lane.b32.xlu0 %v832, 32
        %v4891 = vpop.permute.xlu0 %4890
        %v4896 = vcombine.low %v821, %v4873
        %v4897 = vcombine.high %v821, %v4873
        %v4899 = vunpack.c.l.s4 1983009808
        %v4900 = vunpack.c.0.s8 %v4899
        %v4901 = vlaneseq
        %v4902 = vshrl.u32 %v4901, 7
        %v4903 = vsub.s32 %v4900, %v4902
        %v4904 = vrot.slane %v4896, %v4903
        %v4906 = vunpack.c.l.s4 1983009808
        %v4907 = vunpack.c.0.s8 %v4906
        %v4908 = vlaneseq
        %v4909 = vshrl.u32 %v4908, 7
        %v4910 = vsub.s32 %v4907, %v4909
        %v4911 = vrot.slane %v4897, %v4910
        %v4912 = vcombine.low %v4861, %v4885
        %v4913 = vcombine.high %v4861, %v4885
        %v4915 = vunpack.c.l.s4 1983009808
        %v4916 = vunpack.c.0.s8 %v4915
        %v4917 = vlaneseq
        %v4918 = vshrl.u32 %v4917, 7
        %v4919 = vsub.s32 %v4916, %v4918
        %v4920 = vrot.slane %v4912, %v4919
        %v4922 = vunpack.c.l.s4 1983009808
        %v4923 = vunpack.c.0.s8 %v4922
        %v4924 = vlaneseq
        %v4925 = vshrl.u32 %v4924, 7
        %v4926 = vsub.s32 %v4923, %v4925
        %v4927 = vrot.slane %v4913, %v4926
        %v4928 = vcombine.low %v4904, %v4920
        %v4929 = vcombine.high %v4904, %v4920
        %v4931 = vunpack.c.l.s4 1934713408
        %v4932 = vunpack.c.0.s8 %v4931
        %v4933 = vlaneseq
        %v4934 = vshrl.u32 %v4933, 7
        %v4935 = vsub.s32 %v4932, %v4934
        %v4936 = vrot.slane %v4928, %v4935
        %v4938 = vunpack.c.l.s4 1934713408
        %v4939 = vunpack.c.0.s8 %v4938
        %v4940 = vlaneseq
        %v4941 = vshrl.u32 %v4940, 7
        %v4942 = vsub.s32 %v4939, %v4941
        %v4943 = vrot.slane %v4929, %v4942
        %v4944 = vcombine.low %v4911, %v4927
        %v4945 = vcombine.high %v4911, %v4927
        %v4947 = vunpack.c.l.s4 1934713408
        %v4948 = vunpack.c.0.s8 %v4947
        %v4949 = vlaneseq
        %v4950 = vshrl.u32 %v4949, 7
        %v4951 = vsub.s32 %v4948, %v4950
        %v4952 = vrot.slane %v4944, %v4951
        %v4954 = vunpack.c.l.s4 1934713408
        %v4955 = vunpack.c.0.s8 %v4954
        %v4956 = vlaneseq
        %v4957 = vshrl.u32 %v4956, 7
        %v4958 = vsub.s32 %v4955, %v4957
        %v4959 = vrot.slane %v4945, %v4958
        %v4960 = vcombine.high %v4936, 0.0
        %v4961 = vcombine.high %v4943, 0.0
        %v4962 = vcombine.high %v4952, 0.0
        %v4963 = vcombine.high %v4959, 0.0
        %v4964 = vcombine.low %v824, %v4875
        %v4965 = vcombine.high %v824, %v4875
        %v4967 = vunpack.c.l.s4 1983009808
        %v4968 = vunpack.c.0.s8 %v4967
        %v4969 = vlaneseq
        %v4970 = vshrl.u32 %v4969, 7
        %v4971 = vsub.s32 %v4968, %v4970
        %v4972 = vrot.slane %v4964, %v4971
        %v4974 = vunpack.c.l.s4 1983009808
        %v4975 = vunpack.c.0.s8 %v4974
        %v4976 = vlaneseq
        %v4977 = vshrl.u32 %v4976, 7
        %v4978 = vsub.s32 %v4975, %v4977
        %v4979 = vrot.slane %v4965, %v4978
        %v4980 = vcombine.low %v4863, %v4887
        %v4981 = vcombine.high %v4863, %v4887
        %v4983 = vunpack.c.l.s4 1983009808
        %v4984 = vunpack.c.0.s8 %v4983
        %v4985 = vlaneseq
        %v4986 = vshrl.u32 %v4985, 7
        %v4987 = vsub.s32 %v4984, %v4986
        %v4988 = vrot.slane %v4980, %v4987
        %v4990 = vunpack.c.l.s4 1983009808
        %v4991 = vunpack.c.0.s8 %v4990
        %v4992 = vlaneseq
        %v4993 = vshrl.u32 %v4992, 7
        %v4994 = vsub.s32 %v4991, %v4993
        %v4995 = vrot.slane %v4981, %v4994
        %v4996 = vcombine.low %v4972, %v4988
        %v4997 = vcombine.high %v4972, %v4988
        %v4999 = vunpack.c.l.s4 1934713408
        %v5000 = vunpack.c.0.s8 %v4999
        %v5001 = vlaneseq
        %v5002 = vshrl.u32 %v5001, 7
        %v5003 = vsub.s32 %v5000, %v5002
        %v5004 = vrot.slane %v4996, %v5003
        %v5006 = vunpack.c.l.s4 1934713408
        %v5007 = vunpack.c.0.s8 %v5006
        %v5008 = vlaneseq
        %v5009 = vshrl.u32 %v5008, 7
        %v5010 = vsub.s32 %v5007, %v5009
        %v5011 = vrot.slane %v4997, %v5010
        %v5012 = vcombine.low %v4979, %v4995
        %v5013 = vcombine.high %v4979, %v4995
        %v5015 = vunpack.c.l.s4 1934713408
        %v5016 = vunpack.c.0.s8 %v5015
        %v5017 = vlaneseq
        %v5018 = vshrl.u32 %v5017, 7
        %v5019 = vsub.s32 %v5016, %v5018
        %v5020 = vrot.slane %v5012, %v5019
        %v5022 = vunpack.c.l.s4 1934713408
        %v5023 = vunpack.c.0.s8 %v5022
        %v5024 = vlaneseq
        %v5025 = vshrl.u32 %v5024, 7
        %v5026 = vsub.s32 %v5023, %v5025
        %v5027 = vrot.slane %v5013, %v5026
        %v5028 = vcombine.high %v5004, 0.0
        %v5029 = vcombine.high %v5011, 0.0
        %v5030 = vcombine.high %v5020, 0.0
        %v5031 = vcombine.high %v5027, 0.0
        %v5032 = vcombine.low %v829, %v4877
        %v5033 = vcombine.high %v829, %v4877
        %v5035 = vunpack.c.l.s4 1983009808
        %v5036 = vunpack.c.0.s8 %v5035
        %v5037 = vlaneseq
        %v5038 = vshrl.u32 %v5037, 7
        %v5039 = vsub.s32 %v5036, %v5038
        %v5040 = vrot.slane %v5032, %v5039
        %v5042 = vunpack.c.l.s4 1983009808
        %v5043 = vunpack.c.0.s8 %v5042
        %v5044 = vlaneseq
        %v5045 = vshrl.u32 %v5044, 7
        %v5046 = vsub.s32 %v5043, %v5045
        %v5047 = vrot.slane %v5033, %v5046
        %v5048 = vcombine.low %v4865, %v4889
        %v5049 = vcombine.high %v4865, %v4889
        %v5051 = vunpack.c.l.s4 1983009808
        %v5052 = vunpack.c.0.s8 %v5051
        %v5053 = vlaneseq
        %v5054 = vshrl.u32 %v5053, 7
        %v5055 = vsub.s32 %v5052, %v5054
        %v5056 = vrot.slane %v5048, %v5055
        %v5058 = vunpack.c.l.s4 1983009808
        %v5059 = vunpack.c.0.s8 %v5058
        %v5060 = vlaneseq
        %v5061 = vshrl.u32 %v5060, 7
        %v5062 = vsub.s32 %v5059, %v5061
        %v5063 = vrot.slane %v5049, %v5062
        %v5064 = vcombine.low %v5040, %v5056
        %v5065 = vcombine.high %v5040, %v5056
        %v5067 = vunpack.c.l.s4 1934713408
        %v5068 = vunpack.c.0.s8 %v5067
        %v5069 = vlaneseq
        %v5070 = vshrl.u32 %v5069, 7
        %v5071 = vsub.s32 %v5068, %v5070
        %v5072 = vrot.slane %v5064, %v5071
        %v5074 = vunpack.c.l.s4 1934713408
        %v5075 = vunpack.c.0.s8 %v5074
        %v5076 = vlaneseq
        %v5077 = vshrl.u32 %v5076, 7
        %v5078 = vsub.s32 %v5075, %v5077
        %v5079 = vrot.slane %v5065, %v5078
        %v5080 = vcombine.low %v5047, %v5063
        %v5081 = vcombine.high %v5047, %v5063
        %v5083 = vunpack.c.l.s4 1934713408
        %v5084 = vunpack.c.0.s8 %v5083
        %v5085 = vlaneseq
        %v5086 = vshrl.u32 %v5085, 7
        %v5087 = vsub.s32 %v5084, %v5086
        %v5088 = vrot.slane %v5080, %v5087
        %v5090 = vunpack.c.l.s4 1934713408
        %v5091 = vunpack.c.0.s8 %v5090
        %v5092 = vlaneseq
        %v5093 = vshrl.u32 %v5092, 7
        %v5094 = vsub.s32 %v5091, %v5093
        %v5095 = vrot.slane %v5081, %v5094
        %v5096 = vcombine.high %v5072, 0.0
        %v5097 = vcombine.high %v5079, 0.0
        %v5098 = vcombine.high %v5088, 0.0
        %v5099 = vcombine.high %v5095, 0.0
        %v5100 = vcombine.low %v832, %v4879
        %v5101 = vcombine.high %v832, %v4879
        %v5103 = vunpack.c.l.s4 1983009808
        %v5104 = vunpack.c.0.s8 %v5103
        %v5105 = vlaneseq
        %v5106 = vshrl.u32 %v5105, 7
        %v5107 = vsub.s32 %v5104, %v5106
        %v5108 = vrot.slane %v5100, %v5107
        %v5110 = vunpack.c.l.s4 1983009808
        %v5111 = vunpack.c.0.s8 %v5110
        %v5112 = vlaneseq
        %v5113 = vshrl.u32 %v5112, 7
        %v5114 = vsub.s32 %v5111, %v5113
        %v5115 = vrot.slane %v5101, %v5114
        %v5116 = vcombine.low %v4867, %v4891
        %v5117 = vcombine.high %v4867, %v4891
        %v5119 = vunpack.c.l.s4 1983009808
        %v5120 = vunpack.c.0.s8 %v5119
        %v5121 = vlaneseq
        %v5122 = vshrl.u32 %v5121, 7
        %v5123 = vsub.s32 %v5120, %v5122
        %v5124 = vrot.slane %v5116, %v5123
        %v5126 = vunpack.c.l.s4 1983009808
        %v5127 = vunpack.c.0.s8 %v5126
        %v5128 = vlaneseq
        %v5129 = vshrl.u32 %v5128, 7
        %v5130 = vsub.s32 %v5127, %v5129
        %v5131 = vrot.slane %v5117, %v5130
        %v5132 = vcombine.low %v5108, %v5124
        %v5133 = vcombine.high %v5108, %v5124
        %v5135 = vunpack.c.l.s4 1934713408
        %v5136 = vunpack.c.0.s8 %v5135
        %v5137 = vlaneseq
        %v5138 = vshrl.u32 %v5137, 7
        %v5139 = vsub.s32 %v5136, %v5138
        %v5140 = vrot.slane %v5132, %v5139
        %v5142 = vunpack.c.l.s4 1934713408
        %v5143 = vunpack.c.0.s8 %v5142
        %v5144 = vlaneseq
        %v5145 = vshrl.u32 %v5144, 7
        %v5146 = vsub.s32 %v5143, %v5145
        %v5147 = vrot.slane %v5133, %v5146
        %v5148 = vcombine.low %v5115, %v5131
        %v5149 = vcombine.high %v5115, %v5131
        %v5151 = vunpack.c.l.s4 1934713408
        %v5152 = vunpack.c.0.s8 %v5151
        %v5153 = vlaneseq
        %v5154 = vshrl.u32 %v5153, 7
        %v5155 = vsub.s32 %v5152, %v5154
        %v5156 = vrot.slane %v5148, %v5155
        %v5158 = vunpack.c.l.s4 1934713408
        %v5159 = vunpack.c.0.s8 %v5158
        %v5160 = vlaneseq
        %v5161 = vshrl.u32 %v5160, 7
        %v5162 = vsub.s32 %v5159, %v5161
        %v5163 = vrot.slane %v5149, %v5162
        %v5164 = vcombine.high %v5140, 0.0
        %v5165 = vcombine.high %v5147, 0.0
        %v5166 = vcombine.high %v5156, 0.0
        %v5167 = vcombine.high %v5163, 0.0
        %v5168 = vcombine.low %v4936, %v4943
        %v5170 = vunpack.c.l.s4 1983009808
        %v5171 = vunpack.c.0.s8 %v5170
        %v5172 = vlaneseq
        %v5173 = vshrl.u32 %v5172, 7
        %v5174 = vsub.s32 %v5171, %v5173
        %v5175 = vrot.slane %v5168, %v5174
        %v5176 = vcombine.low %v4960, %v4961
        %v5178 = vunpack.c.l.s4 1983009808
        %v5179 = vunpack.c.0.s8 %v5178
        %v5180 = vlaneseq
        %v5181 = vshrl.u32 %v5180, 7
        %v5182 = vsub.s32 %v5179, %v5181
        %v5183 = vrot.slane %v5176, %v5182
        %v5184 = vcombine.low %v4952, %v4959
        %v5186 = vunpack.c.l.s4 1983009808
        %v5187 = vunpack.c.0.s8 %v5186
        %v5188 = vlaneseq
        %v5189 = vshrl.u32 %v5188, 7
        %v5190 = vsub.s32 %v5187, %v5189
        %v5191 = vrot.slane %v5184, %v5190
        %v5192 = vcombine.low %v4962, %v4963
        %v5194 = vunpack.c.l.s4 1983009808
        %v5195 = vunpack.c.0.s8 %v5194
        %v5196 = vlaneseq
        %v5197 = vshrl.u32 %v5196, 7
        %v5198 = vsub.s32 %v5195, %v5197
        %v5199 = vrot.slane %v5192, %v5198
        %v5200 = vcombine.low %v5175, %v5183
        %v5201 = vcombine.high %v5175, %v5183
        %v5203 = vunpack.c.l.s4 1934713408
        %v5204 = vunpack.c.0.s8 %v5203
        %v5205 = vlaneseq
        %v5206 = vshrl.u32 %v5205, 7
        %v5207 = vsub.s32 %v5204, %v5206
        %v5208 = vrot.slane %v5200, %v5207
        %v5210 = vunpack.c.l.s4 1934713408
        %v5211 = vunpack.c.0.s8 %v5210
        %v5212 = vlaneseq
        %v5213 = vshrl.u32 %v5212, 7
        %v5214 = vsub.s32 %v5211, %v5213
        %v5215 = vrot.slane %v5201, %v5214
        %v5216 = vcombine.low %v5191, %v5199
        %v5217 = vcombine.high %v5191, %v5199
        %v5219 = vunpack.c.l.s4 1934713408
        %v5220 = vunpack.c.0.s8 %v5219
        %v5221 = vlaneseq
        %v5222 = vshrl.u32 %v5221, 7
        %v5223 = vsub.s32 %v5220, %v5222
        %v5224 = vrot.slane %v5216, %v5223
        %v5226 = vunpack.c.l.s4 1934713408
        %v5227 = vunpack.c.0.s8 %v5226
        %v5228 = vlaneseq
        %v5229 = vshrl.u32 %v5228, 7
        %v5230 = vsub.s32 %v5227, %v5229
        %v5231 = vrot.slane %v5217, %v5230
        %v5232 = vcombine.low %v5208, %v5224
        %v5233 = vcombine.high %v5208, %v5224
        %v5234 = vcombine.low %v5215, %v5231
        %v5235 = vcombine.high %v5215, %v5231
        %v5236 = vcombine.low %v5004, %v5011
        %v5238 = vunpack.c.l.s4 1983009808
        %v5239 = vunpack.c.0.s8 %v5238
        %v5240 = vlaneseq
        %v5241 = vshrl.u32 %v5240, 7
        %v5242 = vsub.s32 %v5239, %v5241
        %v5243 = vrot.slane %v5236, %v5242
        %v5244 = vcombine.low %v5028, %v5029
        %v5246 = vunpack.c.l.s4 1983009808
        %v5247 = vunpack.c.0.s8 %v5246
        %v5248 = vlaneseq
        %v5249 = vshrl.u32 %v5248, 7
        %v5250 = vsub.s32 %v5247, %v5249
        %v5251 = vrot.slane %v5244, %v5250
        %v5252 = vcombine.low %v5020, %v5027
        %v5254 = vunpack.c.l.s4 1983009808
        %v5255 = vunpack.c.0.s8 %v5254
        %v5256 = vlaneseq
        %v5257 = vshrl.u32 %v5256, 7
        %v5258 = vsub.s32 %v5255, %v5257
        %v5259 = vrot.slane %v5252, %v5258
        %v5260 = vcombine.low %v5030, %v5031
        %v5262 = vunpack.c.l.s4 1983009808
        %v5263 = vunpack.c.0.s8 %v5262
        %v5264 = vlaneseq
        %v5265 = vshrl.u32 %v5264, 7
        %v5266 = vsub.s32 %v5263, %v5265
        %v5267 = vrot.slane %v5260, %v5266
        %v5268 = vcombine.low %v5243, %v5251
        %v5269 = vcombine.high %v5243, %v5251
        %v5271 = vunpack.c.l.s4 1934713408
        %v5272 = vunpack.c.0.s8 %v5271
        %v5273 = vlaneseq
        %v5274 = vshrl.u32 %v5273, 7
        %v5275 = vsub.s32 %v5272, %v5274
        %v5276 = vrot.slane %v5268, %v5275
        %v5278 = vunpack.c.l.s4 1934713408
        %v5279 = vunpack.c.0.s8 %v5278
        %v5280 = vlaneseq
        %v5281 = vshrl.u32 %v5280, 7
        %v5282 = vsub.s32 %v5279, %v5281
        %v5283 = vrot.slane %v5269, %v5282
        %v5284 = vcombine.low %v5259, %v5267
        %v5285 = vcombine.high %v5259, %v5267
        %v5287 = vunpack.c.l.s4 1934713408
        %v5288 = vunpack.c.0.s8 %v5287
        %v5289 = vlaneseq
        %v5290 = vshrl.u32 %v5289, 7
        %v5291 = vsub.s32 %v5288, %v5290
        %v5292 = vrot.slane %v5284, %v5291
        %v5294 = vunpack.c.l.s4 1934713408
        %v5295 = vunpack.c.0.s8 %v5294
        %v5296 = vlaneseq
        %v5297 = vshrl.u32 %v5296, 7
        %v5298 = vsub.s32 %v5295, %v5297
        %v5299 = vrot.slane %v5285, %v5298
        %v5300 = vcombine.low %v5276, %v5292
        %v5301 = vcombine.high %v5276, %v5292
        %v5302 = vcombine.low %v5283, %v5299
        %v5303 = vcombine.high %v5283, %v5299
        %v5304 = vcombine.low %v5072, %v5079
        %v5306 = vunpack.c.l.s4 1983009808
        %v5307 = vunpack.c.0.s8 %v5306
        %v5308 = vlaneseq
        %v5309 = vshrl.u32 %v5308, 7
        %v5310 = vsub.s32 %v5307, %v5309
        %v5311 = vrot.slane %v5304, %v5310
        %v5312 = vcombine.low %v5096, %v5097
        %v5314 = vunpack.c.l.s4 1983009808
        %v5315 = vunpack.c.0.s8 %v5314
        %v5316 = vlaneseq
        %v5317 = vshrl.u32 %v5316, 7
        %v5318 = vsub.s32 %v5315, %v5317
        %v5319 = vrot.slane %v5312, %v5318
        %v5320 = vcombine.low %v5088, %v5095
        %v5322 = vunpack.c.l.s4 1983009808
        %v5323 = vunpack.c.0.s8 %v5322
        %v5324 = vlaneseq
        %v5325 = vshrl.u32 %v5324, 7
        %v5326 = vsub.s32 %v5323, %v5325
        %v5327 = vrot.slane %v5320, %v5326
        %v5328 = vcombine.low %v5098, %v5099
        %v5330 = vunpack.c.l.s4 1983009808
        %v5331 = vunpack.c.0.s8 %v5330
        %v5332 = vlaneseq
        %v5333 = vshrl.u32 %v5332, 7
        %v5334 = vsub.s32 %v5331, %v5333
        %v5335 = vrot.slane %v5328, %v5334
        %v5336 = vcombine.low %v5311, %v5319
        %v5337 = vcombine.high %v5311, %v5319
        %v5339 = vunpack.c.l.s4 1934713408
        %v5340 = vunpack.c.0.s8 %v5339
        %v5341 = vlaneseq
        %v5342 = vshrl.u32 %v5341, 7
        %v5343 = vsub.s32 %v5340, %v5342
        %v5344 = vrot.slane %v5336, %v5343
        %v5346 = vunpack.c.l.s4 1934713408
        %v5347 = vunpack.c.0.s8 %v5346
        %v5348 = vlaneseq
        %v5349 = vshrl.u32 %v5348, 7
        %v5350 = vsub.s32 %v5347, %v5349
        %v5351 = vrot.slane %v5337, %v5350
        %v5352 = vcombine.low %v5327, %v5335
        %v5353 = vcombine.high %v5327, %v5335
        %v5355 = vunpack.c.l.s4 1934713408
        %v5356 = vunpack.c.0.s8 %v5355
        %v5357 = vlaneseq
        %v5358 = vshrl.u32 %v5357, 7
        %v5359 = vsub.s32 %v5356, %v5358
        %v5360 = vrot.slane %v5352, %v5359
        %v5362 = vunpack.c.l.s4 1934713408
        %v5363 = vunpack.c.0.s8 %v5362
        %v5364 = vlaneseq
        %v5365 = vshrl.u32 %v5364, 7
        %v5366 = vsub.s32 %v5363, %v5365
        %v5367 = vrot.slane %v5353, %v5366
        %v5368 = vcombine.low %v5344, %v5360
        %v5369 = vcombine.high %v5344, %v5360
        %v5370 = vcombine.low %v5351, %v5367
        %v5371 = vcombine.high %v5351, %v5367
        %v5372 = vcombine.low %v5140, %v5147
        %v5374 = vunpack.c.l.s4 1983009808
        %v5375 = vunpack.c.0.s8 %v5374
        %v5376 = vlaneseq
        %v5377 = vshrl.u32 %v5376, 7
        %v5378 = vsub.s32 %v5375, %v5377
        %v5379 = vrot.slane %v5372, %v5378
        %v5380 = vcombine.low %v5164, %v5165
        %v5382 = vunpack.c.l.s4 1983009808
        %v5383 = vunpack.c.0.s8 %v5382
        %v5384 = vlaneseq
        %v5385 = vshrl.u32 %v5384, 7
        %v5386 = vsub.s32 %v5383, %v5385
        %v5387 = vrot.slane %v5380, %v5386
        %v5388 = vcombine.low %v5156, %v5163
        %v5390 = vunpack.c.l.s4 1983009808
        %v5391 = vunpack.c.0.s8 %v5390
        %v5392 = vlaneseq
        %v5393 = vshrl.u32 %v5392, 7
        %v5394 = vsub.s32 %v5391, %v5393
        %v5395 = vrot.slane %v5388, %v5394
        %v5396 = vcombine.low %v5166, %v5167
        %v5398 = vunpack.c.l.s4 1983009808
        %v5399 = vunpack.c.0.s8 %v5398
        %v5400 = vlaneseq
        %v5401 = vshrl.u32 %v5400, 7
        %v5402 = vsub.s32 %v5399, %v5401
        %v5403 = vrot.slane %v5396, %v5402
        %v5404 = vcombine.low %v5379, %v5387
        %v5405 = vcombine.high %v5379, %v5387
        %v5407 = vunpack.c.l.s4 1934713408
        %v5408 = vunpack.c.0.s8 %v5407
        %v5409 = vlaneseq
        %v5410 = vshrl.u32 %v5409, 7
        %v5411 = vsub.s32 %v5408, %v5410
        %v5412 = vrot.slane %v5404, %v5411
        %v5414 = vunpack.c.l.s4 1934713408
        %v5415 = vunpack.c.0.s8 %v5414
        %v5416 = vlaneseq
        %v5417 = vshrl.u32 %v5416, 7
        %v5418 = vsub.s32 %v5415, %v5417
        %v5419 = vrot.slane %v5405, %v5418
        %v5420 = vcombine.low %v5395, %v5403
        %v5421 = vcombine.high %v5395, %v5403
        %v5423 = vunpack.c.l.s4 1934713408
        %v5424 = vunpack.c.0.s8 %v5423
        %v5425 = vlaneseq
        %v5426 = vshrl.u32 %v5425, 7
        %v5427 = vsub.s32 %v5424, %v5426
        %v5428 = vrot.slane %v5420, %v5427
        %v5430 = vunpack.c.l.s4 1934713408
        %v5431 = vunpack.c.0.s8 %v5430
        %v5432 = vlaneseq
        %v5433 = vshrl.u32 %v5432, 7
        %v5434 = vsub.s32 %v5431, %v5433
        %v5435 = vrot.slane %v5421, %v5434
        %v5436 = vcombine.low %v5412, %v5428
        %v5437 = vcombine.high %v5412, %v5428
        %v5438 = vcombine.low %v5419, %v5435
        %v5439 = vcombine.high %v5419, %v5435
        %v5441 = vsel %vm3235, %v4840, 0
        %v5444 = vsel %vm3235, %v4841, 0
        %5446 = vmatprep.subr.mxu0 0.0
        %5447 = vmatpush1.msra.mxu0 %v5232
        %5448 = vmatprep.subr.mxu0 0.0
        %5449 = vmatpush1.msra.mxu0 %v5300
        %5450 = vmatprep.subr.mxu0 0.0
        %5451 = vmatpush1.msra.mxu0 0.0
        %5452 = vmatprep.subr.mxu0 0.0
        %5453 = vmatpush1.msra.mxu0 0.0
        %5454 = vmatprep.subr.mxu0 0.0
        %5455 = vmatpush1.msra.mxu0 0.0
        %5456 = vmatprep.subr.mxu0 0.0
        %5457 = vmatpush1.msra.mxu0 0.0
        %5458 = vmatprep.subr.mxu0 0.0
        %5459 = vmatpush1.msra.mxu0 0.0
        %5460 = vmatprep.subr.mxu0 0.0
        %5461 = vmatpush1.msra.mxu0 0.0
        %5462 = vmatprep.subr.mxu0 0.0
        %5463 = vmatpush1.msra.mxu0 0.0
        %5464 = vmatprep.subr.mxu0 0.0
        %5465 = vmatpush1.msra.mxu0 0.0
        %5466 = vmatprep.subr.mxu0 0.0
        %5467 = vmatpush1.msra.mxu0 0.0
        %5468 = vmatprep.subr.mxu0 0.0
        %5469 = vmatpush1.msra.mxu0 0.0
        %5470 = vmatprep.subr.mxu0 0.0
        %5471 = vmatpush1.msra.mxu0 0.0
        %5472 = vmatprep.subr.mxu0 0.0
        %5473 = vmatpush1.msra.mxu0 0.0
        %5474 = vmatprep.subr.mxu0 0.0
        %5475 = vmatpush1.msra.mxu0 0.0
        %5476 = vmatprep.subr.mxu0 0.0
        %5477 = vmatpush1.msra.mxu0 0.0
        %5478 = vmatprep.subr.mxu0 0.0
        %5479 = vmatpush1.msra.mxu0 0.0
        %5480 = vmatprep.subr.mxu0 0.0
        %5481 = vmatpush1.msra.mxu0 0.0
        %5482 = vmatprep.subr.mxu0 0.0
        %5483 = vmatpush1.msra.mxu0 0.0
        %5484 = vmatprep.subr.mxu0 0.0
        %5485 = vmatpush1.msra.mxu0 0.0
        %5486 = vmatprep.subr.mxu0 0.0
        %5487 = vmatpush1.msra.mxu0 0.0
        %5488 = vmatprep.subr.mxu0 0.0
        %5489 = vmatpush1.msra.mxu0 0.0
        %5490 = vmatprep.subr.mxu0 0.0
        %5491 = vmatpush1.msra.mxu0 0.0
        %5492 = vmatprep.subr.mxu0 0.0
        %5493 = vmatpush1.msra.mxu0 0.0
        %5494 = vmatprep.subr.mxu0 0.0
        %5495 = vmatpush1.msra.mxu0 0.0
        %5496 = vmatprep.subr.mxu0 0.0
        %5497 = vmatpush1.msra.mxu0 0.0
        %5498 = vmatprep.subr.mxu0 0.0
        %5499 = vmatpush1.msra.mxu0 0.0
        %5500 = vmatprep.subr.mxu0 0.0
        %5501 = vmatpush1.msra.mxu0 0.0
        %5502 = vmatprep.subr.mxu0 0.0
        %5503 = vmatpush1.msra.mxu0 0.0
        %5504 = vmatprep.subr.mxu0 0.0
        %5505 = vmatpush1.msra.mxu0 0.0
        %5506 = vmatprep.subr.mxu0 0.0
        %5507 = vmatpush1.msra.mxu0 0.0
        %5508 = vmatprep.subr.mxu0 0.0
        %5509 = vmatpush1.msra.mxu0 0.0
        %5510 = vmatprep.mubr.f32.mxu0 0.0
        %5511 = vmatmul.mubr.f32.gmra.mrb[0].mxu0 %v5441
        %v5512 = vpop.f32.mrb[0].mxu0
        %v5513 = vadd.f32 0.0, %v5512
        %v5514 = vpop.f32.mrb[0].mxu0
        %5515 = vmatprep.mubr.f32.mxu0 0.0
        %5516 = vmatmul.mubr.f32.gmra.mrb[0].mxu0 %v5444
        %v5517 = vpop.f32.mrb[0].mxu0
        %v5518 = vadd.f32 0.0, %v5517
        %v5519 = vpop.f32.mrb[0].mxu0
        %5520 = vdwg.mxu0
        %v5522 = vsel %vm3235, %v4842, 0
        %v5525 = vsel %vm3235, %v4843, 0
        %5527 = vmatprep.subr.mxu0 0.0
        %5528 = vmatpush1.msra.mxu0 %v5233
        %5529 = vmatprep.subr.mxu0 0.0
        %5530 = vmatpush1.msra.mxu0 %v5301
        %5531 = vmatprep.subr.mxu0 0.0
        %5532 = vmatpush1.msra.mxu0 0.0
        %5533 = vmatprep.subr.mxu0 0.0
        %5534 = vmatpush1.msra.mxu0 0.0
        %5535 = vmatprep.subr.mxu0 0.0
        %5536 = vmatpush1.msra.mxu0 0.0
        %5537 = vmatprep.subr.mxu0 0.0
        %5538 = vmatpush1.msra.mxu0 0.0
        %5539 = vmatprep.subr.mxu0 0.0
        %5540 = vmatpush1.msra.mxu0 0.0
        %5541 = vmatprep.subr.mxu0 0.0
        %5542 = vmatpush1.msra.mxu0 0.0
        %5543 = vmatprep.subr.mxu0 0.0
        %5544 = vmatpush1.msra.mxu0 0.0
        %5545 = vmatprep.subr.mxu0 0.0
        %5546 = vmatpush1.msra.mxu0 0.0
        %5547 = vmatprep.subr.mxu0 0.0
        %5548 = vmatpush1.msra.mxu0 0.0
        %5549 = vmatprep.subr.mxu0 0.0
        %5550 = vmatpush1.msra.mxu0 0.0
        %5551 = vmatprep.subr.mxu0 0.0
        %5552 = vmatpush1.msra.mxu0 0.0
        %5553 = vmatprep.subr.mxu0 0.0
        %5554 = vmatpush1.msra.mxu0 0.0
        %5555 = vmatprep.subr.mxu0 0.0
        %5556 = vmatpush1.msra.mxu0 0.0
        %5557 = vmatprep.subr.mxu0 0.0
        %5558 = vmatpush1.msra.mxu0 0.0
        %5559 = vmatprep.subr.mxu0 0.0
        %5560 = vmatpush1.msra.mxu0 0.0
        %5561 = vmatprep.subr.mxu0 0.0
        %5562 = vmatpush1.msra.mxu0 0.0
        %5563 = vmatprep.subr.mxu0 0.0
        %5564 = vmatpush1.msra.mxu0 0.0
        %5565 = vmatprep.subr.mxu0 0.0
        %5566 = vmatpush1.msra.mxu0 0.0
        %5567 = vmatprep.subr.mxu0 0.0
        %5568 = vmatpush1.msra.mxu0 0.0
        %5569 = vmatprep.subr.mxu0 0.0
        %5570 = vmatpush1.msra.mxu0 0.0
        %5571 = vmatprep.subr.mxu0 0.0
        %5572 = vmatpush1.msra.mxu0 0.0
        %5573 = vmatprep.subr.mxu0 0.0
        %5574 = vmatpush1.msra.mxu0 0.0
        %5575 = vmatprep.subr.mxu0 0.0
        %5576 = vmatpush1.msra.mxu0 0.0
        %5577 = vmatprep.subr.mxu0 0.0
        %5578 = vmatpush1.msra.mxu0 0.0
        %5579 = vmatprep.subr.mxu0 0.0
        %5580 = vmatpush1.msra.mxu0 0.0
        %5581 = vmatprep.subr.mxu0 0.0
        %5582 = vmatpush1.msra.mxu0 0.0
        %5583 = vmatprep.subr.mxu0 0.0
        %5584 = vmatpush1.msra.mxu0 0.0
        %5585 = vmatprep.subr.mxu0 0.0
        %5586 = vmatpush1.msra.mxu0 0.0
        %5587 = vmatprep.subr.mxu0 0.0
        %5588 = vmatpush1.msra.mxu0 0.0
        %5589 = vmatprep.subr.mxu0 0.0
        %5590 = vmatpush1.msra.mxu0 0.0
        %5591 = vmatprep.mubr.f32.mxu0 0.0
        %5592 = vmatmul.mubr.f32.gmra.mrb[0].mxu0 %v5522
        %v5593 = vpop.f32.mrb[0].mxu0
        %v5594 = vadd.f32 0.0, %v5593
        %v5595 = vpop.f32.mrb[0].mxu0
        %5596 = vmatprep.mubr.f32.mxu0 0.0
        %5597 = vmatmul.mubr.f32.gmra.mrb[0].mxu0 %v5525
        %v5598 = vpop.f32.mrb[0].mxu0
        %v5599 = vadd.f32 0.0, %v5598
        %v5600 = vpop.f32.mrb[0].mxu0
        %5601 = vdwg.mxu0
        %v5603 = vsel %vm3235, %v4844, 0
        %v5606 = vsel %vm3235, %v4845, 0
        %5608 = vmatprep.subr.mxu0 0.0
        %5609 = vmatpush1.msra.mxu0 %v5234
        %5610 = vmatprep.subr.mxu0 0.0
        %5611 = vmatpush1.msra.mxu0 %v5302
        %5612 = vmatprep.subr.mxu0 0.0
        %5613 = vmatpush1.msra.mxu0 0.0
        %5614 = vmatprep.subr.mxu0 0.0
        %5615 = vmatpush1.msra.mxu0 0.0
        %5616 = vmatprep.subr.mxu0 0.0
        %5617 = vmatpush1.msra.mxu0 0.0
        %5618 = vmatprep.subr.mxu0 0.0
        %5619 = vmatpush1.msra.mxu0 0.0
        %5620 = vmatprep.subr.mxu0 0.0
        %5621 = vmatpush1.msra.mxu0 0.0
        %5622 = vmatprep.subr.mxu0 0.0
        %5623 = vmatpush1.msra.mxu0 0.0
        %5624 = vmatprep.subr.mxu0 0.0
        %5625 = vmatpush1.msra.mxu0 0.0
        %5626 = vmatprep.subr.mxu0 0.0
        %5627 = vmatpush1.msra.mxu0 0.0
        %5628 = vmatprep.subr.mxu0 0.0
        %5629 = vmatpush1.msra.mxu0 0.0
        %5630 = vmatprep.subr.mxu0 0.0
        %5631 = vmatpush1.msra.mxu0 0.0
        %5632 = vmatprep.subr.mxu0 0.0
        %5633 = vmatpush1.msra.mxu0 0.0
        %5634 = vmatprep.subr.mxu0 0.0
        %5635 = vmatpush1.msra.mxu0 0.0
        %5636 = vmatprep.subr.mxu0 0.0
        %5637 = vmatpush1.msra.mxu0 0.0
        %5638 = vmatprep.subr.mxu0 0.0
        %5639 = vmatpush1.msra.mxu0 0.0
        %5640 = vmatprep.subr.mxu0 0.0
        %5641 = vmatpush1.msra.mxu0 0.0
        %5642 = vmatprep.subr.mxu0 0.0
        %5643 = vmatpush1.msra.mxu0 0.0
        %5644 = vmatprep.subr.mxu0 0.0
        %5645 = vmatpush1.msra.mxu0 0.0
        %5646 = vmatprep.subr.mxu0 0.0
        %5647 = vmatpush1.msra.mxu0 0.0
        %5648 = vmatprep.subr.mxu0 0.0
        %5649 = vmatpush1.msra.mxu0 0.0
        %5650 = vmatprep.subr.mxu0 0.0
        %5651 = vmatpush1.msra.mxu0 0.0
        %5652 = vmatprep.subr.mxu0 0.0
        %5653 = vmatpush1.msra.mxu0 0.0
        %5654 = vmatprep.subr.mxu0 0.0
        %5655 = vmatpush1.msra.mxu0 0.0
        %5656 = vmatprep.subr.mxu0 0.0
        %5657 = vmatpush1.msra.mxu0 0.0
        %5658 = vmatprep.subr.mxu0 0.0
        %5659 = vmatpush1.msra.mxu0 0.0
        %5660 = vmatprep.subr.mxu0 0.0
        %5661 = vmatpush1.msra.mxu0 0.0
        %5662 = vmatprep.subr.mxu0 0.0
        %5663 = vmatpush1.msra.mxu0 0.0
        %5664 = vmatprep.subr.mxu0 0.0
        %5665 = vmatpush1.msra.mxu0 0.0
        %5666 = vmatprep.subr.mxu0 0.0
        %5667 = vmatpush1.msra.mxu0 0.0
        %5668 = vmatprep.subr.mxu0 0.0
        %5669 = vmatpush1.msra.mxu0 0.0
        %5670 = vmatprep.subr.mxu0 0.0
        %5671 = vmatpush1.msra.mxu0 0.0
        %5672 = vmatprep.mubr.f32.mxu0 0.0
        %5673 = vmatmul.mubr.f32.gmra.mrb[0].mxu0 %v5603
        %v5674 = vpop.f32.mrb[0].mxu0
        %v5675 = vadd.f32 0.0, %v5674
        %v5676 = vpop.f32.mrb[0].mxu0
        %5677 = vmatprep.mubr.f32.mxu0 0.0
        %5678 = vmatmul.mubr.f32.gmra.mrb[0].mxu0 %v5606
        %v5679 = vpop.f32.mrb[0].mxu0
        %v5680 = vadd.f32 0.0, %v5679
        %v5681 = vpop.f32.mrb[0].mxu0
        %5682 = vdwg.mxu0
        %v5684 = vsel %vm3235, %v4846, 0
        %v5687 = vsel %vm3235, %v4847, 0
        %5689 = vmatprep.subr.mxu0 0.0
        %5690 = vmatpush1.msra.mxu0 %v5235
        %5691 = vmatprep.subr.mxu0 0.0
        %5692 = vmatpush1.msra.mxu0 %v5303
        %5693 = vmatprep.subr.mxu0 0.0
        %5694 = vmatpush1.msra.mxu0 0.0
        %5695 = vmatprep.subr.mxu0 0.0
        %5696 = vmatpush1.msra.mxu0 0.0
        %5697 = vmatprep.subr.mxu0 0.0
        %5698 = vmatpush1.msra.mxu0 0.0
        %5699 = vmatprep.subr.mxu0 0.0
        %5700 = vmatpush1.msra.mxu0 0.0
        %5701 = vmatprep.subr.mxu0 0.0
        %5702 = vmatpush1.msra.mxu0 0.0
        %5703 = vmatprep.subr.mxu0 0.0
        %5704 = vmatpush1.msra.mxu0 0.0
        %5705 = vmatprep.subr.mxu0 0.0
        %5706 = vmatpush1.msra.mxu0 0.0
        %5707 = vmatprep.subr.mxu0 0.0
        %5708 = vmatpush1.msra.mxu0 0.0
        %5709 = vmatprep.subr.mxu0 0.0
        %5710 = vmatpush1.msra.mxu0 0.0
        %5711 = vmatprep.subr.mxu0 0.0
        %5712 = vmatpush1.msra.mxu0 0.0
        %5713 = vmatprep.subr.mxu0 0.0
        %5714 = vmatpush1.msra.mxu0 0.0
        %5715 = vmatprep.subr.mxu0 0.0
        %5716 = vmatpush1.msra.mxu0 0.0
        %5717 = vmatprep.subr.mxu0 0.0
        %5718 = vmatpush1.msra.mxu0 0.0
        %5719 = vmatprep.subr.mxu0 0.0
        %5720 = vmatpush1.msra.mxu0 0.0
        %5721 = vmatprep.subr.mxu0 0.0
        %5722 = vmatpush1.msra.mxu0 0.0
        %5723 = vmatprep.subr.mxu0 0.0
        %5724 = vmatpush1.msra.mxu0 0.0
        %5725 = vmatprep.subr.mxu0 0.0
        %5726 = vmatpush1.msra.mxu0 0.0
        %5727 = vmatprep.subr.mxu0 0.0
        %5728 = vmatpush1.msra.mxu0 0.0
        %5729 = vmatprep.subr.mxu0 0.0
        %5730 = vmatpush1.msra.mxu0 0.0
        %5731 = vmatprep.subr.mxu0 0.0
        %5732 = vmatpush1.msra.mxu0 0.0
        %5733 = vmatprep.subr.mxu0 0.0
        %5734 = vmatpush1.msra.mxu0 0.0
        %5735 = vmatprep.subr.mxu0 0.0
        %5736 = vmatpush1.msra.mxu0 0.0
        %5737 = vmatprep.subr.mxu0 0.0
        %5738 = vmatpush1.msra.mxu0 0.0
        %5739 = vmatprep.subr.mxu0 0.0
        %5740 = vmatpush1.msra.mxu0 0.0
        %5741 = vmatprep.subr.mxu0 0.0
        %5742 = vmatpush1.msra.mxu0 0.0
        %5743 = vmatprep.subr.mxu0 0.0
        %5744 = vmatpush1.msra.mxu0 0.0
        %5745 = vmatprep.subr.mxu0 0.0
        %5746 = vmatpush1.msra.mxu0 0.0
        %5747 = vmatprep.subr.mxu0 0.0
        %5748 = vmatpush1.msra.mxu0 0.0
        %5749 = vmatprep.subr.mxu0 0.0
        %5750 = vmatpush1.msra.mxu0 0.0
        %5751 = vmatprep.subr.mxu0 0.0
        %5752 = vmatpush1.msra.mxu0 0.0
        %5753 = vmatprep.mubr.f32.mxu0 0.0
        %5754 = vmatmul.mubr.f32.gmra.mrb[0].mxu0 %v5684
        %v5755 = vpop.f32.mrb[0].mxu0
        %v5756 = vadd.f32 0.0, %v5755
        %v5757 = vpop.f32.mrb[0].mxu0
        %5758 = vmatprep.mubr.f32.mxu0 0.0
        %5759 = vmatmul.mubr.f32.gmra.mrb[0].mxu0 %v5687
        %v5760 = vpop.f32.mrb[0].mxu0
        %v5761 = vadd.f32 0.0, %v5760
        %v5762 = vpop.f32.mrb[0].mxu0
        %5763 = vdwg.mxu0
        %v5765 = vsel %vm3235, %v4848, 0
        %v5768 = vsel %vm3235, %v4849, 0
        %5770 = vmatprep.subr.mxu0 0.0
        %5771 = vmatpush1.msra.mxu0 %v5368
        %5772 = vmatprep.subr.mxu0 0.0
        %5773 = vmatpush1.msra.mxu0 %v5436
        %5774 = vmatprep.subr.mxu0 0.0
        %5775 = vmatpush1.msra.mxu0 0.0
        %5776 = vmatprep.subr.mxu0 0.0
        %5777 = vmatpush1.msra.mxu0 0.0
        %5778 = vmatprep.subr.mxu0 0.0
        %5779 = vmatpush1.msra.mxu0 0.0
        %5780 = vmatprep.subr.mxu0 0.0
        %5781 = vmatpush1.msra.mxu0 0.0
        %5782 = vmatprep.subr.mxu0 0.0
        %5783 = vmatpush1.msra.mxu0 0.0
        %5784 = vmatprep.subr.mxu0 0.0
        %5785 = vmatpush1.msra.mxu0 0.0
        %5786 = vmatprep.subr.mxu0 0.0
        %5787 = vmatpush1.msra.mxu0 0.0
        %5788 = vmatprep.subr.mxu0 0.0
        %5789 = vmatpush1.msra.mxu0 0.0
        %5790 = vmatprep.subr.mxu0 0.0
        %5791 = vmatpush1.msra.mxu0 0.0
        %5792 = vmatprep.subr.mxu0 0.0
        %5793 = vmatpush1.msra.mxu0 0.0
        %5794 = vmatprep.subr.mxu0 0.0
        %5795 = vmatpush1.msra.mxu0 0.0
        %5796 = vmatprep.subr.mxu0 0.0
        %5797 = vmatpush1.msra.mxu0 0.0
        %5798 = vmatprep.subr.mxu0 0.0
        %5799 = vmatpush1.msra.mxu0 0.0
        %5800 = vmatprep.subr.mxu0 0.0
        %5801 = vmatpush1.msra.mxu0 0.0
        %5802 = vmatprep.subr.mxu0 0.0
        %5803 = vmatpush1.msra.mxu0 0.0
        %5804 = vmatprep.subr.mxu0 0.0
        %5805 = vmatpush1.msra.mxu0 0.0
        %5806 = vmatprep.subr.mxu0 0.0
        %5807 = vmatpush1.msra.mxu0 0.0
        %5808 = vmatprep.subr.mxu0 0.0
        %5809 = vmatpush1.msra.mxu0 0.0
        %5810 = vmatprep.subr.mxu0 0.0
        %5811 = vmatpush1.msra.mxu0 0.0
        %5812 = vmatprep.subr.mxu0 0.0
        %5813 = vmatpush1.msra.mxu0 0.0
        %5814 = vmatprep.subr.mxu0 0.0
        %5815 = vmatpush1.msra.mxu0 0.0
        %5816 = vmatprep.subr.mxu0 0.0
        %5817 = vmatpush1.msra.mxu0 0.0
        %5818 = vmatprep.subr.mxu0 0.0
        %5819 = vmatpush1.msra.mxu0 0.0
        %5820 = vmatprep.subr.mxu0 0.0
        %5821 = vmatpush1.msra.mxu0 0.0
        %5822 = vmatprep.subr.mxu0 0.0
        %5823 = vmatpush1.msra.mxu0 0.0
        %5824 = vmatprep.subr.mxu0 0.0
        %5825 = vmatpush1.msra.mxu0 0.0
        %5826 = vmatprep.subr.mxu0 0.0
        %5827 = vmatpush1.msra.mxu0 0.0
        %5828 = vmatprep.subr.mxu0 0.0
        %5829 = vmatpush1.msra.mxu0 0.0
        %5830 = vmatprep.subr.mxu0 0.0
        %5831 = vmatpush1.msra.mxu0 0.0
        %5832 = vmatprep.subr.mxu0 0.0
        %5833 = vmatpush1.msra.mxu0 0.0
        %5834 = vmatprep.mubr.f32.mxu0 0.0
        %5835 = vmatmul.mubr.f32.gmra.mrb[0].mxu0 %v5765
        %v5836 = vpop.f32.mrb[0].mxu0
        %v5837 = vadd.f32 0.0, %v5836
        %v5838 = vpop.f32.mrb[0].mxu0
        %5839 = vmatprep.mubr.f32.mxu0 0.0
        %5840 = vmatmul.mubr.f32.gmra.mrb[0].mxu0 %v5768
        %v5841 = vpop.f32.mrb[0].mxu0
        %v5842 = vadd.f32 0.0, %v5841
        %v5843 = vpop.f32.mrb[0].mxu0
        %5844 = vdwg.mxu0
        %v5846 = vsel %vm3235, %v4850, 0
        %v5849 = vsel %vm3235, %v4851, 0
        %5851 = vmatprep.subr.mxu0 0.0
        %5852 = vmatpush1.msra.mxu0 %v5369
        %5853 = vmatprep.subr.mxu0 0.0
        %5854 = vmatpush1.msra.mxu0 %v5437
        %5855 = vmatprep.subr.mxu0 0.0
        %5856 = vmatpush1.msra.mxu0 0.0
        %5857 = vmatprep.subr.mxu0 0.0
        %5858 = vmatpush1.msra.mxu0 0.0
        %5859 = vmatprep.subr.mxu0 0.0
        %5860 = vmatpush1.msra.mxu0 0.0
        %5861 = vmatprep.subr.mxu0 0.0
        %5862 = vmatpush1.msra.mxu0 0.0
        %5863 = vmatprep.subr.mxu0 0.0
        %5864 = vmatpush1.msra.mxu0 0.0
        %5865 = vmatprep.subr.mxu0 0.0
        %5866 = vmatpush1.msra.mxu0 0.0
        %5867 = vmatprep.subr.mxu0 0.0
        %5868 = vmatpush1.msra.mxu0 0.0
        %5869 = vmatprep.subr.mxu0 0.0
        %5870 = vmatpush1.msra.mxu0 0.0
        %5871 = vmatprep.subr.mxu0 0.0
        %5872 = vmatpush1.msra.mxu0 0.0
        %5873 = vmatprep.subr.mxu0 0.0
        %5874 = vmatpush1.msra.mxu0 0.0
        %5875 = vmatprep.subr.mxu0 0.0
        %5876 = vmatpush1.msra.mxu0 0.0
        %5877 = vmatprep.subr.mxu0 0.0
        %5878 = vmatpush1.msra.mxu0 0.0
        %5879 = vmatprep.subr.mxu0 0.0
        %5880 = vmatpush1.msra.mxu0 0.0
        %5881 = vmatprep.subr.mxu0 0.0
        %5882 = vmatpush1.msra.mxu0 0.0
        %5883 = vmatprep.subr.mxu0 0.0
        %5884 = vmatpush1.msra.mxu0 0.0
        %5885 = vmatprep.subr.mxu0 0.0
        %5886 = vmatpush1.msra.mxu0 0.0
        %5887 = vmatprep.subr.mxu0 0.0
        %5888 = vmatpush1.msra.mxu0 0.0
        %5889 = vmatprep.subr.mxu0 0.0
        %5890 = vmatpush1.msra.mxu0 0.0
        %5891 = vmatprep.subr.mxu0 0.0
        %5892 = vmatpush1.msra.mxu0 0.0
        %5893 = vmatprep.subr.mxu0 0.0
        %5894 = vmatpush1.msra.mxu0 0.0
        %5895 = vmatprep.subr.mxu0 0.0
        %5896 = vmatpush1.msra.mxu0 0.0
        %5897 = vmatprep.subr.mxu0 0.0
        %5898 = vmatpush1.msra.mxu0 0.0
        %5899 = vmatprep.subr.mxu0 0.0
        %5900 = vmatpush1.msra.mxu0 0.0
        %5901 = vmatprep.subr.mxu0 0.0
        %5902 = vmatpush1.msra.mxu0 0.0
        %5903 = vmatprep.subr.mxu0 0.0
        %5904 = vmatpush1.msra.mxu0 0.0
        %5905 = vmatprep.subr.mxu0 0.0
        %5906 = vmatpush1.msra.mxu0 0.0
        %5907 = vmatprep.subr.mxu0 0.0
        %5908 = vmatpush1.msra.mxu0 0.0
        %5909 = vmatprep.subr.mxu0 0.0
        %5910 = vmatpush1.msra.mxu0 0.0
        %5911 = vmatprep.subr.mxu0 0.0
        %5912 = vmatpush1.msra.mxu0 0.0
        %5913 = vmatprep.subr.mxu0 0.0
        %5914 = vmatpush1.msra.mxu0 0.0
        %5915 = vmatprep.mubr.f32.mxu0 0.0
        %5916 = vmatmul.mubr.f32.gmra.mrb[0].mxu0 %v5846
        %v5917 = vpop.f32.mrb[0].mxu0
        %v5918 = vadd.f32 0.0, %v5917
        %v5919 = vpop.f32.mrb[0].mxu0
        %5920 = vmatprep.mubr.f32.mxu0 0.0
        %5921 = vmatmul.mubr.f32.gmra.mrb[0].mxu0 %v5849
        %v5922 = vpop.f32.mrb[0].mxu0
        %v5923 = vadd.f32 0.0, %v5922
        %v5924 = vpop.f32.mrb[0].mxu0
        %5925 = vdwg.mxu0
        %v5927 = vsel %vm3235, %v4852, 0
        %v5930 = vsel %vm3235, %v4853, 0
        %5932 = vmatprep.subr.mxu0 0.0
        %5933 = vmatpush1.msra.mxu0 %v5370
        %5934 = vmatprep.subr.mxu0 0.0
        %5935 = vmatpush1.msra.mxu0 %v5438
        %5936 = vmatprep.subr.mxu0 0.0
        %5937 = vmatpush1.msra.mxu0 0.0
        %5938 = vmatprep.subr.mxu0 0.0
        %5939 = vmatpush1.msra.mxu0 0.0
        %5940 = vmatprep.subr.mxu0 0.0
        %5941 = vmatpush1.msra.mxu0 0.0
        %5942 = vmatprep.subr.mxu0 0.0
        %5943 = vmatpush1.msra.mxu0 0.0
        %5944 = vmatprep.subr.mxu0 0.0
        %5945 = vmatpush1.msra.mxu0 0.0
        %5946 = vmatprep.subr.mxu0 0.0
        %5947 = vmatpush1.msra.mxu0 0.0
        %5948 = vmatprep.subr.mxu0 0.0
        %5949 = vmatpush1.msra.mxu0 0.0
        %5950 = vmatprep.subr.mxu0 0.0
        %5951 = vmatpush1.msra.mxu0 0.0
        %5952 = vmatprep.subr.mxu0 0.0
        %5953 = vmatpush1.msra.mxu0 0.0
        %5954 = vmatprep.subr.mxu0 0.0
        %5955 = vmatpush1.msra.mxu0 0.0
        %5956 = vmatprep.subr.mxu0 0.0
        %5957 = vmatpush1.msra.mxu0 0.0
        %5958 = vmatprep.subr.mxu0 0.0
        %5959 = vmatpush1.msra.mxu0 0.0
        %5960 = vmatprep.subr.mxu0 0.0
        %5961 = vmatpush1.msra.mxu0 0.0
        %5962 = vmatprep.subr.mxu0 0.0
        %5963 = vmatpush1.msra.mxu0 0.0
        %5964 = vmatprep.subr.mxu0 0.0
        %5965 = vmatpush1.msra.mxu0 0.0
        %5966 = vmatprep.subr.mxu0 0.0
        %5967 = vmatpush1.msra.mxu0 0.0
        %5968 = vmatprep.subr.mxu0 0.0
        %5969 = vmatpush1.msra.mxu0 0.0
        %5970 = vmatprep.subr.mxu0 0.0
        %5971 = vmatpush1.msra.mxu0 0.0
        %5972 = vmatprep.subr.mxu0 0.0
        %5973 = vmatpush1.msra.mxu0 0.0
        %5974 = vmatprep.subr.mxu0 0.0
        %5975 = vmatpush1.msra.mxu0 0.0
        %5976 = vmatprep.subr.mxu0 0.0
        %5977 = vmatpush1.msra.mxu0 0.0
        %5978 = vmatprep.subr.mxu0 0.0
        %5979 = vmatpush1.msra.mxu0 0.0
        %5980 = vmatprep.subr.mxu0 0.0
        %5981 = vmatpush1.msra.mxu0 0.0
        %5982 = vmatprep.subr.mxu0 0.0
        %5983 = vmatpush1.msra.mxu0 0.0
        %5984 = vmatprep.subr.mxu0 0.0
        %5985 = vmatpush1.msra.mxu0 0.0
        %5986 = vmatprep.subr.mxu0 0.0
        %5987 = vmatpush1.msra.mxu0 0.0
        %5988 = vmatprep.subr.mxu0 0.0
        %5989 = vmatpush1.msra.mxu0 0.0
        %5990 = vmatprep.subr.mxu0 0.0
        %5991 = vmatpush1.msra.mxu0 0.0
        %5992 = vmatprep.subr.mxu0 0.0
        %5993 = vmatpush1.msra.mxu0 0.0
        %5994 = vmatprep.subr.mxu0 0.0
        %5995 = vmatpush1.msra.mxu0 0.0
        %5996 = vmatprep.mubr.f32.mxu0 0.0
        %5997 = vmatmul.mubr.f32.gmra.mrb[0].mxu0 %v5927
        %v5998 = vpop.f32.mrb[0].mxu0
        %v5999 = vadd.f32 0.0, %v5998
        %v6000 = vpop.f32.mrb[0].mxu0
        %6001 = vmatprep.mubr.f32.mxu0 0.0
        %6002 = vmatmul.mubr.f32.gmra.mrb[0].mxu0 %v5930
        %v6003 = vpop.f32.mrb[0].mxu0
        %v6004 = vadd.f32 0.0, %v6003
        %v6005 = vpop.f32.mrb[0].mxu0
        %6006 = vdwg.mxu0
        %v6008 = vsel %vm3235, %v4854, 0
        %v6011 = vsel %vm3235, %v4855, 0
        %6013 = vmatprep.subr.mxu0 0.0
        %6014 = vmatpush1.msra.mxu0 %v5371
        %6015 = vmatprep.subr.mxu0 0.0
        %6016 = vmatpush1.msra.mxu0 %v5439
        %6017 = vmatprep.subr.mxu0 0.0
        %6018 = vmatpush1.msra.mxu0 0.0
        %6019 = vmatprep.subr.mxu0 0.0
        %6020 = vmatpush1.msra.mxu0 0.0
        %6021 = vmatprep.subr.mxu0 0.0
        %6022 = vmatpush1.msra.mxu0 0.0
        %6023 = vmatprep.subr.mxu0 0.0
        %6024 = vmatpush1.msra.mxu0 0.0
        %6025 = vmatprep.subr.mxu0 0.0
        %6026 = vmatpush1.msra.mxu0 0.0
        %6027 = vmatprep.subr.mxu0 0.0
        %6028 = vmatpush1.msra.mxu0 0.0
        %6029 = vmatprep.subr.mxu0 0.0
        %6030 = vmatpush1.msra.mxu0 0.0
        %6031 = vmatprep.subr.mxu0 0.0
        %6032 = vmatpush1.msra.mxu0 0.0
        %6033 = vmatprep.subr.mxu0 0.0
        %6034 = vmatpush1.msra.mxu0 0.0
        %6035 = vmatprep.subr.mxu0 0.0
        %6036 = vmatpush1.msra.mxu0 0.0
        %6037 = vmatprep.subr.mxu0 0.0
        %6038 = vmatpush1.msra.mxu0 0.0
        %6039 = vmatprep.subr.mxu0 0.0
        %6040 = vmatpush1.msra.mxu0 0.0
        %6041 = vmatprep.subr.mxu0 0.0
        %6042 = vmatpush1.msra.mxu0 0.0
        %6043 = vmatprep.subr.mxu0 0.0
        %6044 = vmatpush1.msra.mxu0 0.0
        %6045 = vmatprep.subr.mxu0 0.0
        %6046 = vmatpush1.msra.mxu0 0.0
        %6047 = vmatprep.subr.mxu0 0.0
        %6048 = vmatpush1.msra.mxu0 0.0
        %6049 = vmatprep.subr.mxu0 0.0
        %6050 = vmatpush1.msra.mxu0 0.0
        %6051 = vmatprep.subr.mxu0 0.0
        %6052 = vmatpush1.msra.mxu0 0.0
        %6053 = vmatprep.subr.mxu0 0.0
        %6054 = vmatpush1.msra.mxu0 0.0
        %6055 = vmatprep.subr.mxu0 0.0
        %6056 = vmatpush1.msra.mxu0 0.0
        %6057 = vmatprep.subr.mxu0 0.0
        %6058 = vmatpush1.msra.mxu0 0.0
        %6059 = vmatprep.subr.mxu0 0.0
        %6060 = vmatpush1.msra.mxu0 0.0
        %6061 = vmatprep.subr.mxu0 0.0
        %6062 = vmatpush1.msra.mxu0 0.0
        %6063 = vmatprep.subr.mxu0 0.0
        %6064 = vmatpush1.msra.mxu0 0.0
        %6065 = vmatprep.subr.mxu0 0.0
        %6066 = vmatpush1.msra.mxu0 0.0
        %6067 = vmatprep.subr.mxu0 0.0
        %6068 = vmatpush1.msra.mxu0 0.0
        %6069 = vmatprep.subr.mxu0 0.0
        %6070 = vmatpush1.msra.mxu0 0.0
        %6071 = vmatprep.subr.mxu0 0.0
        %6072 = vmatpush1.msra.mxu0 0.0
        %6073 = vmatprep.subr.mxu0 0.0
        %6074 = vmatpush1.msra.mxu0 0.0
        %6075 = vmatprep.subr.mxu0 0.0
        %6076 = vmatpush1.msra.mxu0 0.0
        %6077 = vmatprep.mubr.f32.mxu0 0.0
        %6078 = vmatmul.mubr.f32.gmra.mrb[0].mxu0 %v6008
        %v6079 = vpop.f32.mrb[0].mxu0
        %v6080 = vadd.f32 0.0, %v6079
        %v6081 = vpop.f32.mrb[0].mxu0
        %6082 = vmatprep.mubr.f32.mxu0 0.0
        %6083 = vmatmul.mubr.f32.gmra.mrb[0].mxu0 %v6011
        %v6084 = vpop.f32.mrb[0].mxu0
        %v6085 = vadd.f32 0.0, %v6084
        %v6086 = vpop.f32.mrb[0].mxu0
        %6087 = vdwg.mxu0
        %v6088 = vcombine.low %v5513, %v5675
        %v6089 = vcombine.high %v5513, %v5675
        %v6091 = vunpack.c.l.s4 1983009808
        %v6092 = vunpack.c.0.s8 %v6091
        %v6093 = vlaneseq
        %v6094 = vshrl.u32 %v6093, 7
        %v6095 = vsub.s32 %v6092, %v6094
        %v6096 = vrot.slane %v6088, %v6095
        %v6098 = vunpack.c.l.s4 1983009808
        %v6099 = vunpack.c.0.s8 %v6098
        %v6100 = vlaneseq
        %v6101 = vshrl.u32 %v6100, 7
        %v6102 = vsub.s32 %v6099, %v6101
        %v6103 = vrot.slane %v6089, %v6102
        %v6104 = vcombine.low %v5594, %v5756
        %v6105 = vcombine.high %v5594, %v5756
        %v6107 = vunpack.c.l.s4 1983009808
        %v6108 = vunpack.c.0.s8 %v6107
        %v6109 = vlaneseq
        %v6110 = vshrl.u32 %v6109, 7
        %v6111 = vsub.s32 %v6108, %v6110
        %v6112 = vrot.slane %v6104, %v6111
        %v6114 = vunpack.c.l.s4 1983009808
        %v6115 = vunpack.c.0.s8 %v6114
        %v6116 = vlaneseq
        %v6117 = vshrl.u32 %v6116, 7
        %v6118 = vsub.s32 %v6115, %v6117
        %v6119 = vrot.slane %v6105, %v6118
        %v6120 = vcombine.low %v6096, %v6112
        %v6121 = vcombine.high %v6096, %v6112
        %v6123 = vunpack.c.l.s4 1934713408
        %v6124 = vunpack.c.0.s8 %v6123
        %v6125 = vlaneseq
        %v6126 = vshrl.u32 %v6125, 7
        %v6127 = vsub.s32 %v6124, %v6126
        %v6128 = vrot.slane %v6120, %v6127
        %v6130 = vunpack.c.l.s4 1934713408
        %v6131 = vunpack.c.0.s8 %v6130
        %v6132 = vlaneseq
        %v6133 = vshrl.u32 %v6132, 7
        %v6134 = vsub.s32 %v6131, %v6133
        %v6135 = vrot.slane %v6121, %v6134
        %v6136 = vcombine.low %v6103, %v6119
        %v6137 = vcombine.high %v6103, %v6119
        %v6139 = vunpack.c.l.s4 1934713408
        %v6140 = vunpack.c.0.s8 %v6139
        %v6141 = vlaneseq
        %v6142 = vshrl.u32 %v6141, 7
        %v6143 = vsub.s32 %v6140, %v6142
        %v6144 = vrot.slane %v6136, %v6143
        %v6146 = vunpack.c.l.s4 1934713408
        %v6147 = vunpack.c.0.s8 %v6146
        %v6148 = vlaneseq
        %v6149 = vshrl.u32 %v6148, 7
        %v6150 = vsub.s32 %v6147, %v6149
        %v6151 = vrot.slane %v6137, %v6150
        %v6152 = vcombine.high %v6128, 0.0
        %v6153 = vcombine.high %v6135, 0.0
        %v6154 = vcombine.high %v6144, 0.0
        %v6155 = vcombine.high %v6151, 0.0
        %v6156 = vcombine.low %v5518, %v5680
        %v6157 = vcombine.high %v5518, %v5680
        %v6159 = vunpack.c.l.s4 1983009808
        %v6160 = vunpack.c.0.s8 %v6159
        %v6161 = vlaneseq
        %v6162 = vshrl.u32 %v6161, 7
        %v6163 = vsub.s32 %v6160, %v6162
        %v6164 = vrot.slane %v6156, %v6163
        %v6166 = vunpack.c.l.s4 1983009808
        %v6167 = vunpack.c.0.s8 %v6166
        %v6168 = vlaneseq
        %v6169 = vshrl.u32 %v6168, 7
        %v6170 = vsub.s32 %v6167, %v6169
        %v6171 = vrot.slane %v6157, %v6170
        %v6172 = vcombine.low %v5599, %v5761
        %v6173 = vcombine.high %v5599, %v5761
        %v6175 = vunpack.c.l.s4 1983009808
        %v6176 = vunpack.c.0.s8 %v6175
        %v6177 = vlaneseq
        %v6178 = vshrl.u32 %v6177, 7
        %v6179 = vsub.s32 %v6176, %v6178
        %v6180 = vrot.slane %v6172, %v6179
        %v6182 = vunpack.c.l.s4 1983009808
        %v6183 = vunpack.c.0.s8 %v6182
        %v6184 = vlaneseq
        %v6185 = vshrl.u32 %v6184, 7
        %v6186 = vsub.s32 %v6183, %v6185
        %v6187 = vrot.slane %v6173, %v6186
        %v6188 = vcombine.low %v6164, %v6180
        %v6189 = vcombine.high %v6164, %v6180
        %v6191 = vunpack.c.l.s4 1934713408
        %v6192 = vunpack.c.0.s8 %v6191
        %v6193 = vlaneseq
        %v6194 = vshrl.u32 %v6193, 7
        %v6195 = vsub.s32 %v6192, %v6194
        %v6196 = vrot.slane %v6188, %v6195
        %v6198 = vunpack.c.l.s4 1934713408
        %v6199 = vunpack.c.0.s8 %v6198
        %v6200 = vlaneseq
        %v6201 = vshrl.u32 %v6200, 7
        %v6202 = vsub.s32 %v6199, %v6201
        %v6203 = vrot.slane %v6189, %v6202
        %v6204 = vcombine.low %v6171, %v6187
        %v6205 = vcombine.high %v6171, %v6187
        %v6207 = vunpack.c.l.s4 1934713408
        %v6208 = vunpack.c.0.s8 %v6207
        %v6209 = vlaneseq
        %v6210 = vshrl.u32 %v6209, 7
        %v6211 = vsub.s32 %v6208, %v6210
        %v6212 = vrot.slane %v6204, %v6211
        %v6214 = vunpack.c.l.s4 1934713408
        %v6215 = vunpack.c.0.s8 %v6214
        %v6216 = vlaneseq
        %v6217 = vshrl.u32 %v6216, 7
        %v6218 = vsub.s32 %v6215, %v6217
        %v6219 = vrot.slane %v6205, %v6218
        %v6220 = vcombine.high %v6196, 0.0
        %v6221 = vcombine.high %v6203, 0.0
        %v6222 = vcombine.high %v6212, 0.0
        %v6223 = vcombine.high %v6219, 0.0
        %v6224 = vcombine.low %v5837, %v5999
        %v6225 = vcombine.high %v5837, %v5999
        %v6227 = vunpack.c.l.s4 1983009808
        %v6228 = vunpack.c.0.s8 %v6227
        %v6229 = vlaneseq
        %v6230 = vshrl.u32 %v6229, 7
        %v6231 = vsub.s32 %v6228, %v6230
        %v6232 = vrot.slane %v6224, %v6231
        %v6234 = vunpack.c.l.s4 1983009808
        %v6235 = vunpack.c.0.s8 %v6234
        %v6236 = vlaneseq
        %v6237 = vshrl.u32 %v6236, 7
        %v6238 = vsub.s32 %v6235, %v6237
        %v6239 = vrot.slane %v6225, %v6238
        %v6240 = vcombine.low %v5918, %v6080
        %v6241 = vcombine.high %v5918, %v6080
        %v6243 = vunpack.c.l.s4 1983009808
        %v6244 = vunpack.c.0.s8 %v6243
        %v6245 = vlaneseq
        %v6246 = vshrl.u32 %v6245, 7
        %v6247 = vsub.s32 %v6244, %v6246
        %v6248 = vrot.slane %v6240, %v6247
        %v6250 = vunpack.c.l.s4 1983009808
        %v6251 = vunpack.c.0.s8 %v6250
        %v6252 = vlaneseq
        %v6253 = vshrl.u32 %v6252, 7
        %v6254 = vsub.s32 %v6251, %v6253
        %v6255 = vrot.slane %v6241, %v6254
        %v6256 = vcombine.low %v6232, %v6248
        %v6257 = vcombine.high %v6232, %v6248
        %v6259 = vunpack.c.l.s4 1934713408
        %v6260 = vunpack.c.0.s8 %v6259
        %v6261 = vlaneseq
        %v6262 = vshrl.u32 %v6261, 7
        %v6263 = vsub.s32 %v6260, %v6262
        %v6264 = vrot.slane %v6256, %v6263
        %v6266 = vunpack.c.l.s4 1934713408
        %v6267 = vunpack.c.0.s8 %v6266
        %v6268 = vlaneseq
        %v6269 = vshrl.u32 %v6268, 7
        %v6270 = vsub.s32 %v6267, %v6269
        %v6271 = vrot.slane %v6257, %v6270
        %v6272 = vcombine.low %v6239, %v6255
        %v6273 = vcombine.high %v6239, %v6255
        %v6275 = vunpack.c.l.s4 1934713408
        %v6276 = vunpack.c.0.s8 %v6275
        %v6277 = vlaneseq
        %v6278 = vshrl.u32 %v6277, 7
        %v6279 = vsub.s32 %v6276, %v6278
        %v6280 = vrot.slane %v6272, %v6279
        %v6282 = vunpack.c.l.s4 1934713408
        %v6283 = vunpack.c.0.s8 %v6282
        %v6284 = vlaneseq
        %v6285 = vshrl.u32 %v6284, 7
        %v6286 = vsub.s32 %v6283, %v6285
        %v6287 = vrot.slane %v6273, %v6286
        %v6288 = vcombine.high %v6264, 0.0
        %v6289 = vcombine.high %v6271, 0.0
        %v6290 = vcombine.high %v6280, 0.0
        %v6291 = vcombine.high %v6287, 0.0
        %v6292 = vcombine.low %v5842, %v6004
        %v6293 = vcombine.high %v5842, %v6004
        %v6295 = vunpack.c.l.s4 1983009808
        %v6296 = vunpack.c.0.s8 %v6295
        %v6297 = vlaneseq
        %v6298 = vshrl.u32 %v6297, 7
        %v6299 = vsub.s32 %v6296, %v6298
        %v6300 = vrot.slane %v6292, %v6299
        %v6302 = vunpack.c.l.s4 1983009808
        %v6303 = vunpack.c.0.s8 %v6302
        %v6304 = vlaneseq
        %v6305 = vshrl.u32 %v6304, 7
        %v6306 = vsub.s32 %v6303, %v6305
        %v6307 = vrot.slane %v6293, %v6306
        %v6308 = vcombine.low %v5923, %v6085
        %v6309 = vcombine.high %v5923, %v6085
        %v6311 = vunpack.c.l.s4 1983009808
        %v6312 = vunpack.c.0.s8 %v6311
        %v6313 = vlaneseq
        %v6314 = vshrl.u32 %v6313, 7
        %v6315 = vsub.s32 %v6312, %v6314
        %v6316 = vrot.slane %v6308, %v6315
        %v6318 = vunpack.c.l.s4 1983009808
        %v6319 = vunpack.c.0.s8 %v6318
        %v6320 = vlaneseq
        %v6321 = vshrl.u32 %v6320, 7
        %v6322 = vsub.s32 %v6319, %v6321
        %v6323 = vrot.slane %v6309, %v6322
        %v6324 = vcombine.low %v6300, %v6316
        %v6325 = vcombine.high %v6300, %v6316
        %v6327 = vunpack.c.l.s4 1934713408
        %v6328 = vunpack.c.0.s8 %v6327
        %v6329 = vlaneseq
        %v6330 = vshrl.u32 %v6329, 7
        %v6331 = vsub.s32 %v6328, %v6330
        %v6332 = vrot.slane %v6324, %v6331
        %v6334 = vunpack.c.l.s4 1934713408
        %v6335 = vunpack.c.0.s8 %v6334
        %v6336 = vlaneseq
        %v6337 = vshrl.u32 %v6336, 7
        %v6338 = vsub.s32 %v6335, %v6337
        %v6339 = vrot.slane %v6325, %v6338
        %v6340 = vcombine.low %v6307, %v6323
        %v6341 = vcombine.high %v6307, %v6323
        %v6343 = vunpack.c.l.s4 1934713408
        %v6344 = vunpack.c.0.s8 %v6343
        %v6345 = vlaneseq
        %v6346 = vshrl.u32 %v6345, 7
        %v6347 = vsub.s32 %v6344, %v6346
        %v6348 = vrot.slane %v6340, %v6347
        %v6350 = vunpack.c.l.s4 1934713408
        %v6351 = vunpack.c.0.s8 %v6350
        %v6352 = vlaneseq
        %v6353 = vshrl.u32 %v6352, 7
        %v6354 = vsub.s32 %v6351, %v6353
        %v6355 = vrot.slane %v6341, %v6354
        %v6356 = vcombine.high %v6332, 0.0
        %v6357 = vcombine.high %v6339, 0.0
        %v6358 = vcombine.high %v6348, 0.0
        %v6359 = vcombine.high %v6355, 0.0
        %v6360 = vcombine.low %v6128, %v6135
        %v6362 = vunpack.c.l.s4 1983009808
        %v6363 = vunpack.c.0.s8 %v6362
        %v6364 = vlaneseq
        %v6365 = vshrl.u32 %v6364, 7
        %v6366 = vsub.s32 %v6363, %v6365
        %v6367 = vrot.slane %v6360, %v6366
        %v6368 = vcombine.low %v6152, %v6153
        %v6370 = vunpack.c.l.s4 1983009808
        %v6371 = vunpack.c.0.s8 %v6370
        %v6372 = vlaneseq
        %v6373 = vshrl.u32 %v6372, 7
        %v6374 = vsub.s32 %v6371, %v6373
        %v6375 = vrot.slane %v6368, %v6374
        %v6376 = vcombine.low %v6144, %v6151
        %v6378 = vunpack.c.l.s4 1983009808
        %v6379 = vunpack.c.0.s8 %v6378
        %v6380 = vlaneseq
        %v6381 = vshrl.u32 %v6380, 7
        %v6382 = vsub.s32 %v6379, %v6381
        %v6383 = vrot.slane %v6376, %v6382
        %v6384 = vcombine.low %v6154, %v6155
        %v6386 = vunpack.c.l.s4 1983009808
        %v6387 = vunpack.c.0.s8 %v6386
        %v6388 = vlaneseq
        %v6389 = vshrl.u32 %v6388, 7
        %v6390 = vsub.s32 %v6387, %v6389
        %v6391 = vrot.slane %v6384, %v6390
        %v6392 = vcombine.low %v6367, %v6375
        %v6393 = vcombine.high %v6367, %v6375
        %v6395 = vunpack.c.l.s4 1934713408
        %v6396 = vunpack.c.0.s8 %v6395
        %v6397 = vlaneseq
        %v6398 = vshrl.u32 %v6397, 7
        %v6399 = vsub.s32 %v6396, %v6398
        %v6400 = vrot.slane %v6392, %v6399
        %v6402 = vunpack.c.l.s4 1934713408
        %v6403 = vunpack.c.0.s8 %v6402
        %v6404 = vlaneseq
        %v6405 = vshrl.u32 %v6404, 7
        %v6406 = vsub.s32 %v6403, %v6405
        %v6407 = vrot.slane %v6393, %v6406
        %v6408 = vcombine.low %v6383, %v6391
        %v6409 = vcombine.high %v6383, %v6391
        %v6411 = vunpack.c.l.s4 1934713408
        %v6412 = vunpack.c.0.s8 %v6411
        %v6413 = vlaneseq
        %v6414 = vshrl.u32 %v6413, 7
        %v6415 = vsub.s32 %v6412, %v6414
        %v6416 = vrot.slane %v6408, %v6415
        %v6418 = vunpack.c.l.s4 1934713408
        %v6419 = vunpack.c.0.s8 %v6418
        %v6420 = vlaneseq
        %v6421 = vshrl.u32 %v6420, 7
        %v6422 = vsub.s32 %v6419, %v6421
        %v6423 = vrot.slane %v6409, %v6422
        %v6424 = vcombine.low %v6400, %v6416
        %v6425 = vcombine.high %v6400, %v6416
        %v6426 = vcombine.low %v6407, %v6423
        %v6427 = vcombine.high %v6407, %v6423
        %v6428 = vcombine.low %v6196, %v6203
        %v6430 = vunpack.c.l.s4 1983009808
        %v6431 = vunpack.c.0.s8 %v6430
        %v6432 = vlaneseq
        %v6433 = vshrl.u32 %v6432, 7
        %v6434 = vsub.s32 %v6431, %v6433
        %v6435 = vrot.slane %v6428, %v6434
        %v6436 = vcombine.low %v6220, %v6221
        %v6438 = vunpack.c.l.s4 1983009808
        %v6439 = vunpack.c.0.s8 %v6438
        %v6440 = vlaneseq
        %v6441 = vshrl.u32 %v6440, 7
        %v6442 = vsub.s32 %v6439, %v6441
        %v6443 = vrot.slane %v6436, %v6442
        %v6444 = vcombine.low %v6212, %v6219
        %v6446 = vunpack.c.l.s4 1983009808
        %v6447 = vunpack.c.0.s8 %v6446
        %v6448 = vlaneseq
        %v6449 = vshrl.u32 %v6448, 7
        %v6450 = vsub.s32 %v6447, %v6449
        %v6451 = vrot.slane %v6444, %v6450
        %v6452 = vcombine.low %v6222, %v6223
        %v6454 = vunpack.c.l.s4 1983009808
        %v6455 = vunpack.c.0.s8 %v6454
        %v6456 = vlaneseq
        %v6457 = vshrl.u32 %v6456, 7
        %v6458 = vsub.s32 %v6455, %v6457
        %v6459 = vrot.slane %v6452, %v6458
        %v6460 = vcombine.low %v6435, %v6443
        %v6461 = vcombine.high %v6435, %v6443
        %v6463 = vunpack.c.l.s4 1934713408
        %v6464 = vunpack.c.0.s8 %v6463
        %v6465 = vlaneseq
        %v6466 = vshrl.u32 %v6465, 7
        %v6467 = vsub.s32 %v6464, %v6466
        %v6468 = vrot.slane %v6460, %v6467
        %v6470 = vunpack.c.l.s4 1934713408
        %v6471 = vunpack.c.0.s8 %v6470
        %v6472 = vlaneseq
        %v6473 = vshrl.u32 %v6472, 7
        %v6474 = vsub.s32 %v6471, %v6473
        %v6475 = vrot.slane %v6461, %v6474
        %v6476 = vcombine.low %v6451, %v6459
        %v6477 = vcombine.high %v6451, %v6459
        %v6479 = vunpack.c.l.s4 1934713408
        %v6480 = vunpack.c.0.s8 %v6479
        %v6481 = vlaneseq
        %v6482 = vshrl.u32 %v6481, 7
        %v6483 = vsub.s32 %v6480, %v6482
        %v6484 = vrot.slane %v6476, %v6483
        %v6486 = vunpack.c.l.s4 1934713408
        %v6487 = vunpack.c.0.s8 %v6486
        %v6488 = vlaneseq
        %v6489 = vshrl.u32 %v6488, 7
        %v6490 = vsub.s32 %v6487, %v6489
        %v6491 = vrot.slane %v6477, %v6490
        %v6492 = vcombine.low %v6468, %v6484
        %v6493 = vcombine.high %v6468, %v6484
        %v6494 = vcombine.low %v6475, %v6491
        %v6495 = vcombine.high %v6475, %v6491
        %v6496 = vcombine.low %v6264, %v6271
        %v6498 = vunpack.c.l.s4 1983009808
        %v6499 = vunpack.c.0.s8 %v6498
        %v6500 = vlaneseq
        %v6501 = vshrl.u32 %v6500, 7
        %v6502 = vsub.s32 %v6499, %v6501
        %v6503 = vrot.slane %v6496, %v6502
        %v6504 = vcombine.low %v6288, %v6289
        %v6506 = vunpack.c.l.s4 1983009808
        %v6507 = vunpack.c.0.s8 %v6506
        %v6508 = vlaneseq
        %v6509 = vshrl.u32 %v6508, 7
        %v6510 = vsub.s32 %v6507, %v6509
        %v6511 = vrot.slane %v6504, %v6510
        %v6512 = vcombine.low %v6280, %v6287
        %v6514 = vunpack.c.l.s4 1983009808
        %v6515 = vunpack.c.0.s8 %v6514
        %v6516 = vlaneseq
        %v6517 = vshrl.u32 %v6516, 7
        %v6518 = vsub.s32 %v6515, %v6517
        %v6519 = vrot.slane %v6512, %v6518
        %v6520 = vcombine.low %v6290, %v6291
        %v6522 = vunpack.c.l.s4 1983009808
        %v6523 = vunpack.c.0.s8 %v6522
        %v6524 = vlaneseq
        %v6525 = vshrl.u32 %v6524, 7
        %v6526 = vsub.s32 %v6523, %v6525
        %v6527 = vrot.slane %v6520, %v6526
        %v6528 = vcombine.low %v6503, %v6511
        %v6529 = vcombine.high %v6503, %v6511
        %v6531 = vunpack.c.l.s4 1934713408
        %v6532 = vunpack.c.0.s8 %v6531
        %v6533 = vlaneseq
        %v6534 = vshrl.u32 %v6533, 7
        %v6535 = vsub.s32 %v6532, %v6534
        %v6536 = vrot.slane %v6528, %v6535
        %v6538 = vunpack.c.l.s4 1934713408
        %v6539 = vunpack.c.0.s8 %v6538
        %v6540 = vlaneseq
        %v6541 = vshrl.u32 %v6540, 7
        %v6542 = vsub.s32 %v6539, %v6541
        %v6543 = vrot.slane %v6529, %v6542
        %v6544 = vcombine.low %v6519, %v6527
        %v6545 = vcombine.high %v6519, %v6527
        %v6547 = vunpack.c.l.s4 1934713408
        %v6548 = vunpack.c.0.s8 %v6547
        %v6549 = vlaneseq
        %v6550 = vshrl.u32 %v6549, 7
        %v6551 = vsub.s32 %v6548, %v6550
        %v6552 = vrot.slane %v6544, %v6551
        %v6554 = vunpack.c.l.s4 1934713408
        %v6555 = vunpack.c.0.s8 %v6554
        %v6556 = vlaneseq
        %v6557 = vshrl.u32 %v6556, 7
        %v6558 = vsub.s32 %v6555, %v6557
        %v6559 = vrot.slane %v6545, %v6558
        %v6560 = vcombine.low %v6536, %v6552
        %v6561 = vcombine.high %v6536, %v6552
        %v6562 = vcombine.low %v6543, %v6559
        %v6563 = vcombine.high %v6543, %v6559
        %v6564 = vcombine.low %v6332, %v6339
        %v6566 = vunpack.c.l.s4 1983009808
        %v6567 = vunpack.c.0.s8 %v6566
        %v6568 = vlaneseq
        %v6569 = vshrl.u32 %v6568, 7
        %v6570 = vsub.s32 %v6567, %v6569
        %v6571 = vrot.slane %v6564, %v6570
        %v6572 = vcombine.low %v6356, %v6357
        %v6574 = vunpack.c.l.s4 1983009808
        %v6575 = vunpack.c.0.s8 %v6574
        %v6576 = vlaneseq
        %v6577 = vshrl.u32 %v6576, 7
        %v6578 = vsub.s32 %v6575, %v6577
        %v6579 = vrot.slane %v6572, %v6578
        %v6580 = vcombine.low %v6348, %v6355
        %v6582 = vunpack.c.l.s4 1983009808
        %v6583 = vunpack.c.0.s8 %v6582
        %v6584 = vlaneseq
        %v6585 = vshrl.u32 %v6584, 7
        %v6586 = vsub.s32 %v6583, %v6585
        %v6587 = vrot.slane %v6580, %v6586
        %v6588 = vcombine.low %v6358, %v6359
        %v6590 = vunpack.c.l.s4 1983009808
        %v6591 = vunpack.c.0.s8 %v6590
        %v6592 = vlaneseq
        %v6593 = vshrl.u32 %v6592, 7
        %v6594 = vsub.s32 %v6591, %v6593
        %v6595 = vrot.slane %v6588, %v6594
        %v6596 = vcombine.low %v6571, %v6579
        %v6597 = vcombine.high %v6571, %v6579
        %v6599 = vunpack.c.l.s4 1934713408
        %v6600 = vunpack.c.0.s8 %v6599
        %v6601 = vlaneseq
        %v6602 = vshrl.u32 %v6601, 7
        %v6603 = vsub.s32 %v6600, %v6602
        %v6604 = vrot.slane %v6596, %v6603
        %v6606 = vunpack.c.l.s4 1934713408
        %v6607 = vunpack.c.0.s8 %v6606
        %v6608 = vlaneseq
        %v6609 = vshrl.u32 %v6608, 7
        %v6610 = vsub.s32 %v6607, %v6609
        %v6611 = vrot.slane %v6597, %v6610
        %v6612 = vcombine.low %v6587, %v6595
        %v6613 = vcombine.high %v6587, %v6595
        %v6615 = vunpack.c.l.s4 1934713408
        %v6616 = vunpack.c.0.s8 %v6615
        %v6617 = vlaneseq
        %v6618 = vshrl.u32 %v6617, 7
        %v6619 = vsub.s32 %v6616, %v6618
        %v6620 = vrot.slane %v6612, %v6619
        %v6622 = vunpack.c.l.s4 1934713408
        %v6623 = vunpack.c.0.s8 %v6622
        %v6624 = vlaneseq
        %v6625 = vshrl.u32 %v6624, 7
        %v6626 = vsub.s32 %v6623, %v6625
        %v6627 = vrot.slane %v6613, %v6626
        %v6628 = vcombine.low %v6604, %v6620
        %v6629 = vcombine.high %v6604, %v6620
        %v6630 = vcombine.low %v6611, %v6627
        %v6631 = vcombine.high %v6611, %v6627
        %6636 = vrot.lane.b32.xlu0 %v6425, 32
        %v6637 = vpop.permute.xlu0 %6636
        %6638 = vrot.lane.b32.xlu0 %v6493, 32
        %v6639 = vpop.permute.xlu0 %6638
        %6640 = vrot.lane.b32.xlu0 %v6561, 32
        %v6641 = vpop.permute.xlu0 %6640
        %6642 = vrot.lane.b32.xlu0 %v6629, 32
        %v6643 = vpop.permute.xlu0 %6642
        %6652 = vrot.lane.b32.xlu0 %v6426, 64
        %v6653 = vpop.permute.xlu0 %6652
        %6654 = vrot.lane.b32.xlu0 %v6494, 64
        %v6655 = vpop.permute.xlu0 %6654
        %6656 = vrot.lane.b32.xlu0 %v6562, 64
        %v6657 = vpop.permute.xlu0 %6656
        %6658 = vrot.lane.b32.xlu0 %v6630, 64
        %v6659 = vpop.permute.xlu0 %6658
        %6668 = vrot.lane.b32.xlu0 %v6427, 96
        %v6669 = vpop.permute.xlu0 %6668
        %6670 = vrot.lane.b32.xlu0 %v6495, 96
        %v6671 = vpop.permute.xlu0 %6670
        %6672 = vrot.lane.b32.xlu0 %v6563, 96
        %v6673 = vpop.permute.xlu0 %6672
        %6674 = vrot.lane.b32.xlu0 %v6631, 96
        %v6675 = vpop.permute.xlu0 %6674
        %vm6680 = vcmask 261120
        %v6681 = vsel %vm6680, %v6424, %v6637
        %v6682 = vsel %vm6680, %v6492, %v6639
        %v6683 = vsel %vm6680, %v6560, %v6641
        %v6684 = vsel %vm6680, %v6628, %v6643
        %vm6685 = vcmask 523264
        %v6686 = vsel %vm6685, %v6681, %v6653
        %v6687 = vsel %vm6685, %v6682, %v6655
        %v6688 = vsel %vm6685, %v6683, %v6657
        %v6689 = vsel %vm6685, %v6684, %v6659
        %vm6690 = vcmask 785408
        %v6691 = vsel %vm6690, %v6686, %v6669
        %v6692 = vsel %vm6690, %v6687, %v6671
        %v6693 = vsel %vm6690, %v6688, %v6673
        %v6694 = vsel %vm6690, %v6689, %v6675
        %v6695 = vpack.c.bf16 %v6692, %v6691
        %v6696 = vpack.c.bf16 %v6694, %v6693
        %v6697 = vld [vmem:[%s488] sm:$0xf]
        %v6698 = vld [vmem:[%s488 + $0x4] sm:$0xf]
        %v6699 = vld [vmem:[%s488 + $0x8] sm:$0xf]
        %v6700 = vld [vmem:[%s488 + $0xc] sm:$0xf]
        %v6701 = vld [vmem:[%s488 + $0x10] sm:$0xf]
        %v6702 = vld [vmem:[%s488 + $0x14] sm:$0xf]
        %v6703 = vld [vmem:[%s488 + $0x18] sm:$0xf]
        %v6704 = vld [vmem:[%s488 + $0x1c] sm:$0xf]
        %v6705 = vld [vmem:[%s488 + $0x20] sm:$0xf]
        %v6706 = vld [vmem:[%s488 + $0x24] sm:$0xf]
        %v6707 = vld [vmem:[%s488 + $0x28] sm:$0xf]
        %v6708 = vld [vmem:[%s488 + $0x2c] sm:$0xf]
        %v6709 = vld [vmem:[%s488 + $0x30] sm:$0xf]
        %v6710 = vld [vmem:[%s488 + $0x34] sm:$0xf]
        %v6711 = vld [vmem:[%s488 + $0x38] sm:$0xf]
        %v6712 = vld [vmem:[%s488 + $0x3c] sm:$0xf]
        %v6729 = vunpack.c.l.b16 %v6697
        %v6730 = vunpack.c.l.b16 %v6698
        %v6731 = vunpack.c.l.b16 %v6699
        %v6732 = vunpack.c.l.b16 %v6700
        %v6733 = vunpack.c.l.b16 %v6701
        %v6734 = vunpack.c.l.b16 %v6702
        %v6735 = vunpack.c.l.b16 %v6703
        %v6736 = vunpack.c.l.b16 %v6704
        %v6737 = vunpack.c.l.b16 %v6705
        %v6738 = vunpack.c.l.b16 %v6706
        %v6739 = vunpack.c.l.b16 %v6707
        %v6740 = vunpack.c.l.b16 %v6708
        %v6741 = vunpack.c.l.b16 %v6709
        %v6742 = vunpack.c.l.b16 %v6710
        %v6743 = vunpack.c.l.b16 %v6711
        %v6744 = vunpack.c.l.b16 %v6712
        %v6745 = vpack.c.b16 %v6730, %v6729
        %v6746 = vpack.c.b16 %v6732, %v6731
        %v6747 = vpack.c.b16 %v6734, %v6733
        %v6748 = vpack.c.b16 %v6736, %v6735
        %v6749 = vpack.c.b16 %v6738, %v6737
        %v6750 = vpack.c.b16 %v6740, %v6739
        %v6751 = vpack.c.b16 %v6742, %v6741
        %v6752 = vpack.c.b16 %v6744, %v6743
        %6761 = vmatprep.subr.bf16.mxu0 0
        %6762 = vmatpush1.bf16.msra.mxu0 %v6745
        %6763 = vmatprep.subr.bf16.mxu0 0
        %6764 = vmatpush1.bf16.msra.mxu0 %v6746
        %6765 = vmatprep.subr.bf16.mxu0 0
        %6766 = vmatpush1.bf16.msra.mxu0 %v6747
        %6767 = vmatprep.subr.bf16.mxu0 0
        %6768 = vmatpush1.bf16.msra.mxu0 %v6748
        %6769 = vmatprep.subr.bf16.mxu0 0
        %6770 = vmatpush1.bf16.msra.mxu0 %v6749
        %6771 = vmatprep.subr.bf16.mxu0 0
        %6772 = vmatpush1.bf16.msra.mxu0 %v6750
        %6773 = vmatprep.subr.bf16.mxu0 0
        %6774 = vmatpush1.bf16.msra.mxu0 %v6751
        %6775 = vmatprep.subr.bf16.mxu0 0
        %6776 = vmatpush1.bf16.msra.mxu0 %v6752
        %6777 = vmatprep.subr.bf16.mxu0 0
        %6778 = vmatpush1.bf16.msra.mxu0 0
        %6779 = vmatprep.subr.bf16.mxu0 0
        %6780 = vmatpush1.bf16.msra.mxu0 0
        %6781 = vmatprep.subr.bf16.mxu0 0
        %6782 = vmatpush1.bf16.msra.mxu0 0
        %6783 = vmatprep.subr.bf16.mxu0 0
        %6784 = vmatpush1.bf16.msra.mxu0 0
        %6785 = vmatprep.subr.bf16.mxu0 0
        %6786 = vmatpush1.bf16.msra.mxu0 0
        %6787 = vmatprep.subr.bf16.mxu0 0
        %6788 = vmatpush1.bf16.msra.mxu0 0
        %6789 = vmatprep.subr.bf16.mxu0 0
        %6790 = vmatpush1.bf16.msra.mxu0 0
        %6791 = vmatprep.subr.bf16.mxu0 0
        %6792 = vmatpush1.bf16.msra.mxu0 0
        %6793 = vmatprep.mubr.bf16.mxu0 0
        %6794 = vmatmul.mubr.bf16.gmra.mrb[0].mxu0 %v6695
        %v6795 = vpop.f32.mrb[0].mxu0
        %v6796 = vadd.f32 0.0, %v6795
        %v6797 = vpop.f32.mrb[0].mxu0
        %v6798 = vpop.f32.mrb[0].mxu0
        %v6799 = vadd.f32 0.0, %v6798
        %v6800 = vpop.f32.mrb[0].mxu0
        %6801 = vmatprep.mubr.bf16.mxu0 0
        %6802 = vmatmul.mubr.bf16.gmra.mrb[0].mxu0 %v6696
        %v6803 = vpop.f32.mrb[0].mxu0
        %v6804 = vadd.f32 0.0, %v6803
        %v6805 = vpop.f32.mrb[0].mxu0
        %v6806 = vpop.f32.mrb[0].mxu0
        %v6807 = vadd.f32 0.0, %v6806
        %v6808 = vpop.f32.mrb[0].mxu0
        %6809 = vdwg.mxu0
        %v6810 = vadd.f32 %v510, %v6796
        %v6811 = vadd.f32 %v511, %v6799
        %v6812 = vadd.f32 %v512, %v6804
        %v6813 = vadd.f32 %v513, %v6807
        %v6814 = vld [vmem:[%s491] sm:$0x1]
        %v6815 = vmul.f32 %v6810, %v6810
        %v6816 = vmul.f32 %v6811, %v6811
        %v6817 = vmul.f32 %v6812, %v6812
        %v6818 = vmul.f32 %v6813, %v6813
        %6819 = vadd.xlane.f32.xlu0 %v6815
        %v6820 = vpop.xlane.xlu0 %6819
        %6821 = vadd.xlane.f32.xlu0 %v6816
        %v6822 = vpop.xlane.xlu0 %6821
        %6823 = vadd.xlane.f32.xlu0 %v6817
        %v6824 = vpop.xlane.xlu0 %6823
        %6825 = vadd.xlane.f32.xlu0 %v6818
        %v6826 = vpop.xlane.xlu0 %6825
        %v6827 = vmul.f32 %v6820, %v527
        %v6828 = vmul.f32 %v6822, %v527
        %v6829 = vmul.f32 %v6824, %v527
        %v6830 = vmul.f32 %v6826, %v527
        %v6831 = vadd.f32 %v6827, 1e-06
        %v6832 = vadd.f32 %v6828, 1e-06
        %v6833 = vadd.f32 %v6829, 1e-06
        %v6834 = vadd.f32 %v6830, 1e-06
        %v6835 = vrsqrt.pop %v6831
        %v6836 = vrsqrt.pop %v6832
        %v6837 = vrsqrt.pop %v6833
        %v6838 = vrsqrt.pop %v6834
        %v6839 = vmul.f32 %v6810, %v6835
        %v6840 = vmul.f32 %v6811, %v6836
        %v6841 = vmul.f32 %v6812, %v6837
        %v6842 = vmul.f32 %v6813, %v6838
        %v6844 = vlaneseq
        %v6845 = vshrl.u32 %v6844, 7
        %v6846 = vsub.s32 0, %v6845
        %v6847 = vrot.slane %v6814, %v6846
        %v6849 = vmul.f32 %v6839, %v6847
        %v6850 = vmul.f32 %v6840, %v6847
        %v6851 = vmul.f32 %v6841, %v6847
        %v6852 = vmul.f32 %v6842, %v6847
        %v6853 = vpack.c.bf16 %v6850, %v6849
        %v6854 = vpack.c.bf16 %v6852, %v6851
        %v6855 = vld [vmem:[%s496] sm:$0xff]
        %v6856 = vld [vmem:[%s496 + $0x8] sm:$0xff]
        %v6857 = vld [vmem:[%s496 + $0x10] sm:$0xff]
        %v6858 = vld [vmem:[%s496 + $0x18] sm:$0xff]
        %v6859 = vld [vmem:[%s496 + $0x20] sm:$0xff]
        %v6860 = vld [vmem:[%s496 + $0x28] sm:$0xff]
        %v6861 = vld [vmem:[%s496 + $0x30] sm:$0xff]
        %v6862 = vld [vmem:[%s496 + $0x38] sm:$0xff]
        %v6863 = vld [vmem:[%s496 + $0x40] sm:$0xff]
        %v6864 = vld [vmem:[%s496 + $0x48] sm:$0xff]
        %v6865 = vld [vmem:[%s496 + $0x50] sm:$0xff]
        %v6866 = vld [vmem:[%s496 + $0x58] sm:$0xff]
        %v6867 = vld [vmem:[%s496 + $0x60] sm:$0xff]
        %v6868 = vld [vmem:[%s496 + $0x68] sm:$0xff]
        %v6869 = vld [vmem:[%s496 + $0x70] sm:$0xff]
        %v6870 = vld [vmem:[%s496 + $0x78] sm:$0xff]
        %v6871 = vld [vmem:[%s496 + $0x80] sm:$0xff]
        %v6872 = vld [vmem:[%s496 + $0x88] sm:$0xff]
        %v6873 = vld [vmem:[%s496 + $0x90] sm:$0xff]
        %v6874 = vld [vmem:[%s496 + $0x98] sm:$0xff]
        %v6875 = vld [vmem:[%s496 + $0xa0] sm:$0xff]
        %v6876 = vld [vmem:[%s496 + $0xa8] sm:$0xff]
        %v6877 = vld [vmem:[%s496 + $0xb0] sm:$0xff]
        %v6878 = vld [vmem:[%s496 + $0xb8] sm:$0xff]
        %v6879 = vld [vmem:[%s496 + $0xc0] sm:$0xff]
        %v6880 = vld [vmem:[%s496 + $0xc8] sm:$0xff]
        %v6881 = vld [vmem:[%s496 + $0xd0] sm:$0xff]
        %v6882 = vld [vmem:[%s496 + $0xd8] sm:$0xff]
        %v6883 = vld [vmem:[%s496 + $0xe0] sm:$0xff]
        %v6884 = vld [vmem:[%s496 + $0xe8] sm:$0xff]
        %v6885 = vld [vmem:[%s496 + $0xf0] sm:$0xff]
        %v6886 = vld [vmem:[%s496 + $0xf8] sm:$0xff]
        %v6919 = vunpack.c.l.b16 %v6855
        %v6920 = vunpack.c.h.b16 %v6855
        %v6921 = vunpack.c.l.b16 %v6856
        %v6922 = vunpack.c.h.b16 %v6856
        %v6923 = vunpack.c.l.b16 %v6857
        %v6924 = vunpack.c.h.b16 %v6857
        %v6925 = vunpack.c.l.b16 %v6858
        %v6926 = vunpack.c.h.b16 %v6858
        %v6927 = vunpack.c.l.b16 %v6859
        %v6928 = vunpack.c.h.b16 %v6859
        %v6929 = vunpack.c.l.b16 %v6860
        %v6930 = vunpack.c.h.b16 %v6860
        %v6931 = vunpack.c.l.b16 %v6861
        %v6932 = vunpack.c.h.b16 %v6861
        %v6933 = vunpack.c.l.b16 %v6862
        %v6934 = vunpack.c.h.b16 %v6862
        %v6935 = vunpack.c.l.b16 %v6863
        %v6936 = vunpack.c.h.b16 %v6863
        %v6937 = vunpack.c.l.b16 %v6864
        %v6938 = vunpack.c.h.b16 %v6864
        %v6939 = vunpack.c.l.b16 %v6865
        %v6940 = vunpack.c.h.b16 %v6865
        %v6941 = vunpack.c.l.b16 %v6866
        %v6942 = vunpack.c.h.b16 %v6866
        %v6943 = vunpack.c.l.b16 %v6867
        %v6944 = vunpack.c.h.b16 %v6867
        %v6945 = vunpack.c.l.b16 %v6868
        %v6946 = vunpack.c.h.b16 %v6868
        %v6947 = vunpack.c.l.b16 %v6869
        %v6948 = vunpack.c.h.b16 %v6869
        %v6949 = vunpack.c.l.b16 %v6870
        %v6950 = vunpack.c.h.b16 %v6870
        %v6951 = vunpack.c.l.b16 %v6871
        %v6952 = vunpack.c.h.b16 %v6871
        %v6953 = vunpack.c.l.b16 %v6872
        %v6954 = vunpack.c.h.b16 %v6872
        %v6955 = vunpack.c.l.b16 %v6873
        %v6956 = vunpack.c.h.b16 %v6873
        %v6957 = vunpack.c.l.b16 %v6874
        %v6958 = vunpack.c.h.b16 %v6874
        %v6959 = vunpack.c.l.b16 %v6875
        %v6960 = vunpack.c.h.b16 %v6875
        %v6961 = vunpack.c.l.b16 %v6876
        %v6962 = vunpack.c.h.b16 %v6876
        %v6963 = vunpack.c.l.b16 %v6877
        %v6964 = vunpack.c.h.b16 %v6877
        %v6965 = vunpack.c.l.b16 %v6878
        %v6966 = vunpack.c.h.b16 %v6878
        %v6967 = vunpack.c.l.b16 %v6879
        %v6968 = vunpack.c.h.b16 %v6879
        %v6969 = vunpack.c.l.b16 %v6880
        %v6970 = vunpack.c.h.b16 %v6880
        %v6971 = vunpack.c.l.b16 %v6881
        %v6972 = vunpack.c.h.b16 %v6881
        %v6973 = vunpack.c.l.b16 %v6882
        %v6974 = vunpack.c.h.b16 %v6882
        %v6975 = vunpack.c.l.b16 %v6883
        %v6976 = vunpack.c.h.b16 %v6883
        %v6977 = vunpack.c.l.b16 %v6884
        %v6978 = vunpack.c.h.b16 %v6884
        %v6979 = vunpack.c.l.b16 %v6885
        %v6980 = vunpack.c.h.b16 %v6885
        %v6981 = vunpack.c.l.b16 %v6886
        %v6982 = vunpack.c.h.b16 %v6886
        %v6983 = vpack.c.b16 %v6923, %v6919
        %v6984 = vpack.c.b16 %v6924, %v6920
        %v6985 = vpack.c.b16 %v6925, %v6921
        %v6986 = vpack.c.b16 %v6926, %v6922
        %v6987 = vpack.c.b16 %v6931, %v6927
        %v6988 = vpack.c.b16 %v6932, %v6928
        %v6989 = vpack.c.b16 %v6933, %v6929
        %v6990 = vpack.c.b16 %v6934, %v6930
        %v6991 = vpack.c.b16 %v6939, %v6935
        %v6992 = vpack.c.b16 %v6940, %v6936
        %v6993 = vpack.c.b16 %v6941, %v6937
        %v6994 = vpack.c.b16 %v6942, %v6938
        %v6995 = vpack.c.b16 %v6947, %v6943
        %v6996 = vpack.c.b16 %v6948, %v6944
        %v6997 = vpack.c.b16 %v6949, %v6945
        %v6998 = vpack.c.b16 %v6950, %v6946
        %v6999 = vpack.c.b16 %v6955, %v6951
        %v7000 = vpack.c.b16 %v6956, %v6952
        %v7001 = vpack.c.b16 %v6957, %v6953
        %v7002 = vpack.c.b16 %v6958, %v6954
        %v7003 = vpack.c.b16 %v6963, %v6959
        %v7004 = vpack.c.b16 %v6964, %v6960
        %v7005 = vpack.c.b16 %v6965, %v6961
        %v7006 = vpack.c.b16 %v6966, %v6962
        %v7007 = vpack.c.b16 %v6971, %v6967
        %v7008 = vpack.c.b16 %v6972, %v6968
        %v7009 = vpack.c.b16 %v6973, %v6969
        %v7010 = vpack.c.b16 %v6974, %v6970
        %v7011 = vpack.c.b16 %v6979, %v6975
        %v7012 = vpack.c.b16 %v6980, %v6976
        %v7013 = vpack.c.b16 %v6981, %v6977
        %v7014 = vpack.c.b16 %v6982, %v6978
        %7047 = vmatprep.subr.bf16.mxu0 %v6984
        %7048 = vmatpush1.bf16.msra.mxu0 %v6983
        %7049 = vmatprep.subr.bf16.mxu0 %v6988
        %7050 = vmatpush1.bf16.msra.mxu0 %v6987
        %7051 = vmatprep.subr.bf16.mxu0 %v6992
        %7052 = vmatpush1.bf16.msra.mxu0 %v6991
        %7053 = vmatprep.subr.bf16.mxu0 %v6996
        %7054 = vmatpush1.bf16.msra.mxu0 %v6995
        %7055 = vmatprep.subr.bf16.mxu0 %v7000
        %7056 = vmatpush1.bf16.msra.mxu0 %v6999
        %7057 = vmatprep.subr.bf16.mxu0 %v7004
        %7058 = vmatpush1.bf16.msra.mxu0 %v7003
        %7059 = vmatprep.subr.bf16.mxu0 %v7008
        %7060 = vmatpush1.bf16.msra.mxu0 %v7007
        %7061 = vmatprep.subr.bf16.mxu0 %v7012
        %7062 = vmatpush1.bf16.msra.mxu0 %v7011
        %7063 = vmatprep.subr.bf16.mxu0 0
        %7064 = vmatpush1.bf16.msra.mxu0 0
        %7065 = vmatprep.subr.bf16.mxu0 0
        %7066 = vmatpush1.bf16.msra.mxu0 0
        %7067 = vmatprep.subr.bf16.mxu0 0
        %7068 = vmatpush1.bf16.msra.mxu0 0
        %7069 = vmatprep.subr.bf16.mxu0 0
        %7070 = vmatpush1.bf16.msra.mxu0 0
        %7071 = vmatprep.subr.bf16.mxu0 0
        %7072 = vmatpush1.bf16.msra.mxu0 0
        %7073 = vmatprep.subr.bf16.mxu0 0
        %7074 = vmatpush1.bf16.msra.mxu0 0
        %7075 = vmatprep.subr.bf16.mxu0 0
        %7076 = vmatpush1.bf16.msra.mxu0 0
        %7077 = vmatprep.subr.bf16.mxu0 0
        %7078 = vmatpush1.bf16.msra.mxu0 0
        %7079 = vmatprep.mubr.bf16.mxu0 0
        %7080 = vmatmul.mubr.bf16.gmra.mrb[0].mxu0 %v6853
        %v7081 = vpop.f32.mrb[0].mxu0
        %v7082 = vadd.f32 0.0, %v7081
        %v7083 = vpop.f32.mrb[0].mxu0
        %v7084 = vadd.f32 0.0, %v7083
        %v7085 = vpop.f32.mrb[0].mxu0
        %v7086 = vadd.f32 0.0, %v7085
        %v7087 = vpop.f32.mrb[0].mxu0
        %v7088 = vadd.f32 0.0, %v7087
        %7089 = vmatprep.mubr.bf16.mxu0 0
        %7090 = vmatmul.mubr.bf16.gmra.mrb[0].mxu0 %v6854
        %v7091 = vpop.f32.mrb[0].mxu0
        %v7092 = vadd.f32 0.0, %v7091
        %v7093 = vpop.f32.mrb[0].mxu0
        %v7094 = vadd.f32 0.0, %v7093
        %v7095 = vpop.f32.mrb[0].mxu0
        %v7096 = vadd.f32 0.0, %v7095
        %v7097 = vpop.f32.mrb[0].mxu0
        %v7098 = vadd.f32 0.0, %v7097
        %7099 = vdwg.mxu0
        %7100 = vmatprep.subr.bf16.mxu0 %v6986
        %7101 = vmatpush1.bf16.msra.mxu0 %v6985
        %7102 = vmatprep.subr.bf16.mxu0 %v6990
        %7103 = vmatpush1.bf16.msra.mxu0 %v6989
        %7104 = vmatprep.subr.bf16.mxu0 %v6994
        %7105 = vmatpush1.bf16.msra.mxu0 %v6993
        %7106 = vmatprep.subr.bf16.mxu0 %v6998
        %7107 = vmatpush1.bf16.msra.mxu0 %v6997
        %7108 = vmatprep.subr.bf16.mxu0 %v7002
        %7109 = vmatpush1.bf16.msra.mxu0 %v7001
        %7110 = vmatprep.subr.bf16.mxu0 %v7006
        %7111 = vmatpush1.bf16.msra.mxu0 %v7005
        %7112 = vmatprep.subr.bf16.mxu0 %v7010
        %7113 = vmatpush1.bf16.msra.mxu0 %v7009
        %7114 = vmatprep.subr.bf16.mxu0 %v7014
        %7115 = vmatpush1.bf16.msra.mxu0 %v7013
        %7116 = vmatprep.subr.bf16.mxu0 0
        %7117 = vmatpush1.bf16.msra.mxu0 0
        %7118 = vmatprep.subr.bf16.mxu0 0
        %7119 = vmatpush1.bf16.msra.mxu0 0
        %7120 = vmatprep.subr.bf16.mxu0 0
        %7121 = vmatpush1.bf16.msra.mxu0 0
        %7122 = vmatprep.subr.bf16.mxu0 0
        %7123 = vmatpush1.bf16.msra.mxu0 0
        %7124 = vmatprep.subr.bf16.mxu0 0
        %7125 = vmatpush1.bf16.msra.mxu0 0
        %7126 = vmatprep.subr.bf16.mxu0 0
        %7127 = vmatpush1.bf16.msra.mxu0 0
        %7128 = vmatprep.subr.bf16.mxu0 0
        %7129 = vmatpush1.bf16.msra.mxu0 0
        %7130 = vmatprep.subr.bf16.mxu0 0
        %7131 = vmatpush1.bf16.msra.mxu0 0
        %7132 = vmatprep.mubr.bf16.mxu0 0
        %7133 = vmatmul.mubr.bf16.gmra.mrb[0].mxu0 %v6853
        %v7134 = vpop.f32.mrb[0].mxu0
        %v7135 = vadd.f32 0.0, %v7134
        %v7136 = vpop.f32.mrb[0].mxu0
        %v7137 = vadd.f32 0.0, %v7136
        %v7138 = vpop.f32.mrb[0].mxu0
        %v7139 = vadd.f32 0.0, %v7138
        %v7140 = vpop.f32.mrb[0].mxu0
        %v7141 = vadd.f32 0.0, %v7140
        %7142 = vmatprep.mubr.bf16.mxu0 0
        %7143 = vmatmul.mubr.bf16.gmra.mrb[0].mxu0 %v6854
        %v7144 = vpop.f32.mrb[0].mxu0
        %v7145 = vadd.f32 0.0, %v7144
        %v7146 = vpop.f32.mrb[0].mxu0
        %v7147 = vadd.f32 0.0, %v7146
        %v7148 = vpop.f32.mrb[0].mxu0
        %v7149 = vadd.f32 0.0, %v7148
        %v7150 = vpop.f32.mrb[0].mxu0
        %v7151 = vadd.f32 0.0, %v7150
        %7152 = vdwg.mxu0
        %v7153 = vxor.u32 %v7082, 2147483648
        %v7154 = vxor.u32 %v7084, 2147483648
        %v7155 = vxor.u32 %v7086, 2147483648
        %v7156 = vxor.u32 %v7088, 2147483648
        %v7157 = vxor.u32 %v7092, 2147483648
        %v7158 = vxor.u32 %v7094, 2147483648
        %v7159 = vxor.u32 %v7096, 2147483648
        %v7160 = vxor.u32 %v7098, 2147483648
        %v7161 = vmul.f32 %v7153, 1.442695
        %v7162 = vpow.pop %v7161
        %v7163 = vmul.f32 %v7154, 1.442695
        %v7164 = vpow.pop %v7163
        %v7165 = vmul.f32 %v7155, 1.442695
        %v7166 = vpow.pop %v7165
        %v7167 = vmul.f32 %v7156, 1.442695
        %v7168 = vpow.pop %v7167
        %v7169 = vmul.f32 %v7157, 1.442695
        %v7170 = vpow.pop %v7169
        %v7171 = vmul.f32 %v7158, 1.442695
        %v7172 = vpow.pop %v7171
        %v7173 = vmul.f32 %v7159, 1.442695
        %v7174 = vpow.pop %v7173
        %v7175 = vmul.f32 %v7160, 1.442695
        %v7176 = vpow.pop %v7175
        %v7177 = vadd.f32 %v7162, 1.0
        %v7178 = vadd.f32 %v7164, 1.0
        %v7179 = vadd.f32 %v7166, 1.0
        %v7180 = vadd.f32 %v7168, 1.0
        %v7181 = vadd.f32 %v7170, 1.0
        %v7182 = vadd.f32 %v7172, 1.0
        %v7183 = vadd.f32 %v7174, 1.0
        %v7184 = vadd.f32 %v7176, 1.0
        %v7185 = vrcp.pop %v7177
        %v7186 = vmul.f32 1.0, %v7185
        %v7187 = vrcp.pop %v7178
        %v7188 = vmul.f32 1.0, %v7187
        %v7189 = vrcp.pop %v7179
        %v7190 = vmul.f32 1.0, %v7189
        %v7191 = vrcp.pop %v7180
        %v7192 = vmul.f32 1.0, %v7191
        %v7193 = vrcp.pop %v7181
        %v7194 = vmul.f32 1.0, %v7193
        %v7195 = vrcp.pop %v7182
        %v7196 = vmul.f32 1.0, %v7195
        %v7197 = vrcp.pop %v7183
        %v7198 = vmul.f32 1.0, %v7197
        %v7199 = vrcp.pop %v7184
        %v7200 = vmul.f32 1.0, %v7199
        %v7201 = vmul.f32 %v7082, %v7186
        %v7202 = vmul.f32 %v7084, %v7188
        %v7203 = vmul.f32 %v7086, %v7190
        %v7204 = vmul.f32 %v7088, %v7192
        %v7205 = vmul.f32 %v7092, %v7194
        %v7206 = vmul.f32 %v7094, %v7196
        %v7207 = vmul.f32 %v7096, %v7198
        %v7208 = vmul.f32 %v7098, %v7200
        %v7209 = vmul.f32 %v7201, %v7135
        %v7210 = vmul.f32 %v7202, %v7137
        %v7211 = vmul.f32 %v7203, %v7139
        %v7212 = vmul.f32 %v7204, %v7141
        %v7213 = vmul.f32 %v7205, %v7145
        %v7214 = vmul.f32 %v7206, %v7147
        %v7215 = vmul.f32 %v7207, %v7149
        %v7216 = vmul.f32 %v7208, %v7151
        %v7217 = vpack.c.bf16 %v7211, %v7209
        %v7218 = vpack.c.bf16 %v7212, %v7210
        %v7219 = vpack.c.bf16 %v7215, %v7213
        %v7220 = vpack.c.bf16 %v7216, %v7214
        %v7221 = vld [vmem:[%s413] sm:$0xf]
        %v7222 = vld [vmem:[%s413 + $0x4] sm:$0xf]
        %v7223 = vld [vmem:[%s413 + $0x8] sm:$0xf]
        %v7224 = vld [vmem:[%s413 + $0xc] sm:$0xf]
        %v7225 = vld [vmem:[%s413 + $0x10] sm:$0xf]
        %v7226 = vld [vmem:[%s413 + $0x14] sm:$0xf]
        %v7227 = vld [vmem:[%s413 + $0x18] sm:$0xf]
        %v7228 = vld [vmem:[%s413 + $0x1c] sm:$0xf]
        %v7229 = vld [vmem:[%s413 + $0x20] sm:$0xf]
        %v7230 = vld [vmem:[%s413 + $0x24] sm:$0xf]
        %v7231 = vld [vmem:[%s413 + $0x28] sm:$0xf]
        %v7232 = vld [vmem:[%s413 + $0x2c] sm:$0xf]
        %v7233 = vld [vmem:[%s413 + $0x30] sm:$0xf]
        %v7234 = vld [vmem:[%s413 + $0x34] sm:$0xf]
        %v7235 = vld [vmem:[%s413 + $0x38] sm:$0xf]
        %v7236 = vld [vmem:[%s413 + $0x3c] sm:$0xf]
        %v7237 = vld [vmem:[%s413 + $0x40] sm:$0xf]
        %v7238 = vld [vmem:[%s413 + $0x44] sm:$0xf]
        %v7239 = vld [vmem:[%s413 + $0x48] sm:$0xf]
        %v7240 = vld [vmem:[%s413 + $0x4c] sm:$0xf]
        %v7241 = vld [vmem:[%s413 + $0x50] sm:$0xf]
        %v7242 = vld [vmem:[%s413 + $0x54] sm:$0xf]
        %v7243 = vld [vmem:[%s413 + $0x58] sm:$0xf]
        %v7244 = vld [vmem:[%s413 + $0x5c] sm:$0xf]
        %v7245 = vld [vmem:[%s413 + $0x60] sm:$0xf]
        %v7246 = vld [vmem:[%s413 + $0x64] sm:$0xf]
        %v7247 = vld [vmem:[%s413 + $0x68] sm:$0xf]
        %v7248 = vld [vmem:[%s413 + $0x6c] sm:$0xf]
        %v7249 = vld [vmem:[%s413 + $0x70] sm:$0xf]
        %v7250 = vld [vmem:[%s413 + $0x74] sm:$0xf]
        %v7251 = vld [vmem:[%s413 + $0x78] sm:$0xf]
        %v7252 = vld [vmem:[%s413 + $0x7c] sm:$0xf]
        %v7285 = vunpack.c.l.b16 %v7221
        %v7286 = vunpack.c.l.b16 %v7222
        %v7287 = vunpack.c.l.b16 %v7223
        %v7288 = vunpack.c.l.b16 %v7224
        %v7289 = vunpack.c.l.b16 %v7225
        %v7290 = vunpack.c.l.b16 %v7226
        %v7291 = vunpack.c.l.b16 %v7227
        %v7292 = vunpack.c.l.b16 %v7228
        %v7293 = vunpack.c.l.b16 %v7229
        %v7294 = vunpack.c.l.b16 %v7230
        %v7295 = vunpack.c.l.b16 %v7231
        %v7296 = vunpack.c.l.b16 %v7232
        %v7297 = vunpack.c.l.b16 %v7233
        %v7298 = vunpack.c.l.b16 %v7234
        %v7299 = vunpack.c.l.b16 %v7235
        %v7300 = vunpack.c.l.b16 %v7236
        %v7301 = vunpack.c.l.b16 %v7237
        %v7302 = vunpack.c.l.b16 %v7238
        %v7303 = vunpack.c.l.b16 %v7239
        %v7304 = vunpack.c.l.b16 %v7240
        %v7305 = vunpack.c.l.b16 %v7241
        %v7306 = vunpack.c.l.b16 %v7242
        %v7307 = vunpack.c.l.b16 %v7243
        %v7308 = vunpack.c.l.b16 %v7244
        %v7309 = vunpack.c.l.b16 %v7245
        %v7310 = vunpack.c.l.b16 %v7246
        %v7311 = vunpack.c.l.b16 %v7247
        %v7312 = vunpack.c.l.b16 %v7248
        %v7313 = vunpack.c.l.b16 %v7249
        %v7314 = vunpack.c.l.b16 %v7250
        %v7315 = vunpack.c.l.b16 %v7251
        %v7316 = vunpack.c.l.b16 %v7252
        %v7317 = vpack.c.b16 %v7286, %v7285
        %v7318 = vpack.c.b16 %v7288, %v7287
        %v7319 = vpack.c.b16 %v7290, %v7289
        %v7320 = vpack.c.b16 %v7292, %v7291
        %v7321 = vpack.c.b16 %v7294, %v7293
        %v7322 = vpack.c.b16 %v7296, %v7295
        %v7323 = vpack.c.b16 %v7298, %v7297
        %v7324 = vpack.c.b16 %v7300, %v7299
        %v7325 = vpack.c.b16 %v7302, %v7301
        %v7326 = vpack.c.b16 %v7304, %v7303
        %v7327 = vpack.c.b16 %v7306, %v7305
        %v7328 = vpack.c.b16 %v7308, %v7307
        %v7329 = vpack.c.b16 %v7310, %v7309
        %v7330 = vpack.c.b16 %v7312, %v7311
        %v7331 = vpack.c.b16 %v7314, %v7313
        %v7332 = vpack.c.b16 %v7316, %v7315
        %7349 = vmatprep.subr.bf16.mxu0 0
        %7350 = vmatpush1.bf16.msra.mxu0 %v7317
        %7351 = vmatprep.subr.bf16.mxu0 0
        %7352 = vmatpush1.bf16.msra.mxu0 %v7318
        %7353 = vmatprep.subr.bf16.mxu0 0
        %7354 = vmatpush1.bf16.msra.mxu0 %v7319
        %7355 = vmatprep.subr.bf16.mxu0 0
        %7356 = vmatpush1.bf16.msra.mxu0 %v7320
        %7357 = vmatprep.subr.bf16.mxu0 0
        %7358 = vmatpush1.bf16.msra.mxu0 %v7321
        %7359 = vmatprep.subr.bf16.mxu0 0
        %7360 = vmatpush1.bf16.msra.mxu0 %v7322
        %7361 = vmatprep.subr.bf16.mxu0 0
        %7362 = vmatpush1.bf16.msra.mxu0 %v7323
        %7363 = vmatprep.subr.bf16.mxu0 0
        %7364 = vmatpush1.bf16.msra.mxu0 %v7324
        %7365 = vmatprep.subr.bf16.mxu0 0
        %7366 = vmatpush1.bf16.msra.mxu0 %v7325
        %7367 = vmatprep.subr.bf16.mxu0 0
        %7368 = vmatpush1.bf16.msra.mxu0 %v7326
        %7369 = vmatprep.subr.bf16.mxu0 0
        %7370 = vmatpush1.bf16.msra.mxu0 %v7327
        %7371 = vmatprep.subr.bf16.mxu0 0
        %7372 = vmatpush1.bf16.msra.mxu0 %v7328
        %7373 = vmatprep.subr.bf16.mxu0 0
        %7374 = vmatpush1.bf16.msra.mxu0 %v7329
        %7375 = vmatprep.subr.bf16.mxu0 0
        %7376 = vmatpush1.bf16.msra.mxu0 %v7330
        %7377 = vmatprep.subr.bf16.mxu0 0
        %7378 = vmatpush1.bf16.msra.mxu0 %v7331
        %7379 = vmatprep.subr.bf16.mxu0 0
        %7380 = vmatpush1.bf16.msra.mxu0 %v7332
        %7381 = vmatprep.mubr.bf16.mxu0 %v7218
        %7382 = vmatmul.mubr.bf16.gmra.mrb[0].mxu0 %v7217
        %v7383 = vpop.f32.mrb[0].mxu0
        %v7384 = vadd.f32 0.0, %v7383
        %v7385 = vpop.f32.mrb[0].mxu0
        %v7386 = vpop.f32.mrb[0].mxu0
        %v7387 = vadd.f32 0.0, %v7386
        %v7388 = vpop.f32.mrb[0].mxu0
        %7389 = vmatprep.mubr.bf16.mxu0 %v7220
        %7390 = vmatmul.mubr.bf16.gmra.mrb[0].mxu0 %v7219
        %v7391 = vpop.f32.mrb[0].mxu0
        %v7392 = vadd.f32 0.0, %v7391
        %v7393 = vpop.f32.mrb[0].mxu0
        %v7394 = vpop.f32.mrb[0].mxu0
        %v7395 = vadd.f32 0.0, %v7394
        %v7396 = vpop.f32.mrb[0].mxu0
        %7397 = vdwg.mxu0
        %v7398 = vadd.f32 %v6810, %v7384
        %v7399 = vadd.f32 %v6811, %v7387
        %v7400 = vadd.f32 %v6812, %v7392
        %v7401 = vadd.f32 %v6813, %v7395
        %7402 = vst [vmem:[%s11] sm:$0xff] %v7398
        %7403 = vst [vmem:[%s11 + $0x8] sm:$0xff] %v7399
        %7404 = vst [vmem:[%s11 + $0x10] sm:$0xff] %v7400
        %7405 = vst [vmem:[%s11 + $0x18] sm:$0xff] %v7401
        // Predicated region
        $region73: #{forward.2} parent=63 // pred_check
          %p7406 = pneg %p304
        $region74: #{forward.2} parent=63 // pred_check_branch
          %7408 = sbr.rel (%p7406) target = $region76
        $region75: #{forward.2} parent=63 // pred_region
          _
        $region76: #{forward.2} parent=63 // pred_fallthru
          _
        // Predicated region
        $region77: #{forward.2} parent=63 // pred_check
          %p7409 = pneg %p304
        $region78: #{forward.2} parent=63 // pred_check_branch
          %7411 = sbr.rel (%p7409) target = $region80
        $region79: #{forward.2} parent=63 // pred_region
          _
        $region80: #{forward.2} parent=63 // pred_fallthru
          _
      $region64: #{forward.2} parent=5 // pred_fallthru
        _
      %p7412 = scmp.le.s32.totalorder 2, %s20
      // Predicated region
      $region81: #{forward.2} parent=5 // pred_check
        %p7413 = pneg %p7412
      $region82: #{forward.2} parent=5 // pred_check_branch
        %7415 = sbr.rel (%p7413) target = $region84
      $region83: #{forward.2} parent=5 // pred_region
        %s7416 = ssub.s32 %s20, 2
      $region84: #{forward.2} parent=5 // pred_fallthru
        _
    $region6: #{forward.2} parent=1 // loop_footer
      %s24 = sadd.s32 1, %s20
    $region7: #{forward.2} parent=1 // loop_footer_branch
      %19 = sbr.rel target = $region3
    $region8: #{forward.2} parent=1 // loop_exit
      _
    %7417 = vsyncpa [#allocation3], 1
    %s7418 = scalar_lea.sflag [#allocation3], 1
    %7419 = vsyncpa %s7418, 1

</llo_original>
